<compile_context>
chip_gen: v6e
topology: v6e:2x2x1
jax: 0.10.0
libtpu: 0.0.40
codegen_flags: <defaults>
</compile_context>

<pallas_src>
import math

import jax
import jax.numpy as jnp
from jax import lax
from jax.experimental import pallas as pl
from jax.experimental.pallas import tpu as pltpu

K = 9            # depthwise kernel size
PAD = K // 2     # 'same' padding
TH = 8           # output row-strip height in stage 1 (== 2*PAD by design)
BN_EPS = 1e-5


# ----------------------------------------------------------------------------
# elementwise helpers (used inside kernels only)
# ----------------------------------------------------------------------------
def _erf(x):
    # Abramowitz & Stegun 7.1.26 rational approximation (abs err ~1.5e-7).
    # Exact f32 divide (not the approx EUP reciprocal) so GELU stays close to
    # torch's erf-based GELU; the exp is the expensive EUP op anyway.
    a1, a2, a3, a4, a5 = (0.254829592, -0.284496736, 1.421413741,
                          -1.453152027, 1.061405429)
    p = 0.3275911
    s = jnp.where(x >= 0.0, 1.0, -1.0)
    z = jnp.abs(x)
    t = 1.0 / (1.0 + p * z)
    poly = ((((a5 * t + a4) * t + a3) * t + a2) * t + a1) * t
    return s * (1.0 - poly * jnp.exp(-z * z))


def _gelu(x):
    # erf-based GELU, matching torch.nn.GELU() default
    return 0.5 * x * (1.0 + _erf(x * (1.0 / math.sqrt(2.0))))


def _pick_w_chunk(w):
    # Chunk the strip along W so one chunk's 81-tap accumulator stays in vregs.
    if w <= 16:
        return w
    for wc in range(16, 0, -1):
        if w % wc == 0:
            return wc
    return w


# ----------------------------------------------------------------------------
# Stage 1: depthwise 9x9 conv + bias + GELU (halo'd row strips) + BN1 stats
# ----------------------------------------------------------------------------
def dwconv_gelu_kernel(xa_ref, xb_ref, wdw_ref, bdw_ref,      # inputs
                       a1_ref, xc_ref, ps_ref, pss_ref,       # outputs
                       xs_ref):                               # VMEM scratch
    # xa_ref: (TH, Wp, Cp)     padded rows [h*TH,      h*TH+TH)
    # xb_ref: (2*PAD, Wp, Cp)  padded rows [h*TH+TH,   h*TH+TH+2*PAD)
    # wdw_ref: (K, K, Cp) depthwise taps;  bdw_ref: (1, Cp) bias
    # a1_ref: (TH, W, Cp) GELU(dwconv) strip;  xc_ref: (TH, W, Cp) central input
    # ps_ref / pss_ref: (TH, Cp) BN1 partial sum / sum-of-squares (over W)
    # xs_ref: (TH + 2*PAD, Wp, Cp) stitched halo'd input strip
    th, w, cp = a1_ref.shape

    # Stitch the two auto-pipelined blocks into one halo'd strip.
    xs_ref[0:th, :, :] = xa_ref[...]
    xs_ref[th:th + 2 * PAD, :, :] = xb_ref[...]

    # Central (spatially un-padded) window -> residual source for stage 2.
    xc_ref[...] = xs_ref[PAD:PAD + th, PAD:PAD + w, :]

    bias = bdw_ref[0].reshape(1, 1, cp)
    wc = _pick_w_chunk(w)
    ps = jnp.zeros((th, cp), jnp.float32)
    pss = jnp.zeros((th, cp), jnp.float32)
    for w0 in range(0, w, wc):
        acc = jnp.zeros((th, wc, cp), jnp.float32)
        for kh in range(K):                    # 81 taps, fully unrolled:
            for kw in range(K):                # direct ref loads, vreg accumulate
                tap = wdw_ref[kh, kw].reshape(1, 1, cp)
                acc = acc + xs_ref[kh:kh + th, w0 + kw:w0 + kw + wc, :] * tap
        a1c = _gelu(acc + bias)
        a1_ref[:, w0:w0 + wc, :] = a1c         # single store per chunk
        ps = ps + jnp.sum(a1c, axis=1)
        pss = pss + jnp.sum(a1c * a1c, axis=1)
    ps_ref[...] = ps
    pss_ref[...] = pss


# ----------------------------------------------------------------------------
# Stage 2: residual + BN1-apply + pointwise 1x1 (MXU) + GELU + BN2 stats
# ----------------------------------------------------------------------------
def resid_pw_gelu_kernel(x_ref, a1_ref, s1_ref, t1_ref, wpw_ref, bpw_ref,
                         a2_ref, ps_ref, pss_ref):
    # x_ref / a1_ref / a2_ref: (TR, Cp) row tiles of the flattened activations
    # s1/t1: (1, Cp) BN1 scale/shift;  wpw: (Cin, Cout);  bpw: (1, Cp)
    y = x_ref[...] + a1_ref[...] * s1_ref[...] + t1_ref[...]   # residual + BN1
    # TODO(synk): cast y / wpw to bf16 for the MXU (2-3x matmul throughput on
    # v6e/v7x) once a looser parity tolerance vs torch is acceptable.
    z = jnp.dot(y, wpw_ref[...], preferred_element_type=jnp.float32) + bpw_ref[...]
    a2 = _gelu(z)
    a2_ref[...] = a2

    tr, cp = a2.shape
    a2r = a2.reshape(tr // 8, 8, cp)           # fold rows, keep (8, lane) tiles
    ps_ref[...] = jnp.sum(a2r, axis=0)         # (8, Cp) BN2 partial stats
    pss_ref[...] = jnp.sum(a2r * a2r, axis=0)


# ----------------------------------------------------------------------------
# parameter init matching ConvMixerSubBlock._init_weights
# ----------------------------------------------------------------------------
def init_params(key, dim):
    k1, k2 = jax.random.split(key)
    # depthwise conv: torch weight (dim, 1, K, K), fan_out = K*K*dim // dim
    std_dw = math.sqrt(2.0 / (K * K * dim // dim))
    w_dw = jax.random.normal(k1, (dim, 1, K, K), jnp.float32) * std_dw
    # pointwise conv: torch weight (dim, dim, 1, 1), fan_out = dim
    std_pw = math.sqrt(2.0 / dim)
    w_pw = jax.random.normal(k2, (dim, dim), jnp.float32) * std_pw   # (Cout, Cin)
    return dict(
        w_dw=w_dw, b_dw=jnp.zeros((dim,), jnp.float32),
        w_pw=w_pw, b_pw=jnp.zeros((dim,), jnp.float32),
        g1=jnp.ones((dim,), jnp.float32), b1=jnp.zeros((dim,), jnp.float32),
        g2=jnp.ones((dim,), jnp.float32), b2=jnp.zeros((dim,), jnp.float32),
    )


# ----------------------------------------------------------------------------
# wrapper helpers
# ----------------------------------------------------------------------------
def _pick_row_tile(r, cp):
    # Largest row tile (multiple of 8) dividing R whose working set
    # (3 double-buffered (TR,Cp) row arrays + double-buffered (Cp,Cp) weight)
    # fits comfortably under the default scoped-VMEM limit on all generations.
    budget = 24 * 1024 * 1024
    for tr in (1024, 512, 256, 128, 64, 32, 16, 8):
        if r % tr == 0 and 6 * tr * cp * 4 + 2 * cp * cp * 4 <= budget:
            return tr
    raise ValueError("N*H*W must be a multiple of 8 for this kernel")


def _bn_scale_shift(ps, pss, count, gamma, beta):
    # Finalize global training-mode BN stats from per-tile partial sums.
    # NOTE: E[x^2]-E[x]^2 in f32 can cancel for very large counts; acceptable at
    # these sizes.  TODO(synk): Welford/two-pass reduction for huge N*H*W.
    mean = jnp.sum(ps, axis=(0, 1)) / count
    var = jnp.maximum(jnp.sum(pss, axis=(0, 1)) / count - mean * mean, 0.0)
    scale = gamma * lax.rsqrt(var + BN_EPS)
    shift = beta - mean * scale
    return scale.reshape(1, -1), shift.reshape(1, -1)


# ----------------------------------------------------------------------------
# forward wrapper
# ----------------------------------------------------------------------------
def convmixer_subblock(x_nchw, params):
    N, C, H, W = x_nchw.shape
    if H % 8 != 0:
        # TODO(synk): support H not divisible by 8 (row padding / per-image strips).
        raise NotImplementedError("H must be a multiple of 8")
    Cp = ((C + 127) // 128) * 128          # lane-dense channel dim (Cp/C is a
    pc = Cp - C                            # direct traffic multiplier for tiny C)
    ns = H // TH
    Hp, Wp = H + 2 * PAD, W + 2 * PAD

    # Single wrapper-side materialization: NCHW->NHWC, spatial halo and channel
    # pad in one jnp.pad.  TODO(synk): fold the layout change into the kernels.
    x_nhwc = jnp.transpose(x_nchw, (0, 2, 3, 1)).astype(jnp.float32)
    xpad = jnp.pad(x_nhwc, ((0, 0), (PAD, PAD), (PAD, PAD), (0, pc)))

    # Weights, channel-padded with zeros: padded channels stay exactly 0 through
    # dwconv -> GELU -> BN1 -> matmul -> GELU -> BN2 (gamma pads with 1 only to
    # keep the BN scale finite; the shift for padded channels stays 0).
    wdw = jnp.pad(jnp.transpose(params["w_dw"][:, 0], (1, 2, 0)),
                  ((0, 0), (0, 0), (0, pc)))                          # (K, K, Cp)
    bdw = jnp.pad(params["b_dw"], (0, pc)).reshape(1, Cp)
    wpw = jnp.pad(jnp.transpose(params["w_pw"]), ((0, pc), (0, pc)))  # (Cin, Cout)
    bpw = jnp.pad(params["b_pw"], (0, pc)).reshape(1, Cp)
    g1 = jnp.pad(params["g1"], (0, pc), constant_values=1.0)
    b1 = jnp.pad(params["b1"], (0, pc))
    g2 = jnp.pad(params["g2"], (0, pc), constant_values=1.0)
    b2 = jnp.pad(params["b2"], (0, pc))

    # ---------------- stage 1: depthwise conv + GELU over halo'd strips -------
    a1, xc, ps1, pss1 = pl.pallas_call(
        dwconv_gelu_kernel,
        out_shape=[
            jax.ShapeDtypeStruct((N, H, W, Cp), jnp.float32),
            jax.ShapeDtypeStruct((N, H, W, Cp), jnp.float32),
            jax.ShapeDtypeStruct((N * ns, TH, Cp), jnp.float32),
            jax.ShapeDtypeStruct((N * ns, TH, Cp), jnp.float32),
        ],
        grid=(N, ns),
        in_specs=[
            # body rows [h*TH, h*TH+TH) of the padded image
            pl.BlockSpec((None, TH, Wp, Cp), lambda n, h: (n, h, 0, 0)),
            # halo rows [h*TH+TH, h*TH+TH+2*PAD): same array, next 8-row block
            # (valid because TH == 2*PAD == 8 and Hp = H + 8 is a multiple of 8)
            pl.BlockSpec((None, 2 * PAD, Wp, Cp), lambda n, h: (n, h + 1, 0, 0)),
            pl.BlockSpec((K, K, Cp), lambda n, h: (0, 0, 0)),
            pl.BlockSpec((1, Cp), lambda n, h: (0, 0)),
        ],
        out_specs=[
            pl.BlockSpec((None, TH, W, Cp), lambda n, h: (n, h, 0, 0)),
            pl.BlockSpec((None, TH, W, Cp), lambda n, h: (n, h, 0, 0)),
            pl.BlockSpec((None, TH, Cp), lambda n, h: (n * ns + h, 0, 0)),
            pl.BlockSpec((None, TH, Cp), lambda n, h: (n * ns + h, 0, 0)),
        ],
        scratch_shapes=[pltpu.VMEM((TH + 2 * PAD, Wp, Cp), jnp.float32)],
        compiler_params=pltpu.CompilerParams(
            dimension_semantics=("parallel", "parallel")),
    )(xpad, xpad, wdw, bdw)

    # ---------------- stage 2: residual + BN1 + 1x1 conv (MXU) + GELU ---------
    R = N * H * W
    count = float(R)
    TR = _pick_row_tile(R, Cp)
    nt = R // TR
    x2d = xc.reshape(R, Cp)          # metadata-only reshapes (contiguous NHWC)
    a1_2d = a1.reshape(R, Cp)
    scale1, shift1 = _bn_scale_shift(ps1, pss1, count, g1, b1)

    a2, ps2, pss2 = pl.pallas_call(
        resid_pw_gelu_kernel,
        out_shape=[
            jax.ShapeDtypeStruct((R, Cp), jnp.float32),
            jax.ShapeDtypeStruct((nt, 8, Cp), jnp.float32),
            jax.ShapeDtypeStruct((nt, 8, Cp), jnp.float32),
        ],
        grid=(nt,),
        in_specs=[
            pl.BlockSpec((TR, Cp), lambda i: (i, 0)),
            pl.BlockSpec((TR, Cp), lambda i: (i, 0)),
            pl.BlockSpec((1, Cp), lambda i: (0, 0)),
            pl.BlockSpec((1, Cp), lambda i: (0, 0)),
            # TODO(synk): pin this revisited weight (pipeline_mode=pl.Buffered(1))
            # to reclaim VMEM for even larger TR on v7x when Cp is large.
            pl.BlockSpec((Cp, Cp), lambda i: (0, 0)),
            pl.BlockSpec((1, Cp), lambda i: (0, 0)),
        ],
        out_specs=[
            pl.BlockSpec((TR, Cp), lambda i: (i, 0)),
            pl.BlockSpec((None, 8, Cp), lambda i: (i, 0, 0)),
            pl.BlockSpec((None, 8, Cp), lambda i: (i, 0, 0)),
        ],
        compiler_params=pltpu.CompilerParams(
            dimension_semantics=("parallel",)),
    )(x2d, a1_2d, scale1, shift1, wpw, bpw)

    # ------- BN2 apply + channel un-pad + NHWC->NCHW epilogue (plain jnp) -----
    scale2, shift2 = _bn_scale_shift(ps2, pss2, count, g2, b2)
    out = (a2 * scale2 + shift2).reshape(N, H, W, Cp)[..., :C]
    return jnp.transpose(out, (0, 3, 1, 2))              # back to NCHW


if __name__ == "__main__":
    key = jax.random.PRNGKey(0)
    kx, kp = jax.random.split(key)
    N, C, H, W = 2, 4, 16, 16
    x = jax.random.normal(kx, (N, C, H, W), jnp.float32)
    params = init_params(kp, C)

    y = jax.jit(convmixer_subblock)(x, params)
    jax.block_until_ready(y)
    assert y.shape == (N, C, H, W)
    assert bool(jnp.all(jnp.isfinite(y)))
    print("KERNEL_OK")
</pallas_src>

<mosaic_0001>
module attributes {stable_mosaic.version = 11 : i64} {
  func.func @dwconv_gelu_kernel(%arg0: i32, %arg1: i32, %arg2: memref<1x8x24x128xf32, #tpu.memory_space<vmem>>, %arg3: memref<1x8x24x128xf32, #tpu.memory_space<vmem>>, %arg4: memref<9x9x128xf32, #tpu.memory_space<vmem>>, %arg5: memref<1x128xf32, #tpu.memory_space<vmem>>, %arg6: memref<1x8x16x128xf32, #tpu.memory_space<vmem>>, %arg7: memref<1x8x16x128xf32, #tpu.memory_space<vmem>>, %arg8: memref<1x8x128xf32, #tpu.memory_space<vmem>>, %arg9: memref<1x8x128xf32, #tpu.memory_space<vmem>>, %arg10: memref<16x24x128xf32, #tpu.memory_space<vmem>>) attributes {dimension_semantics = [#tpu.dimension_semantics<parallel>, #tpu.dimension_semantics<parallel>], iteration_bounds = array<i64: 2, 2>, scalar_prefetch = 0 : i64, scratch_operands = 1 : i64, tpu.core_type = #tpu.core_type<tc>, window_params = [{transform_indices = @transform_0, window_bounds = array<i64: 1, 8, 24, 128>}, {transform_indices = @transform_1, window_bounds = array<i64: 1, 8, 24, 128>}, {pipeline_mode = #tpu.pipeline_mode<synchronous>, transform_indices = @transform_2, window_bounds = array<i64: 9, 9, 128>}, {pipeline_mode = #tpu.pipeline_mode<synchronous>, transform_indices = @transform_3, window_bounds = array<i64: 1, 128>}, {transform_indices = @transform_4, window_bounds = array<i64: 1, 8, 16, 128>}, {transform_indices = @transform_5, window_bounds = array<i64: 1, 8, 16, 128>}, {transform_indices = @transform_6, window_bounds = array<i64: 1, 8, 128>}, {transform_indices = @transform_7, window_bounds = array<i64: 1, 8, 128>}]} {
    %c0 = arith.constant 0 : index
    %c0_0 = arith.constant 0 : index
    %c0_1 = arith.constant 0 : index
    %c0_2 = arith.constant 0 : index
    %0 = vector.load %arg2[%c0, %c0_0, %c0_1, %c0_2] : memref<1x8x24x128xf32, #tpu.memory_space<vmem>>, vector<1x8x24x128xf32>
    %1 = vector.shape_cast %0 : vector<1x8x24x128xf32> to vector<8x24x128xf32>
    %c0_3 = arith.constant 0 : index
    %c0_4 = arith.constant 0 : index
    %c0_5 = arith.constant 0 : index
    %2 = vector.load %arg10[%c0_3, %c0_4, %c0_5] : memref<16x24x128xf32, #tpu.memory_space<vmem>>, vector<8x24x128xf32>
    tpu.vector_store %arg10[%c0_3, %c0_4, %c0_5], %1 {strides = array<i32>} : memref<16x24x128xf32, #tpu.memory_space<vmem>>, vector<8x24x128xf32>,
    %c0_6 = arith.constant 0 : index
    %c0_7 = arith.constant 0 : index
    %c0_8 = arith.constant 0 : index
    %c0_9 = arith.constant 0 : index
    %3 = vector.load %arg3[%c0_6, %c0_7, %c0_8, %c0_9] : memref<1x8x24x128xf32, #tpu.memory_space<vmem>>, vector<1x8x24x128xf32>
    %4 = vector.shape_cast %3 : vector<1x8x24x128xf32> to vector<8x24x128xf32>
    %c8 = arith.constant 8 : index
    %c0_10 = arith.constant 0 : index
    %c0_11 = arith.constant 0 : index
    %5 = vector.load %arg10[%c8, %c0_10, %c0_11] : memref<16x24x128xf32, #tpu.memory_space<vmem>>, vector<8x24x128xf32>
    tpu.vector_store %arg10[%c8, %c0_10, %c0_11], %4 {strides = array<i32>} : memref<16x24x128xf32, #tpu.memory_space<vmem>>, vector<8x24x128xf32>,
    %c4 = arith.constant 4 : index
    %c4_12 = arith.constant 4 : index
    %c0_13 = arith.constant 0 : index
    %6 = vector.load %arg10[%c4, %c4_12, %c0_13] : memref<16x24x128xf32, #tpu.memory_space<vmem>>, vector<8x16x128xf32>
    %c0_14 = arith.constant 0 : index
    %c0_15 = arith.constant 0 : index
    %c0_16 = arith.constant 0 : index
    %c0_17 = arith.constant 0 : index
    %7 = vector.load %arg7[%c0_14, %c0_15, %c0_16, %c0_17] : memref<1x8x16x128xf32, #tpu.memory_space<vmem>>, vector<1x8x16x128xf32>
    %8 = vector.shape_cast %7 : vector<1x8x16x128xf32> to vector<8x16x128xf32>
    %9 = vector.shape_cast %6 : vector<8x16x128xf32> to vector<1x8x16x128xf32>
    tpu.vector_store %arg7[%c0_14, %c0_15, %c0_16, %c0_17], %9 {strides = array<i32>} : memref<1x8x16x128xf32, #tpu.memory_space<vmem>>, vector<1x8x16x128xf32>,
    %c0_18 = arith.constant 0 : index
    %c0_19 = arith.constant 0 : index
    %10 = vector.load %arg5[%c0_18, %c0_19] : memref<1x128xf32, #tpu.memory_space<vmem>>, vector<1x128xf32>
    %11 = vector.shape_cast %10 : vector<1x128xf32> to vector<128xf32>
    %12 = vector.shape_cast %11 : vector<128xf32> to vector<1x1x128xf32>
    %cst = arith.constant 0.000000e+00 : f32
    %13 = vector.broadcast %cst : f32 to vector<8x128xf32>
    %cst_20 = arith.constant 0.000000e+00 : f32
    %14 = vector.broadcast %cst_20 : f32 to vector<8x128xf32>
    %cst_21 = arith.constant 0.000000e+00 : f32
    %15 = vector.broadcast %cst_21 : f32 to vector<8x16x128xf32>
    %c0_22 = arith.constant 0 : index
    %c0_23 = arith.constant 0 : index
    %c0_24 = arith.constant 0 : index
    %16 = vector.load %arg4[%c0_22, %c0_23, %c0_24] : memref<9x9x128xf32, #tpu.memory_space<vmem>>, vector<1x1x128xf32>
    %17 = vector.shape_cast %16 : vector<1x1x128xf32> to vector<128xf32>
    %18 = vector.shape_cast %17 : vector<128xf32> to vector<1x1x128xf32>
    %c0_25 = arith.constant 0 : index
    %c0_26 = arith.constant 0 : index
    %c0_27 = arith.constant 0 : index
    %19 = vector.load %arg10[%c0_25, %c0_26, %c0_27] : memref<16x24x128xf32, #tpu.memory_space<vmem>>, vector<8x16x128xf32>
    %20 = vector.broadcast %18 : vector<1x1x128xf32> to vector<8x16x128xf32>
    %21 = arith.mulf %19, %20 : vector<8x16x128xf32>
    %22 = arith.addf %15, %21 : vector<8x16x128xf32>
    %c0_28 = arith.constant 0 : index
    %c1 = arith.constant 1 : index
    %c0_29 = arith.constant 0 : index
    %23 = vector.load %arg4[%c0_28, %c1, %c0_29] : memref<9x9x128xf32, #tpu.memory_space<vmem>>, vector<1x1x128xf32>
    %24 = vector.shape_cast %23 : vector<1x1x128xf32> to vector<128xf32>
    %25 = vector.shape_cast %24 : vector<128xf32> to vector<1x1x128xf32>
    %c0_30 = arith.constant 0 : index
    %c1_31 = arith.constant 1 : index
    %c0_32 = arith.constant 0 : index
    %26 = vector.load %arg10[%c0_30, %c1_31, %c0_32] : memref<16x24x128xf32, #tpu.memory_space<vmem>>, vector<8x16x128xf32>
    %27 = vector.broadcast %25 : vector<1x1x128xf32> to vector<8x16x128xf32>
    %28 = arith.mulf %26, %27 : vector<8x16x128xf32>
    %29 = arith.addf %22, %28 : vector<8x16x128xf32>
    %c0_33 = arith.constant 0 : index
    %c2 = arith.constant 2 : index
    %c0_34 = arith.constant 0 : index
    %30 = vector.load %arg4[%c0_33, %c2, %c0_34] : memref<9x9x128xf32, #tpu.memory_space<vmem>>, vector<1x1x128xf32>
    %31 = vector.shape_cast %30 : vector<1x1x128xf32> to vector<128xf32>
    %32 = vector.shape_cast %31 : vector<128xf32> to vector<1x1x128xf32>
    %c0_35 = arith.constant 0 : index
    %c2_36 = arith.constant 2 : index
    %c0_37 = arith.constant 0 : index
    %33 = vector.load %arg10[%c0_35, %c2_36, %c0_37] : memref<16x24x128xf32, #tpu.memory_space<vmem>>, vector<8x16x128xf32>
    %34 = vector.broadcast %32 : vector<1x1x128xf32> to vector<8x16x128xf32>
    %35 = arith.mulf %33, %34 : vector<8x16x128xf32>
    %36 = arith.addf %29, %35 : vector<8x16x128xf32>
    %c0_38 = arith.constant 0 : index
    %c3 = arith.constant 3 : index
    %c0_39 = arith.constant 0 : index
    %37 = vector.load %arg4[%c0_38, %c3, %c0_39] : memref<9x9x128xf32, #tpu.memory_space<vmem>>, vector<1x1x128xf32>
    %38 = vector.shape_cast %37 : vector<1x1x128xf32> to vector<128xf32>
    %39 = vector.shape_cast %38 : vector<128xf32> to vector<1x1x128xf32>
    %c0_40 = arith.constant 0 : index
    %c3_41 = arith.constant 3 : index
    %c0_42 = arith.constant 0 : index
    %40 = vector.load %arg10[%c0_40, %c3_41, %c0_42] : memref<16x24x128xf32, #tpu.memory_space<vmem>>, vector<8x16x128xf32>
    %41 = vector.broadcast %39 : vector<1x1x128xf32> to vector<8x16x128xf32>
    %42 = arith.mulf %40, %41 : vector<8x16x128xf32>
    %43 = arith.addf %36, %42 : vector<8x16x128xf32>
    %c0_43 = arith.constant 0 : index
    %c4_44 = arith.constant 4 : index
    %c0_45 = arith.constant 0 : index
    %44 = vector.load %arg4[%c0_43, %c4_44, %c0_45] : memref<9x9x128xf32, #tpu.memory_space<vmem>>, vector<1x1x128xf32>
    %45 = vector.shape_cast %44 : vector<1x1x128xf32> to vector<128xf32>
    %46 = vector.shape_cast %45 : vector<128xf32> to vector<1x1x128xf32>
    %c0_46 = arith.constant 0 : index
    %c4_47 = arith.constant 4 : index
    %c0_48 = arith.constant 0 : index
    %47 = vector.load %arg10[%c0_46, %c4_47, %c0_48] : memref<16x24x128xf32, #tpu.memory_space<vmem>>, vector<8x16x128xf32>
    %48 = vector.broadcast %46 : vector<1x1x128xf32> to vector<8x16x128xf32>
    %49 = arith.mulf %47, %48 : vector<8x16x128xf32>
    %50 = arith.addf %43, %49 : vector<8x16x128xf32>
    %c0_49 = arith.constant 0 : index
    %c5 = arith.constant 5 : index
    %c0_50 = arith.constant 0 : index
    %51 = vector.load %arg4[%c0_49, %c5, %c0_50] : memref<9x9x128xf32, #tpu.memory_space<vmem>>, vector<1x1x128xf32>
    %52 = vector.shape_cast %51 : vector<1x1x128xf32> to vector<128xf32>
    %53 = vector.shape_cast %52 : vector<128xf32> to vector<1x1x128xf32>
    %c0_51 = arith.constant 0 : index
    %c5_52 = arith.constant 5 : index
    %c0_53 = arith.constant 0 : index
    %54 = vector.load %arg10[%c0_51, %c5_52, %c0_53] : memref<16x24x128xf32, #tpu.memory_space<vmem>>, vector<8x16x128xf32>
    %55 = vector.broadcast %53 : vector<1x1x128xf32> to vector<8x16x128xf32>
    %56 = arith.mulf %54, %55 : vector<8x16x128xf32>
    %57 = arith.addf %50, %56 : vector<8x16x128xf32>
    %c0_54 = arith.constant 0 : index
    %c6 = arith.constant 6 : index
    %c0_55 = arith.constant 0 : index
    %58 = vector.load %arg4[%c0_54, %c6, %c0_55] : memref<9x9x128xf32, #tpu.memory_space<vmem>>, vector<1x1x128xf32>
    %59 = vector.shape_cast %58 : vector<1x1x128xf32> to vector<128xf32>
    %60 = vector.shape_cast %59 : vector<128xf32> to vector<1x1x128xf32>
    %c0_56 = arith.constant 0 : index
    %c6_57 = arith.constant 6 : index
    %c0_58 = arith.constant 0 : index
    %61 = vector.load %arg10[%c0_56, %c6_57, %c0_58] : memref<16x24x128xf32, #tpu.memory_space<vmem>>, vector<8x16x128xf32>
    %62 = vector.broadcast %60 : vector<1x1x128xf32> to vector<8x16x128xf32>
    %63 = arith.mulf %61, %62 : vector<8x16x128xf32>
    %64 = arith.addf %57, %63 : vector<8x16x128xf32>
    %c0_59 = arith.constant 0 : index
    %c7 = arith.constant 7 : index
    %c0_60 = arith.constant 0 : index
    %65 = vector.load %arg4[%c0_59, %c7, %c0_60] : memref<9x9x128xf32, #tpu.memory_space<vmem>>, vector<1x1x128xf32>
    %66 = vector.shape_cast %65 : vector<1x1x128xf32> to vector<128xf32>
    %67 = vector.shape_cast %66 : vector<128xf32> to vector<1x1x128xf32>
    %c0_61 = arith.constant 0 : index
    %c7_62 = arith.constant 7 : index
    %c0_63 = arith.constant 0 : index
    %68 = vector.load %arg10[%c0_61, %c7_62, %c0_63] : memref<16x24x128xf32, #tpu.memory_space<vmem>>, vector<8x16x128xf32>
    %69 = vector.broadcast %67 : vector<1x1x128xf32> to vector<8x16x128xf32>
    %70 = arith.mulf %68, %69 : vector<8x16x128xf32>
    %71 = arith.addf %64, %70 : vector<8x16x128xf32>
    %c0_64 = arith.constant 0 : index
    %c8_65 = arith.constant 8 : index
    %c0_66 = arith.constant 0 : index
    %72 = vector.load %arg4[%c0_64, %c8_65, %c0_66] : memref<9x9x128xf32, #tpu.memory_space<vmem>>, vector<1x1x128xf32>
    %73 = vector.shape_cast %72 : vector<1x1x128xf32> to vector<128xf32>
    %74 = vector.shape_cast %73 : vector<128xf32> to vector<1x1x128xf32>
    %c0_67 = arith.constant 0 : index
    %c8_68 = arith.constant 8 : index
    %c0_69 = arith.constant 0 : index
    %75 = vector.load %arg10[%c0_67, %c8_68, %c0_69] : memref<16x24x128xf32, #tpu.memory_space<vmem>>, vector<8x16x128xf32>
    %76 = vector.broadcast %74 : vector<1x1x128xf32> to vector<8x16x128xf32>
    %77 = arith.mulf %75, %76 : vector<8x16x128xf32>
    %78 = arith.addf %71, %77 : vector<8x16x128xf32>
    %c1_70 = arith.constant 1 : index
    %c0_71 = arith.constant 0 : index
    %c0_72 = arith.constant 0 : index
    %79 = vector.load %arg4[%c1_70, %c0_71, %c0_72] : memref<9x9x128xf32, #tpu.memory_space<vmem>>, vector<1x1x128xf32>
    %80 = vector.shape_cast %79 : vector<1x1x128xf32> to vector<128xf32>
    %81 = vector.shape_cast %80 : vector<128xf32> to vector<1x1x128xf32>
    %c1_73 = arith.constant 1 : index
    %c0_74 = arith.constant 0 : index
    %c0_75 = arith.constant 0 : index
    %82 = vector.load %arg10[%c1_73, %c0_74, %c0_75] : memref<16x24x128xf32, #tpu.memory_space<vmem>>, vector<8x16x128xf32>
    %83 = vector.broadcast %81 : vector<1x1x128xf32> to vector<8x16x128xf32>
    %84 = arith.mulf %82, %83 : vector<8x16x128xf32>
    %85 = arith.addf %78, %84 : vector<8x16x128xf32>
    %c1_76 = arith.constant 1 : index
    %c1_77 = arith.constant 1 : index
    %c0_78 = arith.constant 0 : index
    %86 = vector.load %arg4[%c1_76, %c1_77, %c0_78] : memref<9x9x128xf32, #tpu.memory_space<vmem>>, vector<1x1x128xf32>
    %87 = vector.shape_cast %86 : vector<1x1x128xf32> to vector<128xf32>
    %88 = vector.shape_cast %87 : vector<128xf32> to vector<1x1x128xf32>
    %c1_79 = arith.constant 1 : index
    %c1_80 = arith.constant 1 : index
    %c0_81 = arith.constant 0 : index
    %89 = vector.load %arg10[%c1_79, %c1_80, %c0_81] : memref<16x24x128xf32, #tpu.memory_space<vmem>>, vector<8x16x128xf32>
    %90 = vector.broadcast %88 : vector<1x1x128xf32> to vector<8x16x128xf32>
    %91 = arith.mulf %89, %90 : vector<8x16x128xf32>
    %92 = arith.addf %85, %91 : vector<8x16x128xf32>
    %c1_82 = arith.constant 1 : index
    %c2_83 = arith.constant 2 : index
    %c0_84 = arith.constant 0 : index
    %93 = vector.load %arg4[%c1_82, %c2_83, %c0_84] : memref<9x9x128xf32, #tpu.memory_space<vmem>>, vector<1x1x128xf32>
    %94 = vector.shape_cast %93 : vector<1x1x128xf32> to vector<128xf32>
    %95 = vector.shape_cast %94 : vector<128xf32> to vector<1x1x128xf32>
    %c1_85 = arith.constant 1 : index
    %c2_86 = arith.constant 2 : index
    %c0_87 = arith.constant 0 : index
    %96 = vector.load %arg10[%c1_85, %c2_86, %c0_87] : memref<16x24x128xf32, #tpu.memory_space<vmem>>, vector<8x16x128xf32>
    %97 = vector.broadcast %95 : vector<1x1x128xf32> to vector<8x16x128xf32>
    %98 = arith.mulf %96, %97 : vector<8x16x128xf32>
    %99 = arith.addf %92, %98 : vector<8x16x128xf32>
    %c1_88 = arith.constant 1 : index
    %c3_89 = arith.constant 3 : index
    %c0_90 = arith.constant 0 : index
    %100 = vector.load %arg4[%c1_88, %c3_89, %c0_90] : memref<9x9x128xf32, #tpu.memory_space<vmem>>, vector<1x1x128xf32>
    %101 = vector.shape_cast %100 : vector<1x1x128xf32> to vector<128xf32>
    %102 = vector.shape_cast %101 : vector<128xf32> to vector<1x1x128xf32>
    %c1_91 = arith.constant 1 : index
    %c3_92 = arith.constant 3 : index
    %c0_93 = arith.constant 0 : index
    %103 = vector.load %arg10[%c1_91, %c3_92, %c0_93] : memref<16x24x128xf32, #tpu.memory_space<vmem>>, vector<8x16x128xf32>
    %104 = vector.broadcast %102 : vector<1x1x128xf32> to vector<8x16x128xf32>
    %105 = arith.mulf %103, %104 : vector<8x16x128xf32>
    %106 = arith.addf %99, %105 : vector<8x16x128xf32>
    %c1_94 = arith.constant 1 : index
    %c4_95 = arith.constant 4 : index
    %c0_96 = arith.constant 0 : index
    %107 = vector.load %arg4[%c1_94, %c4_95, %c0_96] : memref<9x9x128xf32, #tpu.memory_space<vmem>>, vector<1x1x128xf32>
    %108 = vector.shape_cast %107 : vector<1x1x128xf32> to vector<128xf32>
    %109 = vector.shape_cast %108 : vector<128xf32> to vector<1x1x128xf32>
    %c1_97 = arith.constant 1 : index
    %c4_98 = arith.constant 4 : index
    %c0_99 = arith.constant 0 : index
    %110 = vector.load %arg10[%c1_97, %c4_98, %c0_99] : memref<16x24x128xf32, #tpu.memory_space<vmem>>, vector<8x16x128xf32>
    %111 = vector.broadcast %109 : vector<1x1x128xf32> to vector<8x16x128xf32>
    %112 = arith.mulf %110, %111 : vector<8x16x128xf32>
    %113 = arith.addf %106, %112 : vector<8x16x128xf32>
    %c1_100 = arith.constant 1 : index
    %c5_101 = arith.constant 5 : index
    %c0_102 = arith.constant 0 : index
    %114 = vector.load %arg4[%c1_100, %c5_101, %c0_102] : memref<9x9x128xf32, #tpu.memory_space<vmem>>, vector<1x1x128xf32>
    %115 = vector.shape_cast %114 : vector<1x1x128xf32> to vector<128xf32>
    %116 = vector.shape_cast %115 : vector<128xf32> to vector<1x1x128xf32>
    %c1_103 = arith.constant 1 : index
    %c5_104 = arith.constant 5 : index
    %c0_105 = arith.constant 0 : index
    %117 = vector.load %arg10[%c1_103, %c5_104, %c0_105] : memref<16x24x128xf32, #tpu.memory_space<vmem>>, vector<8x16x128xf32>
    %118 = vector.broadcast %116 : vector<1x1x128xf32> to vector<8x16x128xf32>
    %119 = arith.mulf %117, %118 : vector<8x16x128xf32>
    %120 = arith.addf %113, %119 : vector<8x16x128xf32>
    %c1_106 = arith.constant 1 : index
    %c6_107 = arith.constant 6 : index
    %c0_108 = arith.constant 0 : index
    %121 = vector.load %arg4[%c1_106, %c6_107, %c0_108] : memref<9x9x128xf32, #tpu.memory_space<vmem>>, vector<1x1x128xf32>
    %122 = vector.shape_cast %121 : vector<1x1x128xf32> to vector<128xf32>
    %123 = vector.shape_cast %122 : vector<128xf32> to vector<1x1x128xf32>
    %c1_109 = arith.constant 1 : index
    %c6_110 = arith.constant 6 : index
    %c0_111 = arith.constant 0 : index
    %124 = vector.load %arg10[%c1_109, %c6_110, %c0_111] : memref<16x24x128xf32, #tpu.memory_space<vmem>>, vector<8x16x128xf32>
    %125 = vector.broadcast %123 : vector<1x1x128xf32> to vector<8x16x128xf32>
    %126 = arith.mulf %124, %125 : vector<8x16x128xf32>
    %127 = arith.addf %120, %126 : vector<8x16x128xf32>
    %c1_112 = arith.constant 1 : index
    %c7_113 = arith.constant 7 : index
    %c0_114 = arith.constant 0 : index
    %128 = vector.load %arg4[%c1_112, %c7_113, %c0_114] : memref<9x9x128xf32, #tpu.memory_space<vmem>>, vector<1x1x128xf32>
    %129 = vector.shape_cast %128 : vector<1x1x128xf32> to vector<128xf32>
    %130 = vector.shape_cast %129 : vector<128xf32> to vector<1x1x128xf32>
    %c1_115 = arith.constant 1 : index
    %c7_116 = arith.constant 7 : index
    %c0_117 = arith.constant 0 : index
    %131 = vector.load %arg10[%c1_115, %c7_116, %c0_117] : memref<16x24x128xf32, #tpu.memory_space<vmem>>, vector<8x16x128xf32>
    %132 = vector.broadcast %130 : vector<1x1x128xf32> to vector<8x16x128xf32>
    %133 = arith.mulf %131, %132 : vector<8x16x128xf32>
    %134 = arith.addf %127, %133 : vector<8x16x128xf32>
    %c1_118 = arith.constant 1 : index
    %c8_119 = arith.constant 8 : index
    %c0_120 = arith.constant 0 : index
    %135 = vector.load %arg4[%c1_118, %c8_119, %c0_120] : memref<9x9x128xf32, #tpu.memory_space<vmem>>, vector<1x1x128xf32>
    %136 = vector.shape_cast %135 : vector<1x1x128xf32> to vector<128xf32>
    %137 = vector.shape_cast %136 : vector<128xf32> to vector<1x1x128xf32>
    %c1_121 = arith.constant 1 : index
    %c8_122 = arith.constant 8 : index
    %c0_123 = arith.constant 0 : index
    %138 = vector.load %arg10[%c1_121, %c8_122, %c0_123] : memref<16x24x128xf32, #tpu.memory_space<vmem>>, vector<8x16x128xf32>
    %139 = vector.broadcast %137 : vector<1x1x128xf32> to vector<8x16x128xf32>
    %140 = arith.mulf %138, %139 : vector<8x16x128xf32>
    %141 = arith.addf %134, %140 : vector<8x16x128xf32>
    %c2_124 = arith.constant 2 : index
    %c0_125 = arith.constant 0 : index
    %c0_126 = arith.constant 0 : index
    %142 = vector.load %arg4[%c2_124, %c0_125, %c0_126] : memref<9x9x128xf32, #tpu.memory_space<vmem>>, vector<1x1x128xf32>
    %143 = vector.shape_cast %142 : vector<1x1x128xf32> to vector<128xf32>
    %144 = vector.shape_cast %143 : vector<128xf32> to vector<1x1x128xf32>
    %c2_127 = arith.constant 2 : index
    %c0_128 = arith.constant 0 : index
    %c0_129 = arith.constant 0 : index
    %145 = vector.load %arg10[%c2_127, %c0_128, %c0_129] : memref<16x24x128xf32, #tpu.memory_space<vmem>>, vector<8x16x128xf32>
    %146 = vector.broadcast %144 : vector<1x1x128xf32> to vector<8x16x128xf32>
    %147 = arith.mulf %145, %146 : vector<8x16x128xf32>
    %148 = arith.addf %141, %147 : vector<8x16x128xf32>
    %c2_130 = arith.constant 2 : index
    %c1_131 = arith.constant 1 : index
    %c0_132 = arith.constant 0 : index
    %149 = vector.load %arg4[%c2_130, %c1_131, %c0_132] : memref<9x9x128xf32, #tpu.memory_space<vmem>>, vector<1x1x128xf32>
    %150 = vector.shape_cast %149 : vector<1x1x128xf32> to vector<128xf32>
    %151 = vector.shape_cast %150 : vector<128xf32> to vector<1x1x128xf32>
    %c2_133 = arith.constant 2 : index
    %c1_134 = arith.constant 1 : index
    %c0_135 = arith.constant 0 : index
    %152 = vector.load %arg10[%c2_133, %c1_134, %c0_135] : memref<16x24x128xf32, #tpu.memory_space<vmem>>, vector<8x16x128xf32>
    %153 = vector.broadcast %151 : vector<1x1x128xf32> to vector<8x16x128xf32>
    %154 = arith.mulf %152, %153 : vector<8x16x128xf32>
    %155 = arith.addf %148, %154 : vector<8x16x128xf32>
    %c2_136 = arith.constant 2 : index
    %c2_137 = arith.constant 2 : index
    %c0_138 = arith.constant 0 : index
    %156 = vector.load %arg4[%c2_136, %c2_137, %c0_138] : memref<9x9x128xf32, #tpu.memory_space<vmem>>, vector<1x1x128xf32>
    %157 = vector.shape_cast %156 : vector<1x1x128xf32> to vector<128xf32>
    %158 = vector.shape_cast %157 : vector<128xf32> to vector<1x1x128xf32>
    %c2_139 = arith.constant 2 : index
    %c2_140 = arith.constant 2 : index
    %c0_141 = arith.constant 0 : index
    %159 = vector.load %arg10[%c2_139, %c2_140, %c0_141] : memref<16x24x128xf32, #tpu.memory_space<vmem>>, vector<8x16x128xf32>
    %160 = vector.broadcast %158 : vector<1x1x128xf32> to vector<8x16x128xf32>
    %161 = arith.mulf %159, %160 : vector<8x16x128xf32>
    %162 = arith.addf %155, %161 : vector<8x16x128xf32>
    %c2_142 = arith.constant 2 : index
    %c3_143 = arith.constant 3 : index
    %c0_144 = arith.constant 0 : index
    %163 = vector.load %arg4[%c2_142, %c3_143, %c0_144] : memref<9x9x128xf32, #tpu.memory_space<vmem>>, vector<1x1x128xf32>
    %164 = vector.shape_cast %163 : vector<1x1x128xf32> to vector<128xf32>
    %165 = vector.shape_cast %164 : vector<128xf32> to vector<1x1x128xf32>
    %c2_145 = arith.constant 2 : index
    %c3_146 = arith.constant 3 : index
    %c0_147 = arith.constant 0 : index
    %166 = vector.load %arg10[%c2_145, %c3_146, %c0_147] : memref<16x24x128xf32, #tpu.memory_space<vmem>>, vector<8x16x128xf32>
    %167 = vector.broadcast %165 : vector<1x1x128xf32> to vector<8x16x128xf32>
    %168 = arith.mulf %166, %167 : vector<8x16x128xf32>
    %169 = arith.addf %162, %168 : vector<8x16x128xf32>
    %c2_148 = arith.constant 2 : index
    %c4_149 = arith.constant 4 : index
    %c0_150 = arith.constant 0 : index
    %170 = vector.load %arg4[%c2_148, %c4_149, %c0_150] : memref<9x9x128xf32, #tpu.memory_space<vmem>>, vector<1x1x128xf32>
    %171 = vector.shape_cast %170 : vector<1x1x128xf32> to vector<128xf32>
    %172 = vector.shape_cast %171 : vector<128xf32> to vector<1x1x128xf32>
    %c2_151 = arith.constant 2 : index
    %c4_152 = arith.constant 4 : index
    %c0_153 = arith.constant 0 : index
    %173 = vector.load %arg10[%c2_151, %c4_152, %c0_153] : memref<16x24x128xf32, #tpu.memory_space<vmem>>, vector<8x16x128xf32>
    %174 = vector.broadcast %172 : vector<1x1x128xf32> to vector<8x16x128xf32>
    %175 = arith.mulf %173, %174 : vector<8x16x128xf32>
    %176 = arith.addf %169, %175 : vector<8x16x128xf32>
    %c2_154 = arith.constant 2 : index
    %c5_155 = arith.constant 5 : index
    %c0_156 = arith.constant 0 : index
    %177 = vector.load %arg4[%c2_154, %c5_155, %c0_156] : memref<9x9x128xf32, #tpu.memory_space<vmem>>, vector<1x1x128xf32>
    %178 = vector.shape_cast %177 : vector<1x1x128xf32> to vector<128xf32>
    %179 = vector.shape_cast %178 : vector<128xf32> to vector<1x1x128xf32>
    %c2_157 = arith.constant 2 : index
    %c5_158 = arith.constant 5 : index
    %c0_159 = arith.constant 0 : index
    %180 = vector.load %arg10[%c2_157, %c5_158, %c0_159] : memref<16x24x128xf32, #tpu.memory_space<vmem>>, vector<8x16x128xf32>
    %181 = vector.broadcast %179 : vector<1x1x128xf32> to vector<8x16x128xf32>
    %182 = arith.mulf %180, %181 : vector<8x16x128xf32>
    %183 = arith.addf %176, %182 : vector<8x16x128xf32>
    %c2_160 = arith.constant 2 : index
    %c6_161 = arith.constant 6 : index
    %c0_162 = arith.constant 0 : index
    %184 = vector.load %arg4[%c2_160, %c6_161, %c0_162] : memref<9x9x128xf32, #tpu.memory_space<vmem>>, vector<1x1x128xf32>
    %185 = vector.shape_cast %184 : vector<1x1x128xf32> to vector<128xf32>
    %186 = vector.shape_cast %185 : vector<128xf32> to vector<1x1x128xf32>
    %c2_163 = arith.constant 2 : index
    %c6_164 = arith.constant 6 : index
    %c0_165 = arith.constant 0 : index
    %187 = vector.load %arg10[%c2_163, %c6_164, %c0_165] : memref<16x24x128xf32, #tpu.memory_space<vmem>>, vector<8x16x128xf32>
    %188 = vector.broadcast %186 : vector<1x1x128xf32> to vector<8x16x128xf32>
    %189 = arith.mulf %187, %188 : vector<8x16x128xf32>
    %190 = arith.addf %183, %189 : vector<8x16x128xf32>
    %c2_166 = arith.constant 2 : index
    %c7_167 = arith.constant 7 : index
    %c0_168 = arith.constant 0 : index
    %191 = vector.load %arg4[%c2_166, %c7_167, %c0_168] : memref<9x9x128xf32, #tpu.memory_space<vmem>>, vector<1x1x128xf32>
    %192 = vector.shape_cast %191 : vector<1x1x128xf32> to vector<128xf32>
    %193 = vector.shape_cast %192 : vector<128xf32> to vector<1x1x128xf32>
    %c2_169 = arith.constant 2 : index
    %c7_170 = arith.constant 7 : index
    %c0_171 = arith.constant 0 : index
    %194 = vector.load %arg10[%c2_169, %c7_170, %c0_171] : memref<16x24x128xf32, #tpu.memory_space<vmem>>, vector<8x16x128xf32>
    %195 = vector.broadcast %193 : vector<1x1x128xf32> to vector<8x16x128xf32>
    %196 = arith.mulf %194, %195 : vector<8x16x128xf32>
    %197 = arith.addf %190, %196 : vector<8x16x128xf32>
    %c2_172 = arith.constant 2 : index
    %c8_173 = arith.constant 8 : index
    %c0_174 = arith.constant 0 : index
    %198 = vector.load %arg4[%c2_172, %c8_173, %c0_174] : memref<9x9x128xf32, #tpu.memory_space<vmem>>, vector<1x1x128xf32>
    %199 = vector.shape_cast %198 : vector<1x1x128xf32> to vector<128xf32>
    %200 = vector.shape_cast %199 : vector<128xf32> to vector<1x1x128xf32>
    %c2_175 = arith.constant 2 : index
    %c8_176 = arith.constant 8 : index
    %c0_177 = arith.constant 0 : index
    %201 = vector.load %arg10[%c2_175, %c8_176, %c0_177] : memref<16x24x128xf32, #tpu.memory_space<vmem>>, vector<8x16x128xf32>
    %202 = vector.broadcast %200 : vector<1x1x128xf32> to vector<8x16x128xf32>
    %203 = arith.mulf %201, %202 : vector<8x16x128xf32>
    %204 = arith.addf %197, %203 : vector<8x16x128xf32>
    %c3_178 = arith.constant 3 : index
    %c0_179 = arith.constant 0 : index
    %c0_180 = arith.constant 0 : index
    %205 = vector.load %arg4[%c3_178, %c0_179, %c0_180] : memref<9x9x128xf32, #tpu.memory_space<vmem>>, vector<1x1x128xf32>
    %206 = vector.shape_cast %205 : vector<1x1x128xf32> to vector<128xf32>
    %207 = vector.shape_cast %206 : vector<128xf32> to vector<1x1x128xf32>
    %c3_181 = arith.constant 3 : index
    %c0_182 = arith.constant 0 : index
    %c0_183 = arith.constant 0 : index
    %208 = vector.load %arg10[%c3_181, %c0_182, %c0_183] : memref<16x24x128xf32, #tpu.memory_space<vmem>>, vector<8x16x128xf32>
    %209 = vector.broadcast %207 : vector<1x1x128xf32> to vector<8x16x128xf32>
    %210 = arith.mulf %208, %209 : vector<8x16x128xf32>
    %211 = arith.addf %204, %210 : vector<8x16x128xf32>
    %c3_184 = arith.constant 3 : index
    %c1_185 = arith.constant 1 : index
    %c0_186 = arith.constant 0 : index
    %212 = vector.load %arg4[%c3_184, %c1_185, %c0_186] : memref<9x9x128xf32, #tpu.memory_space<vmem>>, vector<1x1x128xf32>
    %213 = vector.shape_cast %212 : vector<1x1x128xf32> to vector<128xf32>
    %214 = vector.shape_cast %213 : vector<128xf32> to vector<1x1x128xf32>
    %c3_187 = arith.constant 3 : index
    %c1_188 = arith.constant 1 : index
    %c0_189 = arith.constant 0 : index
    %215 = vector.load %arg10[%c3_187, %c1_188, %c0_189] : memref<16x24x128xf32, #tpu.memory_space<vmem>>, vector<8x16x128xf32>
    %216 = vector.broadcast %214 : vector<1x1x128xf32> to vector<8x16x128xf32>
    %217 = arith.mulf %215, %216 : vector<8x16x128xf32>
    %218 = arith.addf %211, %217 : vector<8x16x128xf32>
    %c3_190 = arith.constant 3 : index
    %c2_191 = arith.constant 2 : index
    %c0_192 = arith.constant 0 : index
    %219 = vector.load %arg4[%c3_190, %c2_191, %c0_192] : memref<9x9x128xf32, #tpu.memory_space<vmem>>, vector<1x1x128xf32>
    %220 = vector.shape_cast %219 : vector<1x1x128xf32> to vector<128xf32>
    %221 = vector.shape_cast %220 : vector<128xf32> to vector<1x1x128xf32>
    %c3_193 = arith.constant 3 : index
    %c2_194 = arith.constant 2 : index
    %c0_195 = arith.constant 0 : index
    %222 = vector.load %arg10[%c3_193, %c2_194, %c0_195] : memref<16x24x128xf32, #tpu.memory_space<vmem>>, vector<8x16x128xf32>
    %223 = vector.broadcast %221 : vector<1x1x128xf32> to vector<8x16x128xf32>
    %224 = arith.mulf %222, %223 : vector<8x16x128xf32>
    %225 = arith.addf %218, %224 : vector<8x16x128xf32>
    %c3_196 = arith.constant 3 : index
    %c3_197 = arith.constant 3 : index
    %c0_198 = arith.constant 0 : index
    %226 = vector.load %arg4[%c3_196, %c3_197, %c0_198] : memref<9x9x128xf32, #tpu.memory_space<vmem>>, vector<1x1x128xf32>
    %227 = vector.shape_cast %226 : vector<1x1x128xf32> to vector<128xf32>
    %228 = vector.shape_cast %227 : vector<128xf32> to vector<1x1x128xf32>
    %c3_199 = arith.constant 3 : index
    %c3_200 = arith.constant 3 : index
    %c0_201 = arith.constant 0 : index
    %229 = vector.load %arg10[%c3_199, %c3_200, %c0_201] : memref<16x24x128xf32, #tpu.memory_space<vmem>>, vector<8x16x128xf32>
    %230 = vector.broadcast %228 : vector<1x1x128xf32> to vector<8x16x128xf32>
    %231 = arith.mulf %229, %230 : vector<8x16x128xf32>
    %232 = arith.addf %225, %231 : vector<8x16x128xf32>
    %c3_202 = arith.constant 3 : index
    %c4_203 = arith.constant 4 : index
    %c0_204 = arith.constant 0 : index
    %233 = vector.load %arg4[%c3_202, %c4_203, %c0_204] : memref<9x9x128xf32, #tpu.memory_space<vmem>>, vector<1x1x128xf32>
    %234 = vector.shape_cast %233 : vector<1x1x128xf32> to vector<128xf32>
    %235 = vector.shape_cast %234 : vector<128xf32> to vector<1x1x128xf32>
    %c3_205 = arith.constant 3 : index
    %c4_206 = arith.constant 4 : index
    %c0_207 = arith.constant 0 : index
    %236 = vector.load %arg10[%c3_205, %c4_206, %c0_207] : memref<16x24x128xf32, #tpu.memory_space<vmem>>, vector<8x16x128xf32>
    %237 = vector.broadcast %235 : vector<1x1x128xf32> to vector<8x16x128xf32>
    %238 = arith.mulf %236, %237 : vector<8x16x128xf32>
    %239 = arith.addf %232, %238 : vector<8x16x128xf32>
    %c3_208 = arith.constant 3 : index
    %c5_209 = arith.constant 5 : index
    %c0_210 = arith.constant 0 : index
    %240 = vector.load %arg4[%c3_208, %c5_209, %c0_210] : memref<9x9x128xf32, #tpu.memory_space<vmem>>, vector<1x1x128xf32>
    %241 = vector.shape_cast %240 : vector<1x1x128xf32> to vector<128xf32>
    %242 = vector.shape_cast %241 : vector<128xf32> to vector<1x1x128xf32>
    %c3_211 = arith.constant 3 : index
    %c5_212 = arith.constant 5 : index
    %c0_213 = arith.constant 0 : index
    %243 = vector.load %arg10[%c3_211, %c5_212, %c0_213] : memref<16x24x128xf32, #tpu.memory_space<vmem>>, vector<8x16x128xf32>
    %244 = vector.broadcast %242 : vector<1x1x128xf32> to vector<8x16x128xf32>
    %245 = arith.mulf %243, %244 : vector<8x16x128xf32>
    %246 = arith.addf %239, %245 : vector<8x16x128xf32>
    %c3_214 = arith.constant 3 : index
    %c6_215 = arith.constant 6 : index
    %c0_216 = arith.constant 0 : index
    %247 = vector.load %arg4[%c3_214, %c6_215, %c0_216] : memref<9x9x128xf32, #tpu.memory_space<vmem>>, vector<1x1x128xf32>
    %248 = vector.shape_cast %247 : vector<1x1x128xf32> to vector<128xf32>
    %249 = vector.shape_cast %248 : vector<128xf32> to vector<1x1x128xf32>
    %c3_217 = arith.constant 3 : index
    %c6_218 = arith.constant 6 : index
    %c0_219 = arith.constant 0 : index
    %250 = vector.load %arg10[%c3_217, %c6_218, %c0_219] : memref<16x24x128xf32, #tpu.memory_space<vmem>>, vector<8x16x128xf32>
    %251 = vector.broadcast %249 : vector<1x1x128xf32> to vector<8x16x128xf32>
    %252 = arith.mulf %250, %251 : vector<8x16x128xf32>
    %253 = arith.addf %246, %252 : vector<8x16x128xf32>
    %c3_220 = arith.constant 3 : index
    %c7_221 = arith.constant 7 : index
    %c0_222 = arith.constant 0 : index
    %254 = vector.load %arg4[%c3_220, %c7_221, %c0_222] : memref<9x9x128xf32, #tpu.memory_space<vmem>>, vector<1x1x128xf32>
    %255 = vector.shape_cast %254 : vector<1x1x128xf32> to vector<128xf32>
    %256 = vector.shape_cast %255 : vector<128xf32> to vector<1x1x128xf32>
    %c3_223 = arith.constant 3 : index
    %c7_224 = arith.constant 7 : index
    %c0_225 = arith.constant 0 : index
    %257 = vector.load %arg10[%c3_223, %c7_224, %c0_225] : memref<16x24x128xf32, #tpu.memory_space<vmem>>, vector<8x16x128xf32>
    %258 = vector.broadcast %256 : vector<1x1x128xf32> to vector<8x16x128xf32>
    %259 = arith.mulf %257, %258 : vector<8x16x128xf32>
    %260 = arith.addf %253, %259 : vector<8x16x128xf32>
    %c3_226 = arith.constant 3 : index
    %c8_227 = arith.constant 8 : index
    %c0_228 = arith.constant 0 : index
    %261 = vector.load %arg4[%c3_226, %c8_227, %c0_228] : memref<9x9x128xf32, #tpu.memory_space<vmem>>, vector<1x1x128xf32>
    %262 = vector.shape_cast %261 : vector<1x1x128xf32> to vector<128xf32>
    %263 = vector.shape_cast %262 : vector<128xf32> to vector<1x1x128xf32>
    %c3_229 = arith.constant 3 : index
    %c8_230 = arith.constant 8 : index
    %c0_231 = arith.constant 0 : index
    %264 = vector.load %arg10[%c3_229, %c8_230, %c0_231] : memref<16x24x128xf32, #tpu.memory_space<vmem>>, vector<8x16x128xf32>
    %265 = vector.broadcast %263 : vector<1x1x128xf32> to vector<8x16x128xf32>
    %266 = arith.mulf %264, %265 : vector<8x16x128xf32>
    %267 = arith.addf %260, %266 : vector<8x16x128xf32>
    %c4_232 = arith.constant 4 : index
    %c0_233 = arith.constant 0 : index
    %c0_234 = arith.constant 0 : index
    %268 = vector.load %arg4[%c4_232, %c0_233, %c0_234] : memref<9x9x128xf32, #tpu.memory_space<vmem>>, vector<1x1x128xf32>
    %269 = vector.shape_cast %268 : vector<1x1x128xf32> to vector<128xf32>
    %270 = vector.shape_cast %269 : vector<128xf32> to vector<1x1x128xf32>
    %c4_235 = arith.constant 4 : index
    %c0_236 = arith.constant 0 : index
    %c0_237 = arith.constant 0 : index
    %271 = vector.load %arg10[%c4_235, %c0_236, %c0_237] : memref<16x24x128xf32, #tpu.memory_space<vmem>>, vector<8x16x128xf32>
    %272 = vector.broadcast %270 : vector<1x1x128xf32> to vector<8x16x128xf32>
    %273 = arith.mulf %271, %272 : vector<8x16x128xf32>
    %274 = arith.addf %267, %273 : vector<8x16x128xf32>
    %c4_238 = arith.constant 4 : index
    %c1_239 = arith.constant 1 : index
    %c0_240 = arith.constant 0 : index
    %275 = vector.load %arg4[%c4_238, %c1_239, %c0_240] : memref<9x9x128xf32, #tpu.memory_space<vmem>>, vector<1x1x128xf32>
    %276 = vector.shape_cast %275 : vector<1x1x128xf32> to vector<128xf32>
    %277 = vector.shape_cast %276 : vector<128xf32> to vector<1x1x128xf32>
    %c4_241 = arith.constant 4 : index
    %c1_242 = arith.constant 1 : index
    %c0_243 = arith.constant 0 : index
    %278 = vector.load %arg10[%c4_241, %c1_242, %c0_243] : memref<16x24x128xf32, #tpu.memory_space<vmem>>, vector<8x16x128xf32>
    %279 = vector.broadcast %277 : vector<1x1x128xf32> to vector<8x16x128xf32>
    %280 = arith.mulf %278, %279 : vector<8x16x128xf32>
    %281 = arith.addf %274, %280 : vector<8x16x128xf32>
    %c4_244 = arith.constant 4 : index
    %c2_245 = arith.constant 2 : index
    %c0_246 = arith.constant 0 : index
    %282 = vector.load %arg4[%c4_244, %c2_245, %c0_246] : memref<9x9x128xf32, #tpu.memory_space<vmem>>, vector<1x1x128xf32>
    %283 = vector.shape_cast %282 : vector<1x1x128xf32> to vector<128xf32>
    %284 = vector.shape_cast %283 : vector<128xf32> to vector<1x1x128xf32>
    %c4_247 = arith.constant 4 : index
    %c2_248 = arith.constant 2 : index
    %c0_249 = arith.constant 0 : index
    %285 = vector.load %arg10[%c4_247, %c2_248, %c0_249] : memref<16x24x128xf32, #tpu.memory_space<vmem>>, vector<8x16x128xf32>
    %286 = vector.broadcast %284 : vector<1x1x128xf32> to vector<8x16x128xf32>
    %287 = arith.mulf %285, %286 : vector<8x16x128xf32>
    %288 = arith.addf %281, %287 : vector<8x16x128xf32>
    %c4_250 = arith.constant 4 : index
    %c3_251 = arith.constant 3 : index
    %c0_252 = arith.constant 0 : index
    %289 = vector.load %arg4[%c4_250, %c3_251, %c0_252] : memref<9x9x128xf32, #tpu.memory_space<vmem>>, vector<1x1x128xf32>
    %290 = vector.shape_cast %289 : vector<1x1x128xf32> to vector<128xf32>
    %291 = vector.shape_cast %290 : vector<128xf32> to vector<1x1x128xf32>
    %c4_253 = arith.constant 4 : index
    %c3_254 = arith.constant 3 : index
    %c0_255 = arith.constant 0 : index
    %292 = vector.load %arg10[%c4_253, %c3_254, %c0_255] : memref<16x24x128xf32, #tpu.memory_space<vmem>>, vector<8x16x128xf32>
    %293 = vector.broadcast %291 : vector<1x1x128xf32> to vector<8x16x128xf32>
    %294 = arith.mulf %292, %293 : vector<8x16x128xf32>
    %295 = arith.addf %288, %294 : vector<8x16x128xf32>
    %c4_256 = arith.constant 4 : index
    %c4_257 = arith.constant 4 : index
    %c0_258 = arith.constant 0 : index
    %296 = vector.load %arg4[%c4_256, %c4_257, %c0_258] : memref<9x9x128xf32, #tpu.memory_space<vmem>>, vector<1x1x128xf32>
    %297 = vector.shape_cast %296 : vector<1x1x128xf32> to vector<128xf32>
    %298 = vector.shape_cast %297 : vector<128xf32> to vector<1x1x128xf32>
    %c4_259 = arith.constant 4 : index
    %c4_260 = arith.constant 4 : index
    %c0_261 = arith.constant 0 : index
    %299 = vector.load %arg10[%c4_259, %c4_260, %c0_261] : memref<16x24x128xf32, #tpu.memory_space<vmem>>, vector<8x16x128xf32>
    %300 = vector.broadcast %298 : vector<1x1x128xf32> to vector<8x16x128xf32>
    %301 = arith.mulf %299, %300 : vector<8x16x128xf32>
    %302 = arith.addf %295, %301 : vector<8x16x128xf32>
    %c4_262 = arith.constant 4 : index
    %c5_263 = arith.constant 5 : index
    %c0_264 = arith.constant 0 : index
    %303 = vector.load %arg4[%c4_262, %c5_263, %c0_264] : memref<9x9x128xf32, #tpu.memory_space<vmem>>, vector<1x1x128xf32>
    %304 = vector.shape_cast %303 : vector<1x1x128xf32> to vector<128xf32>
    %305 = vector.shape_cast %304 : vector<128xf32> to vector<1x1x128xf32>
    %c4_265 = arith.constant 4 : index
    %c5_266 = arith.constant 5 : index
    %c0_267 = arith.constant 0 : index
    %306 = vector.load %arg10[%c4_265, %c5_266, %c0_267] : memref<16x24x128xf32, #tpu.memory_space<vmem>>, vector<8x16x128xf32>
    %307 = vector.broadcast %305 : vector<1x1x128xf32> to vector<8x16x128xf32>
    %308 = arith.mulf %306, %307 : vector<8x16x128xf32>
    %309 = arith.addf %302, %308 : vector<8x16x128xf32>
    %c4_268 = arith.constant 4 : index
    %c6_269 = arith.constant 6 : index
    %c0_270 = arith.constant 0 : index
    %310 = vector.load %arg4[%c4_268, %c6_269, %c0_270] : memref<9x9x128xf32, #tpu.memory_space<vmem>>, vector<1x1x128xf32>
    %311 = vector.shape_cast %310 : vector<1x1x128xf32> to vector<128xf32>
    %312 = vector.shape_cast %311 : vector<128xf32> to vector<1x1x128xf32>
    %c4_271 = arith.constant 4 : index
    %c6_272 = arith.constant 6 : index
    %c0_273 = arith.constant 0 : index
    %313 = vector.load %arg10[%c4_271, %c6_272, %c0_273] : memref<16x24x128xf32, #tpu.memory_space<vmem>>, vector<8x16x128xf32>
    %314 = vector.broadcast %312 : vector<1x1x128xf32> to vector<8x16x128xf32>
    %315 = arith.mulf %313, %314 : vector<8x16x128xf32>
    %316 = arith.addf %309, %315 : vector<8x16x128xf32>
    %c4_274 = arith.constant 4 : index
    %c7_275 = arith.constant 7 : index
    %c0_276 = arith.constant 0 : index
    %317 = vector.load %arg4[%c4_274, %c7_275, %c0_276] : memref<9x9x128xf32, #tpu.memory_space<vmem>>, vector<1x1x128xf32>
    %318 = vector.shape_cast %317 : vector<1x1x128xf32> to vector<128xf32>
    %319 = vector.shape_cast %318 : vector<128xf32> to vector<1x1x128xf32>
    %c4_277 = arith.constant 4 : index
    %c7_278 = arith.constant 7 : index
    %c0_279 = arith.constant 0 : index
    %320 = vector.load %arg10[%c4_277, %c7_278, %c0_279] : memref<16x24x128xf32, #tpu.memory_space<vmem>>, vector<8x16x128xf32>
    %321 = vector.broadcast %319 : vector<1x1x128xf32> to vector<8x16x128xf32>
    %322 = arith.mulf %320, %321 : vector<8x16x128xf32>
    %323 = arith.addf %316, %322 : vector<8x16x128xf32>
    %c4_280 = arith.constant 4 : index
    %c8_281 = arith.constant 8 : index
    %c0_282 = arith.constant 0 : index
    %324 = vector.load %arg4[%c4_280, %c8_281, %c0_282] : memref<9x9x128xf32, #tpu.memory_space<vmem>>, vector<1x1x128xf32>
    %325 = vector.shape_cast %324 : vector<1x1x128xf32> to vector<128xf32>
    %326 = vector.shape_cast %325 : vector<128xf32> to vector<1x1x128xf32>
    %c4_283 = arith.constant 4 : index
    %c8_284 = arith.constant 8 : index
    %c0_285 = arith.constant 0 : index
    %327 = vector.load %arg10[%c4_283, %c8_284, %c0_285] : memref<16x24x128xf32, #tpu.memory_space<vmem>>, vector<8x16x128xf32>
    %328 = vector.broadcast %326 : vector<1x1x128xf32> to vector<8x16x128xf32>
    %329 = arith.mulf %327, %328 : vector<8x16x128xf32>
    %330 = arith.addf %323, %329 : vector<8x16x128xf32>
    %c5_286 = arith.constant 5 : index
    %c0_287 = arith.constant 0 : index
    %c0_288 = arith.constant 0 : index
    %331 = vector.load %arg4[%c5_286, %c0_287, %c0_288] : memref<9x9x128xf32, #tpu.memory_space<vmem>>, vector<1x1x128xf32>
    %332 = vector.shape_cast %331 : vector<1x1x128xf32> to vector<128xf32>
    %333 = vector.shape_cast %332 : vector<128xf32> to vector<1x1x128xf32>
    %c5_289 = arith.constant 5 : index
    %c0_290 = arith.constant 0 : index
    %c0_291 = arith.constant 0 : index
    %334 = vector.load %arg10[%c5_289, %c0_290, %c0_291] : memref<16x24x128xf32, #tpu.memory_space<vmem>>, vector<8x16x128xf32>
    %335 = vector.broadcast %333 : vector<1x1x128xf32> to vector<8x16x128xf32>
    %336 = arith.mulf %334, %335 : vector<8x16x128xf32>
    %337 = arith.addf %330, %336 : vector<8x16x128xf32>
    %c5_292 = arith.constant 5 : index
    %c1_293 = arith.constant 1 : index
    %c0_294 = arith.constant 0 : index
    %338 = vector.load %arg4[%c5_292, %c1_293, %c0_294] : memref<9x9x128xf32, #tpu.memory_space<vmem>>, vector<1x1x128xf32>
    %339 = vector.shape_cast %338 : vector<1x1x128xf32> to vector<128xf32>
    %340 = vector.shape_cast %339 : vector<128xf32> to vector<1x1x128xf32>
    %c5_295 = arith.constant 5 : index
    %c1_296 = arith.constant 1 : index
    %c0_297 = arith.constant 0 : index
    %341 = vector.load %arg10[%c5_295, %c1_296, %c0_297] : memref<16x24x128xf32, #tpu.memory_space<vmem>>, vector<8x16x128xf32>
    %342 = vector.broadcast %340 : vector<1x1x128xf32> to vector<8x16x128xf32>
    %343 = arith.mulf %341, %342 : vector<8x16x128xf32>
    %344 = arith.addf %337, %343 : vector<8x16x128xf32>
    %c5_298 = arith.constant 5 : index
    %c2_299 = arith.constant 2 : index
    %c0_300 = arith.constant 0 : index
    %345 = vector.load %arg4[%c5_298, %c2_299, %c0_300] : memref<9x9x128xf32, #tpu.memory_space<vmem>>, vector<1x1x128xf32>
    %346 = vector.shape_cast %345 : vector<1x1x128xf32> to vector<128xf32>
    %347 = vector.shape_cast %346 : vector<128xf32> to vector<1x1x128xf32>
    %c5_301 = arith.constant 5 : index
    %c2_302 = arith.constant 2 : index
    %c0_303 = arith.constant 0 : index
    %348 = vector.load %arg10[%c5_301, %c2_302, %c0_303] : memref<16x24x128xf32, #tpu.memory_space<vmem>>, vector<8x16x128xf32>
    %349 = vector.broadcast %347 : vector<1x1x128xf32> to vector<8x16x128xf32>
    %350 = arith.mulf %348, %349 : vector<8x16x128xf32>
    %351 = arith.addf %344, %350 : vector<8x16x128xf32>
    %c5_304 = arith.constant 5 : index
    %c3_305 = arith.constant 3 : index
    %c0_306 = arith.constant 0 : index
    %352 = vector.load %arg4[%c5_304, %c3_305, %c0_306] : memref<9x9x128xf32, #tpu.memory_space<vmem>>, vector<1x1x128xf32>
    %353 = vector.shape_cast %352 : vector<1x1x128xf32> to vector<128xf32>
    %354 = vector.shape_cast %353 : vector<128xf32> to vector<1x1x128xf32>
    %c5_307 = arith.constant 5 : index
    %c3_308 = arith.constant 3 : index
    %c0_309 = arith.constant 0 : index
    %355 = vector.load %arg10[%c5_307, %c3_308, %c0_309] : memref<16x24x128xf32, #tpu.memory_space<vmem>>, vector<8x16x128xf32>
    %356 = vector.broadcast %354 : vector<1x1x128xf32> to vector<8x16x128xf32>
    %357 = arith.mulf %355, %356 : vector<8x16x128xf32>
    %358 = arith.addf %351, %357 : vector<8x16x128xf32>
    %c5_310 = arith.constant 5 : index
    %c4_311 = arith.constant 4 : index
    %c0_312 = arith.constant 0 : index
    %359 = vector.load %arg4[%c5_310, %c4_311, %c0_312] : memref<9x9x128xf32, #tpu.memory_space<vmem>>, vector<1x1x128xf32>
    %360 = vector.shape_cast %359 : vector<1x1x128xf32> to vector<128xf32>
    %361 = vector.shape_cast %360 : vector<128xf32> to vector<1x1x128xf32>
    %c5_313 = arith.constant 5 : index
    %c4_314 = arith.constant 4 : index
    %c0_315 = arith.constant 0 : index
    %362 = vector.load %arg10[%c5_313, %c4_314, %c0_315] : memref<16x24x128xf32, #tpu.memory_space<vmem>>, vector<8x16x128xf32>
    %363 = vector.broadcast %361 : vector<1x1x128xf32> to vector<8x16x128xf32>
    %364 = arith.mulf %362, %363 : vector<8x16x128xf32>
    %365 = arith.addf %358, %364 : vector<8x16x128xf32>
    %c5_316 = arith.constant 5 : index
    %c5_317 = arith.constant 5 : index
    %c0_318 = arith.constant 0 : index
    %366 = vector.load %arg4[%c5_316, %c5_317, %c0_318] : memref<9x9x128xf32, #tpu.memory_space<vmem>>, vector<1x1x128xf32>
    %367 = vector.shape_cast %366 : vector<1x1x128xf32> to vector<128xf32>
    %368 = vector.shape_cast %367 : vector<128xf32> to vector<1x1x128xf32>
    %c5_319 = arith.constant 5 : index
    %c5_320 = arith.constant 5 : index
    %c0_321 = arith.constant 0 : index
    %369 = vector.load %arg10[%c5_319, %c5_320, %c0_321] : memref<16x24x128xf32, #tpu.memory_space<vmem>>, vector<8x16x128xf32>
    %370 = vector.broadcast %368 : vector<1x1x128xf32> to vector<8x16x128xf32>
    %371 = arith.mulf %369, %370 : vector<8x16x128xf32>
    %372 = arith.addf %365, %371 : vector<8x16x128xf32>
    %c5_322 = arith.constant 5 : index
    %c6_323 = arith.constant 6 : index
    %c0_324 = arith.constant 0 : index
    %373 = vector.load %arg4[%c5_322, %c6_323, %c0_324] : memref<9x9x128xf32, #tpu.memory_space<vmem>>, vector<1x1x128xf32>
    %374 = vector.shape_cast %373 : vector<1x1x128xf32> to vector<128xf32>
    %375 = vector.shape_cast %374 : vector<128xf32> to vector<1x1x128xf32>
    %c5_325 = arith.constant 5 : index
    %c6_326 = arith.constant 6 : index
    %c0_327 = arith.constant 0 : index
    %376 = vector.load %arg10[%c5_325, %c6_326, %c0_327] : memref<16x24x128xf32, #tpu.memory_space<vmem>>, vector<8x16x128xf32>
    %377 = vector.broadcast %375 : vector<1x1x128xf32> to vector<8x16x128xf32>
    %378 = arith.mulf %376, %377 : vector<8x16x128xf32>
    %379 = arith.addf %372, %378 : vector<8x16x128xf32>
    %c5_328 = arith.constant 5 : index
    %c7_329 = arith.constant 7 : index
    %c0_330 = arith.constant 0 : index
    %380 = vector.load %arg4[%c5_328, %c7_329, %c0_330] : memref<9x9x128xf32, #tpu.memory_space<vmem>>, vector<1x1x128xf32>
    %381 = vector.shape_cast %380 : vector<1x1x128xf32> to vector<128xf32>
    %382 = vector.shape_cast %381 : vector<128xf32> to vector<1x1x128xf32>
    %c5_331 = arith.constant 5 : index
    %c7_332 = arith.constant 7 : index
    %c0_333 = arith.constant 0 : index
    %383 = vector.load %arg10[%c5_331, %c7_332, %c0_333] : memref<16x24x128xf32, #tpu.memory_space<vmem>>, vector<8x16x128xf32>
    %384 = vector.broadcast %382 : vector<1x1x128xf32> to vector<8x16x128xf32>
    %385 = arith.mulf %383, %384 : vector<8x16x128xf32>
    %386 = arith.addf %379, %385 : vector<8x16x128xf32>
    %c5_334 = arith.constant 5 : index
    %c8_335 = arith.constant 8 : index
    %c0_336 = arith.constant 0 : index
    %387 = vector.load %arg4[%c5_334, %c8_335, %c0_336] : memref<9x9x128xf32, #tpu.memory_space<vmem>>, vector<1x1x128xf32>
    %388 = vector.shape_cast %387 : vector<1x1x128xf32> to vector<128xf32>
    %389 = vector.shape_cast %388 : vector<128xf32> to vector<1x1x128xf32>
    %c5_337 = arith.constant 5 : index
    %c8_338 = arith.constant 8 : index
    %c0_339 = arith.constant 0 : index
    %390 = vector.load %arg10[%c5_337, %c8_338, %c0_339] : memref<16x24x128xf32, #tpu.memory_space<vmem>>, vector<8x16x128xf32>
    %391 = vector.broadcast %389 : vector<1x1x128xf32> to vector<8x16x128xf32>
    %392 = arith.mulf %390, %391 : vector<8x16x128xf32>
    %393 = arith.addf %386, %392 : vector<8x16x128xf32>
    %c6_340 = arith.constant 6 : index
    %c0_341 = arith.constant 0 : index
    %c0_342 = arith.constant 0 : index
    %394 = vector.load %arg4[%c6_340, %c0_341, %c0_342] : memref<9x9x128xf32, #tpu.memory_space<vmem>>, vector<1x1x128xf32>
    %395 = vector.shape_cast %394 : vector<1x1x128xf32> to vector<128xf32>
    %396 = vector.shape_cast %395 : vector<128xf32> to vector<1x1x128xf32>
    %c6_343 = arith.constant 6 : index
    %c0_344 = arith.constant 0 : index
    %c0_345 = arith.constant 0 : index
    %397 = vector.load %arg10[%c6_343, %c0_344, %c0_345] : memref<16x24x128xf32, #tpu.memory_space<vmem>>, vector<8x16x128xf32>
    %398 = vector.broadcast %396 : vector<1x1x128xf32> to vector<8x16x128xf32>
    %399 = arith.mulf %397, %398 : vector<8x16x128xf32>
    %400 = arith.addf %393, %399 : vector<8x16x128xf32>
    %c6_346 = arith.constant 6 : index
    %c1_347 = arith.constant 1 : index
    %c0_348 = arith.constant 0 : index
    %401 = vector.load %arg4[%c6_346, %c1_347, %c0_348] : memref<9x9x128xf32, #tpu.memory_space<vmem>>, vector<1x1x128xf32>
    %402 = vector.shape_cast %401 : vector<1x1x128xf32> to vector<128xf32>
    %403 = vector.shape_cast %402 : vector<128xf32> to vector<1x1x128xf32>
    %c6_349 = arith.constant 6 : index
    %c1_350 = arith.constant 1 : index
    %c0_351 = arith.constant 0 : index
    %404 = vector.load %arg10[%c6_349, %c1_350, %c0_351] : memref<16x24x128xf32, #tpu.memory_space<vmem>>, vector<8x16x128xf32>
    %405 = vector.broadcast %403 : vector<1x1x128xf32> to vector<8x16x128xf32>
    %406 = arith.mulf %404, %405 : vector<8x16x128xf32>
    %407 = arith.addf %400, %406 : vector<8x16x128xf32>
    %c6_352 = arith.constant 6 : index
    %c2_353 = arith.constant 2 : index
    %c0_354 = arith.constant 0 : index
    %408 = vector.load %arg4[%c6_352, %c2_353, %c0_354] : memref<9x9x128xf32, #tpu.memory_space<vmem>>, vector<1x1x128xf32>
    %409 = vector.shape_cast %408 : vector<1x1x128xf32> to vector<128xf32>
    %410 = vector.shape_cast %409 : vector<128xf32> to vector<1x1x128xf32>
    %c6_355 = arith.constant 6 : index
    %c2_356 = arith.constant 2 : index
    %c0_357 = arith.constant 0 : index
    %411 = vector.load %arg10[%c6_355, %c2_356, %c0_357] : memref<16x24x128xf32, #tpu.memory_space<vmem>>, vector<8x16x128xf32>
    %412 = vector.broadcast %410 : vector<1x1x128xf32> to vector<8x16x128xf32>
    %413 = arith.mulf %411, %412 : vector<8x16x128xf32>
    %414 = arith.addf %407, %413 : vector<8x16x128xf32>
    %c6_358 = arith.constant 6 : index
    %c3_359 = arith.constant 3 : index
    %c0_360 = arith.constant 0 : index
    %415 = vector.load %arg4[%c6_358, %c3_359, %c0_360] : memref<9x9x128xf32, #tpu.memory_space<vmem>>, vector<1x1x128xf32>
    %416 = vector.shape_cast %415 : vector<1x1x128xf32> to vector<128xf32>
    %417 = vector.shape_cast %416 : vector<128xf32> to vector<1x1x128xf32>
    %c6_361 = arith.constant 6 : index
    %c3_362 = arith.constant 3 : index
    %c0_363 = arith.constant 0 : index
    %418 = vector.load %arg10[%c6_361, %c3_362, %c0_363] : memref<16x24x128xf32, #tpu.memory_space<vmem>>, vector<8x16x128xf32>
    %419 = vector.broadcast %417 : vector<1x1x128xf32> to vector<8x16x128xf32>
    %420 = arith.mulf %418, %419 : vector<8x16x128xf32>
    %421 = arith.addf %414, %420 : vector<8x16x128xf32>
    %c6_364 = arith.constant 6 : index
    %c4_365 = arith.constant 4 : index
    %c0_366 = arith.constant 0 : index
    %422 = vector.load %arg4[%c6_364, %c4_365, %c0_366] : memref<9x9x128xf32, #tpu.memory_space<vmem>>, vector<1x1x128xf32>
    %423 = vector.shape_cast %422 : vector<1x1x128xf32> to vector<128xf32>
    %424 = vector.shape_cast %423 : vector<128xf32> to vector<1x1x128xf32>
    %c6_367 = arith.constant 6 : index
    %c4_368 = arith.constant 4 : index
    %c0_369 = arith.constant 0 : index
    %425 = vector.load %arg10[%c6_367, %c4_368, %c0_369] : memref<16x24x128xf32, #tpu.memory_space<vmem>>, vector<8x16x128xf32>
    %426 = vector.broadcast %424 : vector<1x1x128xf32> to vector<8x16x128xf32>
    %427 = arith.mulf %425, %426 : vector<8x16x128xf32>
    %428 = arith.addf %421, %427 : vector<8x16x128xf32>
    %c6_370 = arith.constant 6 : index
    %c5_371 = arith.constant 5 : index
    %c0_372 = arith.constant 0 : index
    %429 = vector.load %arg4[%c6_370, %c5_371, %c0_372] : memref<9x9x128xf32, #tpu.memory_space<vmem>>, vector<1x1x128xf32>
    %430 = vector.shape_cast %429 : vector<1x1x128xf32> to vector<128xf32>
    %431 = vector.shape_cast %430 : vector<128xf32> to vector<1x1x128xf32>
    %c6_373 = arith.constant 6 : index
    %c5_374 = arith.constant 5 : index
    %c0_375 = arith.constant 0 : index
    %432 = vector.load %arg10[%c6_373, %c5_374, %c0_375] : memref<16x24x128xf32, #tpu.memory_space<vmem>>, vector<8x16x128xf32>
    %433 = vector.broadcast %431 : vector<1x1x128xf32> to vector<8x16x128xf32>
    %434 = arith.mulf %432, %433 : vector<8x16x128xf32>
    %435 = arith.addf %428, %434 : vector<8x16x128xf32>
    %c6_376 = arith.constant 6 : index
    %c6_377 = arith.constant 6 : index
    %c0_378 = arith.constant 0 : index
    %436 = vector.load %arg4[%c6_376, %c6_377, %c0_378] : memref<9x9x128xf32, #tpu.memory_space<vmem>>, vector<1x1x128xf32>
    %437 = vector.shape_cast %436 : vector<1x1x128xf32> to vector<128xf32>
    %438 = vector.shape_cast %437 : vector<128xf32> to vector<1x1x128xf32>
    %c6_379 = arith.constant 6 : index
    %c6_380 = arith.constant 6 : index
    %c0_381 = arith.constant 0 : index
    %439 = vector.load %arg10[%c6_379, %c6_380, %c0_381] : memref<16x24x128xf32, #tpu.memory_space<vmem>>, vector<8x16x128xf32>
    %440 = vector.broadcast %438 : vector<1x1x128xf32> to vector<8x16x128xf32>
    %441 = arith.mulf %439, %440 : vector<8x16x128xf32>
    %442 = arith.addf %435, %441 : vector<8x16x128xf32>
    %c6_382 = arith.constant 6 : index
    %c7_383 = arith.constant 7 : index
    %c0_384 = arith.constant 0 : index
    %443 = vector.load %arg4[%c6_382, %c7_383, %c0_384] : memref<9x9x128xf32, #tpu.memory_space<vmem>>, vector<1x1x128xf32>
    %444 = vector.shape_cast %443 : vector<1x1x128xf32> to vector<128xf32>
    %445 = vector.shape_cast %444 : vector<128xf32> to vector<1x1x128xf32>
    %c6_385 = arith.constant 6 : index
    %c7_386 = arith.constant 7 : index
    %c0_387 = arith.constant 0 : index
    %446 = vector.load %arg10[%c6_385, %c7_386, %c0_387] : memref<16x24x128xf32, #tpu.memory_space<vmem>>, vector<8x16x128xf32>
    %447 = vector.broadcast %445 : vector<1x1x128xf32> to vector<8x16x128xf32>
    %448 = arith.mulf %446, %447 : vector<8x16x128xf32>
    %449 = arith.addf %442, %448 : vector<8x16x128xf32>
    %c6_388 = arith.constant 6 : index
    %c8_389 = arith.constant 8 : index
    %c0_390 = arith.constant 0 : index
    %450 = vector.load %arg4[%c6_388, %c8_389, %c0_390] : memref<9x9x128xf32, #tpu.memory_space<vmem>>, vector<1x1x128xf32>
    %451 = vector.shape_cast %450 : vector<1x1x128xf32> to vector<128xf32>
    %452 = vector.shape_cast %451 : vector<128xf32> to vector<1x1x128xf32>
    %c6_391 = arith.constant 6 : index
    %c8_392 = arith.constant 8 : index
    %c0_393 = arith.constant 0 : index
    %453 = vector.load %arg10[%c6_391, %c8_392, %c0_393] : memref<16x24x128xf32, #tpu.memory_space<vmem>>, vector<8x16x128xf32>
    %454 = vector.broadcast %452 : vector<1x1x128xf32> to vector<8x16x128xf32>
    %455 = arith.mulf %453, %454 : vector<8x16x128xf32>
    %456 = arith.addf %449, %455 : vector<8x16x128xf32>
    %c7_394 = arith.constant 7 : index
    %c0_395 = arith.constant 0 : index
    %c0_396 = arith.constant 0 : index
    %457 = vector.load %arg4[%c7_394, %c0_395, %c0_396] : memref<9x9x128xf32, #tpu.memory_space<vmem>>, vector<1x1x128xf32>
    %458 = vector.shape_cast %457 : vector<1x1x128xf32> to vector<128xf32>
    %459 = vector.shape_cast %458 : vector<128xf32> to vector<1x1x128xf32>
    %c7_397 = arith.constant 7 : index
    %c0_398 = arith.constant 0 : index
    %c0_399 = arith.constant 0 : index
    %460 = vector.load %arg10[%c7_397, %c0_398, %c0_399] : memref<16x24x128xf32, #tpu.memory_space<vmem>>, vector<8x16x128xf32>
    %461 = vector.broadcast %459 : vector<1x1x128xf32> to vector<8x16x128xf32>
    %462 = arith.mulf %460, %461 : vector<8x16x128xf32>
    %463 = arith.addf %456, %462 : vector<8x16x128xf32>
    %c7_400 = arith.constant 7 : index
    %c1_401 = arith.constant 1 : index
    %c0_402 = arith.constant 0 : index
    %464 = vector.load %arg4[%c7_400, %c1_401, %c0_402] : memref<9x9x128xf32, #tpu.memory_space<vmem>>, vector<1x1x128xf32>
    %465 = vector.shape_cast %464 : vector<1x1x128xf32> to vector<128xf32>
    %466 = vector.shape_cast %465 : vector<128xf32> to vector<1x1x128xf32>
    %c7_403 = arith.constant 7 : index
    %c1_404 = arith.constant 1 : index
    %c0_405 = arith.constant 0 : index
    %467 = vector.load %arg10[%c7_403, %c1_404, %c0_405] : memref<16x24x128xf32, #tpu.memory_space<vmem>>, vector<8x16x128xf32>
    %468 = vector.broadcast %466 : vector<1x1x128xf32> to vector<8x16x128xf32>
    %469 = arith.mulf %467, %468 : vector<8x16x128xf32>
    %470 = arith.addf %463, %469 : vector<8x16x128xf32>
    %c7_406 = arith.constant 7 : index
    %c2_407 = arith.constant 2 : index
    %c0_408 = arith.constant 0 : index
    %471 = vector.load %arg4[%c7_406, %c2_407, %c0_408] : memref<9x9x128xf32, #tpu.memory_space<vmem>>, vector<1x1x128xf32>
    %472 = vector.shape_cast %471 : vector<1x1x128xf32> to vector<128xf32>
    %473 = vector.shape_cast %472 : vector<128xf32> to vector<1x1x128xf32>
    %c7_409 = arith.constant 7 : index
    %c2_410 = arith.constant 2 : index
    %c0_411 = arith.constant 0 : index
    %474 = vector.load %arg10[%c7_409, %c2_410, %c0_411] : memref<16x24x128xf32, #tpu.memory_space<vmem>>, vector<8x16x128xf32>
    %475 = vector.broadcast %473 : vector<1x1x128xf32> to vector<8x16x128xf32>
    %476 = arith.mulf %474, %475 : vector<8x16x128xf32>
    %477 = arith.addf %470, %476 : vector<8x16x128xf32>
    %c7_412 = arith.constant 7 : index
    %c3_413 = arith.constant 3 : index
    %c0_414 = arith.constant 0 : index
    %478 = vector.load %arg4[%c7_412, %c3_413, %c0_414] : memref<9x9x128xf32, #tpu.memory_space<vmem>>, vector<1x1x128xf32>
    %479 = vector.shape_cast %478 : vector<1x1x128xf32> to vector<128xf32>
    %480 = vector.shape_cast %479 : vector<128xf32> to vector<1x1x128xf32>
    %c7_415 = arith.constant 7 : index
    %c3_416 = arith.constant 3 : index
    %c0_417 = arith.constant 0 : index
    %481 = vector.load %arg10[%c7_415, %c3_416, %c0_417] : memref<16x24x128xf32, #tpu.memory_space<vmem>>, vector<8x16x128xf32>
    %482 = vector.broadcast %480 : vector<1x1x128xf32> to vector<8x16x128xf32>
    %483 = arith.mulf %481, %482 : vector<8x16x128xf32>
    %484 = arith.addf %477, %483 : vector<8x16x128xf32>
    %c7_418 = arith.constant 7 : index
    %c4_419 = arith.constant 4 : index
    %c0_420 = arith.constant 0 : index
    %485 = vector.load %arg4[%c7_418, %c4_419, %c0_420] : memref<9x9x128xf32, #tpu.memory_space<vmem>>, vector<1x1x128xf32>
    %486 = vector.shape_cast %485 : vector<1x1x128xf32> to vector<128xf32>
    %487 = vector.shape_cast %486 : vector<128xf32> to vector<1x1x128xf32>
    %c7_421 = arith.constant 7 : index
    %c4_422 = arith.constant 4 : index
    %c0_423 = arith.constant 0 : index
    %488 = vector.load %arg10[%c7_421, %c4_422, %c0_423] : memref<16x24x128xf32, #tpu.memory_space<vmem>>, vector<8x16x128xf32>
    %489 = vector.broadcast %487 : vector<1x1x128xf32> to vector<8x16x128xf32>
    %490 = arith.mulf %488, %489 : vector<8x16x128xf32>
    %491 = arith.addf %484, %490 : vector<8x16x128xf32>
    %c7_424 = arith.constant 7 : index
    %c5_425 = arith.constant 5 : index
    %c0_426 = arith.constant 0 : index
    %492 = vector.load %arg4[%c7_424, %c5_425, %c0_426] : memref<9x9x128xf32, #tpu.memory_space<vmem>>, vector<1x1x128xf32>
    %493 = vector.shape_cast %492 : vector<1x1x128xf32> to vector<128xf32>
    %494 = vector.shape_cast %493 : vector<128xf32> to vector<1x1x128xf32>
    %c7_427 = arith.constant 7 : index
    %c5_428 = arith.constant 5 : index
    %c0_429 = arith.constant 0 : index
    %495 = vector.load %arg10[%c7_427, %c5_428, %c0_429] : memref<16x24x128xf32, #tpu.memory_space<vmem>>, vector<8x16x128xf32>
    %496 = vector.broadcast %494 : vector<1x1x128xf32> to vector<8x16x128xf32>
    %497 = arith.mulf %495, %496 : vector<8x16x128xf32>
    %498 = arith.addf %491, %497 : vector<8x16x128xf32>
    %c7_430 = arith.constant 7 : index
    %c6_431 = arith.constant 6 : index
    %c0_432 = arith.constant 0 : index
    %499 = vector.load %arg4[%c7_430, %c6_431, %c0_432] : memref<9x9x128xf32, #tpu.memory_space<vmem>>, vector<1x1x128xf32>
    %500 = vector.shape_cast %499 : vector<1x1x128xf32> to vector<128xf32>
    %501 = vector.shape_cast %500 : vector<128xf32> to vector<1x1x128xf32>
    %c7_433 = arith.constant 7 : index
    %c6_434 = arith.constant 6 : index
    %c0_435 = arith.constant 0 : index
    %502 = vector.load %arg10[%c7_433, %c6_434, %c0_435] : memref<16x24x128xf32, #tpu.memory_space<vmem>>, vector<8x16x128xf32>
    %503 = vector.broadcast %501 : vector<1x1x128xf32> to vector<8x16x128xf32>
    %504 = arith.mulf %502, %503 : vector<8x16x128xf32>
    %505 = arith.addf %498, %504 : vector<8x16x128xf32>
    %c7_436 = arith.constant 7 : index
    %c7_437 = arith.constant 7 : index
    %c0_438 = arith.constant 0 : index
    %506 = vector.load %arg4[%c7_436, %c7_437, %c0_438] : memref<9x9x128xf32, #tpu.memory_space<vmem>>, vector<1x1x128xf32>
    %507 = vector.shape_cast %506 : vector<1x1x128xf32> to vector<128xf32>
    %508 = vector.shape_cast %507 : vector<128xf32> to vector<1x1x128xf32>
    %c7_439 = arith.constant 7 : index
    %c7_440 = arith.constant 7 : index
    %c0_441 = arith.constant 0 : index
    %509 = vector.load %arg10[%c7_439, %c7_440, %c0_441] : memref<16x24x128xf32, #tpu.memory_space<vmem>>, vector<8x16x128xf32>
    %510 = vector.broadcast %508 : vector<1x1x128xf32> to vector<8x16x128xf32>
    %511 = arith.mulf %509, %510 : vector<8x16x128xf32>
    %512 = arith.addf %505, %511 : vector<8x16x128xf32>
    %c7_442 = arith.constant 7 : index
    %c8_443 = arith.constant 8 : index
    %c0_444 = arith.constant 0 : index
    %513 = vector.load %arg4[%c7_442, %c8_443, %c0_444] : memref<9x9x128xf32, #tpu.memory_space<vmem>>, vector<1x1x128xf32>
    %514 = vector.shape_cast %513 : vector<1x1x128xf32> to vector<128xf32>
    %515 = vector.shape_cast %514 : vector<128xf32> to vector<1x1x128xf32>
    %c7_445 = arith.constant 7 : index
    %c8_446 = arith.constant 8 : index
    %c0_447 = arith.constant 0 : index
    %516 = vector.load %arg10[%c7_445, %c8_446, %c0_447] : memref<16x24x128xf32, #tpu.memory_space<vmem>>, vector<8x16x128xf32>
    %517 = vector.broadcast %515 : vector<1x1x128xf32> to vector<8x16x128xf32>
    %518 = arith.mulf %516, %517 : vector<8x16x128xf32>
    %519 = arith.addf %512, %518 : vector<8x16x128xf32>
    %c8_448 = arith.constant 8 : index
    %c0_449 = arith.constant 0 : index
    %c0_450 = arith.constant 0 : index
    %520 = vector.load %arg4[%c8_448, %c0_449, %c0_450] : memref<9x9x128xf32, #tpu.memory_space<vmem>>, vector<1x1x128xf32>
    %521 = vector.shape_cast %520 : vector<1x1x128xf32> to vector<128xf32>
    %522 = vector.shape_cast %521 : vector<128xf32> to vector<1x1x128xf32>
    %c8_451 = arith.constant 8 : index
    %c0_452 = arith.constant 0 : index
    %c0_453 = arith.constant 0 : index
    %523 = vector.load %arg10[%c8_451, %c0_452, %c0_453] : memref<16x24x128xf32, #tpu.memory_space<vmem>>, vector<8x16x128xf32>
    %524 = vector.broadcast %522 : vector<1x1x128xf32> to vector<8x16x128xf32>
    %525 = arith.mulf %523, %524 : vector<8x16x128xf32>
    %526 = arith.addf %519, %525 : vector<8x16x128xf32>
    %c8_454 = arith.constant 8 : index
    %c1_455 = arith.constant 1 : index
    %c0_456 = arith.constant 0 : index
    %527 = vector.load %arg4[%c8_454, %c1_455, %c0_456] : memref<9x9x128xf32, #tpu.memory_space<vmem>>, vector<1x1x128xf32>
    %528 = vector.shape_cast %527 : vector<1x1x128xf32> to vector<128xf32>
    %529 = vector.shape_cast %528 : vector<128xf32> to vector<1x1x128xf32>
    %c8_457 = arith.constant 8 : index
    %c1_458 = arith.constant 1 : index
    %c0_459 = arith.constant 0 : index
    %530 = vector.load %arg10[%c8_457, %c1_458, %c0_459] : memref<16x24x128xf32, #tpu.memory_space<vmem>>, vector<8x16x128xf32>
    %531 = vector.broadcast %529 : vector<1x1x128xf32> to vector<8x16x128xf32>
    %532 = arith.mulf %530, %531 : vector<8x16x128xf32>
    %533 = arith.addf %526, %532 : vector<8x16x128xf32>
    %c8_460 = arith.constant 8 : index
    %c2_461 = arith.constant 2 : index
    %c0_462 = arith.constant 0 : index
    %534 = vector.load %arg4[%c8_460, %c2_461, %c0_462] : memref<9x9x128xf32, #tpu.memory_space<vmem>>, vector<1x1x128xf32>
    %535 = vector.shape_cast %534 : vector<1x1x128xf32> to vector<128xf32>
    %536 = vector.shape_cast %535 : vector<128xf32> to vector<1x1x128xf32>
    %c8_463 = arith.constant 8 : index
    %c2_464 = arith.constant 2 : index
    %c0_465 = arith.constant 0 : index
    %537 = vector.load %arg10[%c8_463, %c2_464, %c0_465] : memref<16x24x128xf32, #tpu.memory_space<vmem>>, vector<8x16x128xf32>
    %538 = vector.broadcast %536 : vector<1x1x128xf32> to vector<8x16x128xf32>
    %539 = arith.mulf %537, %538 : vector<8x16x128xf32>
    %540 = arith.addf %533, %539 : vector<8x16x128xf32>
    %c8_466 = arith.constant 8 : index
    %c3_467 = arith.constant 3 : index
    %c0_468 = arith.constant 0 : index
    %541 = vector.load %arg4[%c8_466, %c3_467, %c0_468] : memref<9x9x128xf32, #tpu.memory_space<vmem>>, vector<1x1x128xf32>
    %542 = vector.shape_cast %541 : vector<1x1x128xf32> to vector<128xf32>
    %543 = vector.shape_cast %542 : vector<128xf32> to vector<1x1x128xf32>
    %c8_469 = arith.constant 8 : index
    %c3_470 = arith.constant 3 : index
    %c0_471 = arith.constant 0 : index
    %544 = vector.load %arg10[%c8_469, %c3_470, %c0_471] : memref<16x24x128xf32, #tpu.memory_space<vmem>>, vector<8x16x128xf32>
    %545 = vector.broadcast %543 : vector<1x1x128xf32> to vector<8x16x128xf32>
    %546 = arith.mulf %544, %545 : vector<8x16x128xf32>
    %547 = arith.addf %540, %546 : vector<8x16x128xf32>
    %c8_472 = arith.constant 8 : index
    %c4_473 = arith.constant 4 : index
    %c0_474 = arith.constant 0 : index
    %548 = vector.load %arg4[%c8_472, %c4_473, %c0_474] : memref<9x9x128xf32, #tpu.memory_space<vmem>>, vector<1x1x128xf32>
    %549 = vector.shape_cast %548 : vector<1x1x128xf32> to vector<128xf32>
    %550 = vector.shape_cast %549 : vector<128xf32> to vector<1x1x128xf32>
    %c8_475 = arith.constant 8 : index
    %c4_476 = arith.constant 4 : index
    %c0_477 = arith.constant 0 : index
    %551 = vector.load %arg10[%c8_475, %c4_476, %c0_477] : memref<16x24x128xf32, #tpu.memory_space<vmem>>, vector<8x16x128xf32>
    %552 = vector.broadcast %550 : vector<1x1x128xf32> to vector<8x16x128xf32>
    %553 = arith.mulf %551, %552 : vector<8x16x128xf32>
    %554 = arith.addf %547, %553 : vector<8x16x128xf32>
    %c8_478 = arith.constant 8 : index
    %c5_479 = arith.constant 5 : index
    %c0_480 = arith.constant 0 : index
    %555 = vector.load %arg4[%c8_478, %c5_479, %c0_480] : memref<9x9x128xf32, #tpu.memory_space<vmem>>, vector<1x1x128xf32>
    %556 = vector.shape_cast %555 : vector<1x1x128xf32> to vector<128xf32>
    %557 = vector.shape_cast %556 : vector<128xf32> to vector<1x1x128xf32>
    %c8_481 = arith.constant 8 : index
    %c5_482 = arith.constant 5 : index
    %c0_483 = arith.constant 0 : index
    %558 = vector.load %arg10[%c8_481, %c5_482, %c0_483] : memref<16x24x128xf32, #tpu.memory_space<vmem>>, vector<8x16x128xf32>
    %559 = vector.broadcast %557 : vector<1x1x128xf32> to vector<8x16x128xf32>
    %560 = arith.mulf %558, %559 : vector<8x16x128xf32>
    %561 = arith.addf %554, %560 : vector<8x16x128xf32>
    %c8_484 = arith.constant 8 : index
    %c6_485 = arith.constant 6 : index
    %c0_486 = arith.constant 0 : index
    %562 = vector.load %arg4[%c8_484, %c6_485, %c0_486] : memref<9x9x128xf32, #tpu.memory_space<vmem>>, vector<1x1x128xf32>
    %563 = vector.shape_cast %562 : vector<1x1x128xf32> to vector<128xf32>
    %564 = vector.shape_cast %563 : vector<128xf32> to vector<1x1x128xf32>
    %c8_487 = arith.constant 8 : index
    %c6_488 = arith.constant 6 : index
    %c0_489 = arith.constant 0 : index
    %565 = vector.load %arg10[%c8_487, %c6_488, %c0_489] : memref<16x24x128xf32, #tpu.memory_space<vmem>>, vector<8x16x128xf32>
    %566 = vector.broadcast %564 : vector<1x1x128xf32> to vector<8x16x128xf32>
    %567 = arith.mulf %565, %566 : vector<8x16x128xf32>
    %568 = arith.addf %561, %567 : vector<8x16x128xf32>
    %c8_490 = arith.constant 8 : index
    %c7_491 = arith.constant 7 : index
    %c0_492 = arith.constant 0 : index
    %569 = vector.load %arg4[%c8_490, %c7_491, %c0_492] : memref<9x9x128xf32, #tpu.memory_space<vmem>>, vector<1x1x128xf32>
    %570 = vector.shape_cast %569 : vector<1x1x128xf32> to vector<128xf32>
    %571 = vector.shape_cast %570 : vector<128xf32> to vector<1x1x128xf32>
    %c8_493 = arith.constant 8 : index
    %c7_494 = arith.constant 7 : index
    %c0_495 = arith.constant 0 : index
    %572 = vector.load %arg10[%c8_493, %c7_494, %c0_495] : memref<16x24x128xf32, #tpu.memory_space<vmem>>, vector<8x16x128xf32>
    %573 = vector.broadcast %571 : vector<1x1x128xf32> to vector<8x16x128xf32>
    %574 = arith.mulf %572, %573 : vector<8x16x128xf32>
    %575 = arith.addf %568, %574 : vector<8x16x128xf32>
    %c8_496 = arith.constant 8 : index
    %c8_497 = arith.constant 8 : index
    %c0_498 = arith.constant 0 : index
    %576 = vector.load %arg4[%c8_496, %c8_497, %c0_498] : memref<9x9x128xf32, #tpu.memory_space<vmem>>, vector<1x1x128xf32>
    %577 = vector.shape_cast %576 : vector<1x1x128xf32> to vector<128xf32>
    %578 = vector.shape_cast %577 : vector<128xf32> to vector<1x1x128xf32>
    %c8_499 = arith.constant 8 : index
    %c8_500 = arith.constant 8 : index
    %c0_501 = arith.constant 0 : index
    %579 = vector.load %arg10[%c8_499, %c8_500, %c0_501] : memref<16x24x128xf32, #tpu.memory_space<vmem>>, vector<8x16x128xf32>
    %580 = vector.broadcast %578 : vector<1x1x128xf32> to vector<8x16x128xf32>
    %581 = arith.mulf %579, %580 : vector<8x16x128xf32>
    %582 = arith.addf %575, %581 : vector<8x16x128xf32>
    %583 = vector.broadcast %12 : vector<1x1x128xf32> to vector<8x16x128xf32>
    %584 = arith.addf %582, %583 : vector<8x16x128xf32>
    %cst_502 = arith.constant 5.000000e-01 : f32
    %585 = vector.broadcast %cst_502 : f32 to vector<8x16x128xf32>
    %586 = arith.mulf %585, %584 : vector<8x16x128xf32>
    %cst_503 = arith.constant 0.707106769 : f32
    %587 = vector.broadcast %cst_503 : f32 to vector<8x16x128xf32>
    %588 = arith.mulf %584, %587 : vector<8x16x128xf32>
    %cst_504 = arith.constant 0.000000e+00 : f32
    %589 = vector.broadcast %cst_504 : f32 to vector<8x16x128xf32>
    %590 = arith.cmpf oge, %588, %589 : vector<8x16x128xf32>
    %cst_505 = arith.constant 1.000000e+00 : f32
    %cst_506 = arith.constant -1.000000e+00 : f32
    %591 = vector.broadcast %cst_505 : f32 to vector<8x16x128xf32>
    %592 = vector.broadcast %cst_506 : f32 to vector<8x16x128xf32>
    %593 = arith.select %590, %591, %592 : vector<8x16x128xi1>, vector<8x16x128xf32>
    %594 = math.absf %588 : vector<8x16x128xf32>
    %cst_507 = arith.constant 0.327591091 : f32
    %595 = vector.broadcast %cst_507 : f32 to vector<8x16x128xf32>
    %596 = arith.mulf %595, %594 : vector<8x16x128xf32>
    %cst_508 = arith.constant 1.000000e+00 : f32
    %597 = vector.broadcast %cst_508 : f32 to vector<8x16x128xf32>
    %598 = arith.addf %597, %596 : vector<8x16x128xf32>
    %cst_509 = arith.constant 1.000000e+00 : f32
    %599 = vector.broadcast %cst_509 : f32 to vector<8x16x128xf32>
    %600 = arith.divf %599, %598 : vector<8x16x128xf32>
    %cst_510 = arith.constant 1.06140542 : f32
    %601 = vector.broadcast %cst_510 : f32 to vector<8x16x128xf32>
    %602 = arith.mulf %601, %600 : vector<8x16x128xf32>
    %cst_511 = arith.constant -1.45315206 : f32
    %603 = vector.broadcast %cst_511 : f32 to vector<8x16x128xf32>
    %604 = arith.addf %602, %603 : vector<8x16x128xf32>
    %605 = arith.mulf %604, %600 : vector<8x16x128xf32>
    %cst_512 = arith.constant 1.42141378 : f32
    %606 = vector.broadcast %cst_512 : f32 to vector<8x16x128xf32>
    %607 = arith.addf %605, %606 : vector<8x16x128xf32>
    %608 = arith.mulf %607, %600 : vector<8x16x128xf32>
    %cst_513 = arith.constant -0.284496725 : f32
    %609 = vector.broadcast %cst_513 : f32 to vector<8x16x128xf32>
    %610 = arith.addf %608, %609 : vector<8x16x128xf32>
    %611 = arith.mulf %610, %600 : vector<8x16x128xf32>
    %cst_514 = arith.constant 0.254829586 : f32
    %612 = vector.broadcast %cst_514 : f32 to vector<8x16x128xf32>
    %613 = arith.addf %611, %612 : vector<8x16x128xf32>
    %614 = arith.mulf %613, %600 : vector<8x16x128xf32>
    %cst_515 = arith.constant 0.000000e+00 : f32
    %615 = vector.broadcast %cst_515 : f32 to vector<8x16x128xf32>
    %616 = arith.subf %615, %594 : vector<8x16x128xf32>
    %617 = arith.mulf %616, %594 : vector<8x16x128xf32>
    %618 = math.exp %617 : vector<8x16x128xf32>
    %619 = arith.mulf %614, %618 : vector<8x16x128xf32>
    %cst_516 = arith.constant 1.000000e+00 : f32
    %620 = vector.broadcast %cst_516 : f32 to vector<8x16x128xf32>
    %621 = arith.subf %620, %619 : vector<8x16x128xf32>
    %622 = arith.mulf %593, %621 : vector<8x16x128xf32>
    %cst_517 = arith.constant 1.000000e+00 : f32
    %623 = vector.broadcast %cst_517 : f32 to vector<8x16x128xf32>
    %624 = arith.addf %623, %622 : vector<8x16x128xf32>
    %625 = arith.mulf %586, %624 : vector<8x16x128xf32>
    %c0_518 = arith.constant 0 : index
    %c0_519 = arith.constant 0 : index
    %c0_520 = arith.constant 0 : index
    %c0_521 = arith.constant 0 : index
    %626 = vector.load %arg6[%c0_518, %c0_519, %c0_520, %c0_521] : memref<1x8x16x128xf32, #tpu.memory_space<vmem>>, vector<1x8x16x128xf32>
    %627 = vector.shape_cast %626 : vector<1x8x16x128xf32> to vector<8x16x128xf32>
    %628 = vector.shape_cast %625 : vector<8x16x128xf32> to vector<1x8x16x128xf32>
    tpu.vector_store %arg6[%c0_518, %c0_519, %c0_520, %c0_521], %628 {strides = array<i32>} : memref<1x8x16x128xf32, #tpu.memory_space<vmem>>, vector<1x8x16x128xf32>,
    %cst_522 = arith.constant dense<0.000000e+00> : vector<8x128xf32>
    %629 = vector.multi_reduction <add>, %625, %cst_522 [1] : vector<8x16x128xf32> to vector<8x128xf32>
    %630 = arith.addf %13, %629 : vector<8x128xf32>
    %631 = arith.mulf %625, %625 : vector<8x16x128xf32>
    %cst_523 = arith.constant dense<0.000000e+00> : vector<8x128xf32>
    %632 = vector.multi_reduction <add>, %631, %cst_523 [1] : vector<8x16x128xf32> to vector<8x128xf32>
    %633 = arith.addf %14, %632 : vector<8x128xf32>
    %c0_524 = arith.constant 0 : index
    %c0_525 = arith.constant 0 : index
    %c0_526 = arith.constant 0 : index
    %634 = vector.load %arg8[%c0_524, %c0_525, %c0_526] : memref<1x8x128xf32, #tpu.memory_space<vmem>>, vector<1x8x128xf32>
    %635 = vector.shape_cast %634 : vector<1x8x128xf32> to vector<8x128xf32>
    %636 = vector.shape_cast %630 : vector<8x128xf32> to vector<1x8x128xf32>
    tpu.vector_store %arg8[%c0_524, %c0_525, %c0_526], %636 {strides = array<i32>} : memref<1x8x128xf32, #tpu.memory_space<vmem>>, vector<1x8x128xf32>,
    %c0_527 = arith.constant 0 : index
    %c0_528 = arith.constant 0 : index
    %c0_529 = arith.constant 0 : index
    %637 = vector.load %arg9[%c0_527, %c0_528, %c0_529] : memref<1x8x128xf32, #tpu.memory_space<vmem>>, vector<1x8x128xf32>
    %638 = vector.shape_cast %637 : vector<1x8x128xf32> to vector<8x128xf32>
    %639 = vector.shape_cast %633 : vector<8x128xf32> to vector<1x8x128xf32>
    tpu.vector_store %arg9[%c0_527, %c0_528, %c0_529], %639 {strides = array<i32>} : memref<1x8x128xf32, #tpu.memory_space<vmem>>, vector<1x8x128xf32>,
    return
  }
  func.func @transform_0(%arg0: i32, %arg1: i32) -> (i32, i32, i32, i32) {
    %c0_i32 = arith.constant 0 : i32
    %c0_i32_0 = arith.constant 0 : i32
    %c0_i32_1 = arith.constant 0 : i32
    return %arg0, %arg1, %c0_i32, %c0_i32_0 : i32, i32, i32, i32
  }
  func.func @transform_1(%arg0: i32, %arg1: i32) -> (i32, i32, i32, i32) {
    %c1_i32 = arith.constant 1 : i32
    %0 = arith.addi %arg1, %c1_i32 : i32
    %c0_i32 = arith.constant 0 : i32
    %c0_i32_0 = arith.constant 0 : i32
    %c0_i32_1 = arith.constant 0 : i32
    return %arg0, %0, %c0_i32, %c0_i32_0 : i32, i32, i32, i32
  }
  func.func @transform_2(%arg0: i32, %arg1: i32) -> (i32, i32, i32) {
    %c0_i32 = arith.constant 0 : i32
    %c0_i32_0 = arith.constant 0 : i32
    %c0_i32_1 = arith.constant 0 : i32
    %c0_i32_2 = arith.constant 0 : i32
    return %c0_i32, %c0_i32_0, %c0_i32_1 : i32, i32, i32
  }
  func.func @transform_3(%arg0: i32, %arg1: i32) -> (i32, i32) {
    %c0_i32 = arith.constant 0 : i32
    %c0_i32_0 = arith.constant 0 : i32
    %c0_i32_1 = arith.constant 0 : i32
    return %c0_i32, %c0_i32_0 : i32, i32
  }
  func.func @transform_4(%arg0: i32, %arg1: i32) -> (i32, i32, i32, i32) {
    %c0_i32 = arith.constant 0 : i32
    %c0_i32_0 = arith.constant 0 : i32
    %c0_i32_1 = arith.constant 0 : i32
    return %arg0, %arg1, %c0_i32, %c0_i32_0 : i32, i32, i32, i32
  }
  func.func @transform_5(%arg0: i32, %arg1: i32) -> (i32, i32, i32, i32) {
    %c0_i32 = arith.constant 0 : i32
    %c0_i32_0 = arith.constant 0 : i32
    %c0_i32_1 = arith.constant 0 : i32
    return %arg0, %arg1, %c0_i32, %c0_i32_0 : i32, i32, i32, i32
  }
  func.func @transform_6(%arg0: i32, %arg1: i32) -> (i32, i32, i32) {
    %c2_i32 = arith.constant 2 : i32
    %0 = arith.muli %arg0, %c2_i32 : i32
    %1 = arith.addi %0, %arg1 : i32
    %c0_i32 = arith.constant 0 : i32
    %c0_i32_0 = arith.constant 0 : i32
    %c0_i32_1 = arith.constant 0 : i32
    return %1, %c0_i32, %c0_i32_0 : i32, i32, i32
  }
  func.func @transform_7(%arg0: i32, %arg1: i32) -> (i32, i32, i32) {
    %c2_i32 = arith.constant 2 : i32
    %0 = arith.muli %arg0, %c2_i32 : i32
    %1 = arith.addi %0, %arg1 : i32
    %c0_i32 = arith.constant 0 : i32
    %c0_i32_0 = arith.constant 0 : i32
    %c0_i32_1 = arith.constant 0 : i32
    return %1, %c0_i32, %c0_i32_0 : i32, i32, i32
  }
}

module attributes {stable_mosaic.version = 11 : i64} {
  func.func @resid_pw_gelu_kernel(%arg0: i32, %arg1: memref<512x128xf32, #tpu.memory_space<vmem>>, %arg2: memref<512x128xf32, #tpu.memory_space<vmem>>, %arg3: memref<1x128xf32, #tpu.memory_space<vmem>>, %arg4: memref<1x128xf32, #tpu.memory_space<vmem>>, %arg5: memref<128x128xf32, #tpu.memory_space<vmem>>, %arg6: memref<1x128xf32, #tpu.memory_space<vmem>>, %arg7: memref<512x128xf32, #tpu.memory_space<vmem>>, %arg8: memref<1x8x128xf32, #tpu.memory_space<vmem>>, %arg9: memref<1x8x128xf32, #tpu.memory_space<vmem>>) attributes {dimension_semantics = [#tpu.dimension_semantics<parallel>], iteration_bounds = array<i64: 1>, scalar_prefetch = 0 : i64, scratch_operands = 0 : i64, tpu.core_type = #tpu.core_type<tc>, window_params = [{transform_indices = @transform_0, window_bounds = array<i64: 512, 128>}, {transform_indices = @transform_1, window_bounds = array<i64: 512, 128>}, {pipeline_mode = #tpu.pipeline_mode<synchronous>, transform_indices = @transform_2, window_bounds = array<i64: 1, 128>}, {pipeline_mode = #tpu.pipeline_mode<synchronous>, transform_indices = @transform_3, window_bounds = array<i64: 1, 128>}, {pipeline_mode = #tpu.pipeline_mode<synchronous>, transform_indices = @transform_4, window_bounds = array<i64: 128, 128>}, {pipeline_mode = #tpu.pipeline_mode<synchronous>, transform_indices = @transform_5, window_bounds = array<i64: 1, 128>}, {transform_indices = @transform_6, window_bounds = array<i64: 512, 128>}, {transform_indices = @transform_7, window_bounds = array<i64: 1, 8, 128>}, {transform_indices = @transform_8, window_bounds = array<i64: 1, 8, 128>}]} {
    %c0 = arith.constant 0 : index
    %c0_0 = arith.constant 0 : index
    %0 = vector.load %arg1[%c0, %c0_0] : memref<512x128xf32, #tpu.memory_space<vmem>>, vector<512x128xf32>
    %c0_1 = arith.constant 0 : index
    %c0_2 = arith.constant 0 : index
    %1 = vector.load %arg2[%c0_1, %c0_2] : memref<512x128xf32, #tpu.memory_space<vmem>>, vector<512x128xf32>
    %c0_3 = arith.constant 0 : index
    %c0_4 = arith.constant 0 : index
    %2 = vector.load %arg3[%c0_3, %c0_4] : memref<1x128xf32, #tpu.memory_space<vmem>>, vector<1x128xf32>
    %3 = vector.broadcast %2 : vector<1x128xf32> to vector<512x128xf32>
    %4 = arith.mulf %1, %3 : vector<512x128xf32>
    %5 = arith.addf %0, %4 : vector<512x128xf32>
    %c0_5 = arith.constant 0 : index
    %c0_6 = arith.constant 0 : index
    %6 = vector.load %arg4[%c0_5, %c0_6] : memref<1x128xf32, #tpu.memory_space<vmem>>, vector<1x128xf32>
    %7 = vector.broadcast %6 : vector<1x128xf32> to vector<512x128xf32>
    %8 = arith.addf %5, %7 : vector<512x128xf32>
    %c0_7 = arith.constant 0 : index
    %c0_8 = arith.constant 0 : index
    %9 = vector.load %arg5[%c0_7, %c0_8] : memref<128x128xf32, #tpu.memory_space<vmem>>, vector<128x128xf32>
    %cst = arith.constant dense<0.000000e+00> : vector<512x128xf32>
    %10 = tpu.matmul %8, %9, %cst {dimension_numbers = #tpu.dot_dimension_numbers<[1], [0], [0], [1], [0, 0, 1, 1], [], []>} : vector<512x128xf32>, vector<128x128xf32>, vector<512x128xf32> -> vector<512x128xf32>
    %c0_9 = arith.constant 0 : index
    %c0_10 = arith.constant 0 : index
    %11 = vector.load %arg6[%c0_9, %c0_10] : memref<1x128xf32, #tpu.memory_space<vmem>>, vector<1x128xf32>
    %12 = vector.broadcast %11 : vector<1x128xf32> to vector<512x128xf32>
    %13 = arith.addf %10, %12 : vector<512x128xf32>
    %cst_11 = arith.constant 5.000000e-01 : f32
    %14 = vector.broadcast %cst_11 : f32 to vector<512x128xf32>
    %15 = arith.mulf %14, %13 : vector<512x128xf32>
    %cst_12 = arith.constant 0.707106769 : f32
    %16 = vector.broadcast %cst_12 : f32 to vector<512x128xf32>
    %17 = arith.mulf %13, %16 : vector<512x128xf32>
    %cst_13 = arith.constant 0.000000e+00 : f32
    %18 = vector.broadcast %cst_13 : f32 to vector<512x128xf32>
    %19 = arith.cmpf oge, %17, %18 : vector<512x128xf32>
    %cst_14 = arith.constant 1.000000e+00 : f32
    %cst_15 = arith.constant -1.000000e+00 : f32
    %20 = vector.broadcast %cst_14 : f32 to vector<512x128xf32>
    %21 = vector.broadcast %cst_15 : f32 to vector<512x128xf32>
    %22 = arith.select %19, %20, %21 : vector<512x128xi1>, vector<512x128xf32>
    %23 = math.absf %17 : vector<512x128xf32>
    %cst_16 = arith.constant 0.327591091 : f32
    %24 = vector.broadcast %cst_16 : f32 to vector<512x128xf32>
    %25 = arith.mulf %24, %23 : vector<512x128xf32>
    %cst_17 = arith.constant 1.000000e+00 : f32
    %26 = vector.broadcast %cst_17 : f32 to vector<512x128xf32>
    %27 = arith.addf %26, %25 : vector<512x128xf32>
    %cst_18 = arith.constant 1.000000e+00 : f32
    %28 = vector.broadcast %cst_18 : f32 to vector<512x128xf32>
    %29 = arith.divf %28, %27 : vector<512x128xf32>
    %cst_19 = arith.constant 1.06140542 : f32
    %30 = vector.broadcast %cst_19 : f32 to vector<512x128xf32>
    %31 = arith.mulf %30, %29 : vector<512x128xf32>
    %cst_20 = arith.constant -1.45315206 : f32
    %32 = vector.broadcast %cst_20 : f32 to vector<512x128xf32>
    %33 = arith.addf %31, %32 : vector<512x128xf32>
    %34 = arith.mulf %33, %29 : vector<512x128xf32>
    %cst_21 = arith.constant 1.42141378 : f32
    %35 = vector.broadcast %cst_21 : f32 to vector<512x128xf32>
    %36 = arith.addf %34, %35 : vector<512x128xf32>
    %37 = arith.mulf %36, %29 : vector<512x128xf32>
    %cst_22 = arith.constant -0.284496725 : f32
    %38 = vector.broadcast %cst_22 : f32 to vector<512x128xf32>
    %39 = arith.addf %37, %38 : vector<512x128xf32>
    %40 = arith.mulf %39, %29 : vector<512x128xf32>
    %cst_23 = arith.constant 0.254829586 : f32
    %41 = vector.broadcast %cst_23 : f32 to vector<512x128xf32>
    %42 = arith.addf %40, %41 : vector<512x128xf32>
    %43 = arith.mulf %42, %29 : vector<512x128xf32>
    %cst_24 = arith.constant 0.000000e+00 : f32
    %44 = vector.broadcast %cst_24 : f32 to vector<512x128xf32>
    %45 = arith.subf %44, %23 : vector<512x128xf32>
    %46 = arith.mulf %45, %23 : vector<512x128xf32>
    %47 = math.exp %46 : vector<512x128xf32>
    %48 = arith.mulf %43, %47 : vector<512x128xf32>
    %cst_25 = arith.constant 1.000000e+00 : f32
    %49 = vector.broadcast %cst_25 : f32 to vector<512x128xf32>
    %50 = arith.subf %49, %48 : vector<512x128xf32>
    %51 = arith.mulf %22, %50 : vector<512x128xf32>
    %cst_26 = arith.constant 1.000000e+00 : f32
    %52 = vector.broadcast %cst_26 : f32 to vector<512x128xf32>
    %53 = arith.addf %52, %51 : vector<512x128xf32>
    %54 = arith.mulf %15, %53 : vector<512x128xf32>
    %c0_27 = arith.constant 0 : index
    %c0_28 = arith.constant 0 : index
    %55 = vector.load %arg7[%c0_27, %c0_28] : memref<512x128xf32, #tpu.memory_space<vmem>>, vector<512x128xf32>
    tpu.vector_store %arg7[%c0_27, %c0_28], %54 {strides = array<i32>} : memref<512x128xf32, #tpu.memory_space<vmem>>, vector<512x128xf32>,
    %56 = vector.shape_cast %54 : vector<512x128xf32> to vector<64x8x128xf32>
    %cst_29 = arith.constant dense<0.000000e+00> : vector<8x128xf32>
    %57 = vector.multi_reduction <add>, %56, %cst_29 [0] : vector<64x8x128xf32> to vector<8x128xf32>
    %c0_30 = arith.constant 0 : index
    %c0_31 = arith.constant 0 : index
    %c0_32 = arith.constant 0 : index
    %58 = vector.load %arg8[%c0_30, %c0_31, %c0_32] : memref<1x8x128xf32, #tpu.memory_space<vmem>>, vector<1x8x128xf32>
    %59 = vector.shape_cast %58 : vector<1x8x128xf32> to vector<8x128xf32>
    %60 = vector.shape_cast %57 : vector<8x128xf32> to vector<1x8x128xf32>
    tpu.vector_store %arg8[%c0_30, %c0_31, %c0_32], %60 {strides = array<i32>} : memref<1x8x128xf32, #tpu.memory_space<vmem>>, vector<1x8x128xf32>,
    %61 = arith.mulf %56, %56 : vector<64x8x128xf32>
    %cst_33 = arith.constant dense<0.000000e+00> : vector<8x128xf32>
    %62 = vector.multi_reduction <add>, %61, %cst_33 [0] : vector<64x8x128xf32> to vector<8x128xf32>
    %c0_34 = arith.constant 0 : index
    %c0_35 = arith.constant 0 : index
    %c0_36 = arith.constant 0 : index
    %63 = vector.load %arg9[%c0_34, %c0_35, %c0_36] : memref<1x8x128xf32, #tpu.memory_space<vmem>>, vector<1x8x128xf32>
    %64 = vector.shape_cast %63 : vector<1x8x128xf32> to vector<8x128xf32>
    %65 = vector.shape_cast %62 : vector<8x128xf32> to vector<1x8x128xf32>
    tpu.vector_store %arg9[%c0_34, %c0_35, %c0_36], %65 {strides = array<i32>} : memref<1x8x128xf32, #tpu.memory_space<vmem>>, vector<1x8x128xf32>,
    return
  }
  func.func @transform_0(%arg0: i32) -> (i32, i32) {
    %c0_i32 = arith.constant 0 : i32
    %c0_i32_0 = arith.constant 0 : i32
    return %arg0, %c0_i32 : i32, i32
  }
  func.func @transform_1(%arg0: i32) -> (i32, i32) {
    %c0_i32 = arith.constant 0 : i32
    %c0_i32_0 = arith.constant 0 : i32
    return %arg0, %c0_i32 : i32, i32
  }
  func.func @transform_2(%arg0: i32) -> (i32, i32) {
    %c0_i32 = arith.constant 0 : i32
    %c0_i32_0 = arith.constant 0 : i32
    %c0_i32_1 = arith.constant 0 : i32
    return %c0_i32, %c0_i32_0 : i32, i32
  }
  func.func @transform_3(%arg0: i32) -> (i32, i32) {
    %c0_i32 = arith.constant 0 : i32
    %c0_i32_0 = arith.constant 0 : i32
    %c0_i32_1 = arith.constant 0 : i32
    return %c0_i32, %c0_i32_0 : i32, i32
  }
  func.func @transform_4(%arg0: i32) -> (i32, i32) {
    %c0_i32 = arith.constant 0 : i32
    %c0_i32_0 = arith.constant 0 : i32
    %c0_i32_1 = arith.constant 0 : i32
    return %c0_i32, %c0_i32_0 : i32, i32
  }
  func.func @transform_5(%arg0: i32) -> (i32, i32) {
    %c0_i32 = arith.constant 0 : i32
    %c0_i32_0 = arith.constant 0 : i32
    %c0_i32_1 = arith.constant 0 : i32
    return %c0_i32, %c0_i32_0 : i32, i32
  }
  func.func @transform_6(%arg0: i32) -> (i32, i32) {
    %c0_i32 = arith.constant 0 : i32
    %c0_i32_0 = arith.constant 0 : i32
    return %arg0, %c0_i32 : i32, i32
  }
  func.func @transform_7(%arg0: i32) -> (i32, i32, i32) {
    %c0_i32 = arith.constant 0 : i32
    %c0_i32_0 = arith.constant 0 : i32
    %c0_i32_1 = arith.constant 0 : i32
    return %arg0, %c0_i32, %c0_i32_0 : i32, i32, i32
  }
  func.func @transform_8(%arg0: i32) -> (i32, i32, i32) {
    %c0_i32 = arith.constant 0 : i32
    %c0_i32_0 = arith.constant 0 : i32
    %c0_i32_1 = arith.constant 0 : i32
    return %arg0, %c0_i32, %c0_i32_0 : i32, i32, i32
  }
}

</mosaic_0001>

<llo_original>
// kernel: convmixer_subblock.3
$region0: #{convmixer_subblock.3}
  #allocation0 [shape = 'u32[]', space=smem, size = 0x4, offset = 0x4, fixed_abs, tag = 'smem constant byte address 0x4 - core index']
  #allocation1 [shape = 'u32[144,128]{1,0:T(1,128)}', space=vmem, size = 0x12000, scoped, tag = 'internal scratch']
  %s0 = inlined_call_operand.vmem [shape: f32[512,128], index: 0, kind: input, shape index: {}]
  %s1 = inlined_call_operand.vmem [shape: f32[512,128], index: 1, kind: input, shape index: {}]
  %s2 = inlined_call_operand.vmem [shape: f32[1,128], index: 2, kind: input, shape index: {}]
  %s3 = inlined_call_operand.vmem [shape: f32[1,128], index: 3, kind: input, shape index: {}]
  %s4 = inlined_call_operand.vmem [shape: f32[128,128], index: 4, kind: input, shape index: {}]
  %s5 = inlined_call_operand.vmem [shape: f32[1,128], index: 5, kind: input, shape index: {}]
  %s6 = inlined_call_operand.vmem [shape: f32[512,128], index: 6, kind: output, shape index: {0}]
  %s7 = inlined_call_operand.vmem [shape: f32[1,8,128], index: 7, kind: output, shape index: {1}]
  %s8 = inlined_call_operand.vmem [shape: f32[1,8,128], index: 8, kind: output, shape index: {2}]
  %9 = xla_tuple %s6, %s7, %s8
  %s10 = sld [smem:[#allocation0]]
  $region50: #{convmixer_subblock.3} parent=0
    _
  %s12 = ssub.s32 1, %s10
  %s13 = scalar_select 0, %s12, %s10
  // Predicated region
  $region2: #{convmixer_subblock.3} parent=0 // pred_check
    _
  $region3: #{convmixer_subblock.3} parent=0 // pred_check_branch
    %15 = sbr.rel (0) target = $region5
  $region4: #{convmixer_subblock.3} parent=0 // pred_region
    _
  $region5: #{convmixer_subblock.3} parent=0 // pred_fallthru
    _
  // Predicated region
  $region6: #{convmixer_subblock.3} parent=0 // pred_check
    _
  $region7: #{convmixer_subblock.3} parent=0 // pred_check_branch
    %17 = sbr.rel (0) target = $region9
  $region8: #{convmixer_subblock.3} parent=0 // pred_region
    _
  $region9: #{convmixer_subblock.3} parent=0 // pred_fallthru
    _
  // Predicated region
  $region10: #{convmixer_subblock.3} parent=0 // pred_check
    _
  $region11: #{convmixer_subblock.3} parent=0 // pred_check_branch
    %19 = sbr.rel (0) target = $region13
  $region12: #{convmixer_subblock.3} parent=0 // pred_region
    _
  $region13: #{convmixer_subblock.3} parent=0 // pred_fallthru
    _
  // Predicated region
  $region14: #{convmixer_subblock.3} parent=0 // pred_check
    _
  $region15: #{convmixer_subblock.3} parent=0 // pred_check_branch
    %21 = sbr.rel (0) target = $region17
  $region16: #{convmixer_subblock.3} parent=0 // pred_region
    _
  $region17: #{convmixer_subblock.3} parent=0 // pred_fallthru
    _
  // Predicated region
  $region18: #{convmixer_subblock.3} parent=0 // pred_check
    _
  $region19: #{convmixer_subblock.3} parent=0 // pred_check_branch
    %23 = sbr.rel (0) target = $region21
  $region20: #{convmixer_subblock.3} parent=0 // pred_region
    _
  $region21: #{convmixer_subblock.3} parent=0 // pred_fallthru
    _
  // Predicated region
  $region22: #{convmixer_subblock.3} parent=0 // pred_check
    _
  $region23: #{convmixer_subblock.3} parent=0 // pred_check_branch
    %25 = sbr.rel (0) target = $region25
  $region24: #{convmixer_subblock.3} parent=0 // pred_region
    _
  $region25: #{convmixer_subblock.3} parent=0 // pred_fallthru
    _
  %v26 = vld [vmem:[%s0] sm:$0xff]
  %v27 = vld [vmem:[%s0 + $0x8] sm:$0xff]
  %v28 = vld [vmem:[%s0 + $0x10] sm:$0xff]
  %v29 = vld [vmem:[%s0 + $0x18] sm:$0xff]
  %v30 = vld [vmem:[%s0 + $0x20] sm:$0xff]
  %v31 = vld [vmem:[%s0 + $0x28] sm:$0xff]
  %v32 = vld [vmem:[%s0 + $0x30] sm:$0xff]
  %v33 = vld [vmem:[%s0 + $0x38] sm:$0xff]
  %v34 = vld [vmem:[%s0 + $0x40] sm:$0xff]
  %v35 = vld [vmem:[%s0 + $0x48] sm:$0xff]
  %v36 = vld [vmem:[%s0 + $0x50] sm:$0xff]
  %v37 = vld [vmem:[%s0 + $0x58] sm:$0xff]
  %v38 = vld [vmem:[%s0 + $0x60] sm:$0xff]
  %v39 = vld [vmem:[%s0 + $0x68] sm:$0xff]
  %v40 = vld [vmem:[%s0 + $0x70] sm:$0xff]
  %v41 = vld [vmem:[%s0 + $0x78] sm:$0xff]
  %v42 = vld [vmem:[%s0 + $0x80] sm:$0xff]
  %v43 = vld [vmem:[%s0 + $0x88] sm:$0xff]
  %v44 = vld [vmem:[%s0 + $0x90] sm:$0xff]
  %v45 = vld [vmem:[%s0 + $0x98] sm:$0xff]
  %v46 = vld [vmem:[%s0 + $0xa0] sm:$0xff]
  %v47 = vld [vmem:[%s0 + $0xa8] sm:$0xff]
  %v48 = vld [vmem:[%s0 + $0xb0] sm:$0xff]
  %v49 = vld [vmem:[%s0 + $0xb8] sm:$0xff]
  %v50 = vld [vmem:[%s0 + $0xc0] sm:$0xff]
  %v51 = vld [vmem:[%s0 + $0xc8] sm:$0xff]
  %v52 = vld [vmem:[%s0 + $0xd0] sm:$0xff]
  %v53 = vld [vmem:[%s0 + $0xd8] sm:$0xff]
  %v54 = vld [vmem:[%s0 + $0xe0] sm:$0xff]
  %v55 = vld [vmem:[%s0 + $0xe8] sm:$0xff]
  %v56 = vld [vmem:[%s0 + $0xf0] sm:$0xff]
  %v57 = vld [vmem:[%s0 + $0xf8] sm:$0xff]
  %v58 = vld [vmem:[%s0 + $0x100] sm:$0xff]
  %v59 = vld [vmem:[%s0 + $0x108] sm:$0xff]
  %v60 = vld [vmem:[%s0 + $0x110] sm:$0xff]
  %v61 = vld [vmem:[%s0 + $0x118] sm:$0xff]
  %v62 = vld [vmem:[%s0 + $0x120] sm:$0xff]
  %v63 = vld [vmem:[%s0 + $0x128] sm:$0xff]
  %v64 = vld [vmem:[%s0 + $0x130] sm:$0xff]
  %v65 = vld [vmem:[%s0 + $0x138] sm:$0xff]
  %v66 = vld [vmem:[%s0 + $0x140] sm:$0xff]
  %v67 = vld [vmem:[%s0 + $0x148] sm:$0xff]
  %v68 = vld [vmem:[%s0 + $0x150] sm:$0xff]
  %v69 = vld [vmem:[%s0 + $0x158] sm:$0xff]
  %v70 = vld [vmem:[%s0 + $0x160] sm:$0xff]
  %v71 = vld [vmem:[%s0 + $0x168] sm:$0xff]
  %v72 = vld [vmem:[%s0 + $0x170] sm:$0xff]
  %v73 = vld [vmem:[%s0 + $0x178] sm:$0xff]
  %v74 = vld [vmem:[%s0 + $0x180] sm:$0xff]
  %v75 = vld [vmem:[%s0 + $0x188] sm:$0xff]
  %v76 = vld [vmem:[%s0 + $0x190] sm:$0xff]
  %v77 = vld [vmem:[%s0 + $0x198] sm:$0xff]
  %v78 = vld [vmem:[%s0 + $0x1a0] sm:$0xff]
  %v79 = vld [vmem:[%s0 + $0x1a8] sm:$0xff]
  %v80 = vld [vmem:[%s0 + $0x1b0] sm:$0xff]
  %v81 = vld [vmem:[%s0 + $0x1b8] sm:$0xff]
  %v82 = vld [vmem:[%s0 + $0x1c0] sm:$0xff]
  %v83 = vld [vmem:[%s0 + $0x1c8] sm:$0xff]
  %v84 = vld [vmem:[%s0 + $0x1d0] sm:$0xff]
  %v85 = vld [vmem:[%s0 + $0x1d8] sm:$0xff]
  %v86 = vld [vmem:[%s0 + $0x1e0] sm:$0xff]
  %v87 = vld [vmem:[%s0 + $0x1e8] sm:$0xff]
  %v88 = vld [vmem:[%s0 + $0x1f0] sm:$0xff]
  %v89 = vld [vmem:[%s0 + $0x1f8] sm:$0xff]
  %v90 = vld [vmem:[%s1] sm:$0xff]
  %v91 = vld [vmem:[%s1 + $0x8] sm:$0xff]
  %v92 = vld [vmem:[%s1 + $0x10] sm:$0xff]
  %v93 = vld [vmem:[%s1 + $0x18] sm:$0xff]
  %v94 = vld [vmem:[%s1 + $0x20] sm:$0xff]
  %v95 = vld [vmem:[%s1 + $0x28] sm:$0xff]
  %v96 = vld [vmem:[%s1 + $0x30] sm:$0xff]
  %v97 = vld [vmem:[%s1 + $0x38] sm:$0xff]
  %v98 = vld [vmem:[%s1 + $0x40] sm:$0xff]
  %v99 = vld [vmem:[%s1 + $0x48] sm:$0xff]
  %v100 = vld [vmem:[%s1 + $0x50] sm:$0xff]
  %v101 = vld [vmem:[%s1 + $0x58] sm:$0xff]
  %v102 = vld [vmem:[%s1 + $0x60] sm:$0xff]
  %v103 = vld [vmem:[%s1 + $0x68] sm:$0xff]
  %v104 = vld [vmem:[%s1 + $0x70] sm:$0xff]
  %v105 = vld [vmem:[%s1 + $0x78] sm:$0xff]
  %v106 = vld [vmem:[%s1 + $0x80] sm:$0xff]
  %v107 = vld [vmem:[%s1 + $0x88] sm:$0xff]
  %v108 = vld [vmem:[%s1 + $0x90] sm:$0xff]
  %v109 = vld [vmem:[%s1 + $0x98] sm:$0xff]
  %v110 = vld [vmem:[%s1 + $0xa0] sm:$0xff]
  %v111 = vld [vmem:[%s1 + $0xa8] sm:$0xff]
  %v112 = vld [vmem:[%s1 + $0xb0] sm:$0xff]
  %v113 = vld [vmem:[%s1 + $0xb8] sm:$0xff]
  %v114 = vld [vmem:[%s1 + $0xc0] sm:$0xff]
  %v115 = vld [vmem:[%s1 + $0xc8] sm:$0xff]
  %v116 = vld [vmem:[%s1 + $0xd0] sm:$0xff]
  %v117 = vld [vmem:[%s1 + $0xd8] sm:$0xff]
  %v118 = vld [vmem:[%s1 + $0xe0] sm:$0xff]
  %v119 = vld [vmem:[%s1 + $0xe8] sm:$0xff]
  %v120 = vld [vmem:[%s1 + $0xf0] sm:$0xff]
  %v121 = vld [vmem:[%s1 + $0xf8] sm:$0xff]
  %v122 = vld [vmem:[%s1 + $0x100] sm:$0xff]
  %v123 = vld [vmem:[%s1 + $0x108] sm:$0xff]
  %v124 = vld [vmem:[%s1 + $0x110] sm:$0xff]
  %v125 = vld [vmem:[%s1 + $0x118] sm:$0xff]
  %v126 = vld [vmem:[%s1 + $0x120] sm:$0xff]
  %v127 = vld [vmem:[%s1 + $0x128] sm:$0xff]
  %v128 = vld [vmem:[%s1 + $0x130] sm:$0xff]
  %v129 = vld [vmem:[%s1 + $0x138] sm:$0xff]
  %v130 = vld [vmem:[%s1 + $0x140] sm:$0xff]
  %v131 = vld [vmem:[%s1 + $0x148] sm:$0xff]
  %v132 = vld [vmem:[%s1 + $0x150] sm:$0xff]
  %v133 = vld [vmem:[%s1 + $0x158] sm:$0xff]
  %v134 = vld [vmem:[%s1 + $0x160] sm:$0xff]
  %v135 = vld [vmem:[%s1 + $0x168] sm:$0xff]
  %v136 = vld [vmem:[%s1 + $0x170] sm:$0xff]
  %v137 = vld [vmem:[%s1 + $0x178] sm:$0xff]
  %v138 = vld [vmem:[%s1 + $0x180] sm:$0xff]
  %v139 = vld [vmem:[%s1 + $0x188] sm:$0xff]
  %v140 = vld [vmem:[%s1 + $0x190] sm:$0xff]
  %v141 = vld [vmem:[%s1 + $0x198] sm:$0xff]
  %v142 = vld [vmem:[%s1 + $0x1a0] sm:$0xff]
  %v143 = vld [vmem:[%s1 + $0x1a8] sm:$0xff]
  %v144 = vld [vmem:[%s1 + $0x1b0] sm:$0xff]
  %v145 = vld [vmem:[%s1 + $0x1b8] sm:$0xff]
  %v146 = vld [vmem:[%s1 + $0x1c0] sm:$0xff]
  %v147 = vld [vmem:[%s1 + $0x1c8] sm:$0xff]
  %v148 = vld [vmem:[%s1 + $0x1d0] sm:$0xff]
  %v149 = vld [vmem:[%s1 + $0x1d8] sm:$0xff]
  %v150 = vld [vmem:[%s1 + $0x1e0] sm:$0xff]
  %v151 = vld [vmem:[%s1 + $0x1e8] sm:$0xff]
  %v152 = vld [vmem:[%s1 + $0x1f0] sm:$0xff]
  %v153 = vld [vmem:[%s1 + $0x1f8] sm:$0xff]
  %v154 = vld [vmem:[%s2] sm:$0x1]
  %v156 = vlaneseq
  %v157 = vshrl.u32 %v156, 7
  %v158 = vsub.s32 0, %v157
  %v159 = vrot.slane %v154, %v158
  %v161 = vmul.f32 %v90, %v159
  %v162 = vmul.f32 %v91, %v159
  %v163 = vmul.f32 %v92, %v159
  %v164 = vmul.f32 %v93, %v159
  %v165 = vmul.f32 %v94, %v159
  %v166 = vmul.f32 %v95, %v159
  %v167 = vmul.f32 %v96, %v159
  %v168 = vmul.f32 %v97, %v159
  %v169 = vmul.f32 %v98, %v159
  %v170 = vmul.f32 %v99, %v159
  %v171 = vmul.f32 %v100, %v159
  %v172 = vmul.f32 %v101, %v159
  %v173 = vmul.f32 %v102, %v159
  %v174 = vmul.f32 %v103, %v159
  %v175 = vmul.f32 %v104, %v159
  %v176 = vmul.f32 %v105, %v159
  %v177 = vmul.f32 %v106, %v159
  %v178 = vmul.f32 %v107, %v159
  %v179 = vmul.f32 %v108, %v159
  %v180 = vmul.f32 %v109, %v159
  %v181 = vmul.f32 %v110, %v159
  %v182 = vmul.f32 %v111, %v159
  %v183 = vmul.f32 %v112, %v159
  %v184 = vmul.f32 %v113, %v159
  %v185 = vmul.f32 %v114, %v159
  %v186 = vmul.f32 %v115, %v159
  %v187 = vmul.f32 %v116, %v159
  %v188 = vmul.f32 %v117, %v159
  %v189 = vmul.f32 %v118, %v159
  %v190 = vmul.f32 %v119, %v159
  %v191 = vmul.f32 %v120, %v159
  %v192 = vmul.f32 %v121, %v159
  %v193 = vmul.f32 %v122, %v159
  %v194 = vmul.f32 %v123, %v159
  %v195 = vmul.f32 %v124, %v159
  %v196 = vmul.f32 %v125, %v159
  %v197 = vmul.f32 %v126, %v159
  %v198 = vmul.f32 %v127, %v159
  %v199 = vmul.f32 %v128, %v159
  %v200 = vmul.f32 %v129, %v159
  %v201 = vmul.f32 %v130, %v159
  %v202 = vmul.f32 %v131, %v159
  %v203 = vmul.f32 %v132, %v159
  %v204 = vmul.f32 %v133, %v159
  %v205 = vmul.f32 %v134, %v159
  %v206 = vmul.f32 %v135, %v159
  %v207 = vmul.f32 %v136, %v159
  %v208 = vmul.f32 %v137, %v159
  %v209 = vmul.f32 %v138, %v159
  %v210 = vmul.f32 %v139, %v159
  %v211 = vmul.f32 %v140, %v159
  %v212 = vmul.f32 %v141, %v159
  %v213 = vmul.f32 %v142, %v159
  %v214 = vmul.f32 %v143, %v159
  %v215 = vmul.f32 %v144, %v159
  %v216 = vmul.f32 %v145, %v159
  %v217 = vmul.f32 %v146, %v159
  %v218 = vmul.f32 %v147, %v159
  %v219 = vmul.f32 %v148, %v159
  %v220 = vmul.f32 %v149, %v159
  %v221 = vmul.f32 %v150, %v159
  %v222 = vmul.f32 %v151, %v159
  %v223 = vmul.f32 %v152, %v159
  %v224 = vmul.f32 %v153, %v159
  %v225 = vadd.f32 %v26, %v161
  %v226 = vadd.f32 %v27, %v162
  %v227 = vadd.f32 %v28, %v163
  %v228 = vadd.f32 %v29, %v164
  %v229 = vadd.f32 %v30, %v165
  %v230 = vadd.f32 %v31, %v166
  %v231 = vadd.f32 %v32, %v167
  %v232 = vadd.f32 %v33, %v168
  %v233 = vadd.f32 %v34, %v169
  %v234 = vadd.f32 %v35, %v170
  %v235 = vadd.f32 %v36, %v171
  %v236 = vadd.f32 %v37, %v172
  %v237 = vadd.f32 %v38, %v173
  %v238 = vadd.f32 %v39, %v174
  %v239 = vadd.f32 %v40, %v175
  %v240 = vadd.f32 %v41, %v176
  %v241 = vadd.f32 %v42, %v177
  %v242 = vadd.f32 %v43, %v178
  %v243 = vadd.f32 %v44, %v179
  %v244 = vadd.f32 %v45, %v180
  %v245 = vadd.f32 %v46, %v181
  %v246 = vadd.f32 %v47, %v182
  %v247 = vadd.f32 %v48, %v183
  %v248 = vadd.f32 %v49, %v184
  %v249 = vadd.f32 %v50, %v185
  %v250 = vadd.f32 %v51, %v186
  %v251 = vadd.f32 %v52, %v187
  %v252 = vadd.f32 %v53, %v188
  %v253 = vadd.f32 %v54, %v189
  %v254 = vadd.f32 %v55, %v190
  %v255 = vadd.f32 %v56, %v191
  %v256 = vadd.f32 %v57, %v192
  %v257 = vadd.f32 %v58, %v193
  %v258 = vadd.f32 %v59, %v194
  %v259 = vadd.f32 %v60, %v195
  %v260 = vadd.f32 %v61, %v196
  %v261 = vadd.f32 %v62, %v197
  %v262 = vadd.f32 %v63, %v198
  %v263 = vadd.f32 %v64, %v199
  %v264 = vadd.f32 %v65, %v200
  %v265 = vadd.f32 %v66, %v201
  %v266 = vadd.f32 %v67, %v202
  %v267 = vadd.f32 %v68, %v203
  %v268 = vadd.f32 %v69, %v204
  %v269 = vadd.f32 %v70, %v205
  %v270 = vadd.f32 %v71, %v206
  %v271 = vadd.f32 %v72, %v207
  %v272 = vadd.f32 %v73, %v208
  %v273 = vadd.f32 %v74, %v209
  %v274 = vadd.f32 %v75, %v210
  %v275 = vadd.f32 %v76, %v211
  %v276 = vadd.f32 %v77, %v212
  %v277 = vadd.f32 %v78, %v213
  %v278 = vadd.f32 %v79, %v214
  %v279 = vadd.f32 %v80, %v215
  %v280 = vadd.f32 %v81, %v216
  %v281 = vadd.f32 %v82, %v217
  %v282 = vadd.f32 %v83, %v218
  %v283 = vadd.f32 %v84, %v219
  %v284 = vadd.f32 %v85, %v220
  %v285 = vadd.f32 %v86, %v221
  %v286 = vadd.f32 %v87, %v222
  %v287 = vadd.f32 %v88, %v223
  %v288 = vadd.f32 %v89, %v224
  %v289 = vld [vmem:[%s3] sm:$0x1]
  %v291 = vlaneseq
  %v292 = vshrl.u32 %v291, 7
  %v293 = vsub.s32 0, %v292
  %v294 = vrot.slane %v289, %v293
  %v296 = vadd.f32 %v225, %v294
  %v297 = vadd.f32 %v226, %v294
  %v298 = vadd.f32 %v227, %v294
  %v299 = vadd.f32 %v228, %v294
  %v300 = vadd.f32 %v229, %v294
  %v301 = vadd.f32 %v230, %v294
  %v302 = vadd.f32 %v231, %v294
  %v303 = vadd.f32 %v232, %v294
  %v304 = vadd.f32 %v233, %v294
  %v305 = vadd.f32 %v234, %v294
  %v306 = vadd.f32 %v235, %v294
  %v307 = vadd.f32 %v236, %v294
  %v308 = vadd.f32 %v237, %v294
  %v309 = vadd.f32 %v238, %v294
  %v310 = vadd.f32 %v239, %v294
  %v311 = vadd.f32 %v240, %v294
  %v312 = vadd.f32 %v241, %v294
  %v313 = vadd.f32 %v242, %v294
  %v314 = vadd.f32 %v243, %v294
  %v315 = vadd.f32 %v244, %v294
  %v316 = vadd.f32 %v245, %v294
  %v317 = vadd.f32 %v246, %v294
  %v318 = vadd.f32 %v247, %v294
  %v319 = vadd.f32 %v248, %v294
  %v320 = vadd.f32 %v249, %v294
  %v321 = vadd.f32 %v250, %v294
  %v322 = vadd.f32 %v251, %v294
  %v323 = vadd.f32 %v252, %v294
  %v324 = vadd.f32 %v253, %v294
  %v325 = vadd.f32 %v254, %v294
  %v326 = vadd.f32 %v255, %v294
  %v327 = vadd.f32 %v256, %v294
  %v328 = vadd.f32 %v257, %v294
  %v329 = vadd.f32 %v258, %v294
  %v330 = vadd.f32 %v259, %v294
  %v331 = vadd.f32 %v260, %v294
  %v332 = vadd.f32 %v261, %v294
  %v333 = vadd.f32 %v262, %v294
  %v334 = vadd.f32 %v263, %v294
  %v335 = vadd.f32 %v264, %v294
  %v336 = vadd.f32 %v265, %v294
  %v337 = vadd.f32 %v266, %v294
  %v338 = vadd.f32 %v267, %v294
  %v339 = vadd.f32 %v268, %v294
  %v340 = vadd.f32 %v269, %v294
  %v341 = vadd.f32 %v270, %v294
  %v342 = vadd.f32 %v271, %v294
  %v343 = vadd.f32 %v272, %v294
  %v344 = vadd.f32 %v273, %v294
  %v345 = vadd.f32 %v274, %v294
  %v346 = vadd.f32 %v275, %v294
  %v347 = vadd.f32 %v276, %v294
  %v348 = vadd.f32 %v277, %v294
  %v349 = vadd.f32 %v278, %v294
  %v350 = vadd.f32 %v279, %v294
  %v351 = vadd.f32 %v280, %v294
  %v352 = vadd.f32 %v281, %v294
  %v353 = vadd.f32 %v282, %v294
  %v354 = vadd.f32 %v283, %v294
  %v355 = vadd.f32 %v284, %v294
  %v356 = vadd.f32 %v285, %v294
  %v357 = vadd.f32 %v286, %v294
  %v358 = vadd.f32 %v287, %v294
  %v359 = vadd.f32 %v288, %v294
  %v360 = vld [vmem:[%s4] sm:$0xff]
  %v361 = vld [vmem:[%s4 + $0x8] sm:$0xff]
  %v362 = vld [vmem:[%s4 + $0x10] sm:$0xff]
  %v363 = vld [vmem:[%s4 + $0x18] sm:$0xff]
  %v364 = vld [vmem:[%s4 + $0x20] sm:$0xff]
  %v365 = vld [vmem:[%s4 + $0x28] sm:$0xff]
  %v366 = vld [vmem:[%s4 + $0x30] sm:$0xff]
  %v367 = vld [vmem:[%s4 + $0x38] sm:$0xff]
  %v368 = vld [vmem:[%s4 + $0x40] sm:$0xff]
  %v369 = vld [vmem:[%s4 + $0x48] sm:$0xff]
  %v370 = vld [vmem:[%s4 + $0x50] sm:$0xff]
  %v371 = vld [vmem:[%s4 + $0x58] sm:$0xff]
  %v372 = vld [vmem:[%s4 + $0x60] sm:$0xff]
  %v373 = vld [vmem:[%s4 + $0x68] sm:$0xff]
  %v374 = vld [vmem:[%s4 + $0x70] sm:$0xff]
  %v375 = vld [vmem:[%s4 + $0x78] sm:$0xff]
  %v376 = vld [vmem:[%s5] sm:$0x1]
  %v378 = vlaneseq
  %v379 = vshrl.u32 %v378, 7
  %v380 = vsub.s32 0, %v379
  %v381 = vrot.slane %v376, %v380
  %383 = vmatprep.subr.mxu0 0.0
  %384 = vmatpush1.msra.mxu0 %v375
  %385 = vmatprep.subr.mxu0 0.0
  %386 = vmatpush1.msra.mxu0 %v374
  %387 = vmatprep.subr.mxu0 0.0
  %388 = vmatpush1.msra.mxu0 %v373
  %389 = vmatprep.subr.mxu0 0.0
  %390 = vmatpush1.msra.mxu0 %v372
  %391 = vmatprep.subr.mxu0 0.0
  %392 = vmatpush1.msra.mxu0 %v371
  %393 = vmatprep.subr.mxu0 0.0
  %394 = vmatpush1.msra.mxu0 %v370
  %395 = vmatprep.subr.mxu0 0.0
  %396 = vmatpush1.msra.mxu0 %v369
  %397 = vmatprep.subr.mxu0 0.0
  %398 = vmatpush1.msra.mxu0 %v368
  %399 = vmatprep.subr.mxu0 0.0
  %400 = vmatpush1.msra.mxu0 %v367
  %401 = vmatprep.subr.mxu0 0.0
  %402 = vmatpush1.msra.mxu0 %v366
  %403 = vmatprep.subr.mxu0 0.0
  %404 = vmatpush1.msra.mxu0 %v365
  %405 = vmatprep.subr.mxu0 0.0
  %406 = vmatpush1.msra.mxu0 %v364
  %407 = vmatprep.subr.mxu0 0.0
  %408 = vmatpush1.msra.mxu0 %v363
  %409 = vmatprep.subr.mxu0 0.0
  %410 = vmatpush1.msra.mxu0 %v362
  %411 = vmatprep.subr.mxu0 0.0
  %412 = vmatpush1.msra.mxu0 %v361
  %413 = vmatprep.subr.mxu0 0.0
  %414 = vmatpush1.msra.mxu0 %v360
  %415 = vmatprep.subr.mxu0 0.0
  %416 = vmatpush2.msra.mxu0 0.0
  %417 = vmatprep.subr.mxu0 0.0
  %418 = vmatpush2.msra.mxu0 0.0
  %419 = vmatprep.subr.mxu0 0.0
  %420 = vmatpush2.msra.mxu0 0.0
  %421 = vmatprep.subr.mxu0 0.0
  %422 = vmatpush2.msra.mxu0 0.0
  %423 = vmatprep.subr.mxu0 0.0
  %424 = vmatpush2.msra.mxu0 0.0
  %425 = vmatprep.subr.mxu0 0.0
  %426 = vmatpush2.msra.mxu0 0.0
  %427 = vmatprep.subr.mxu0 0.0
  %428 = vmatpush2.msra.mxu0 0.0
  %429 = vmatprep.subr.mxu0 0.0
  %430 = vmatpush2.msra.mxu0 0.0
  %431 = vmatprep.subr.mxu0 0.0
  %432 = vmatpush2.msra.mxu0 0.0
  %433 = vmatprep.subr.mxu0 0.0
  %434 = vmatpush2.msra.mxu0 0.0
  %435 = vmatprep.subr.mxu0 0.0
  %436 = vmatpush2.msra.mxu0 0.0
  %437 = vmatprep.subr.mxu0 0.0
  %438 = vmatpush2.msra.mxu0 0.0
  %439 = vmatprep.subr.mxu0 0.0
  %440 = vmatpush2.msra.mxu0 0.0
  %441 = vmatprep.subr.mxu0 0.0
  %442 = vmatpush2.msra.mxu0 0.0
  %443 = vmatprep.subr.mxu0 0.0
  %444 = vmatpush2.msra.mxu0 0.0
  %445 = vmatprep.subr.mxu0 0.0
  %446 = vmatpush2.msra.mxu0 0.0
  %447 = vmatprep.mubr.f32.mxu0 0.0
  %448 = vmatmul.mubr.f32.gmra.mxu0 %v296
  %v449 = vpop.f32.mrf.mxu0
  %v450 = vadd.f32 %v381, %v449
  %v451 = vpop.f32.mrf.mxu0
  %452 = vmatprep.mubr.f32.mxu0 0.0
  %453 = vmatmul.mubr.f32.gmra.mxu0 %v297
  %v454 = vpop.f32.mrf.mxu0
  %v455 = vadd.f32 %v381, %v454
  %v456 = vpop.f32.mrf.mxu0
  %457 = vmatprep.mubr.f32.mxu0 0.0
  %458 = vmatmul.mubr.f32.gmra.mxu0 %v298
  %v459 = vpop.f32.mrf.mxu0
  %v460 = vadd.f32 %v381, %v459
  %v461 = vpop.f32.mrf.mxu0
  %462 = vmatprep.mubr.f32.mxu0 0.0
  %463 = vmatmul.mubr.f32.gmra.mxu0 %v299
  %v464 = vpop.f32.mrf.mxu0
  %v465 = vadd.f32 %v381, %v464
  %v466 = vpop.f32.mrf.mxu0
  %467 = vmatprep.mubr.f32.mxu0 0.0
  %468 = vmatmul.mubr.f32.gmra.mxu0 %v300
  %v469 = vpop.f32.mrf.mxu0
  %v470 = vadd.f32 %v381, %v469
  %v471 = vpop.f32.mrf.mxu0
  %472 = vmatprep.mubr.f32.mxu0 0.0
  %473 = vmatmul.mubr.f32.gmra.mxu0 %v301
  %v474 = vpop.f32.mrf.mxu0
  %v475 = vadd.f32 %v381, %v474
  %v476 = vpop.f32.mrf.mxu0
  %477 = vmatprep.mubr.f32.mxu0 0.0
  %478 = vmatmul.mubr.f32.gmra.mxu0 %v302
  %v479 = vpop.f32.mrf.mxu0
  %v480 = vadd.f32 %v381, %v479
  %v481 = vpop.f32.mrf.mxu0
  %482 = vmatprep.mubr.f32.mxu0 0.0
  %483 = vmatmul.mubr.f32.gmra.mxu0 %v303
  %v484 = vpop.f32.mrf.mxu0
  %v485 = vadd.f32 %v381, %v484
  %v486 = vpop.f32.mrf.mxu0
  %487 = vmatprep.mubr.f32.mxu0 0.0
  %488 = vmatmul.mubr.f32.gmra.mxu0 %v304
  %v489 = vpop.f32.mrf.mxu0
  %v490 = vadd.f32 %v381, %v489
  %v491 = vpop.f32.mrf.mxu0
  %492 = vmatprep.mubr.f32.mxu0 0.0
  %493 = vmatmul.mubr.f32.gmra.mxu0 %v305
  %v494 = vpop.f32.mrf.mxu0
  %v495 = vadd.f32 %v381, %v494
  %v496 = vpop.f32.mrf.mxu0
  %497 = vmatprep.mubr.f32.mxu0 0.0
  %498 = vmatmul.mubr.f32.gmra.mxu0 %v306
  %v499 = vpop.f32.mrf.mxu0
  %v500 = vadd.f32 %v381, %v499
  %v501 = vpop.f32.mrf.mxu0
  %502 = vmatprep.mubr.f32.mxu0 0.0
  %503 = vmatmul.mubr.f32.gmra.mxu0 %v307
  %v504 = vpop.f32.mrf.mxu0
  %v505 = vadd.f32 %v381, %v504
  %v506 = vpop.f32.mrf.mxu0
  %507 = vmatprep.mubr.f32.mxu0 0.0
  %508 = vmatmul.mubr.f32.gmra.mxu0 %v308
  %v509 = vpop.f32.mrf.mxu0
  %v510 = vadd.f32 %v381, %v509
  %v511 = vpop.f32.mrf.mxu0
  %512 = vmatprep.mubr.f32.mxu0 0.0
  %513 = vmatmul.mubr.f32.gmra.mxu0 %v309
  %v514 = vpop.f32.mrf.mxu0
  %v515 = vadd.f32 %v381, %v514
  %v516 = vpop.f32.mrf.mxu0
  %517 = vmatprep.mubr.f32.mxu0 0.0
  %518 = vmatmul.mubr.f32.gmra.mxu0 %v310
  %v519 = vpop.f32.mrf.mxu0
  %v520 = vadd.f32 %v381, %v519
  %v521 = vpop.f32.mrf.mxu0
  %522 = vmatprep.mubr.f32.mxu0 0.0
  %523 = vmatmul.mubr.f32.gmra.mxu0 %v311
  %v524 = vpop.f32.mrf.mxu0
  %v525 = vadd.f32 %v381, %v524
  %v526 = vpop.f32.mrf.mxu0
  %527 = vmatprep.mubr.f32.mxu0 0.0
  %528 = vmatmul.mubr.f32.gmra.mxu0 %v312
  %v529 = vpop.f32.mrf.mxu0
  %v530 = vadd.f32 %v381, %v529
  %v531 = vpop.f32.mrf.mxu0
  %532 = vmatprep.mubr.f32.mxu0 0.0
  %533 = vmatmul.mubr.f32.gmra.mxu0 %v313
  %v534 = vpop.f32.mrf.mxu0
  %v535 = vadd.f32 %v381, %v534
  %v536 = vpop.f32.mrf.mxu0
  %537 = vmatprep.mubr.f32.mxu0 0.0
  %538 = vmatmul.mubr.f32.gmra.mxu0 %v314
  %v539 = vpop.f32.mrf.mxu0
  %v540 = vadd.f32 %v381, %v539
  %v541 = vpop.f32.mrf.mxu0
  %542 = vmatprep.mubr.f32.mxu0 0.0
  %543 = vmatmul.mubr.f32.gmra.mxu0 %v315
  %v544 = vpop.f32.mrf.mxu0
  %v545 = vadd.f32 %v381, %v544
  %v546 = vpop.f32.mrf.mxu0
  %547 = vmatprep.mubr.f32.mxu0 0.0
  %548 = vmatmul.mubr.f32.gmra.mxu0 %v316
  %v549 = vpop.f32.mrf.mxu0
  %v550 = vadd.f32 %v381, %v549
  %v551 = vpop.f32.mrf.mxu0
  %552 = vmatprep.mubr.f32.mxu0 0.0
  %553 = vmatmul.mubr.f32.gmra.mxu0 %v317
  %v554 = vpop.f32.mrf.mxu0
  %v555 = vadd.f32 %v381, %v554
  %v556 = vpop.f32.mrf.mxu0
  %557 = vmatprep.mubr.f32.mxu0 0.0
  %558 = vmatmul.mubr.f32.gmra.mxu0 %v318
  %v559 = vpop.f32.mrf.mxu0
  %v560 = vadd.f32 %v381, %v559
  %v561 = vpop.f32.mrf.mxu0
  %562 = vmatprep.mubr.f32.mxu0 0.0
  %563 = vmatmul.mubr.f32.gmra.mxu0 %v319
  %v564 = vpop.f32.mrf.mxu0
  %v565 = vadd.f32 %v381, %v564
  %v566 = vpop.f32.mrf.mxu0
  %567 = vmatprep.mubr.f32.mxu0 0.0
  %568 = vmatmul.mubr.f32.gmra.mxu0 %v320
  %v569 = vpop.f32.mrf.mxu0
  %v570 = vadd.f32 %v381, %v569
  %v571 = vpop.f32.mrf.mxu0
  %572 = vmatprep.mubr.f32.mxu0 0.0
  %573 = vmatmul.mubr.f32.gmra.mxu0 %v321
  %v574 = vpop.f32.mrf.mxu0
  %v575 = vadd.f32 %v381, %v574
  %v576 = vpop.f32.mrf.mxu0
  %577 = vmatprep.mubr.f32.mxu0 0.0
  %578 = vmatmul.mubr.f32.gmra.mxu0 %v322
  %v579 = vpop.f32.mrf.mxu0
  %v580 = vadd.f32 %v381, %v579
  %v581 = vpop.f32.mrf.mxu0
  %582 = vmatprep.mubr.f32.mxu0 0.0
  %583 = vmatmul.mubr.f32.gmra.mxu0 %v323
  %v584 = vpop.f32.mrf.mxu0
  %v585 = vadd.f32 %v381, %v584
  %v586 = vpop.f32.mrf.mxu0
  %587 = vmatprep.mubr.f32.mxu0 0.0
  %588 = vmatmul.mubr.f32.gmra.mxu0 %v324
  %v589 = vpop.f32.mrf.mxu0
  %v590 = vadd.f32 %v381, %v589
  %v591 = vpop.f32.mrf.mxu0
  %592 = vmatprep.mubr.f32.mxu0 0.0
  %593 = vmatmul.mubr.f32.gmra.mxu0 %v325
  %v594 = vpop.f32.mrf.mxu0
  %v595 = vadd.f32 %v381, %v594
  %v596 = vpop.f32.mrf.mxu0
  %597 = vmatprep.mubr.f32.mxu0 0.0
  %598 = vmatmul.mubr.f32.gmra.mxu0 %v326
  %v599 = vpop.f32.mrf.mxu0
  %v600 = vadd.f32 %v381, %v599
  %v601 = vpop.f32.mrf.mxu0
  %602 = vmatprep.mubr.f32.mxu0 0.0
  %603 = vmatmul.mubr.f32.gmra.mxu0 %v327
  %v604 = vpop.f32.mrf.mxu0
  %v605 = vadd.f32 %v381, %v604
  %v606 = vpop.f32.mrf.mxu0
  %607 = vmatprep.mubr.f32.mxu0 0.0
  %608 = vmatmul.mubr.f32.gmra.mxu0 %v328
  %v609 = vpop.f32.mrf.mxu0
  %v610 = vadd.f32 %v381, %v609
  %v611 = vpop.f32.mrf.mxu0
  %612 = vmatprep.mubr.f32.mxu0 0.0
  %613 = vmatmul.mubr.f32.gmra.mxu0 %v329
  %v614 = vpop.f32.mrf.mxu0
  %v615 = vadd.f32 %v381, %v614
  %v616 = vpop.f32.mrf.mxu0
  %617 = vmatprep.mubr.f32.mxu0 0.0
  %618 = vmatmul.mubr.f32.gmra.mxu0 %v330
  %v619 = vpop.f32.mrf.mxu0
  %v620 = vadd.f32 %v381, %v619
  %v621 = vpop.f32.mrf.mxu0
  %622 = vmatprep.mubr.f32.mxu0 0.0
  %623 = vmatmul.mubr.f32.gmra.mxu0 %v331
  %v624 = vpop.f32.mrf.mxu0
  %v625 = vadd.f32 %v381, %v624
  %v626 = vpop.f32.mrf.mxu0
  %627 = vmatprep.mubr.f32.mxu0 0.0
  %628 = vmatmul.mubr.f32.gmra.mxu0 %v332
  %v629 = vpop.f32.mrf.mxu0
  %v630 = vadd.f32 %v381, %v629
  %v631 = vpop.f32.mrf.mxu0
  %632 = vmatprep.mubr.f32.mxu0 0.0
  %633 = vmatmul.mubr.f32.gmra.mxu0 %v333
  %v634 = vpop.f32.mrf.mxu0
  %v635 = vadd.f32 %v381, %v634
  %v636 = vpop.f32.mrf.mxu0
  %637 = vmatprep.mubr.f32.mxu0 0.0
  %638 = vmatmul.mubr.f32.gmra.mxu0 %v334
  %v639 = vpop.f32.mrf.mxu0
  %v640 = vadd.f32 %v381, %v639
  %v641 = vpop.f32.mrf.mxu0
  %642 = vmatprep.mubr.f32.mxu0 0.0
  %643 = vmatmul.mubr.f32.gmra.mxu0 %v335
  %v644 = vpop.f32.mrf.mxu0
  %v645 = vadd.f32 %v381, %v644
  %v646 = vpop.f32.mrf.mxu0
  %647 = vmatprep.mubr.f32.mxu0 0.0
  %648 = vmatmul.mubr.f32.gmra.mxu0 %v336
  %v649 = vpop.f32.mrf.mxu0
  %v650 = vadd.f32 %v381, %v649
  %v651 = vpop.f32.mrf.mxu0
  %652 = vmatprep.mubr.f32.mxu0 0.0
  %653 = vmatmul.mubr.f32.gmra.mxu0 %v337
  %v654 = vpop.f32.mrf.mxu0
  %v655 = vadd.f32 %v381, %v654
  %v656 = vpop.f32.mrf.mxu0
  %657 = vmatprep.mubr.f32.mxu0 0.0
  %658 = vmatmul.mubr.f32.gmra.mxu0 %v338
  %v659 = vpop.f32.mrf.mxu0
  %v660 = vadd.f32 %v381, %v659
  %v661 = vpop.f32.mrf.mxu0
  %662 = vmatprep.mubr.f32.mxu0 0.0
  %663 = vmatmul.mubr.f32.gmra.mxu0 %v339
  %v664 = vpop.f32.mrf.mxu0
  %v665 = vadd.f32 %v381, %v664
  %v666 = vpop.f32.mrf.mxu0
  %667 = vmatprep.mubr.f32.mxu0 0.0
  %668 = vmatmul.mubr.f32.gmra.mxu0 %v340
  %v669 = vpop.f32.mrf.mxu0
  %v670 = vadd.f32 %v381, %v669
  %v671 = vpop.f32.mrf.mxu0
  %672 = vmatprep.mubr.f32.mxu0 0.0
  %673 = vmatmul.mubr.f32.gmra.mxu0 %v341
  %v674 = vpop.f32.mrf.mxu0
  %v675 = vadd.f32 %v381, %v674
  %v676 = vpop.f32.mrf.mxu0
  %677 = vmatprep.mubr.f32.mxu0 0.0
  %678 = vmatmul.mubr.f32.gmra.mxu0 %v342
  %v679 = vpop.f32.mrf.mxu0
  %v680 = vadd.f32 %v381, %v679
  %v681 = vpop.f32.mrf.mxu0
  %682 = vmatprep.mubr.f32.mxu0 0.0
  %683 = vmatmul.mubr.f32.gmra.mxu0 %v343
  %v684 = vpop.f32.mrf.mxu0
  %v685 = vadd.f32 %v381, %v684
  %v686 = vpop.f32.mrf.mxu0
  %687 = vmatprep.mubr.f32.mxu0 0.0
  %688 = vmatmul.mubr.f32.gmra.mxu0 %v344
  %v689 = vpop.f32.mrf.mxu0
  %v690 = vadd.f32 %v381, %v689
  %v691 = vpop.f32.mrf.mxu0
  %692 = vmatprep.mubr.f32.mxu0 0.0
  %693 = vmatmul.mubr.f32.gmra.mxu0 %v345
  %v694 = vpop.f32.mrf.mxu0
  %v695 = vadd.f32 %v381, %v694
  %v696 = vpop.f32.mrf.mxu0
  %697 = vmatprep.mubr.f32.mxu0 0.0
  %698 = vmatmul.mubr.f32.gmra.mxu0 %v346
  %v699 = vpop.f32.mrf.mxu0
  %v700 = vadd.f32 %v381, %v699
  %v701 = vpop.f32.mrf.mxu0
  %702 = vmatprep.mubr.f32.mxu0 0.0
  %703 = vmatmul.mubr.f32.gmra.mxu0 %v347
  %v704 = vpop.f32.mrf.mxu0
  %v705 = vadd.f32 %v381, %v704
  %v706 = vpop.f32.mrf.mxu0
  %707 = vmatprep.mubr.f32.mxu0 0.0
  %708 = vmatmul.mubr.f32.gmra.mxu0 %v348
  %v709 = vpop.f32.mrf.mxu0
  %v710 = vadd.f32 %v381, %v709
  %v711 = vpop.f32.mrf.mxu0
  %712 = vmatprep.mubr.f32.mxu0 0.0
  %713 = vmatmul.mubr.f32.gmra.mxu0 %v349
  %v714 = vpop.f32.mrf.mxu0
  %v715 = vadd.f32 %v381, %v714
  %v716 = vpop.f32.mrf.mxu0
  %717 = vmatprep.mubr.f32.mxu0 0.0
  %718 = vmatmul.mubr.f32.gmra.mxu0 %v350
  %v719 = vpop.f32.mrf.mxu0
  %v720 = vadd.f32 %v381, %v719
  %v721 = vpop.f32.mrf.mxu0
  %722 = vmatprep.mubr.f32.mxu0 0.0
  %723 = vmatmul.mubr.f32.gmra.mxu0 %v351
  %v724 = vpop.f32.mrf.mxu0
  %v725 = vadd.f32 %v381, %v724
  %v726 = vpop.f32.mrf.mxu0
  %727 = vmatprep.mubr.f32.mxu0 0.0
  %728 = vmatmul.mubr.f32.gmra.mxu0 %v352
  %v729 = vpop.f32.mrf.mxu0
  %v730 = vadd.f32 %v381, %v729
  %v731 = vpop.f32.mrf.mxu0
  %732 = vmatprep.mubr.f32.mxu0 0.0
  %733 = vmatmul.mubr.f32.gmra.mxu0 %v353
  %v734 = vpop.f32.mrf.mxu0
  %v735 = vadd.f32 %v381, %v734
  %v736 = vpop.f32.mrf.mxu0
  %737 = vmatprep.mubr.f32.mxu0 0.0
  %738 = vmatmul.mubr.f32.gmra.mxu0 %v354
  %v739 = vpop.f32.mrf.mxu0
  %v740 = vadd.f32 %v381, %v739
  %v741 = vpop.f32.mrf.mxu0
  %742 = vmatprep.mubr.f32.mxu0 0.0
  %743 = vmatmul.mubr.f32.gmra.mxu0 %v355
  %v744 = vpop.f32.mrf.mxu0
  %v745 = vadd.f32 %v381, %v744
  %v746 = vpop.f32.mrf.mxu0
  %747 = vmatprep.mubr.f32.mxu0 0.0
  %748 = vmatmul.mubr.f32.gmra.mxu0 %v356
  %v749 = vpop.f32.mrf.mxu0
  %v750 = vadd.f32 %v381, %v749
  %v751 = vpop.f32.mrf.mxu0
  %752 = vmatprep.mubr.f32.mxu0 0.0
  %753 = vmatmul.mubr.f32.gmra.mxu0 %v357
  %v754 = vpop.f32.mrf.mxu0
  %v755 = vadd.f32 %v381, %v754
  %v756 = vpop.f32.mrf.mxu0
  %757 = vmatprep.mubr.f32.mxu0 0.0
  %758 = vmatmul.mubr.f32.gmra.mxu0 %v358
  %v759 = vpop.f32.mrf.mxu0
  %v760 = vadd.f32 %v381, %v759
  %v761 = vpop.f32.mrf.mxu0
  %762 = vmatprep.mubr.f32.mxu0 0.0
  %763 = vmatmul.mubr.f32.gmra.mxu0 %v359
  %v764 = vpop.f32.mrf.mxu0
  %v765 = vadd.f32 %v381, %v764
  %v766 = vpop.f32.mrf.mxu0
  %767 = vdwg.mxu0
  %v768 = vmul.f32 %v450, 0.5
  %v769 = vmul.f32 %v455, 0.5
  %v770 = vmul.f32 %v460, 0.5
  %v771 = vmul.f32 %v465, 0.5
  %v772 = vmul.f32 %v470, 0.5
  %v773 = vmul.f32 %v475, 0.5
  %v774 = vmul.f32 %v480, 0.5
  %v775 = vmul.f32 %v485, 0.5
  %v776 = vmul.f32 %v490, 0.5
  %v777 = vmul.f32 %v495, 0.5
  %v778 = vmul.f32 %v500, 0.5
  %v779 = vmul.f32 %v505, 0.5
  %v780 = vmul.f32 %v510, 0.5
  %v781 = vmul.f32 %v515, 0.5
  %v782 = vmul.f32 %v520, 0.5
  %v783 = vmul.f32 %v525, 0.5
  %v784 = vmul.f32 %v530, 0.5
  %v785 = vmul.f32 %v535, 0.5
  %v786 = vmul.f32 %v540, 0.5
  %v787 = vmul.f32 %v545, 0.5
  %v788 = vmul.f32 %v550, 0.5
  %v789 = vmul.f32 %v555, 0.5
  %v790 = vmul.f32 %v560, 0.5
  %v791 = vmul.f32 %v565, 0.5
  %v792 = vmul.f32 %v570, 0.5
  %v793 = vmul.f32 %v575, 0.5
  %v794 = vmul.f32 %v580, 0.5
  %v795 = vmul.f32 %v585, 0.5
  %v796 = vmul.f32 %v590, 0.5
  %v797 = vmul.f32 %v595, 0.5
  %v798 = vmul.f32 %v600, 0.5
  %v799 = vmul.f32 %v605, 0.5
  %v800 = vmul.f32 %v610, 0.5
  %v801 = vmul.f32 %v615, 0.5
  %v802 = vmul.f32 %v620, 0.5
  %v803 = vmul.f32 %v625, 0.5
  %v804 = vmul.f32 %v630, 0.5
  %v805 = vmul.f32 %v635, 0.5
  %v806 = vmul.f32 %v640, 0.5
  %v807 = vmul.f32 %v645, 0.5
  %v808 = vmul.f32 %v650, 0.5
  %v809 = vmul.f32 %v655, 0.5
  %v810 = vmul.f32 %v660, 0.5
  %v811 = vmul.f32 %v665, 0.5
  %v812 = vmul.f32 %v670, 0.5
  %v813 = vmul.f32 %v675, 0.5
  %v814 = vmul.f32 %v680, 0.5
  %v815 = vmul.f32 %v685, 0.5
  %v816 = vmul.f32 %v690, 0.5
  %v817 = vmul.f32 %v695, 0.5
  %v818 = vmul.f32 %v700, 0.5
  %v819 = vmul.f32 %v705, 0.5
  %v820 = vmul.f32 %v710, 0.5
  %v821 = vmul.f32 %v715, 0.5
  %v822 = vmul.f32 %v720, 0.5
  %v823 = vmul.f32 %v725, 0.5
  %v824 = vmul.f32 %v730, 0.5
  %v825 = vmul.f32 %v735, 0.5
  %v826 = vmul.f32 %v740, 0.5
  %v827 = vmul.f32 %v745, 0.5
  %v828 = vmul.f32 %v750, 0.5
  %v829 = vmul.f32 %v755, 0.5
  %v830 = vmul.f32 %v760, 0.5
  %v831 = vmul.f32 %v765, 0.5
  %v832 = vmul.f32 %v450, 0.70710677
  %v833 = vmul.f32 %v455, 0.70710677
  %v834 = vmul.f32 %v460, 0.70710677
  %v835 = vmul.f32 %v465, 0.70710677
  %v836 = vmul.f32 %v470, 0.70710677
  %v837 = vmul.f32 %v475, 0.70710677
  %v838 = vmul.f32 %v480, 0.70710677
  %v839 = vmul.f32 %v485, 0.70710677
  %v840 = vmul.f32 %v490, 0.70710677
  %v841 = vmul.f32 %v495, 0.70710677
  %v842 = vmul.f32 %v500, 0.70710677
  %v843 = vmul.f32 %v505, 0.70710677
  %v844 = vmul.f32 %v510, 0.70710677
  %v845 = vmul.f32 %v515, 0.70710677
  %v846 = vmul.f32 %v520, 0.70710677
  %v847 = vmul.f32 %v525, 0.70710677
  %v848 = vmul.f32 %v530, 0.70710677
  %v849 = vmul.f32 %v535, 0.70710677
  %v850 = vmul.f32 %v540, 0.70710677
  %v851 = vmul.f32 %v545, 0.70710677
  %v852 = vmul.f32 %v550, 0.70710677
  %v853 = vmul.f32 %v555, 0.70710677
  %v854 = vmul.f32 %v560, 0.70710677
  %v855 = vmul.f32 %v565, 0.70710677
  %v856 = vmul.f32 %v570, 0.70710677
  %v857 = vmul.f32 %v575, 0.70710677
  %v858 = vmul.f32 %v580, 0.70710677
  %v859 = vmul.f32 %v585, 0.70710677
  %v860 = vmul.f32 %v590, 0.70710677
  %v861 = vmul.f32 %v595, 0.70710677
  %v862 = vmul.f32 %v600, 0.70710677
  %v863 = vmul.f32 %v605, 0.70710677
  %v864 = vmul.f32 %v610, 0.70710677
  %v865 = vmul.f32 %v615, 0.70710677
  %v866 = vmul.f32 %v620, 0.70710677
  %v867 = vmul.f32 %v625, 0.70710677
  %v868 = vmul.f32 %v630, 0.70710677
  %v869 = vmul.f32 %v635, 0.70710677
  %v870 = vmul.f32 %v640, 0.70710677
  %v871 = vmul.f32 %v645, 0.70710677
  %v872 = vmul.f32 %v650, 0.70710677
  %v873 = vmul.f32 %v655, 0.70710677
  %v874 = vmul.f32 %v660, 0.70710677
  %v875 = vmul.f32 %v665, 0.70710677
  %v876 = vmul.f32 %v670, 0.70710677
  %v877 = vmul.f32 %v675, 0.70710677
  %v878 = vmul.f32 %v680, 0.70710677
  %v879 = vmul.f32 %v685, 0.70710677
  %v880 = vmul.f32 %v690, 0.70710677
  %v881 = vmul.f32 %v695, 0.70710677
  %v882 = vmul.f32 %v700, 0.70710677
  %v883 = vmul.f32 %v705, 0.70710677
  %v884 = vmul.f32 %v710, 0.70710677
  %v885 = vmul.f32 %v715, 0.70710677
  %v886 = vmul.f32 %v720, 0.70710677
  %v887 = vmul.f32 %v725, 0.70710677
  %v888 = vmul.f32 %v730, 0.70710677
  %v889 = vmul.f32 %v735, 0.70710677
  %v890 = vmul.f32 %v740, 0.70710677
  %v891 = vmul.f32 %v745, 0.70710677
  %v892 = vmul.f32 %v750, 0.70710677
  %v893 = vmul.f32 %v755, 0.70710677
  %v894 = vmul.f32 %v760, 0.70710677
  %v895 = vmul.f32 %v765, 0.70710677
  %vm896 = vcmp.ge.f32.partialorder %v832, 0.0
  %vm897 = vcmp.ge.f32.partialorder %v833, 0.0
  %vm898 = vcmp.ge.f32.partialorder %v834, 0.0
  %vm899 = vcmp.ge.f32.partialorder %v835, 0.0
  %vm900 = vcmp.ge.f32.partialorder %v836, 0.0
  %vm901 = vcmp.ge.f32.partialorder %v837, 0.0
  %vm902 = vcmp.ge.f32.partialorder %v838, 0.0
  %vm903 = vcmp.ge.f32.partialorder %v839, 0.0
  %vm904 = vcmp.ge.f32.partialorder %v840, 0.0
  %vm905 = vcmp.ge.f32.partialorder %v841, 0.0
  %vm906 = vcmp.ge.f32.partialorder %v842, 0.0
  %vm907 = vcmp.ge.f32.partialorder %v843, 0.0
  %vm908 = vcmp.ge.f32.partialorder %v844, 0.0
  %vm909 = vcmp.ge.f32.partialorder %v845, 0.0
  %vm910 = vcmp.ge.f32.partialorder %v846, 0.0
  %vm911 = vcmp.ge.f32.partialorder %v847, 0.0
  %vm912 = vcmp.ge.f32.partialorder %v848, 0.0
  %vm913 = vcmp.ge.f32.partialorder %v849, 0.0
  %vm914 = vcmp.ge.f32.partialorder %v850, 0.0
  %vm915 = vcmp.ge.f32.partialorder %v851, 0.0
  %vm916 = vcmp.ge.f32.partialorder %v852, 0.0
  %vm917 = vcmp.ge.f32.partialorder %v853, 0.0
  %vm918 = vcmp.ge.f32.partialorder %v854, 0.0
  %vm919 = vcmp.ge.f32.partialorder %v855, 0.0
  %vm920 = vcmp.ge.f32.partialorder %v856, 0.0
  %vm921 = vcmp.ge.f32.partialorder %v857, 0.0
  %vm922 = vcmp.ge.f32.partialorder %v858, 0.0
  %vm923 = vcmp.ge.f32.partialorder %v859, 0.0
  %vm924 = vcmp.ge.f32.partialorder %v860, 0.0
  %vm925 = vcmp.ge.f32.partialorder %v861, 0.0
  %vm926 = vcmp.ge.f32.partialorder %v862, 0.0
  %vm927 = vcmp.ge.f32.partialorder %v863, 0.0
  %vm928 = vcmp.ge.f32.partialorder %v864, 0.0
  %vm929 = vcmp.ge.f32.partialorder %v865, 0.0
  %vm930 = vcmp.ge.f32.partialorder %v866, 0.0
  %vm931 = vcmp.ge.f32.partialorder %v867, 0.0
  %vm932 = vcmp.ge.f32.partialorder %v868, 0.0
  %vm933 = vcmp.ge.f32.partialorder %v869, 0.0
  %vm934 = vcmp.ge.f32.partialorder %v870, 0.0
  %vm935 = vcmp.ge.f32.partialorder %v871, 0.0
  %vm936 = vcmp.ge.f32.partialorder %v872, 0.0
  %vm937 = vcmp.ge.f32.partialorder %v873, 0.0
  %vm938 = vcmp.ge.f32.partialorder %v874, 0.0
  %vm939 = vcmp.ge.f32.partialorder %v875, 0.0
  %vm940 = vcmp.ge.f32.partialorder %v876, 0.0
  %vm941 = vcmp.ge.f32.partialorder %v877, 0.0
  %vm942 = vcmp.ge.f32.partialorder %v878, 0.0
  %vm943 = vcmp.ge.f32.partialorder %v879, 0.0
  %vm944 = vcmp.ge.f32.partialorder %v880, 0.0
  %vm945 = vcmp.ge.f32.partialorder %v881, 0.0
  %vm946 = vcmp.ge.f32.partialorder %v882, 0.0
  %vm947 = vcmp.ge.f32.partialorder %v883, 0.0
  %vm948 = vcmp.ge.f32.partialorder %v884, 0.0
  %vm949 = vcmp.ge.f32.partialorder %v885, 0.0
  %vm950 = vcmp.ge.f32.partialorder %v886, 0.0
  %vm951 = vcmp.ge.f32.partialorder %v887, 0.0
  %vm952 = vcmp.ge.f32.partialorder %v888, 0.0
  %vm953 = vcmp.ge.f32.partialorder %v889, 0.0
  %vm954 = vcmp.ge.f32.partialorder %v890, 0.0
  %vm955 = vcmp.ge.f32.partialorder %v891, 0.0
  %vm956 = vcmp.ge.f32.partialorder %v892, 0.0
  %vm957 = vcmp.ge.f32.partialorder %v893, 0.0
  %vm958 = vcmp.ge.f32.partialorder %v894, 0.0
  %vm959 = vcmp.ge.f32.partialorder %v895, 0.0
  %v960 = vsel %vm896, 1.0, -1.0
  %v961 = vsel %vm897, 1.0, -1.0
  %v962 = vsel %vm898, 1.0, -1.0
  %v963 = vsel %vm899, 1.0, -1.0
  %v964 = vsel %vm900, 1.0, -1.0
  %v965 = vsel %vm901, 1.0, -1.0
  %v966 = vsel %vm902, 1.0, -1.0
  %v967 = vsel %vm903, 1.0, -1.0
  %v968 = vsel %vm904, 1.0, -1.0
  %v969 = vsel %vm905, 1.0, -1.0
  %v970 = vsel %vm906, 1.0, -1.0
  %v971 = vsel %vm907, 1.0, -1.0
  %v972 = vsel %vm908, 1.0, -1.0
  %v973 = vsel %vm909, 1.0, -1.0
  %v974 = vsel %vm910, 1.0, -1.0
  %v975 = vsel %vm911, 1.0, -1.0
  %v976 = vsel %vm912, 1.0, -1.0
  %v977 = vsel %vm913, 1.0, -1.0
  %v978 = vsel %vm914, 1.0, -1.0
  %v979 = vsel %vm915, 1.0, -1.0
  %v980 = vsel %vm916, 1.0, -1.0
  %v981 = vsel %vm917, 1.0, -1.0
  %v982 = vsel %vm918, 1.0, -1.0
  %v983 = vsel %vm919, 1.0, -1.0
  %v984 = vsel %vm920, 1.0, -1.0
  %v985 = vsel %vm921, 1.0, -1.0
  %v986 = vsel %vm922, 1.0, -1.0
  %v987 = vsel %vm923, 1.0, -1.0
  %v988 = vsel %vm924, 1.0, -1.0
  %v989 = vsel %vm925, 1.0, -1.0
  %v990 = vsel %vm926, 1.0, -1.0
  %v991 = vsel %vm927, 1.0, -1.0
  %v992 = vsel %vm928, 1.0, -1.0
  %v993 = vsel %vm929, 1.0, -1.0
  %v994 = vsel %vm930, 1.0, -1.0
  %v995 = vsel %vm931, 1.0, -1.0
  %v996 = vsel %vm932, 1.0, -1.0
  %v997 = vsel %vm933, 1.0, -1.0
  %v998 = vsel %vm934, 1.0, -1.0
  %v999 = vsel %vm935, 1.0, -1.0
  %v1000 = vsel %vm936, 1.0, -1.0
  %v1001 = vsel %vm937, 1.0, -1.0
  %v1002 = vsel %vm938, 1.0, -1.0
  %v1003 = vsel %vm939, 1.0, -1.0
  %v1004 = vsel %vm940, 1.0, -1.0
  %v1005 = vsel %vm941, 1.0, -1.0
  %v1006 = vsel %vm942, 1.0, -1.0
  %v1007 = vsel %vm943, 1.0, -1.0
  %v1008 = vsel %vm944, 1.0, -1.0
  %v1009 = vsel %vm945, 1.0, -1.0
  %v1010 = vsel %vm946, 1.0, -1.0
  %v1011 = vsel %vm947, 1.0, -1.0
  %v1012 = vsel %vm948, 1.0, -1.0
  %v1013 = vsel %vm949, 1.0, -1.0
  %v1014 = vsel %vm950, 1.0, -1.0
  %v1015 = vsel %vm951, 1.0, -1.0
  %v1016 = vsel %vm952, 1.0, -1.0
  %v1017 = vsel %vm953, 1.0, -1.0
  %v1018 = vsel %vm954, 1.0, -1.0
  %v1019 = vsel %vm955, 1.0, -1.0
  %v1020 = vsel %vm956, 1.0, -1.0
  %v1021 = vsel %vm957, 1.0, -1.0
  %v1022 = vsel %vm958, 1.0, -1.0
  %v1023 = vsel %vm959, 1.0, -1.0
  %v1024 = vand.u32 2147483647, %v832
  %v1025 = vand.u32 2147483647, %v833
  %v1026 = vand.u32 2147483647, %v834
  %v1027 = vand.u32 2147483647, %v835
  %v1028 = vand.u32 2147483647, %v836
  %v1029 = vand.u32 2147483647, %v837
  %v1030 = vand.u32 2147483647, %v838
  %v1031 = vand.u32 2147483647, %v839
  %v1032 = vand.u32 2147483647, %v840
  %v1033 = vand.u32 2147483647, %v841
  %v1034 = vand.u32 2147483647, %v842
  %v1035 = vand.u32 2147483647, %v843
  %v1036 = vand.u32 2147483647, %v844
  %v1037 = vand.u32 2147483647, %v845
  %v1038 = vand.u32 2147483647, %v846
  %v1039 = vand.u32 2147483647, %v847
  %v1040 = vand.u32 2147483647, %v848
  %v1041 = vand.u32 2147483647, %v849
  %v1042 = vand.u32 2147483647, %v850
  %v1043 = vand.u32 2147483647, %v851
  %v1044 = vand.u32 2147483647, %v852
  %v1045 = vand.u32 2147483647, %v853
  %v1046 = vand.u32 2147483647, %v854
  %v1047 = vand.u32 2147483647, %v855
  %v1048 = vand.u32 2147483647, %v856
  %v1049 = vand.u32 2147483647, %v857
  %v1050 = vand.u32 2147483647, %v858
  %v1051 = vand.u32 2147483647, %v859
  %v1052 = vand.u32 2147483647, %v860
  %v1053 = vand.u32 2147483647, %v861
  %v1054 = vand.u32 2147483647, %v862
  %v1055 = vand.u32 2147483647, %v863
  %v1056 = vand.u32 2147483647, %v864
  %v1057 = vand.u32 2147483647, %v865
  %v1058 = vand.u32 2147483647, %v866
  %v1059 = vand.u32 2147483647, %v867
  %v1060 = vand.u32 2147483647, %v868
  %v1061 = vand.u32 2147483647, %v869
  %v1062 = vand.u32 2147483647, %v870
  %v1063 = vand.u32 2147483647, %v871
  %v1064 = vand.u32 2147483647, %v872
  %v1065 = vand.u32 2147483647, %v873
  %v1066 = vand.u32 2147483647, %v874
  %v1067 = vand.u32 2147483647, %v875
  %v1068 = vand.u32 2147483647, %v876
  %v1069 = vand.u32 2147483647, %v877
  %v1070 = vand.u32 2147483647, %v878
  %v1071 = vand.u32 2147483647, %v879
  %v1072 = vand.u32 2147483647, %v880
  %v1073 = vand.u32 2147483647, %v881
  %v1074 = vand.u32 2147483647, %v882
  %v1075 = vand.u32 2147483647, %v883
  %v1076 = vand.u32 2147483647, %v884
  %v1077 = vand.u32 2147483647, %v885
  %v1078 = vand.u32 2147483647, %v886
  %v1079 = vand.u32 2147483647, %v887
  %v1080 = vand.u32 2147483647, %v888
  %v1081 = vand.u32 2147483647, %v889
  %v1082 = vand.u32 2147483647, %v890
  %v1083 = vand.u32 2147483647, %v891
  %v1084 = vand.u32 2147483647, %v892
  %v1085 = vand.u32 2147483647, %v893
  %v1086 = vand.u32 2147483647, %v894
  %v1087 = vand.u32 2147483647, %v895
  %v1088 = vmul.f32 %v1024, 0.3275911
  %v1089 = vmul.f32 %v1025, 0.3275911
  %v1090 = vmul.f32 %v1026, 0.3275911
  %v1091 = vmul.f32 %v1027, 0.3275911
  %v1092 = vmul.f32 %v1028, 0.3275911
  %v1093 = vmul.f32 %v1029, 0.3275911
  %v1094 = vmul.f32 %v1030, 0.3275911
  %v1095 = vmul.f32 %v1031, 0.3275911
  %v1096 = vmul.f32 %v1032, 0.3275911
  %v1097 = vmul.f32 %v1033, 0.3275911
  %v1098 = vmul.f32 %v1034, 0.3275911
  %v1099 = vmul.f32 %v1035, 0.3275911
  %v1100 = vmul.f32 %v1036, 0.3275911
  %v1101 = vmul.f32 %v1037, 0.3275911
  %v1102 = vmul.f32 %v1038, 0.3275911
  %v1103 = vmul.f32 %v1039, 0.3275911
  %v1104 = vmul.f32 %v1040, 0.3275911
  %v1105 = vmul.f32 %v1041, 0.3275911
  %v1106 = vmul.f32 %v1042, 0.3275911
  %v1107 = vmul.f32 %v1043, 0.3275911
  %v1108 = vmul.f32 %v1044, 0.3275911
  %v1109 = vmul.f32 %v1045, 0.3275911
  %v1110 = vmul.f32 %v1046, 0.3275911
  %v1111 = vmul.f32 %v1047, 0.3275911
  %v1112 = vmul.f32 %v1048, 0.3275911
  %v1113 = vmul.f32 %v1049, 0.3275911
  %v1114 = vmul.f32 %v1050, 0.3275911
  %v1115 = vmul.f32 %v1051, 0.3275911
  %v1116 = vmul.f32 %v1052, 0.3275911
  %v1117 = vmul.f32 %v1053, 0.3275911
  %v1118 = vmul.f32 %v1054, 0.3275911
  %v1119 = vmul.f32 %v1055, 0.3275911
  %v1120 = vmul.f32 %v1056, 0.3275911
  %v1121 = vmul.f32 %v1057, 0.3275911
  %v1122 = vmul.f32 %v1058, 0.3275911
  %v1123 = vmul.f32 %v1059, 0.3275911
  %v1124 = vmul.f32 %v1060, 0.3275911
  %v1125 = vmul.f32 %v1061, 0.3275911
  %v1126 = vmul.f32 %v1062, 0.3275911
  %v1127 = vmul.f32 %v1063, 0.3275911
  %v1128 = vmul.f32 %v1064, 0.3275911
  %v1129 = vmul.f32 %v1065, 0.3275911
  %v1130 = vmul.f32 %v1066, 0.3275911
  %v1131 = vmul.f32 %v1067, 0.3275911
  %v1132 = vmul.f32 %v1068, 0.3275911
  %v1133 = vmul.f32 %v1069, 0.3275911
  %v1134 = vmul.f32 %v1070, 0.3275911
  %v1135 = vmul.f32 %v1071, 0.3275911
  %v1136 = vmul.f32 %v1072, 0.3275911
  %v1137 = vmul.f32 %v1073, 0.3275911
  %v1138 = vmul.f32 %v1074, 0.3275911
  %v1139 = vmul.f32 %v1075, 0.3275911
  %v1140 = vmul.f32 %v1076, 0.3275911
  %v1141 = vmul.f32 %v1077, 0.3275911
  %v1142 = vmul.f32 %v1078, 0.3275911
  %v1143 = vmul.f32 %v1079, 0.3275911
  %v1144 = vmul.f32 %v1080, 0.3275911
  %v1145 = vmul.f32 %v1081, 0.3275911
  %v1146 = vmul.f32 %v1082, 0.3275911
  %v1147 = vmul.f32 %v1083, 0.3275911
  %v1148 = vmul.f32 %v1084, 0.3275911
  %v1149 = vmul.f32 %v1085, 0.3275911
  %v1150 = vmul.f32 %v1086, 0.3275911
  %v1151 = vmul.f32 %v1087, 0.3275911
  %v1152 = vadd.f32 %v1088, 1.0
  %v1153 = vadd.f32 %v1089, 1.0
  %v1154 = vadd.f32 %v1090, 1.0
  %v1155 = vadd.f32 %v1091, 1.0
  %v1156 = vadd.f32 %v1092, 1.0
  %v1157 = vadd.f32 %v1093, 1.0
  %v1158 = vadd.f32 %v1094, 1.0
  %v1159 = vadd.f32 %v1095, 1.0
  %v1160 = vadd.f32 %v1096, 1.0
  %v1161 = vadd.f32 %v1097, 1.0
  %v1162 = vadd.f32 %v1098, 1.0
  %v1163 = vadd.f32 %v1099, 1.0
  %v1164 = vadd.f32 %v1100, 1.0
  %v1165 = vadd.f32 %v1101, 1.0
  %v1166 = vadd.f32 %v1102, 1.0
  %v1167 = vadd.f32 %v1103, 1.0
  %v1168 = vadd.f32 %v1104, 1.0
  %v1169 = vadd.f32 %v1105, 1.0
  %v1170 = vadd.f32 %v1106, 1.0
  %v1171 = vadd.f32 %v1107, 1.0
  %v1172 = vadd.f32 %v1108, 1.0
  %v1173 = vadd.f32 %v1109, 1.0
  %v1174 = vadd.f32 %v1110, 1.0
  %v1175 = vadd.f32 %v1111, 1.0
  %v1176 = vadd.f32 %v1112, 1.0
  %v1177 = vadd.f32 %v1113, 1.0
  %v1178 = vadd.f32 %v1114, 1.0
  %v1179 = vadd.f32 %v1115, 1.0
  %v1180 = vadd.f32 %v1116, 1.0
  %v1181 = vadd.f32 %v1117, 1.0
  %v1182 = vadd.f32 %v1118, 1.0
  %v1183 = vadd.f32 %v1119, 1.0
  %v1184 = vadd.f32 %v1120, 1.0
  %v1185 = vadd.f32 %v1121, 1.0
  %v1186 = vadd.f32 %v1122, 1.0
  %v1187 = vadd.f32 %v1123, 1.0
  %v1188 = vadd.f32 %v1124, 1.0
  %v1189 = vadd.f32 %v1125, 1.0
  %v1190 = vadd.f32 %v1126, 1.0
  %v1191 = vadd.f32 %v1127, 1.0
  %v1192 = vadd.f32 %v1128, 1.0
  %v1193 = vadd.f32 %v1129, 1.0
  %v1194 = vadd.f32 %v1130, 1.0
  %v1195 = vadd.f32 %v1131, 1.0
  %v1196 = vadd.f32 %v1132, 1.0
  %v1197 = vadd.f32 %v1133, 1.0
  %v1198 = vadd.f32 %v1134, 1.0
  %v1199 = vadd.f32 %v1135, 1.0
  %v1200 = vadd.f32 %v1136, 1.0
  %v1201 = vadd.f32 %v1137, 1.0
  %v1202 = vadd.f32 %v1138, 1.0
  %v1203 = vadd.f32 %v1139, 1.0
  %v1204 = vadd.f32 %v1140, 1.0
  %v1205 = vadd.f32 %v1141, 1.0
  %v1206 = vadd.f32 %v1142, 1.0
  %v1207 = vadd.f32 %v1143, 1.0
  %v1208 = vadd.f32 %v1144, 1.0
  %v1209 = vadd.f32 %v1145, 1.0
  %v1210 = vadd.f32 %v1146, 1.0
  %v1211 = vadd.f32 %v1147, 1.0
  %v1212 = vadd.f32 %v1148, 1.0
  %v1213 = vadd.f32 %v1149, 1.0
  %v1214 = vadd.f32 %v1150, 1.0
  %v1215 = vadd.f32 %v1151, 1.0
  %v1216 = vrcp.pop %v1152
  %v1217 = vmul.f32 1.0, %v1216
  %v1218 = vrcp.pop %v1153
  %v1219 = vmul.f32 1.0, %v1218
  %v1220 = vrcp.pop %v1154
  %v1221 = vmul.f32 1.0, %v1220
  %v1222 = vrcp.pop %v1155
  %v1223 = vmul.f32 1.0, %v1222
  %v1224 = vrcp.pop %v1156
  %v1225 = vmul.f32 1.0, %v1224
  %v1226 = vrcp.pop %v1157
  %v1227 = vmul.f32 1.0, %v1226
  %v1228 = vrcp.pop %v1158
  %v1229 = vmul.f32 1.0, %v1228
  %v1230 = vrcp.pop %v1159
  %v1231 = vmul.f32 1.0, %v1230
  %v1232 = vrcp.pop %v1160
  %v1233 = vmul.f32 1.0, %v1232
  %v1234 = vrcp.pop %v1161
  %v1235 = vmul.f32 1.0, %v1234
  %v1236 = vrcp.pop %v1162
  %v1237 = vmul.f32 1.0, %v1236
  %v1238 = vrcp.pop %v1163
  %v1239 = vmul.f32 1.0, %v1238
  %v1240 = vrcp.pop %v1164
  %v1241 = vmul.f32 1.0, %v1240
  %v1242 = vrcp.pop %v1165
  %v1243 = vmul.f32 1.0, %v1242
  %v1244 = vrcp.pop %v1166
  %v1245 = vmul.f32 1.0, %v1244
  %v1246 = vrcp.pop %v1167
  %v1247 = vmul.f32 1.0, %v1246
  %v1248 = vrcp.pop %v1168
  %v1249 = vmul.f32 1.0, %v1248
  %v1250 = vrcp.pop %v1169
  %v1251 = vmul.f32 1.0, %v1250
  %v1252 = vrcp.pop %v1170
  %v1253 = vmul.f32 1.0, %v1252
  %v1254 = vrcp.pop %v1171
  %v1255 = vmul.f32 1.0, %v1254
  %v1256 = vrcp.pop %v1172
  %v1257 = vmul.f32 1.0, %v1256
  %v1258 = vrcp.pop %v1173
  %v1259 = vmul.f32 1.0, %v1258
  %v1260 = vrcp.pop %v1174
  %v1261 = vmul.f32 1.0, %v1260
  %v1262 = vrcp.pop %v1175
  %v1263 = vmul.f32 1.0, %v1262
  %v1264 = vrcp.pop %v1176
  %v1265 = vmul.f32 1.0, %v1264
  %v1266 = vrcp.pop %v1177
  %v1267 = vmul.f32 1.0, %v1266
  %v1268 = vrcp.pop %v1178
  %v1269 = vmul.f32 1.0, %v1268
  %v1270 = vrcp.pop %v1179
  %v1271 = vmul.f32 1.0, %v1270
  %v1272 = vrcp.pop %v1180
  %v1273 = vmul.f32 1.0, %v1272
  %v1274 = vrcp.pop %v1181
  %v1275 = vmul.f32 1.0, %v1274
  %v1276 = vrcp.pop %v1182
  %v1277 = vmul.f32 1.0, %v1276
  %v1278 = vrcp.pop %v1183
  %v1279 = vmul.f32 1.0, %v1278
  %v1280 = vrcp.pop %v1184
  %v1281 = vmul.f32 1.0, %v1280
  %v1282 = vrcp.pop %v1185
  %v1283 = vmul.f32 1.0, %v1282
  %v1284 = vrcp.pop %v1186
  %v1285 = vmul.f32 1.0, %v1284
  %v1286 = vrcp.pop %v1187
  %v1287 = vmul.f32 1.0, %v1286
  %v1288 = vrcp.pop %v1188
  %v1289 = vmul.f32 1.0, %v1288
  %v1290 = vrcp.pop %v1189
  %v1291 = vmul.f32 1.0, %v1290
  %v1292 = vrcp.pop %v1190
  %v1293 = vmul.f32 1.0, %v1292
  %v1294 = vrcp.pop %v1191
  %v1295 = vmul.f32 1.0, %v1294
  %v1296 = vrcp.pop %v1192
  %v1297 = vmul.f32 1.0, %v1296
  %v1298 = vrcp.pop %v1193
  %v1299 = vmul.f32 1.0, %v1298
  %v1300 = vrcp.pop %v1194
  %v1301 = vmul.f32 1.0, %v1300
  %v1302 = vrcp.pop %v1195
  %v1303 = vmul.f32 1.0, %v1302
  %v1304 = vrcp.pop %v1196
  %v1305 = vmul.f32 1.0, %v1304
  %v1306 = vrcp.pop %v1197
  %v1307 = vmul.f32 1.0, %v1306
  %v1308 = vrcp.pop %v1198
  %v1309 = vmul.f32 1.0, %v1308
  %v1310 = vrcp.pop %v1199
  %v1311 = vmul.f32 1.0, %v1310
  %v1312 = vrcp.pop %v1200
  %v1313 = vmul.f32 1.0, %v1312
  %v1314 = vrcp.pop %v1201
  %v1315 = vmul.f32 1.0, %v1314
  %v1316 = vrcp.pop %v1202
  %v1317 = vmul.f32 1.0, %v1316
  %v1318 = vrcp.pop %v1203
  %v1319 = vmul.f32 1.0, %v1318
  %v1320 = vrcp.pop %v1204
  %v1321 = vmul.f32 1.0, %v1320
  %v1322 = vrcp.pop %v1205
  %v1323 = vmul.f32 1.0, %v1322
  %v1324 = vrcp.pop %v1206
  %v1325 = vmul.f32 1.0, %v1324
  %v1326 = vrcp.pop %v1207
  %v1327 = vmul.f32 1.0, %v1326
  %v1328 = vrcp.pop %v1208
  %v1329 = vmul.f32 1.0, %v1328
  %v1330 = vrcp.pop %v1209
  %v1331 = vmul.f32 1.0, %v1330
  %v1332 = vrcp.pop %v1210
  %v1333 = vmul.f32 1.0, %v1332
  %v1334 = vrcp.pop %v1211
  %v1335 = vmul.f32 1.0, %v1334
  %v1336 = vrcp.pop %v1212
  %v1337 = vmul.f32 1.0, %v1336
  %v1338 = vrcp.pop %v1213
  %v1339 = vmul.f32 1.0, %v1338
  %v1340 = vrcp.pop %v1214
  %v1341 = vmul.f32 1.0, %v1340
  %v1342 = vrcp.pop %v1215
  %v1343 = vmul.f32 1.0, %v1342
  %v1344 = vmul.f32 %v1217, 1.0614054
  %v1345 = vmul.f32 %v1219, 1.0614054
  %v1346 = vmul.f32 %v1221, 1.0614054
  %v1347 = vmul.f32 %v1223, 1.0614054
  %v1348 = vmul.f32 %v1225, 1.0614054
  %v1349 = vmul.f32 %v1227, 1.0614054
  %v1350 = vmul.f32 %v1229, 1.0614054
  %v1351 = vmul.f32 %v1231, 1.0614054
  %v1352 = vmul.f32 %v1233, 1.0614054
  %v1353 = vmul.f32 %v1235, 1.0614054
  %v1354 = vmul.f32 %v1237, 1.0614054
  %v1355 = vmul.f32 %v1239, 1.0614054
  %v1356 = vmul.f32 %v1241, 1.0614054
  %v1357 = vmul.f32 %v1243, 1.0614054
  %v1358 = vmul.f32 %v1245, 1.0614054
  %v1359 = vmul.f32 %v1247, 1.0614054
  %v1360 = vmul.f32 %v1249, 1.0614054
  %v1361 = vmul.f32 %v1251, 1.0614054
  %v1362 = vmul.f32 %v1253, 1.0614054
  %v1363 = vmul.f32 %v1255, 1.0614054
  %v1364 = vmul.f32 %v1257, 1.0614054
  %v1365 = vmul.f32 %v1259, 1.0614054
  %v1366 = vmul.f32 %v1261, 1.0614054
  %v1367 = vmul.f32 %v1263, 1.0614054
  %v1368 = vmul.f32 %v1265, 1.0614054
  %v1369 = vmul.f32 %v1267, 1.0614054
  %v1370 = vmul.f32 %v1269, 1.0614054
  %v1371 = vmul.f32 %v1271, 1.0614054
  %v1372 = vmul.f32 %v1273, 1.0614054
  %v1373 = vmul.f32 %v1275, 1.0614054
  %v1374 = vmul.f32 %v1277, 1.0614054
  %v1375 = vmul.f32 %v1279, 1.0614054
  %v1376 = vmul.f32 %v1281, 1.0614054
  %v1377 = vmul.f32 %v1283, 1.0614054
  %v1378 = vmul.f32 %v1285, 1.0614054
  %v1379 = vmul.f32 %v1287, 1.0614054
  %v1380 = vmul.f32 %v1289, 1.0614054
  %v1381 = vmul.f32 %v1291, 1.0614054
  %v1382 = vmul.f32 %v1293, 1.0614054
  %v1383 = vmul.f32 %v1295, 1.0614054
  %v1384 = vmul.f32 %v1297, 1.0614054
  %v1385 = vmul.f32 %v1299, 1.0614054
  %v1386 = vmul.f32 %v1301, 1.0614054
  %v1387 = vmul.f32 %v1303, 1.0614054
  %v1388 = vmul.f32 %v1305, 1.0614054
  %v1389 = vmul.f32 %v1307, 1.0614054
  %v1390 = vmul.f32 %v1309, 1.0614054
  %v1391 = vmul.f32 %v1311, 1.0614054
  %v1392 = vmul.f32 %v1313, 1.0614054
  %v1393 = vmul.f32 %v1315, 1.0614054
  %v1394 = vmul.f32 %v1317, 1.0614054
  %v1395 = vmul.f32 %v1319, 1.0614054
  %v1396 = vmul.f32 %v1321, 1.0614054
  %v1397 = vmul.f32 %v1323, 1.0614054
  %v1398 = vmul.f32 %v1325, 1.0614054
  %v1399 = vmul.f32 %v1327, 1.0614054
  %v1400 = vmul.f32 %v1329, 1.0614054
  %v1401 = vmul.f32 %v1331, 1.0614054
  %v1402 = vmul.f32 %v1333, 1.0614054
  %v1403 = vmul.f32 %v1335, 1.0614054
  %v1404 = vmul.f32 %v1337, 1.0614054
  %v1405 = vmul.f32 %v1339, 1.0614054
  %v1406 = vmul.f32 %v1341, 1.0614054
  %v1407 = vmul.f32 %v1343, 1.0614054
  %v1408 = vadd.f32 %v1344, -1.4531521
  %v1409 = vadd.f32 %v1345, -1.4531521
  %v1410 = vadd.f32 %v1346, -1.4531521
  %v1411 = vadd.f32 %v1347, -1.4531521
  %v1412 = vadd.f32 %v1348, -1.4531521
  %v1413 = vadd.f32 %v1349, -1.4531521
  %v1414 = vadd.f32 %v1350, -1.4531521
  %v1415 = vadd.f32 %v1351, -1.4531521
  %v1416 = vadd.f32 %v1352, -1.4531521
  %v1417 = vadd.f32 %v1353, -1.4531521
  %v1418 = vadd.f32 %v1354, -1.4531521
  %v1419 = vadd.f32 %v1355, -1.4531521
  %v1420 = vadd.f32 %v1356, -1.4531521
  %v1421 = vadd.f32 %v1357, -1.4531521
  %v1422 = vadd.f32 %v1358, -1.4531521
  %v1423 = vadd.f32 %v1359, -1.4531521
  %v1424 = vadd.f32 %v1360, -1.4531521
  %v1425 = vadd.f32 %v1361, -1.4531521
  %v1426 = vadd.f32 %v1362, -1.4531521
  %v1427 = vadd.f32 %v1363, -1.4531521
  %v1428 = vadd.f32 %v1364, -1.4531521
  %v1429 = vadd.f32 %v1365, -1.4531521
  %v1430 = vadd.f32 %v1366, -1.4531521
  %v1431 = vadd.f32 %v1367, -1.4531521
  %v1432 = vadd.f32 %v1368, -1.4531521
  %v1433 = vadd.f32 %v1369, -1.4531521
  %v1434 = vadd.f32 %v1370, -1.4531521
  %v1435 = vadd.f32 %v1371, -1.4531521
  %v1436 = vadd.f32 %v1372, -1.4531521
  %v1437 = vadd.f32 %v1373, -1.4531521
  %v1438 = vadd.f32 %v1374, -1.4531521
  %v1439 = vadd.f32 %v1375, -1.4531521
  %v1440 = vadd.f32 %v1376, -1.4531521
  %v1441 = vadd.f32 %v1377, -1.4531521
  %v1442 = vadd.f32 %v1378, -1.4531521
  %v1443 = vadd.f32 %v1379, -1.4531521
  %v1444 = vadd.f32 %v1380, -1.4531521
  %v1445 = vadd.f32 %v1381, -1.4531521
  %v1446 = vadd.f32 %v1382, -1.4531521
  %v1447 = vadd.f32 %v1383, -1.4531521
  %v1448 = vadd.f32 %v1384, -1.4531521
  %v1449 = vadd.f32 %v1385, -1.4531521
  %v1450 = vadd.f32 %v1386, -1.4531521
  %v1451 = vadd.f32 %v1387, -1.4531521
  %v1452 = vadd.f32 %v1388, -1.4531521
  %v1453 = vadd.f32 %v1389, -1.4531521
  %v1454 = vadd.f32 %v1390, -1.4531521
  %v1455 = vadd.f32 %v1391, -1.4531521
  %v1456 = vadd.f32 %v1392, -1.4531521
  %v1457 = vadd.f32 %v1393, -1.4531521
  %v1458 = vadd.f32 %v1394, -1.4531521
  %v1459 = vadd.f32 %v1395, -1.4531521
  %v1460 = vadd.f32 %v1396, -1.4531521
  %v1461 = vadd.f32 %v1397, -1.4531521
  %v1462 = vadd.f32 %v1398, -1.4531521
  %v1463 = vadd.f32 %v1399, -1.4531521
  %v1464 = vadd.f32 %v1400, -1.4531521
  %v1465 = vadd.f32 %v1401, -1.4531521
  %v1466 = vadd.f32 %v1402, -1.4531521
  %v1467 = vadd.f32 %v1403, -1.4531521
  %v1468 = vadd.f32 %v1404, -1.4531521
  %v1469 = vadd.f32 %v1405, -1.4531521
  %v1470 = vadd.f32 %v1406, -1.4531521
  %v1471 = vadd.f32 %v1407, -1.4531521
  %v1472 = vmul.f32 %v1408, %v1217
  %v1473 = vmul.f32 %v1409, %v1219
  %v1474 = vmul.f32 %v1410, %v1221
  %v1475 = vmul.f32 %v1411, %v1223
  %v1476 = vmul.f32 %v1412, %v1225
  %v1477 = vmul.f32 %v1413, %v1227
  %v1478 = vmul.f32 %v1414, %v1229
  %v1479 = vmul.f32 %v1415, %v1231
  %v1480 = vmul.f32 %v1416, %v1233
  %v1481 = vmul.f32 %v1417, %v1235
  %v1482 = vmul.f32 %v1418, %v1237
  %v1483 = vmul.f32 %v1419, %v1239
  %v1484 = vmul.f32 %v1420, %v1241
  %v1485 = vmul.f32 %v1421, %v1243
  %v1486 = vmul.f32 %v1422, %v1245
  %v1487 = vmul.f32 %v1423, %v1247
  %v1488 = vmul.f32 %v1424, %v1249
  %v1489 = vmul.f32 %v1425, %v1251
  %v1490 = vmul.f32 %v1426, %v1253
  %v1491 = vmul.f32 %v1427, %v1255
  %v1492 = vmul.f32 %v1428, %v1257
  %v1493 = vmul.f32 %v1429, %v1259
  %v1494 = vmul.f32 %v1430, %v1261
  %v1495 = vmul.f32 %v1431, %v1263
  %v1496 = vmul.f32 %v1432, %v1265
  %v1497 = vmul.f32 %v1433, %v1267
  %v1498 = vmul.f32 %v1434, %v1269
  %v1499 = vmul.f32 %v1435, %v1271
  %v1500 = vmul.f32 %v1436, %v1273
  %v1501 = vmul.f32 %v1437, %v1275
  %v1502 = vmul.f32 %v1438, %v1277
  %v1503 = vmul.f32 %v1439, %v1279
  %v1504 = vmul.f32 %v1440, %v1281
  %v1505 = vmul.f32 %v1441, %v1283
  %v1506 = vmul.f32 %v1442, %v1285
  %v1507 = vmul.f32 %v1443, %v1287
  %v1508 = vmul.f32 %v1444, %v1289
  %v1509 = vmul.f32 %v1445, %v1291
  %v1510 = vmul.f32 %v1446, %v1293
  %v1511 = vmul.f32 %v1447, %v1295
  %v1512 = vmul.f32 %v1448, %v1297
  %v1513 = vmul.f32 %v1449, %v1299
  %v1514 = vmul.f32 %v1450, %v1301
  %v1515 = vmul.f32 %v1451, %v1303
  %v1516 = vmul.f32 %v1452, %v1305
  %v1517 = vmul.f32 %v1453, %v1307
  %v1518 = vmul.f32 %v1454, %v1309
  %v1519 = vmul.f32 %v1455, %v1311
  %v1520 = vmul.f32 %v1456, %v1313
  %v1521 = vmul.f32 %v1457, %v1315
  %v1522 = vmul.f32 %v1458, %v1317
  %v1523 = vmul.f32 %v1459, %v1319
  %v1524 = vmul.f32 %v1460, %v1321
  %v1525 = vmul.f32 %v1461, %v1323
  %v1526 = vmul.f32 %v1462, %v1325
  %v1527 = vmul.f32 %v1463, %v1327
  %v1528 = vmul.f32 %v1464, %v1329
  %v1529 = vmul.f32 %v1465, %v1331
  %v1530 = vmul.f32 %v1466, %v1333
  %v1531 = vmul.f32 %v1467, %v1335
  %v1532 = vmul.f32 %v1468, %v1337
  %v1533 = vmul.f32 %v1469, %v1339
  %v1534 = vmul.f32 %v1470, %v1341
  %v1535 = vmul.f32 %v1471, %v1343
  %v1536 = vadd.f32 %v1472, 1.4214138
  %v1537 = vadd.f32 %v1473, 1.4214138
  %v1538 = vadd.f32 %v1474, 1.4214138
  %v1539 = vadd.f32 %v1475, 1.4214138
  %v1540 = vadd.f32 %v1476, 1.4214138
  %v1541 = vadd.f32 %v1477, 1.4214138
  %v1542 = vadd.f32 %v1478, 1.4214138
  %v1543 = vadd.f32 %v1479, 1.4214138
  %v1544 = vadd.f32 %v1480, 1.4214138
  %v1545 = vadd.f32 %v1481, 1.4214138
  %v1546 = vadd.f32 %v1482, 1.4214138
  %v1547 = vadd.f32 %v1483, 1.4214138
  %v1548 = vadd.f32 %v1484, 1.4214138
  %v1549 = vadd.f32 %v1485, 1.4214138
  %v1550 = vadd.f32 %v1486, 1.4214138
  %v1551 = vadd.f32 %v1487, 1.4214138
  %v1552 = vadd.f32 %v1488, 1.4214138
  %v1553 = vadd.f32 %v1489, 1.4214138
  %v1554 = vadd.f32 %v1490, 1.4214138
  %v1555 = vadd.f32 %v1491, 1.4214138
  %v1556 = vadd.f32 %v1492, 1.4214138
  %v1557 = vadd.f32 %v1493, 1.4214138
  %v1558 = vadd.f32 %v1494, 1.4214138
  %v1559 = vadd.f32 %v1495, 1.4214138
  %v1560 = vadd.f32 %v1496, 1.4214138
  %v1561 = vadd.f32 %v1497, 1.4214138
  %v1562 = vadd.f32 %v1498, 1.4214138
  %v1563 = vadd.f32 %v1499, 1.4214138
  %v1564 = vadd.f32 %v1500, 1.4214138
  %v1565 = vadd.f32 %v1501, 1.4214138
  %v1566 = vadd.f32 %v1502, 1.4214138
  %v1567 = vadd.f32 %v1503, 1.4214138
  %v1568 = vadd.f32 %v1504, 1.4214138
  %v1569 = vadd.f32 %v1505, 1.4214138
  %v1570 = vadd.f32 %v1506, 1.4214138
  %v1571 = vadd.f32 %v1507, 1.4214138
  %v1572 = vadd.f32 %v1508, 1.4214138
  %v1573 = vadd.f32 %v1509, 1.4214138
  %v1574 = vadd.f32 %v1510, 1.4214138
  %v1575 = vadd.f32 %v1511, 1.4214138
  %v1576 = vadd.f32 %v1512, 1.4214138
  %v1577 = vadd.f32 %v1513, 1.4214138
  %v1578 = vadd.f32 %v1514, 1.4214138
  %v1579 = vadd.f32 %v1515, 1.4214138
  %v1580 = vadd.f32 %v1516, 1.4214138
  %v1581 = vadd.f32 %v1517, 1.4214138
  %v1582 = vadd.f32 %v1518, 1.4214138
  %v1583 = vadd.f32 %v1519, 1.4214138
  %v1584 = vadd.f32 %v1520, 1.4214138
  %v1585 = vadd.f32 %v1521, 1.4214138
  %v1586 = vadd.f32 %v1522, 1.4214138
  %v1587 = vadd.f32 %v1523, 1.4214138
  %v1588 = vadd.f32 %v1524, 1.4214138
  %v1589 = vadd.f32 %v1525, 1.4214138
  %v1590 = vadd.f32 %v1526, 1.4214138
  %v1591 = vadd.f32 %v1527, 1.4214138
  %v1592 = vadd.f32 %v1528, 1.4214138
  %v1593 = vadd.f32 %v1529, 1.4214138
  %v1594 = vadd.f32 %v1530, 1.4214138
  %v1595 = vadd.f32 %v1531, 1.4214138
  %v1596 = vadd.f32 %v1532, 1.4214138
  %v1597 = vadd.f32 %v1533, 1.4214138
  %v1598 = vadd.f32 %v1534, 1.4214138
  %v1599 = vadd.f32 %v1535, 1.4214138
  %v1600 = vmul.f32 %v1536, %v1217
  %v1601 = vmul.f32 %v1537, %v1219
  %v1602 = vmul.f32 %v1538, %v1221
  %v1603 = vmul.f32 %v1539, %v1223
  %v1604 = vmul.f32 %v1540, %v1225
  %v1605 = vmul.f32 %v1541, %v1227
  %v1606 = vmul.f32 %v1542, %v1229
  %v1607 = vmul.f32 %v1543, %v1231
  %v1608 = vmul.f32 %v1544, %v1233
  %v1609 = vmul.f32 %v1545, %v1235
  %v1610 = vmul.f32 %v1546, %v1237
  %v1611 = vmul.f32 %v1547, %v1239
  %v1612 = vmul.f32 %v1548, %v1241
  %v1613 = vmul.f32 %v1549, %v1243
  %v1614 = vmul.f32 %v1550, %v1245
  %v1615 = vmul.f32 %v1551, %v1247
  %v1616 = vmul.f32 %v1552, %v1249
  %v1617 = vmul.f32 %v1553, %v1251
  %v1618 = vmul.f32 %v1554, %v1253
  %v1619 = vmul.f32 %v1555, %v1255
  %v1620 = vmul.f32 %v1556, %v1257
  %v1621 = vmul.f32 %v1557, %v1259
  %v1622 = vmul.f32 %v1558, %v1261
  %v1623 = vmul.f32 %v1559, %v1263
  %v1624 = vmul.f32 %v1560, %v1265
  %v1625 = vmul.f32 %v1561, %v1267
  %v1626 = vmul.f32 %v1562, %v1269
  %v1627 = vmul.f32 %v1563, %v1271
  %v1628 = vmul.f32 %v1564, %v1273
  %v1629 = vmul.f32 %v1565, %v1275
  %v1630 = vmul.f32 %v1566, %v1277
  %v1631 = vmul.f32 %v1567, %v1279
  %v1632 = vmul.f32 %v1568, %v1281
  %v1633 = vmul.f32 %v1569, %v1283
  %v1634 = vmul.f32 %v1570, %v1285
  %v1635 = vmul.f32 %v1571, %v1287
  %v1636 = vmul.f32 %v1572, %v1289
  %v1637 = vmul.f32 %v1573, %v1291
  %v1638 = vmul.f32 %v1574, %v1293
  %v1639 = vmul.f32 %v1575, %v1295
  %v1640 = vmul.f32 %v1576, %v1297
  %v1641 = vmul.f32 %v1577, %v1299
  %v1642 = vmul.f32 %v1578, %v1301
  %v1643 = vmul.f32 %v1579, %v1303
  %v1644 = vmul.f32 %v1580, %v1305
  %v1645 = vmul.f32 %v1581, %v1307
  %v1646 = vmul.f32 %v1582, %v1309
  %v1647 = vmul.f32 %v1583, %v1311
  %v1648 = vmul.f32 %v1584, %v1313
  %v1649 = vmul.f32 %v1585, %v1315
  %v1650 = vmul.f32 %v1586, %v1317
  %v1651 = vmul.f32 %v1587, %v1319
  %v1652 = vmul.f32 %v1588, %v1321
  %v1653 = vmul.f32 %v1589, %v1323
  %v1654 = vmul.f32 %v1590, %v1325
  %v1655 = vmul.f32 %v1591, %v1327
  %v1656 = vmul.f32 %v1592, %v1329
  %v1657 = vmul.f32 %v1593, %v1331
  %v1658 = vmul.f32 %v1594, %v1333
  %v1659 = vmul.f32 %v1595, %v1335
  %v1660 = vmul.f32 %v1596, %v1337
  %v1661 = vmul.f32 %v1597, %v1339
  %v1662 = vmul.f32 %v1598, %v1341
  %v1663 = vmul.f32 %v1599, %v1343
  %v1664 = vadd.f32 %v1600, -0.28449672
  %v1665 = vadd.f32 %v1601, -0.28449672
  %v1666 = vadd.f32 %v1602, -0.28449672
  %v1667 = vadd.f32 %v1603, -0.28449672
  %v1668 = vadd.f32 %v1604, -0.28449672
  %v1669 = vadd.f32 %v1605, -0.28449672
  %v1670 = vadd.f32 %v1606, -0.28449672
  %v1671 = vadd.f32 %v1607, -0.28449672
  %v1672 = vadd.f32 %v1608, -0.28449672
  %v1673 = vadd.f32 %v1609, -0.28449672
  %v1674 = vadd.f32 %v1610, -0.28449672
  %v1675 = vadd.f32 %v1611, -0.28449672
  %v1676 = vadd.f32 %v1612, -0.28449672
  %v1677 = vadd.f32 %v1613, -0.28449672
  %v1678 = vadd.f32 %v1614, -0.28449672
  %v1679 = vadd.f32 %v1615, -0.28449672
  %v1680 = vadd.f32 %v1616, -0.28449672
  %v1681 = vadd.f32 %v1617, -0.28449672
  %v1682 = vadd.f32 %v1618, -0.28449672
  %v1683 = vadd.f32 %v1619, -0.28449672
  %v1684 = vadd.f32 %v1620, -0.28449672
  %v1685 = vadd.f32 %v1621, -0.28449672
  %v1686 = vadd.f32 %v1622, -0.28449672
  %v1687 = vadd.f32 %v1623, -0.28449672
  %v1688 = vadd.f32 %v1624, -0.28449672
  %v1689 = vadd.f32 %v1625, -0.28449672
  %v1690 = vadd.f32 %v1626, -0.28449672
  %v1691 = vadd.f32 %v1627, -0.28449672
  %v1692 = vadd.f32 %v1628, -0.28449672
  %v1693 = vadd.f32 %v1629, -0.28449672
  %v1694 = vadd.f32 %v1630, -0.28449672
  %v1695 = vadd.f32 %v1631, -0.28449672
  %v1696 = vadd.f32 %v1632, -0.28449672
  %v1697 = vadd.f32 %v1633, -0.28449672
  %v1698 = vadd.f32 %v1634, -0.28449672
  %v1699 = vadd.f32 %v1635, -0.28449672
  %v1700 = vadd.f32 %v1636, -0.28449672
  %v1701 = vadd.f32 %v1637, -0.28449672
  %v1702 = vadd.f32 %v1638, -0.28449672
  %v1703 = vadd.f32 %v1639, -0.28449672
  %v1704 = vadd.f32 %v1640, -0.28449672
  %v1705 = vadd.f32 %v1641, -0.28449672
  %v1706 = vadd.f32 %v1642, -0.28449672
  %v1707 = vadd.f32 %v1643, -0.28449672
  %v1708 = vadd.f32 %v1644, -0.28449672
  %v1709 = vadd.f32 %v1645, -0.28449672
  %v1710 = vadd.f32 %v1646, -0.28449672
  %v1711 = vadd.f32 %v1647, -0.28449672
  %v1712 = vadd.f32 %v1648, -0.28449672
  %v1713 = vadd.f32 %v1649, -0.28449672
  %v1714 = vadd.f32 %v1650, -0.28449672
  %v1715 = vadd.f32 %v1651, -0.28449672
  %v1716 = vadd.f32 %v1652, -0.28449672
  %v1717 = vadd.f32 %v1653, -0.28449672
  %v1718 = vadd.f32 %v1654, -0.28449672
  %v1719 = vadd.f32 %v1655, -0.28449672
  %v1720 = vadd.f32 %v1656, -0.28449672
  %v1721 = vadd.f32 %v1657, -0.28449672
  %v1722 = vadd.f32 %v1658, -0.28449672
  %v1723 = vadd.f32 %v1659, -0.28449672
  %v1724 = vadd.f32 %v1660, -0.28449672
  %v1725 = vadd.f32 %v1661, -0.28449672
  %v1726 = vadd.f32 %v1662, -0.28449672
  %v1727 = vadd.f32 %v1663, -0.28449672
  %v1728 = vmul.f32 %v1664, %v1217
  %v1729 = vmul.f32 %v1665, %v1219
  %v1730 = vmul.f32 %v1666, %v1221
  %v1731 = vmul.f32 %v1667, %v1223
  %v1732 = vmul.f32 %v1668, %v1225
  %v1733 = vmul.f32 %v1669, %v1227
  %v1734 = vmul.f32 %v1670, %v1229
  %v1735 = vmul.f32 %v1671, %v1231
  %v1736 = vmul.f32 %v1672, %v1233
  %v1737 = vmul.f32 %v1673, %v1235
  %v1738 = vmul.f32 %v1674, %v1237
  %v1739 = vmul.f32 %v1675, %v1239
  %v1740 = vmul.f32 %v1676, %v1241
  %v1741 = vmul.f32 %v1677, %v1243
  %v1742 = vmul.f32 %v1678, %v1245
  %v1743 = vmul.f32 %v1679, %v1247
  %v1744 = vmul.f32 %v1680, %v1249
  %v1745 = vmul.f32 %v1681, %v1251
  %v1746 = vmul.f32 %v1682, %v1253
  %v1747 = vmul.f32 %v1683, %v1255
  %v1748 = vmul.f32 %v1684, %v1257
  %v1749 = vmul.f32 %v1685, %v1259
  %v1750 = vmul.f32 %v1686, %v1261
  %v1751 = vmul.f32 %v1687, %v1263
  %v1752 = vmul.f32 %v1688, %v1265
  %v1753 = vmul.f32 %v1689, %v1267
  %v1754 = vmul.f32 %v1690, %v1269
  %v1755 = vmul.f32 %v1691, %v1271
  %v1756 = vmul.f32 %v1692, %v1273
  %v1757 = vmul.f32 %v1693, %v1275
  %v1758 = vmul.f32 %v1694, %v1277
  %v1759 = vmul.f32 %v1695, %v1279
  %v1760 = vmul.f32 %v1696, %v1281
  %v1761 = vmul.f32 %v1697, %v1283
  %v1762 = vmul.f32 %v1698, %v1285
  %v1763 = vmul.f32 %v1699, %v1287
  %v1764 = vmul.f32 %v1700, %v1289
  %v1765 = vmul.f32 %v1701, %v1291
  %v1766 = vmul.f32 %v1702, %v1293
  %v1767 = vmul.f32 %v1703, %v1295
  %v1768 = vmul.f32 %v1704, %v1297
  %v1769 = vmul.f32 %v1705, %v1299
  %v1770 = vmul.f32 %v1706, %v1301
  %v1771 = vmul.f32 %v1707, %v1303
  %v1772 = vmul.f32 %v1708, %v1305
  %v1773 = vmul.f32 %v1709, %v1307
  %v1774 = vmul.f32 %v1710, %v1309
  %v1775 = vmul.f32 %v1711, %v1311
  %v1776 = vmul.f32 %v1712, %v1313
  %v1777 = vmul.f32 %v1713, %v1315
  %v1778 = vmul.f32 %v1714, %v1317
  %v1779 = vmul.f32 %v1715, %v1319
  %v1780 = vmul.f32 %v1716, %v1321
  %v1781 = vmul.f32 %v1717, %v1323
  %v1782 = vmul.f32 %v1718, %v1325
  %v1783 = vmul.f32 %v1719, %v1327
  %v1784 = vmul.f32 %v1720, %v1329
  %v1785 = vmul.f32 %v1721, %v1331
  %v1786 = vmul.f32 %v1722, %v1333
  %v1787 = vmul.f32 %v1723, %v1335
  %v1788 = vmul.f32 %v1724, %v1337
  %v1789 = vmul.f32 %v1725, %v1339
  %v1790 = vmul.f32 %v1726, %v1341
  %v1791 = vmul.f32 %v1727, %v1343
  %v1792 = vadd.f32 %v1728, 0.2548296
  %v1793 = vadd.f32 %v1729, 0.2548296
  %v1794 = vadd.f32 %v1730, 0.2548296
  %v1795 = vadd.f32 %v1731, 0.2548296
  %v1796 = vadd.f32 %v1732, 0.2548296
  %v1797 = vadd.f32 %v1733, 0.2548296
  %v1798 = vadd.f32 %v1734, 0.2548296
  %v1799 = vadd.f32 %v1735, 0.2548296
  %v1800 = vadd.f32 %v1736, 0.2548296
  %v1801 = vadd.f32 %v1737, 0.2548296
  %v1802 = vadd.f32 %v1738, 0.2548296
  %v1803 = vadd.f32 %v1739, 0.2548296
  %v1804 = vadd.f32 %v1740, 0.2548296
  %v1805 = vadd.f32 %v1741, 0.2548296
  %v1806 = vadd.f32 %v1742, 0.2548296
  %v1807 = vadd.f32 %v1743, 0.2548296
  %v1808 = vadd.f32 %v1744, 0.2548296
  %v1809 = vadd.f32 %v1745, 0.2548296
  %v1810 = vadd.f32 %v1746, 0.2548296
  %v1811 = vadd.f32 %v1747, 0.2548296
  %v1812 = vadd.f32 %v1748, 0.2548296
  %v1813 = vadd.f32 %v1749, 0.2548296
  %v1814 = vadd.f32 %v1750, 0.2548296
  %v1815 = vadd.f32 %v1751, 0.2548296
  %v1816 = vadd.f32 %v1752, 0.2548296
  %v1817 = vadd.f32 %v1753, 0.2548296
  %v1818 = vadd.f32 %v1754, 0.2548296
  %v1819 = vadd.f32 %v1755, 0.2548296
  %v1820 = vadd.f32 %v1756, 0.2548296
  %v1821 = vadd.f32 %v1757, 0.2548296
  %v1822 = vadd.f32 %v1758, 0.2548296
  %v1823 = vadd.f32 %v1759, 0.2548296
  %v1824 = vadd.f32 %v1760, 0.2548296
  %v1825 = vadd.f32 %v1761, 0.2548296
  %v1826 = vadd.f32 %v1762, 0.2548296
  %v1827 = vadd.f32 %v1763, 0.2548296
  %v1828 = vadd.f32 %v1764, 0.2548296
  %v1829 = vadd.f32 %v1765, 0.2548296
  %v1830 = vadd.f32 %v1766, 0.2548296
  %v1831 = vadd.f32 %v1767, 0.2548296
  %v1832 = vadd.f32 %v1768, 0.2548296
  %v1833 = vadd.f32 %v1769, 0.2548296
  %v1834 = vadd.f32 %v1770, 0.2548296
  %v1835 = vadd.f32 %v1771, 0.2548296
  %v1836 = vadd.f32 %v1772, 0.2548296
  %v1837 = vadd.f32 %v1773, 0.2548296
  %v1838 = vadd.f32 %v1774, 0.2548296
  %v1839 = vadd.f32 %v1775, 0.2548296
  %v1840 = vadd.f32 %v1776, 0.2548296
  %v1841 = vadd.f32 %v1777, 0.2548296
  %v1842 = vadd.f32 %v1778, 0.2548296
  %v1843 = vadd.f32 %v1779, 0.2548296
  %v1844 = vadd.f32 %v1780, 0.2548296
  %v1845 = vadd.f32 %v1781, 0.2548296
  %v1846 = vadd.f32 %v1782, 0.2548296
  %v1847 = vadd.f32 %v1783, 0.2548296
  %v1848 = vadd.f32 %v1784, 0.2548296
  %v1849 = vadd.f32 %v1785, 0.2548296
  %v1850 = vadd.f32 %v1786, 0.2548296
  %v1851 = vadd.f32 %v1787, 0.2548296
  %v1852 = vadd.f32 %v1788, 0.2548296
  %v1853 = vadd.f32 %v1789, 0.2548296
  %v1854 = vadd.f32 %v1790, 0.2548296
  %v1855 = vadd.f32 %v1791, 0.2548296
  %v1856 = vmul.f32 %v1792, %v1217
  %v1857 = vmul.f32 %v1793, %v1219
  %v1858 = vmul.f32 %v1794, %v1221
  %v1859 = vmul.f32 %v1795, %v1223
  %v1860 = vmul.f32 %v1796, %v1225
  %v1861 = vmul.f32 %v1797, %v1227
  %v1862 = vmul.f32 %v1798, %v1229
  %v1863 = vmul.f32 %v1799, %v1231
  %v1864 = vmul.f32 %v1800, %v1233
  %v1865 = vmul.f32 %v1801, %v1235
  %v1866 = vmul.f32 %v1802, %v1237
  %v1867 = vmul.f32 %v1803, %v1239
  %v1868 = vmul.f32 %v1804, %v1241
  %v1869 = vmul.f32 %v1805, %v1243
  %v1870 = vmul.f32 %v1806, %v1245
  %v1871 = vmul.f32 %v1807, %v1247
  %v1872 = vmul.f32 %v1808, %v1249
  %v1873 = vmul.f32 %v1809, %v1251
  %v1874 = vmul.f32 %v1810, %v1253
  %v1875 = vmul.f32 %v1811, %v1255
  %v1876 = vmul.f32 %v1812, %v1257
  %v1877 = vmul.f32 %v1813, %v1259
  %v1878 = vmul.f32 %v1814, %v1261
  %v1879 = vmul.f32 %v1815, %v1263
  %v1880 = vmul.f32 %v1816, %v1265
  %v1881 = vmul.f32 %v1817, %v1267
  %v1882 = vmul.f32 %v1818, %v1269
  %v1883 = vmul.f32 %v1819, %v1271
  %v1884 = vmul.f32 %v1820, %v1273
  %v1885 = vmul.f32 %v1821, %v1275
  %v1886 = vmul.f32 %v1822, %v1277
  %v1887 = vmul.f32 %v1823, %v1279
  %v1888 = vmul.f32 %v1824, %v1281
  %v1889 = vmul.f32 %v1825, %v1283
  %v1890 = vmul.f32 %v1826, %v1285
  %v1891 = vmul.f32 %v1827, %v1287
  %v1892 = vmul.f32 %v1828, %v1289
  %v1893 = vmul.f32 %v1829, %v1291
  %v1894 = vmul.f32 %v1830, %v1293
  %v1895 = vmul.f32 %v1831, %v1295
  %v1896 = vmul.f32 %v1832, %v1297
  %v1897 = vmul.f32 %v1833, %v1299
  %v1898 = vmul.f32 %v1834, %v1301
  %v1899 = vmul.f32 %v1835, %v1303
  %v1900 = vmul.f32 %v1836, %v1305
  %v1901 = vmul.f32 %v1837, %v1307
  %v1902 = vmul.f32 %v1838, %v1309
  %v1903 = vmul.f32 %v1839, %v1311
  %v1904 = vmul.f32 %v1840, %v1313
  %v1905 = vmul.f32 %v1841, %v1315
  %v1906 = vmul.f32 %v1842, %v1317
  %v1907 = vmul.f32 %v1843, %v1319
  %v1908 = vmul.f32 %v1844, %v1321
  %v1909 = vmul.f32 %v1845, %v1323
  %v1910 = vmul.f32 %v1846, %v1325
  %v1911 = vmul.f32 %v1847, %v1327
  %v1912 = vmul.f32 %v1848, %v1329
  %v1913 = vmul.f32 %v1849, %v1331
  %v1914 = vmul.f32 %v1850, %v1333
  %v1915 = vmul.f32 %v1851, %v1335
  %v1916 = vmul.f32 %v1852, %v1337
  %v1917 = vmul.f32 %v1853, %v1339
  %v1918 = vmul.f32 %v1854, %v1341
  %v1919 = vmul.f32 %v1855, %v1343
  %v1920 = vsub.f32 0.0, %v1024
  %v1921 = vsub.f32 0.0, %v1025
  %v1922 = vsub.f32 0.0, %v1026
  %v1923 = vsub.f32 0.0, %v1027
  %v1924 = vsub.f32 0.0, %v1028
  %v1925 = vsub.f32 0.0, %v1029
  %v1926 = vsub.f32 0.0, %v1030
  %v1927 = vsub.f32 0.0, %v1031
  %v1928 = vsub.f32 0.0, %v1032
  %v1929 = vsub.f32 0.0, %v1033
  %v1930 = vsub.f32 0.0, %v1034
  %v1931 = vsub.f32 0.0, %v1035
  %v1932 = vsub.f32 0.0, %v1036
  %v1933 = vsub.f32 0.0, %v1037
  %v1934 = vsub.f32 0.0, %v1038
  %v1935 = vsub.f32 0.0, %v1039
  %v1936 = vsub.f32 0.0, %v1040
  %v1937 = vsub.f32 0.0, %v1041
  %v1938 = vsub.f32 0.0, %v1042
  %v1939 = vsub.f32 0.0, %v1043
  %v1940 = vsub.f32 0.0, %v1044
  %v1941 = vsub.f32 0.0, %v1045
  %v1942 = vsub.f32 0.0, %v1046
  %v1943 = vsub.f32 0.0, %v1047
  %v1944 = vsub.f32 0.0, %v1048
  %v1945 = vsub.f32 0.0, %v1049
  %v1946 = vsub.f32 0.0, %v1050
  %v1947 = vsub.f32 0.0, %v1051
  %v1948 = vsub.f32 0.0, %v1052
  %v1949 = vsub.f32 0.0, %v1053
  %v1950 = vsub.f32 0.0, %v1054
  %v1951 = vsub.f32 0.0, %v1055
  %v1952 = vsub.f32 0.0, %v1056
  %v1953 = vsub.f32 0.0, %v1057
  %v1954 = vsub.f32 0.0, %v1058
  %v1955 = vsub.f32 0.0, %v1059
  %v1956 = vsub.f32 0.0, %v1060
  %v1957 = vsub.f32 0.0, %v1061
  %v1958 = vsub.f32 0.0, %v1062
  %v1959 = vsub.f32 0.0, %v1063
  %v1960 = vsub.f32 0.0, %v1064
  %v1961 = vsub.f32 0.0, %v1065
  %v1962 = vsub.f32 0.0, %v1066
  %v1963 = vsub.f32 0.0, %v1067
  %v1964 = vsub.f32 0.0, %v1068
  %v1965 = vsub.f32 0.0, %v1069
  %v1966 = vsub.f32 0.0, %v1070
  %v1967 = vsub.f32 0.0, %v1071
  %v1968 = vsub.f32 0.0, %v1072
  %v1969 = vsub.f32 0.0, %v1073
  %v1970 = vsub.f32 0.0, %v1074
  %v1971 = vsub.f32 0.0, %v1075
  %v1972 = vsub.f32 0.0, %v1076
  %v1973 = vsub.f32 0.0, %v1077
  %v1974 = vsub.f32 0.0, %v1078
  %v1975 = vsub.f32 0.0, %v1079
  %v1976 = vsub.f32 0.0, %v1080
  %v1977 = vsub.f32 0.0, %v1081
  %v1978 = vsub.f32 0.0, %v1082
  %v1979 = vsub.f32 0.0, %v1083
  %v1980 = vsub.f32 0.0, %v1084
  %v1981 = vsub.f32 0.0, %v1085
  %v1982 = vsub.f32 0.0, %v1086
  %v1983 = vsub.f32 0.0, %v1087
  %v1984 = vmul.f32 %v1920, %v1024
  %v1985 = vmul.f32 %v1921, %v1025
  %v1986 = vmul.f32 %v1922, %v1026
  %v1987 = vmul.f32 %v1923, %v1027
  %v1988 = vmul.f32 %v1924, %v1028
  %v1989 = vmul.f32 %v1925, %v1029
  %v1990 = vmul.f32 %v1926, %v1030
  %v1991 = vmul.f32 %v1927, %v1031
  %v1992 = vmul.f32 %v1928, %v1032
  %v1993 = vmul.f32 %v1929, %v1033
  %v1994 = vmul.f32 %v1930, %v1034
  %v1995 = vmul.f32 %v1931, %v1035
  %v1996 = vmul.f32 %v1932, %v1036
  %v1997 = vmul.f32 %v1933, %v1037
  %v1998 = vmul.f32 %v1934, %v1038
  %v1999 = vmul.f32 %v1935, %v1039
  %v2000 = vmul.f32 %v1936, %v1040
  %v2001 = vmul.f32 %v1937, %v1041
  %v2002 = vmul.f32 %v1938, %v1042
  %v2003 = vmul.f32 %v1939, %v1043
  %v2004 = vmul.f32 %v1940, %v1044
  %v2005 = vmul.f32 %v1941, %v1045
  %v2006 = vmul.f32 %v1942, %v1046
  %v2007 = vmul.f32 %v1943, %v1047
  %v2008 = vmul.f32 %v1944, %v1048
  %v2009 = vmul.f32 %v1945, %v1049
  %v2010 = vmul.f32 %v1946, %v1050
  %v2011 = vmul.f32 %v1947, %v1051
  %v2012 = vmul.f32 %v1948, %v1052
  %v2013 = vmul.f32 %v1949, %v1053
  %v2014 = vmul.f32 %v1950, %v1054
  %v2015 = vmul.f32 %v1951, %v1055
  %v2016 = vmul.f32 %v1952, %v1056
  %v2017 = vmul.f32 %v1953, %v1057
  %v2018 = vmul.f32 %v1954, %v1058
  %v2019 = vmul.f32 %v1955, %v1059
  %v2020 = vmul.f32 %v1956, %v1060
  %v2021 = vmul.f32 %v1957, %v1061
  %v2022 = vmul.f32 %v1958, %v1062
  %v2023 = vmul.f32 %v1959, %v1063
  %v2024 = vmul.f32 %v1960, %v1064
  %v2025 = vmul.f32 %v1961, %v1065
  %v2026 = vmul.f32 %v1962, %v1066
  %v2027 = vmul.f32 %v1963, %v1067
  %v2028 = vmul.f32 %v1964, %v1068
  %v2029 = vmul.f32 %v1965, %v1069
  %v2030 = vmul.f32 %v1966, %v1070
  %v2031 = vmul.f32 %v1967, %v1071
  %v2032 = vmul.f32 %v1968, %v1072
  %v2033 = vmul.f32 %v1969, %v1073
  %v2034 = vmul.f32 %v1970, %v1074
  %v2035 = vmul.f32 %v1971, %v1075
  %v2036 = vmul.f32 %v1972, %v1076
  %v2037 = vmul.f32 %v1973, %v1077
  %v2038 = vmul.f32 %v1974, %v1078
  %v2039 = vmul.f32 %v1975, %v1079
  %v2040 = vmul.f32 %v1976, %v1080
  %v2041 = vmul.f32 %v1977, %v1081
  %v2042 = vmul.f32 %v1978, %v1082
  %v2043 = vmul.f32 %v1979, %v1083
  %v2044 = vmul.f32 %v1980, %v1084
  %v2045 = vmul.f32 %v1981, %v1085
  %v2046 = vmul.f32 %v1982, %v1086
  %v2047 = vmul.f32 %v1983, %v1087
  %v2048 = vmul.f32 %v1984, 1.442695
  %v2049 = vpow.pop %v2048
  %v2050 = vmul.f32 %v1985, 1.442695
  %v2051 = vpow.pop %v2050
  %v2052 = vmul.f32 %v1986, 1.442695
  %v2053 = vpow.pop %v2052
  %v2054 = vmul.f32 %v1987, 1.442695
  %v2055 = vpow.pop %v2054
  %v2056 = vmul.f32 %v1988, 1.442695
  %v2057 = vpow.pop %v2056
  %v2058 = vmul.f32 %v1989, 1.442695
  %v2059 = vpow.pop %v2058
  %v2060 = vmul.f32 %v1990, 1.442695
  %v2061 = vpow.pop %v2060
  %v2062 = vmul.f32 %v1991, 1.442695
  %v2063 = vpow.pop %v2062
  %v2064 = vmul.f32 %v1992, 1.442695
  %v2065 = vpow.pop %v2064
  %v2066 = vmul.f32 %v1993, 1.442695
  %v2067 = vpow.pop %v2066
  %v2068 = vmul.f32 %v1994, 1.442695
  %v2069 = vpow.pop %v2068
  %v2070 = vmul.f32 %v1995, 1.442695
  %v2071 = vpow.pop %v2070
  %v2072 = vmul.f32 %v1996, 1.442695
  %v2073 = vpow.pop %v2072
  %v2074 = vmul.f32 %v1997, 1.442695
  %v2075 = vpow.pop %v2074
  %v2076 = vmul.f32 %v1998, 1.442695
  %v2077 = vpow.pop %v2076
  %v2078 = vmul.f32 %v1999, 1.442695
  %v2079 = vpow.pop %v2078
  %v2080 = vmul.f32 %v2000, 1.442695
  %v2081 = vpow.pop %v2080
  %v2082 = vmul.f32 %v2001, 1.442695
  %v2083 = vpow.pop %v2082
  %v2084 = vmul.f32 %v2002, 1.442695
  %v2085 = vpow.pop %v2084
  %v2086 = vmul.f32 %v2003, 1.442695
  %v2087 = vpow.pop %v2086
  %v2088 = vmul.f32 %v2004, 1.442695
  %v2089 = vpow.pop %v2088
  %v2090 = vmul.f32 %v2005, 1.442695
  %v2091 = vpow.pop %v2090
  %v2092 = vmul.f32 %v2006, 1.442695
  %v2093 = vpow.pop %v2092
  %v2094 = vmul.f32 %v2007, 1.442695
  %v2095 = vpow.pop %v2094
  %v2096 = vmul.f32 %v2008, 1.442695
  %v2097 = vpow.pop %v2096
  %v2098 = vmul.f32 %v2009, 1.442695
  %v2099 = vpow.pop %v2098
  %v2100 = vmul.f32 %v2010, 1.442695
  %v2101 = vpow.pop %v2100
  %v2102 = vmul.f32 %v2011, 1.442695
  %v2103 = vpow.pop %v2102
  %v2104 = vmul.f32 %v2012, 1.442695
  %v2105 = vpow.pop %v2104
  %v2106 = vmul.f32 %v2013, 1.442695
  %v2107 = vpow.pop %v2106
  %v2108 = vmul.f32 %v2014, 1.442695
  %v2109 = vpow.pop %v2108
  %v2110 = vmul.f32 %v2015, 1.442695
  %v2111 = vpow.pop %v2110
  %v2112 = vmul.f32 %v2016, 1.442695
  %v2113 = vpow.pop %v2112
  %v2114 = vmul.f32 %v2017, 1.442695
  %v2115 = vpow.pop %v2114
  %v2116 = vmul.f32 %v2018, 1.442695
  %v2117 = vpow.pop %v2116
  %v2118 = vmul.f32 %v2019, 1.442695
  %v2119 = vpow.pop %v2118
  %v2120 = vmul.f32 %v2020, 1.442695
  %v2121 = vpow.pop %v2120
  %v2122 = vmul.f32 %v2021, 1.442695
  %v2123 = vpow.pop %v2122
  %v2124 = vmul.f32 %v2022, 1.442695
  %v2125 = vpow.pop %v2124
  %v2126 = vmul.f32 %v2023, 1.442695
  %v2127 = vpow.pop %v2126
  %v2128 = vmul.f32 %v2024, 1.442695
  %v2129 = vpow.pop %v2128
  %v2130 = vmul.f32 %v2025, 1.442695
  %v2131 = vpow.pop %v2130
  %v2132 = vmul.f32 %v2026, 1.442695
  %v2133 = vpow.pop %v2132
  %v2134 = vmul.f32 %v2027, 1.442695
  %v2135 = vpow.pop %v2134
  %v2136 = vmul.f32 %v2028, 1.442695
  %v2137 = vpow.pop %v2136
  %v2138 = vmul.f32 %v2029, 1.442695
  %v2139 = vpow.pop %v2138
  %v2140 = vmul.f32 %v2030, 1.442695
  %v2141 = vpow.pop %v2140
  %v2142 = vmul.f32 %v2031, 1.442695
  %v2143 = vpow.pop %v2142
  %v2144 = vmul.f32 %v2032, 1.442695
  %v2145 = vpow.pop %v2144
  %v2146 = vmul.f32 %v2033, 1.442695
  %v2147 = vpow.pop %v2146
  %v2148 = vmul.f32 %v2034, 1.442695
  %v2149 = vpow.pop %v2148
  %v2150 = vmul.f32 %v2035, 1.442695
  %v2151 = vpow.pop %v2150
  %v2152 = vmul.f32 %v2036, 1.442695
  %v2153 = vpow.pop %v2152
  %v2154 = vmul.f32 %v2037, 1.442695
  %v2155 = vpow.pop %v2154
  %v2156 = vmul.f32 %v2038, 1.442695
  %v2157 = vpow.pop %v2156
  %v2158 = vmul.f32 %v2039, 1.442695
  %v2159 = vpow.pop %v2158
  %v2160 = vmul.f32 %v2040, 1.442695
  %v2161 = vpow.pop %v2160
  %v2162 = vmul.f32 %v2041, 1.442695
  %v2163 = vpow.pop %v2162
  %v2164 = vmul.f32 %v2042, 1.442695
  %v2165 = vpow.pop %v2164
  %v2166 = vmul.f32 %v2043, 1.442695
  %v2167 = vpow.pop %v2166
  %v2168 = vmul.f32 %v2044, 1.442695
  %v2169 = vpow.pop %v2168
  %v2170 = vmul.f32 %v2045, 1.442695
  %v2171 = vpow.pop %v2170
  %v2172 = vmul.f32 %v2046, 1.442695
  %v2173 = vpow.pop %v2172
  %v2174 = vmul.f32 %v2047, 1.442695
  %v2175 = vpow.pop %v2174
  %v2176 = vmul.f32 %v1856, %v2049
  %v2177 = vmul.f32 %v1857, %v2051
  %v2178 = vmul.f32 %v1858, %v2053
  %v2179 = vmul.f32 %v1859, %v2055
  %v2180 = vmul.f32 %v1860, %v2057
  %v2181 = vmul.f32 %v1861, %v2059
  %v2182 = vmul.f32 %v1862, %v2061
  %v2183 = vmul.f32 %v1863, %v2063
  %v2184 = vmul.f32 %v1864, %v2065
  %v2185 = vmul.f32 %v1865, %v2067
  %v2186 = vmul.f32 %v1866, %v2069
  %v2187 = vmul.f32 %v1867, %v2071
  %v2188 = vmul.f32 %v1868, %v2073
  %v2189 = vmul.f32 %v1869, %v2075
  %v2190 = vmul.f32 %v1870, %v2077
  %v2191 = vmul.f32 %v1871, %v2079
  %v2192 = vmul.f32 %v1872, %v2081
  %v2193 = vmul.f32 %v1873, %v2083
  %v2194 = vmul.f32 %v1874, %v2085
  %v2195 = vmul.f32 %v1875, %v2087
  %v2196 = vmul.f32 %v1876, %v2089
  %v2197 = vmul.f32 %v1877, %v2091
  %v2198 = vmul.f32 %v1878, %v2093
  %v2199 = vmul.f32 %v1879, %v2095
  %v2200 = vmul.f32 %v1880, %v2097
  %v2201 = vmul.f32 %v1881, %v2099
  %v2202 = vmul.f32 %v1882, %v2101
  %v2203 = vmul.f32 %v1883, %v2103
  %v2204 = vmul.f32 %v1884, %v2105
  %v2205 = vmul.f32 %v1885, %v2107
  %v2206 = vmul.f32 %v1886, %v2109
  %v2207 = vmul.f32 %v1887, %v2111
  %v2208 = vmul.f32 %v1888, %v2113
  %v2209 = vmul.f32 %v1889, %v2115
  %v2210 = vmul.f32 %v1890, %v2117
  %v2211 = vmul.f32 %v1891, %v2119
  %v2212 = vmul.f32 %v1892, %v2121
  %v2213 = vmul.f32 %v1893, %v2123
  %v2214 = vmul.f32 %v1894, %v2125
  %v2215 = vmul.f32 %v1895, %v2127
  %v2216 = vmul.f32 %v1896, %v2129
  %v2217 = vmul.f32 %v1897, %v2131
  %v2218 = vmul.f32 %v1898, %v2133
  %v2219 = vmul.f32 %v1899, %v2135
  %v2220 = vmul.f32 %v1900, %v2137
  %v2221 = vmul.f32 %v1901, %v2139
  %v2222 = vmul.f32 %v1902, %v2141
  %v2223 = vmul.f32 %v1903, %v2143
  %v2224 = vmul.f32 %v1904, %v2145
  %v2225 = vmul.f32 %v1905, %v2147
  %v2226 = vmul.f32 %v1906, %v2149
  %v2227 = vmul.f32 %v1907, %v2151
  %v2228 = vmul.f32 %v1908, %v2153
  %v2229 = vmul.f32 %v1909, %v2155
  %v2230 = vmul.f32 %v1910, %v2157
  %v2231 = vmul.f32 %v1911, %v2159
  %v2232 = vmul.f32 %v1912, %v2161
  %v2233 = vmul.f32 %v1913, %v2163
  %v2234 = vmul.f32 %v1914, %v2165
  %v2235 = vmul.f32 %v1915, %v2167
  %v2236 = vmul.f32 %v1916, %v2169
  %v2237 = vmul.f32 %v1917, %v2171
  %v2238 = vmul.f32 %v1918, %v2173
  %v2239 = vmul.f32 %v1919, %v2175
  %v2240 = vsub.f32 1.0, %v2176
  %v2241 = vsub.f32 1.0, %v2177
  %v2242 = vsub.f32 1.0, %v2178
  %v2243 = vsub.f32 1.0, %v2179
  %v2244 = vsub.f32 1.0, %v2180
  %v2245 = vsub.f32 1.0, %v2181
  %v2246 = vsub.f32 1.0, %v2182
  %v2247 = vsub.f32 1.0, %v2183
  %v2248 = vsub.f32 1.0, %v2184
  %v2249 = vsub.f32 1.0, %v2185
  %v2250 = vsub.f32 1.0, %v2186
  %v2251 = vsub.f32 1.0, %v2187
  %v2252 = vsub.f32 1.0, %v2188
  %v2253 = vsub.f32 1.0, %v2189
  %v2254 = vsub.f32 1.0, %v2190
  %v2255 = vsub.f32 1.0, %v2191
  %v2256 = vsub.f32 1.0, %v2192
  %v2257 = vsub.f32 1.0, %v2193
  %v2258 = vsub.f32 1.0, %v2194
  %v2259 = vsub.f32 1.0, %v2195
  %v2260 = vsub.f32 1.0, %v2196
  %v2261 = vsub.f32 1.0, %v2197
  %v2262 = vsub.f32 1.0, %v2198
  %v2263 = vsub.f32 1.0, %v2199
  %v2264 = vsub.f32 1.0, %v2200
  %v2265 = vsub.f32 1.0, %v2201
  %v2266 = vsub.f32 1.0, %v2202
  %v2267 = vsub.f32 1.0, %v2203
  %v2268 = vsub.f32 1.0, %v2204
  %v2269 = vsub.f32 1.0, %v2205
  %v2270 = vsub.f32 1.0, %v2206
  %v2271 = vsub.f32 1.0, %v2207
  %v2272 = vsub.f32 1.0, %v2208
  %v2273 = vsub.f32 1.0, %v2209
  %v2274 = vsub.f32 1.0, %v2210
  %v2275 = vsub.f32 1.0, %v2211
  %v2276 = vsub.f32 1.0, %v2212
  %v2277 = vsub.f32 1.0, %v2213
  %v2278 = vsub.f32 1.0, %v2214
  %v2279 = vsub.f32 1.0, %v2215
  %v2280 = vsub.f32 1.0, %v2216
  %v2281 = vsub.f32 1.0, %v2217
  %v2282 = vsub.f32 1.0, %v2218
  %v2283 = vsub.f32 1.0, %v2219
  %v2284 = vsub.f32 1.0, %v2220
  %v2285 = vsub.f32 1.0, %v2221
  %v2286 = vsub.f32 1.0, %v2222
  %v2287 = vsub.f32 1.0, %v2223
  %v2288 = vsub.f32 1.0, %v2224
  %v2289 = vsub.f32 1.0, %v2225
  %v2290 = vsub.f32 1.0, %v2226
  %v2291 = vsub.f32 1.0, %v2227
  %v2292 = vsub.f32 1.0, %v2228
  %v2293 = vsub.f32 1.0, %v2229
  %v2294 = vsub.f32 1.0, %v2230
  %v2295 = vsub.f32 1.0, %v2231
  %v2296 = vsub.f32 1.0, %v2232
  %v2297 = vsub.f32 1.0, %v2233
  %v2298 = vsub.f32 1.0, %v2234
  %v2299 = vsub.f32 1.0, %v2235
  %v2300 = vsub.f32 1.0, %v2236
  %v2301 = vsub.f32 1.0, %v2237
  %v2302 = vsub.f32 1.0, %v2238
  %v2303 = vsub.f32 1.0, %v2239
  %v2304 = vmul.f32 %v960, %v2240
  %v2305 = vmul.f32 %v961, %v2241
  %v2306 = vmul.f32 %v962, %v2242
  %v2307 = vmul.f32 %v963, %v2243
  %v2308 = vmul.f32 %v964, %v2244
  %v2309 = vmul.f32 %v965, %v2245
  %v2310 = vmul.f32 %v966, %v2246
  %v2311 = vmul.f32 %v967, %v2247
  %v2312 = vmul.f32 %v968, %v2248
  %v2313 = vmul.f32 %v969, %v2249
  %v2314 = vmul.f32 %v970, %v2250
  %v2315 = vmul.f32 %v971, %v2251
  %v2316 = vmul.f32 %v972, %v2252
  %v2317 = vmul.f32 %v973, %v2253
  %v2318 = vmul.f32 %v974, %v2254
  %v2319 = vmul.f32 %v975, %v2255
  %v2320 = vmul.f32 %v976, %v2256
  %v2321 = vmul.f32 %v977, %v2257
  %v2322 = vmul.f32 %v978, %v2258
  %v2323 = vmul.f32 %v979, %v2259
  %v2324 = vmul.f32 %v980, %v2260
  %v2325 = vmul.f32 %v981, %v2261
  %v2326 = vmul.f32 %v982, %v2262
  %v2327 = vmul.f32 %v983, %v2263
  %v2328 = vmul.f32 %v984, %v2264
  %v2329 = vmul.f32 %v985, %v2265
  %v2330 = vmul.f32 %v986, %v2266
  %v2331 = vmul.f32 %v987, %v2267
  %v2332 = vmul.f32 %v988, %v2268
  %v2333 = vmul.f32 %v989, %v2269
  %v2334 = vmul.f32 %v990, %v2270
  %v2335 = vmul.f32 %v991, %v2271
  %v2336 = vmul.f32 %v992, %v2272
  %v2337 = vmul.f32 %v993, %v2273
  %v2338 = vmul.f32 %v994, %v2274
  %v2339 = vmul.f32 %v995, %v2275
  %v2340 = vmul.f32 %v996, %v2276
  %v2341 = vmul.f32 %v997, %v2277
  %v2342 = vmul.f32 %v998, %v2278
  %v2343 = vmul.f32 %v999, %v2279
  %v2344 = vmul.f32 %v1000, %v2280
  %v2345 = vmul.f32 %v1001, %v2281
  %v2346 = vmul.f32 %v1002, %v2282
  %v2347 = vmul.f32 %v1003, %v2283
  %v2348 = vmul.f32 %v1004, %v2284
  %v2349 = vmul.f32 %v1005, %v2285
  %v2350 = vmul.f32 %v1006, %v2286
  %v2351 = vmul.f32 %v1007, %v2287
  %v2352 = vmul.f32 %v1008, %v2288
  %v2353 = vmul.f32 %v1009, %v2289
  %v2354 = vmul.f32 %v1010, %v2290
  %v2355 = vmul.f32 %v1011, %v2291
  %v2356 = vmul.f32 %v1012, %v2292
  %v2357 = vmul.f32 %v1013, %v2293
  %v2358 = vmul.f32 %v1014, %v2294
  %v2359 = vmul.f32 %v1015, %v2295
  %v2360 = vmul.f32 %v1016, %v2296
  %v2361 = vmul.f32 %v1017, %v2297
  %v2362 = vmul.f32 %v1018, %v2298
  %v2363 = vmul.f32 %v1019, %v2299
  %v2364 = vmul.f32 %v1020, %v2300
  %v2365 = vmul.f32 %v1021, %v2301
  %v2366 = vmul.f32 %v1022, %v2302
  %v2367 = vmul.f32 %v1023, %v2303
  %v2368 = vadd.f32 %v2304, 1.0
  %v2369 = vadd.f32 %v2305, 1.0
  %v2370 = vadd.f32 %v2306, 1.0
  %v2371 = vadd.f32 %v2307, 1.0
  %v2372 = vadd.f32 %v2308, 1.0
  %v2373 = vadd.f32 %v2309, 1.0
  %v2374 = vadd.f32 %v2310, 1.0
  %v2375 = vadd.f32 %v2311, 1.0
  %v2376 = vadd.f32 %v2312, 1.0
  %v2377 = vadd.f32 %v2313, 1.0
  %v2378 = vadd.f32 %v2314, 1.0
  %v2379 = vadd.f32 %v2315, 1.0
  %v2380 = vadd.f32 %v2316, 1.0
  %v2381 = vadd.f32 %v2317, 1.0
  %v2382 = vadd.f32 %v2318, 1.0
  %v2383 = vadd.f32 %v2319, 1.0
  %v2384 = vadd.f32 %v2320, 1.0
  %v2385 = vadd.f32 %v2321, 1.0
  %v2386 = vadd.f32 %v2322, 1.0
  %v2387 = vadd.f32 %v2323, 1.0
  %v2388 = vadd.f32 %v2324, 1.0
  %v2389 = vadd.f32 %v2325, 1.0
  %v2390 = vadd.f32 %v2326, 1.0
  %v2391 = vadd.f32 %v2327, 1.0
  %v2392 = vadd.f32 %v2328, 1.0
  %v2393 = vadd.f32 %v2329, 1.0
  %v2394 = vadd.f32 %v2330, 1.0
  %v2395 = vadd.f32 %v2331, 1.0
  %v2396 = vadd.f32 %v2332, 1.0
  %v2397 = vadd.f32 %v2333, 1.0
  %v2398 = vadd.f32 %v2334, 1.0
  %v2399 = vadd.f32 %v2335, 1.0
  %v2400 = vadd.f32 %v2336, 1.0
  %v2401 = vadd.f32 %v2337, 1.0
  %v2402 = vadd.f32 %v2338, 1.0
  %v2403 = vadd.f32 %v2339, 1.0
  %v2404 = vadd.f32 %v2340, 1.0
  %v2405 = vadd.f32 %v2341, 1.0
  %v2406 = vadd.f32 %v2342, 1.0
  %v2407 = vadd.f32 %v2343, 1.0
  %v2408 = vadd.f32 %v2344, 1.0
  %v2409 = vadd.f32 %v2345, 1.0
  %v2410 = vadd.f32 %v2346, 1.0
  %v2411 = vadd.f32 %v2347, 1.0
  %v2412 = vadd.f32 %v2348, 1.0
  %v2413 = vadd.f32 %v2349, 1.0
  %v2414 = vadd.f32 %v2350, 1.0
  %v2415 = vadd.f32 %v2351, 1.0
  %v2416 = vadd.f32 %v2352, 1.0
  %v2417 = vadd.f32 %v2353, 1.0
  %v2418 = vadd.f32 %v2354, 1.0
  %v2419 = vadd.f32 %v2355, 1.0
  %v2420 = vadd.f32 %v2356, 1.0
  %v2421 = vadd.f32 %v2357, 1.0
  %v2422 = vadd.f32 %v2358, 1.0
  %v2423 = vadd.f32 %v2359, 1.0
  %v2424 = vadd.f32 %v2360, 1.0
  %v2425 = vadd.f32 %v2361, 1.0
  %v2426 = vadd.f32 %v2362, 1.0
  %v2427 = vadd.f32 %v2363, 1.0
  %v2428 = vadd.f32 %v2364, 1.0
  %v2429 = vadd.f32 %v2365, 1.0
  %v2430 = vadd.f32 %v2366, 1.0
  %v2431 = vadd.f32 %v2367, 1.0
  %v2432 = vmul.f32 %v768, %v2368
  %v2433 = vmul.f32 %v769, %v2369
  %v2434 = vmul.f32 %v770, %v2370
  %v2435 = vmul.f32 %v771, %v2371
  %v2436 = vmul.f32 %v772, %v2372
  %v2437 = vmul.f32 %v773, %v2373
  %v2438 = vmul.f32 %v774, %v2374
  %v2439 = vmul.f32 %v775, %v2375
  %v2440 = vmul.f32 %v776, %v2376
  %v2441 = vmul.f32 %v777, %v2377
  %v2442 = vmul.f32 %v778, %v2378
  %v2443 = vmul.f32 %v779, %v2379
  %v2444 = vmul.f32 %v780, %v2380
  %v2445 = vmul.f32 %v781, %v2381
  %v2446 = vmul.f32 %v782, %v2382
  %v2447 = vmul.f32 %v783, %v2383
  %v2448 = vmul.f32 %v784, %v2384
  %v2449 = vmul.f32 %v785, %v2385
  %v2450 = vmul.f32 %v786, %v2386
  %v2451 = vmul.f32 %v787, %v2387
  %v2452 = vmul.f32 %v788, %v2388
  %v2453 = vmul.f32 %v789, %v2389
  %v2454 = vmul.f32 %v790, %v2390
  %v2455 = vmul.f32 %v791, %v2391
  %v2456 = vmul.f32 %v792, %v2392
  %v2457 = vmul.f32 %v793, %v2393
  %v2458 = vmul.f32 %v794, %v2394
  %v2459 = vmul.f32 %v795, %v2395
  %v2460 = vmul.f32 %v796, %v2396
  %v2461 = vmul.f32 %v797, %v2397
  %v2462 = vmul.f32 %v798, %v2398
  %v2463 = vmul.f32 %v799, %v2399
  %v2464 = vmul.f32 %v800, %v2400
  %v2465 = vmul.f32 %v801, %v2401
  %v2466 = vmul.f32 %v802, %v2402
  %v2467 = vmul.f32 %v803, %v2403
  %v2468 = vmul.f32 %v804, %v2404
  %v2469 = vmul.f32 %v805, %v2405
  %v2470 = vmul.f32 %v806, %v2406
  %v2471 = vmul.f32 %v807, %v2407
  %v2472 = vmul.f32 %v808, %v2408
  %v2473 = vmul.f32 %v809, %v2409
  %v2474 = vmul.f32 %v810, %v2410
  %v2475 = vmul.f32 %v811, %v2411
  %v2476 = vmul.f32 %v812, %v2412
  %v2477 = vmul.f32 %v813, %v2413
  %v2478 = vmul.f32 %v814, %v2414
  %v2479 = vmul.f32 %v815, %v2415
  %v2480 = vmul.f32 %v816, %v2416
  %v2481 = vmul.f32 %v817, %v2417
  %v2482 = vmul.f32 %v818, %v2418
  %v2483 = vmul.f32 %v819, %v2419
  %v2484 = vmul.f32 %v820, %v2420
  %v2485 = vmul.f32 %v821, %v2421
  %v2486 = vmul.f32 %v822, %v2422
  %v2487 = vmul.f32 %v823, %v2423
  %v2488 = vmul.f32 %v824, %v2424
  %v2489 = vmul.f32 %v825, %v2425
  %v2490 = vmul.f32 %v826, %v2426
  %v2491 = vmul.f32 %v827, %v2427
  %v2492 = vmul.f32 %v828, %v2428
  %v2493 = vmul.f32 %v829, %v2429
  %v2494 = vmul.f32 %v830, %v2430
  %v2495 = vmul.f32 %v831, %v2431
  %2496 = vst [vmem:[%s6] sm:$0xff] %v2432
  %2497 = vst [vmem:[%s6 + $0x8] sm:$0xff] %v2433
  %2498 = vst [vmem:[%s6 + $0x10] sm:$0xff] %v2434
  %2499 = vst [vmem:[%s6 + $0x18] sm:$0xff] %v2435
  %2500 = vst [vmem:[%s6 + $0x20] sm:$0xff] %v2436
  %2501 = vst [vmem:[%s6 + $0x28] sm:$0xff] %v2437
  %2502 = vst [vmem:[%s6 + $0x30] sm:$0xff] %v2438
  %2503 = vst [vmem:[%s6 + $0x38] sm:$0xff] %v2439
  %2504 = vst [vmem:[%s6 + $0x40] sm:$0xff] %v2440
  %2505 = vst [vmem:[%s6 + $0x48] sm:$0xff] %v2441
  %2506 = vst [vmem:[%s6 + $0x50] sm:$0xff] %v2442
  %2507 = vst [vmem:[%s6 + $0x58] sm:$0xff] %v2443
  %2508 = vst [vmem:[%s6 + $0x60] sm:$0xff] %v2444
  %2509 = vst [vmem:[%s6 + $0x68] sm:$0xff] %v2445
  %2510 = vst [vmem:[%s6 + $0x70] sm:$0xff] %v2446
  %2511 = vst [vmem:[%s6 + $0x78] sm:$0xff] %v2447
  %2512 = vst [vmem:[%s6 + $0x80] sm:$0xff] %v2448
  %2513 = vst [vmem:[%s6 + $0x88] sm:$0xff] %v2449
  %2514 = vst [vmem:[%s6 + $0x90] sm:$0xff] %v2450
  %2515 = vst [vmem:[%s6 + $0x98] sm:$0xff] %v2451
  %2516 = vst [vmem:[%s6 + $0xa0] sm:$0xff] %v2452
  %2517 = vst [vmem:[%s6 + $0xa8] sm:$0xff] %v2453
  %2518 = vst [vmem:[%s6 + $0xb0] sm:$0xff] %v2454
  %2519 = vst [vmem:[%s6 + $0xb8] sm:$0xff] %v2455
  %2520 = vst [vmem:[%s6 + $0xc0] sm:$0xff] %v2456
  %2521 = vst [vmem:[%s6 + $0xc8] sm:$0xff] %v2457
  %2522 = vst [vmem:[%s6 + $0xd0] sm:$0xff] %v2458
  %2523 = vst [vmem:[%s6 + $0xd8] sm:$0xff] %v2459
  %2524 = vst [vmem:[%s6 + $0xe0] sm:$0xff] %v2460
  %2525 = vst [vmem:[%s6 + $0xe8] sm:$0xff] %v2461
  %2526 = vst [vmem:[%s6 + $0xf0] sm:$0xff] %v2462
  %2527 = vst [vmem:[%s6 + $0xf8] sm:$0xff] %v2463
  %2528 = vst [vmem:[%s6 + $0x100] sm:$0xff] %v2464
  %2529 = vst [vmem:[%s6 + $0x108] sm:$0xff] %v2465
  %2530 = vst [vmem:[%s6 + $0x110] sm:$0xff] %v2466
  %2531 = vst [vmem:[%s6 + $0x118] sm:$0xff] %v2467
  %2532 = vst [vmem:[%s6 + $0x120] sm:$0xff] %v2468
  %2533 = vst [vmem:[%s6 + $0x128] sm:$0xff] %v2469
  %2534 = vst [vmem:[%s6 + $0x130] sm:$0xff] %v2470
  %2535 = vst [vmem:[%s6 + $0x138] sm:$0xff] %v2471
  %2536 = vst [vmem:[%s6 + $0x140] sm:$0xff] %v2472
  %2537 = vst [vmem:[%s6 + $0x148] sm:$0xff] %v2473
  %2538 = vst [vmem:[%s6 + $0x150] sm:$0xff] %v2474
  %2539 = vst [vmem:[%s6 + $0x158] sm:$0xff] %v2475
  %2540 = vst [vmem:[%s6 + $0x160] sm:$0xff] %v2476
  %2541 = vst [vmem:[%s6 + $0x168] sm:$0xff] %v2477
  %2542 = vst [vmem:[%s6 + $0x170] sm:$0xff] %v2478
  %2543 = vst [vmem:[%s6 + $0x178] sm:$0xff] %v2479
  %2544 = vst [vmem:[%s6 + $0x180] sm:$0xff] %v2480
  %2545 = vst [vmem:[%s6 + $0x188] sm:$0xff] %v2481
  %2546 = vst [vmem:[%s6 + $0x190] sm:$0xff] %v2482
  %2547 = vst [vmem:[%s6 + $0x198] sm:$0xff] %v2483
  %2548 = vst [vmem:[%s6 + $0x1a0] sm:$0xff] %v2484
  %2549 = vst [vmem:[%s6 + $0x1a8] sm:$0xff] %v2485
  %2550 = vst [vmem:[%s6 + $0x1b0] sm:$0xff] %v2486
  %2551 = vst [vmem:[%s6 + $0x1b8] sm:$0xff] %v2487
  %2552 = vst [vmem:[%s6 + $0x1c0] sm:$0xff] %v2488
  %2553 = vst [vmem:[%s6 + $0x1c8] sm:$0xff] %v2489
  %2554 = vst [vmem:[%s6 + $0x1d0] sm:$0xff] %v2490
  %2555 = vst [vmem:[%s6 + $0x1d8] sm:$0xff] %v2491
  %2556 = vst [vmem:[%s6 + $0x1e0] sm:$0xff] %v2492
  %2557 = vst [vmem:[%s6 + $0x1e8] sm:$0xff] %v2493
  %2558 = vst [vmem:[%s6 + $0x1f0] sm:$0xff] %v2494
  %2559 = vst [vmem:[%s6 + $0x1f8] sm:$0xff] %v2495
  %v2560 = vadd.f32 %v2432, %v2433
  %v2561 = vadd.f32 %v2560, %v2434
  %v2562 = vadd.f32 %v2561, %v2435
  %v2563 = vadd.f32 %v2562, %v2436
  %v2564 = vadd.f32 %v2563, %v2437
  %v2565 = vadd.f32 %v2564, %v2438
  %v2566 = vadd.f32 %v2565, %v2439
  %v2567 = vadd.f32 %v2566, %v2440
  %v2568 = vadd.f32 %v2567, %v2441
  %v2569 = vadd.f32 %v2568, %v2442
  %v2570 = vadd.f32 %v2569, %v2443
  %v2571 = vadd.f32 %v2570, %v2444
  %v2572 = vadd.f32 %v2571, %v2445
  %v2573 = vadd.f32 %v2572, %v2446
  %v2574 = vadd.f32 %v2573, %v2447
  %v2575 = vadd.f32 %v2574, %v2448
  %v2576 = vadd.f32 %v2575, %v2449
  %v2577 = vadd.f32 %v2576, %v2450
  %v2578 = vadd.f32 %v2577, %v2451
  %v2579 = vadd.f32 %v2578, %v2452
  %v2580 = vadd.f32 %v2579, %v2453
  %v2581 = vadd.f32 %v2580, %v2454
  %v2582 = vadd.f32 %v2581, %v2455
  %v2583 = vadd.f32 %v2582, %v2456
  %v2584 = vadd.f32 %v2583, %v2457
  %v2585 = vadd.f32 %v2584, %v2458
  %v2586 = vadd.f32 %v2585, %v2459
  %v2587 = vadd.f32 %v2586, %v2460
  %v2588 = vadd.f32 %v2587, %v2461
  %v2589 = vadd.f32 %v2588, %v2462
  %v2590 = vadd.f32 %v2589, %v2463
  %v2591 = vadd.f32 %v2590, %v2464
  %v2592 = vadd.f32 %v2591, %v2465
  %v2593 = vadd.f32 %v2592, %v2466
  %v2594 = vadd.f32 %v2593, %v2467
  %v2595 = vadd.f32 %v2594, %v2468
  %v2596 = vadd.f32 %v2595, %v2469
  %v2597 = vadd.f32 %v2596, %v2470
  %v2598 = vadd.f32 %v2597, %v2471
  %v2599 = vadd.f32 %v2598, %v2472
  %v2600 = vadd.f32 %v2599, %v2473
  %v2601 = vadd.f32 %v2600, %v2474
  %v2602 = vadd.f32 %v2601, %v2475
  %v2603 = vadd.f32 %v2602, %v2476
  %v2604 = vadd.f32 %v2603, %v2477
  %v2605 = vadd.f32 %v2604, %v2478
  %v2606 = vadd.f32 %v2605, %v2479
  %v2607 = vadd.f32 %v2606, %v2480
  %v2608 = vadd.f32 %v2607, %v2481
  %v2609 = vadd.f32 %v2608, %v2482
  %v2610 = vadd.f32 %v2609, %v2483
  %v2611 = vadd.f32 %v2610, %v2484
  %v2612 = vadd.f32 %v2611, %v2485
  %v2613 = vadd.f32 %v2612, %v2486
  %v2614 = vadd.f32 %v2613, %v2487
  %v2615 = vadd.f32 %v2614, %v2488
  %v2616 = vadd.f32 %v2615, %v2489
  %v2617 = vadd.f32 %v2616, %v2490
  %v2618 = vadd.f32 %v2617, %v2491
  %v2619 = vadd.f32 %v2618, %v2492
  %v2620 = vadd.f32 %v2619, %v2493
  %v2621 = vadd.f32 %v2620, %v2494
  %v2622 = vadd.f32 %v2621, %v2495
  %2623 = vst [vmem:[%s7] sm:$0xff] %v2622
  %v2624 = vmul.f32 %v2432, %v2432
  %v2625 = vmul.f32 %v2433, %v2433
  %v2626 = vmul.f32 %v2434, %v2434
  %v2627 = vmul.f32 %v2435, %v2435
  %v2628 = vmul.f32 %v2436, %v2436
  %v2629 = vmul.f32 %v2437, %v2437
  %v2630 = vmul.f32 %v2438, %v2438
  %v2631 = vmul.f32 %v2439, %v2439
  %v2632 = vmul.f32 %v2440, %v2440
  %v2633 = vmul.f32 %v2441, %v2441
  %v2634 = vmul.f32 %v2442, %v2442
  %v2635 = vmul.f32 %v2443, %v2443
  %v2636 = vmul.f32 %v2444, %v2444
  %v2637 = vmul.f32 %v2445, %v2445
  %v2638 = vmul.f32 %v2446, %v2446
  %v2639 = vmul.f32 %v2447, %v2447
  %v2640 = vmul.f32 %v2448, %v2448
  %v2641 = vmul.f32 %v2449, %v2449
  %v2642 = vmul.f32 %v2450, %v2450
  %v2643 = vmul.f32 %v2451, %v2451
  %v2644 = vmul.f32 %v2452, %v2452
  %v2645 = vmul.f32 %v2453, %v2453
  %v2646 = vmul.f32 %v2454, %v2454
  %v2647 = vmul.f32 %v2455, %v2455
  %v2648 = vmul.f32 %v2456, %v2456
  %v2649 = vmul.f32 %v2457, %v2457
  %v2650 = vmul.f32 %v2458, %v2458
  %v2651 = vmul.f32 %v2459, %v2459
  %v2652 = vmul.f32 %v2460, %v2460
  %v2653 = vmul.f32 %v2461, %v2461
  %v2654 = vmul.f32 %v2462, %v2462
  %v2655 = vmul.f32 %v2463, %v2463
  %v2656 = vmul.f32 %v2464, %v2464
  %v2657 = vmul.f32 %v2465, %v2465
  %v2658 = vmul.f32 %v2466, %v2466
  %v2659 = vmul.f32 %v2467, %v2467
  %v2660 = vmul.f32 %v2468, %v2468
  %v2661 = vmul.f32 %v2469, %v2469
  %v2662 = vmul.f32 %v2470, %v2470
  %v2663 = vmul.f32 %v2471, %v2471
  %v2664 = vmul.f32 %v2472, %v2472
  %v2665 = vmul.f32 %v2473, %v2473
  %v2666 = vmul.f32 %v2474, %v2474
  %v2667 = vmul.f32 %v2475, %v2475
  %v2668 = vmul.f32 %v2476, %v2476
  %v2669 = vmul.f32 %v2477, %v2477
  %v2670 = vmul.f32 %v2478, %v2478
  %v2671 = vmul.f32 %v2479, %v2479
  %v2672 = vmul.f32 %v2480, %v2480
  %v2673 = vmul.f32 %v2481, %v2481
  %v2674 = vmul.f32 %v2482, %v2482
  %v2675 = vmul.f32 %v2483, %v2483
  %v2676 = vmul.f32 %v2484, %v2484
  %v2677 = vmul.f32 %v2485, %v2485
  %v2678 = vmul.f32 %v2486, %v2486
  %v2679 = vmul.f32 %v2487, %v2487
  %v2680 = vmul.f32 %v2488, %v2488
  %v2681 = vmul.f32 %v2489, %v2489
  %v2682 = vmul.f32 %v2490, %v2490
  %v2683 = vmul.f32 %v2491, %v2491
  %v2684 = vmul.f32 %v2492, %v2492
  %v2685 = vmul.f32 %v2493, %v2493
  %v2686 = vmul.f32 %v2494, %v2494
  %v2687 = vmul.f32 %v2495, %v2495
  %v2688 = vadd.f32 %v2624, %v2625
  %v2689 = vadd.f32 %v2688, %v2626
  %v2690 = vadd.f32 %v2689, %v2627
  %v2691 = vadd.f32 %v2690, %v2628
  %v2692 = vadd.f32 %v2691, %v2629
  %v2693 = vadd.f32 %v2692, %v2630
  %v2694 = vadd.f32 %v2693, %v2631
  %v2695 = vadd.f32 %v2694, %v2632
  %v2696 = vadd.f32 %v2695, %v2633
  %v2697 = vadd.f32 %v2696, %v2634
  %v2698 = vadd.f32 %v2697, %v2635
  %v2699 = vadd.f32 %v2698, %v2636
  %v2700 = vadd.f32 %v2699, %v2637
  %v2701 = vadd.f32 %v2700, %v2638
  %v2702 = vadd.f32 %v2701, %v2639
  %v2703 = vadd.f32 %v2702, %v2640
  %v2704 = vadd.f32 %v2703, %v2641
  %v2705 = vadd.f32 %v2704, %v2642
  %v2706 = vadd.f32 %v2705, %v2643
  %v2707 = vadd.f32 %v2706, %v2644
  %v2708 = vadd.f32 %v2707, %v2645
  %v2709 = vadd.f32 %v2708, %v2646
  %v2710 = vadd.f32 %v2709, %v2647
  %v2711 = vadd.f32 %v2710, %v2648
  %v2712 = vadd.f32 %v2711, %v2649
  %v2713 = vadd.f32 %v2712, %v2650
  %v2714 = vadd.f32 %v2713, %v2651
  %v2715 = vadd.f32 %v2714, %v2652
  %v2716 = vadd.f32 %v2715, %v2653
  %v2717 = vadd.f32 %v2716, %v2654
  %v2718 = vadd.f32 %v2717, %v2655
  %v2719 = vadd.f32 %v2718, %v2656
  %v2720 = vadd.f32 %v2719, %v2657
  %v2721 = vadd.f32 %v2720, %v2658
  %v2722 = vadd.f32 %v2721, %v2659
  %v2723 = vadd.f32 %v2722, %v2660
  %v2724 = vadd.f32 %v2723, %v2661
  %v2725 = vadd.f32 %v2724, %v2662
  %v2726 = vadd.f32 %v2725, %v2663
  %v2727 = vadd.f32 %v2726, %v2664
  %v2728 = vadd.f32 %v2727, %v2665
  %v2729 = vadd.f32 %v2728, %v2666
  %v2730 = vadd.f32 %v2729, %v2667
  %v2731 = vadd.f32 %v2730, %v2668
  %v2732 = vadd.f32 %v2731, %v2669
  %v2733 = vadd.f32 %v2732, %v2670
  %v2734 = vadd.f32 %v2733, %v2671
  %v2735 = vadd.f32 %v2734, %v2672
  %v2736 = vadd.f32 %v2735, %v2673
  %v2737 = vadd.f32 %v2736, %v2674
  %v2738 = vadd.f32 %v2737, %v2675
  %v2739 = vadd.f32 %v2738, %v2676
  %v2740 = vadd.f32 %v2739, %v2677
  %v2741 = vadd.f32 %v2740, %v2678
  %v2742 = vadd.f32 %v2741, %v2679
  %v2743 = vadd.f32 %v2742, %v2680
  %v2744 = vadd.f32 %v2743, %v2681
  %v2745 = vadd.f32 %v2744, %v2682
  %v2746 = vadd.f32 %v2745, %v2683
  %v2747 = vadd.f32 %v2746, %v2684
  %v2748 = vadd.f32 %v2747, %v2685
  %v2749 = vadd.f32 %v2748, %v2686
  %v2750 = vadd.f32 %v2749, %v2687
  %2751 = vst [vmem:[%s8] sm:$0xff] %v2750
  // Predicated region
  $region26: #{convmixer_subblock.3} parent=0 // pred_check
    _
  $region27: #{convmixer_subblock.3} parent=0 // pred_check_branch
    %2753 = sbr.rel (0) target = $region29
  $region28: #{convmixer_subblock.3} parent=0 // pred_region
    _
  $region29: #{convmixer_subblock.3} parent=0 // pred_fallthru
    _
  // Predicated region
  $region30: #{convmixer_subblock.3} parent=0 // pred_check
    _
  $region31: #{convmixer_subblock.3} parent=0 // pred_check_branch
    %2755 = sbr.rel (0) target = $region33
  $region32: #{convmixer_subblock.3} parent=0 // pred_region
    _
  $region33: #{convmixer_subblock.3} parent=0 // pred_fallthru
    _
  // Predicated region
  $region34: #{convmixer_subblock.3} parent=0 // pred_check
    _
  $region35: #{convmixer_subblock.3} parent=0 // pred_check_branch
    %2757 = sbr.rel (0) target = $region37
  $region36: #{convmixer_subblock.3} parent=0 // pred_region
    _
  $region37: #{convmixer_subblock.3} parent=0 // pred_fallthru
    _
  // Predicated region
  $region38: #{convmixer_subblock.3} parent=0 // pred_check
    _
  $region39: #{convmixer_subblock.3} parent=0 // pred_check_branch
    %2759 = sbr.rel (0) target = $region41
  $region40: #{convmixer_subblock.3} parent=0 // pred_region
    _
  $region41: #{convmixer_subblock.3} parent=0 // pred_fallthru
    _
  // Predicated region
  $region42: #{convmixer_subblock.3} parent=0 // pred_check
    _
  $region43: #{convmixer_subblock.3} parent=0 // pred_check_branch
    %2761 = sbr.rel (0) target = $region45
  $region44: #{convmixer_subblock.3} parent=0 // pred_region
    _
  $region45: #{convmixer_subblock.3} parent=0 // pred_fallthru
    _
  // Predicated region
  $region46: #{convmixer_subblock.3} parent=0 // pred_check
    _
  $region47: #{convmixer_subblock.3} parent=0 // pred_check_branch
    %2763 = sbr.rel (0) target = $region49
  $region48: #{convmixer_subblock.3} parent=0 // pred_region
    _
  $region49: #{convmixer_subblock.3} parent=0 // pred_fallthru
    _

// kernel: convmixer_subblock.2
$region0: #{convmixer_subblock.2}
  #allocation0 [shape = 'u32[]', space=smem, size = 0x4, offset = 0x4, fixed_abs, tag = 'smem constant byte address 0x4 - core index']
  #allocation1 [shape = 'u32[144,128]{1,0:T(1,128)}', space=vmem, size = 0x12000, scoped, tag = 'internal scratch']
  #allocation2 [shape = 'f32[16,24,128]{2,1,0:T(8,128)}', space=vmem, size = 0x30000, scoped, tag = 'scratch operand']
  %s0 = inlined_call_operand.vmem [shape: f32[2,24,24,128], index: 0, kind: input, shape index: {}, may-alias: {0,1}]
  %s1 = inlined_call_operand.vmem [shape: f32[2,24,24,128], index: 1, kind: input, shape index: {}, may-alias: {0,1}]
  %s2 = inlined_call_operand.vmem [shape: f32[9,9,128], index: 2, kind: input, shape index: {}]
  %s3 = inlined_call_operand.vmem [shape: f32[1,128], index: 3, kind: input, shape index: {}]
  %s4 = inlined_call_operand.vmem [shape: f32[2,16,16,128], index: 4, kind: output, shape index: {0}]
  %s5 = inlined_call_operand.vmem [shape: f32[2,16,16,128], index: 5, kind: output, shape index: {1}]
  %s6 = inlined_call_operand.vmem [shape: f32[4,8,128], index: 6, kind: output, shape index: {2}]
  %s7 = inlined_call_operand.vmem [shape: f32[4,8,128], index: 7, kind: output, shape index: {3}]
  %8 = xla_tuple %s4, %s5, %s6, %s7
  %s9 = sld [smem:[#allocation0]]
  $region73: #{convmixer_subblock.2} parent=0
    _
  %s11 = ssub.s32 1, %s9
  %s12 = scalar_select 0, %s11, %s9
  loop: start=0, step=1, limit=6
  $region2: #{convmixer_subblock.2} parent=0 // loop_pre_header
    _
  $region3: #{convmixer_subblock.2} parent=0 // loop_header
    %s14 = sphi 0, %s18
    %p15 = scmp.ge.s32.totalorder %s14, 6
    %s21 = sphi 0, %s33
    %s22 = sphi 0, %s29
    %s23 = sphi 0, %s21
    %s24 = sphi 0, %s22
    %s25 = sphi 0, %s23
    %s26 = sphi 0, %s24
    %s38 = sphi 0, %s40
    %s41 = sphi 0, %s38
    %s42 = sphi 0, %s41
    %s58 = sphi 0, %s42
    %s68 = sphi 0, %s70
    %s71 = sphi 0, %s68
    %s72 = sphi 0, %s71
    %s88 = sphi 0, %s72
    %s92 = sphi 0, %s92
    %s94 = sphi 0, %s92
    %s95 = sphi 0, %s94
    %s109 = sphi 0, %s95
    %s113 = sphi 0, %s113
    %s115 = sphi 0, %s113
    %s116 = sphi 0, %s115
    %s130 = sphi 0, %s116
    %s138 = sphi 0, %s140
    %s141 = sphi 0, %s138
    %s142 = sphi 0, %s141
    %s158 = sphi 0, %s142
    %s166 = sphi 0, %s168
    %s169 = sphi 0, %s166
    %s170 = sphi 0, %s169
    %s186 = sphi 0, %s170
    %s196 = sphi 0, %s198
    %s199 = sphi 0, %s196
    %s200 = sphi 0, %s199
    %s216 = sphi 0, %s200
    %s226 = sphi 0, %s228
    %s229 = sphi 0, %s226
    %s230 = sphi 0, %s229
    %s246 = sphi 0, %s230
  $region4: #{convmixer_subblock.2} parent=0 // loop_header_branch
    %17 = sbr.rel (%p15) target = $region8
  $region5: #{convmixer_subblock.2} parent=0 // loop_body
    %s19 = ssub.s32 %s14, 1
    %s20 = ssub.s32 %s14, 2
    %s27 = sadd.s32 1, %s22
    %p28 = scmp.ge.s32.totalorder %s27, 2
    %s29 = scalar_select %p28, 0, %s27
    %s30 = sadd.s32 1, %s21
    %s31 = scalar_select %p28, %s30, %s21
    %p32 = scmp.ge.s32.totalorder %s31, 2
    %s33 = scalar_select %p32, 0, %s31
    %s34 = ssub.s32 %s21, %s33
    %s35 = ssub.s32 %s22, %s29
    %s36 = sor.u32 %s34, %s35
    %p37 = scmp.eq.s32.totalorder %s36, 0
    %s39 = sadd.s32 %s38, 1
    %s40 = scalar_select %p37, %s38, %s39
    %p43 = pneg %p37
    %p44 = scmp.eq.s32.totalorder %s14, 3
    %p45 = por %p43, %p44
    %p46 = scmp.ne.s32.totalorder %s38, %s41
    %p47 = scmp.eq.s32.totalorder %s14, 0
    %p48 = por %p46, %p47
    %p49 = scmp.ne.s32.totalorder %s38, %s41
    %p50 = scmp.eq.s32.totalorder %s19, 3
    %p51 = por %p49, %p50
    %p52 = scmp.ne.s32.totalorder %s41, %s42
    %p53 = scmp.eq.s32.totalorder %s19, 0
    %p54 = por %p52, %p53
    %p55 = scmp.ne.s32.totalorder %s41, %s42
    %p56 = scmp.eq.s32.totalorder %s20, 3
    %p57 = por %p55, %p56
    %p59 = scmp.ne.s32.totalorder %s42, %s58
    %p60 = scmp.eq.s32.totalorder %s20, 0
    %p61 = por %p59, %p60
    %s62 = sadd.s32 %s22, 1
    %s63 = sadd.s32 %s29, 1
    %s64 = ssub.s32 %s21, %s33
    %s65 = ssub.s32 %s62, %s63
    %s66 = sor.u32 %s64, %s65
    %p67 = scmp.eq.s32.totalorder %s66, 0
    %s69 = sadd.s32 %s68, 1
    %s70 = scalar_select %p67, %s68, %s69
    %p73 = pneg %p67
    %p74 = scmp.eq.s32.totalorder %s14, 3
    %p75 = por %p73, %p74
    %p76 = scmp.ne.s32.totalorder %s68, %s71
    %p77 = scmp.eq.s32.totalorder %s14, 0
    %p78 = por %p76, %p77
    %p79 = scmp.ne.s32.totalorder %s68, %s71
    %p80 = scmp.eq.s32.totalorder %s19, 3
    %p81 = por %p79, %p80
    %p82 = scmp.ne.s32.totalorder %s71, %s72
    %p83 = scmp.eq.s32.totalorder %s19, 0
    %p84 = por %p82, %p83
    %p85 = scmp.ne.s32.totalorder %s71, %s72
    %p86 = scmp.eq.s32.totalorder %s20, 3
    %p87 = por %p85, %p86
    %p89 = scmp.ne.s32.totalorder %s72, %s88
    %p90 = scmp.eq.s32.totalorder %s20, 0
    %p91 = por %p89, %p90
    %s93 = sadd.s32 %s92, 1
    %p96 = scmp.eq.s32.totalorder %s14, 3
    %p97 = scmp.ne.s32.totalorder %s92, %s94
    %p98 = scmp.eq.s32.totalorder %s14, 0
    %p99 = por %p97, %p98
    %p100 = scmp.ne.s32.totalorder %s92, %s94
    %p101 = scmp.eq.s32.totalorder %s19, 3
    %p102 = por %p100, %p101
    %p103 = scmp.ne.s32.totalorder %s94, %s95
    %p104 = scmp.eq.s32.totalorder %s19, 0
    %p105 = por %p103, %p104
    %p106 = scmp.ne.s32.totalorder %s94, %s95
    %p107 = scmp.eq.s32.totalorder %s20, 3
    %p108 = por %p106, %p107
    %p110 = scmp.ne.s32.totalorder %s95, %s109
    %p111 = scmp.eq.s32.totalorder %s20, 0
    %p112 = por %p110, %p111
    %s114 = sadd.s32 %s113, 1
    %p117 = scmp.eq.s32.totalorder %s14, 3
    %p118 = scmp.ne.s32.totalorder %s113, %s115
    %p119 = scmp.eq.s32.totalorder %s14, 0
    %p120 = por %p118, %p119
    %p121 = scmp.ne.s32.totalorder %s113, %s115
    %p122 = scmp.eq.s32.totalorder %s19, 3
    %p123 = por %p121, %p122
    %p124 = scmp.ne.s32.totalorder %s115, %s116
    %p125 = scmp.eq.s32.totalorder %s19, 0
    %p126 = por %p124, %p125
    %p127 = scmp.ne.s32.totalorder %s115, %s116
    %p128 = scmp.eq.s32.totalorder %s20, 3
    %p129 = por %p127, %p128
    %p131 = scmp.ne.s32.totalorder %s116, %s130
    %p132 = scmp.eq.s32.totalorder %s20, 0
    %p133 = por %p131, %p132
    %s134 = ssub.s32 %s21, %s33
    %s135 = ssub.s32 %s22, %s29
    %s136 = sor.u32 %s134, %s135
    %p137 = scmp.eq.s32.totalorder %s136, 0
    %s139 = sadd.s32 %s138, 1
    %s140 = scalar_select %p137, %s138, %s139
    %p143 = pneg %p137
    %p144 = scmp.eq.s32.totalorder %s14, 3
    %p145 = por %p143, %p144
    %p146 = scmp.ne.s32.totalorder %s138, %s141
    %p147 = scmp.eq.s32.totalorder %s14, 0
    %p148 = por %p146, %p147
    %p149 = scmp.ne.s32.totalorder %s138, %s141
    %p150 = scmp.eq.s32.totalorder %s19, 3
    %p151 = por %p149, %p150
    %p152 = scmp.ne.s32.totalorder %s141, %s142
    %p153 = scmp.eq.s32.totalorder %s19, 0
    %p154 = por %p152, %p153
    %p155 = scmp.ne.s32.totalorder %s141, %s142
    %p156 = scmp.eq.s32.totalorder %s20, 3
    %p157 = por %p155, %p156
    %p159 = scmp.ne.s32.totalorder %s142, %s158
    %p160 = scmp.eq.s32.totalorder %s20, 0
    %p161 = por %p159, %p160
    %s162 = ssub.s32 %s21, %s33
    %s163 = ssub.s32 %s22, %s29
    %s164 = sor.u32 %s162, %s163
    %p165 = scmp.eq.s32.totalorder %s164, 0
    %s167 = sadd.s32 %s166, 1
    %s168 = scalar_select %p165, %s166, %s167
    %p171 = pneg %p165
    %p172 = scmp.eq.s32.totalorder %s14, 3
    %p173 = por %p171, %p172
    %p174 = scmp.ne.s32.totalorder %s166, %s169
    %p175 = scmp.eq.s32.totalorder %s14, 0
    %p176 = por %p174, %p175
    %p177 = scmp.ne.s32.totalorder %s166, %s169
    %p178 = scmp.eq.s32.totalorder %s19, 3
    %p179 = por %p177, %p178
    %p180 = scmp.ne.s32.totalorder %s169, %s170
    %p181 = scmp.eq.s32.totalorder %s19, 0
    %p182 = por %p180, %p181
    %p183 = scmp.ne.s32.totalorder %s169, %s170
    %p184 = scmp.eq.s32.totalorder %s20, 3
    %p185 = por %p183, %p184
    %p187 = scmp.ne.s32.totalorder %s170, %s186
    %p188 = scmp.eq.s32.totalorder %s20, 0
    %p189 = por %p187, %p188
    %s190 = smul.u32 %s21, 2
    %s191 = sadd.s32 %s190, %s22
    %s192 = smul.u32 %s33, 2
    %s193 = sadd.s32 %s192, %s29
    %s194 = ssub.s32 %s191, %s193
    %p195 = scmp.eq.s32.totalorder %s194, 0
    %s197 = sadd.s32 %s196, 1
    %s198 = scalar_select %p195, %s196, %s197
    %p201 = pneg %p195
    %p202 = scmp.eq.s32.totalorder %s14, 3
    %p203 = por %p201, %p202
    %p204 = scmp.ne.s32.totalorder %s196, %s199
    %p205 = scmp.eq.s32.totalorder %s14, 0
    %p206 = por %p204, %p205
    %p207 = scmp.ne.s32.totalorder %s196, %s199
    %p208 = scmp.eq.s32.totalorder %s19, 3
    %p209 = por %p207, %p208
    %p210 = scmp.ne.s32.totalorder %s199, %s200
    %p211 = scmp.eq.s32.totalorder %s19, 0
    %p212 = por %p210, %p211
    %p213 = scmp.ne.s32.totalorder %s199, %s200
    %p214 = scmp.eq.s32.totalorder %s20, 3
    %p215 = por %p213, %p214
    %p217 = scmp.ne.s32.totalorder %s200, %s216
    %p218 = scmp.eq.s32.totalorder %s20, 0
    %p219 = por %p217, %p218
    %s220 = smul.u32 %s21, 2
    %s221 = sadd.s32 %s220, %s22
    %s222 = smul.u32 %s33, 2
    %s223 = sadd.s32 %s222, %s29
    %s224 = ssub.s32 %s221, %s223
    %p225 = scmp.eq.s32.totalorder %s224, 0
    %s227 = sadd.s32 %s226, 1
    %s228 = scalar_select %p225, %s226, %s227
    %p231 = pneg %p225
    %p232 = scmp.eq.s32.totalorder %s14, 3
    %p233 = por %p231, %p232
    %p234 = scmp.ne.s32.totalorder %s226, %s229
    %p235 = scmp.eq.s32.totalorder %s14, 0
    %p236 = por %p234, %p235
    %p237 = scmp.ne.s32.totalorder %s226, %s229
    %p238 = scmp.eq.s32.totalorder %s19, 3
    %p239 = por %p237, %p238
    %p240 = scmp.ne.s32.totalorder %s229, %s230
    %p241 = scmp.eq.s32.totalorder %s19, 0
    %p242 = por %p240, %p241
    %p243 = scmp.ne.s32.totalorder %s229, %s230
    %p244 = scmp.eq.s32.totalorder %s20, 3
    %p245 = por %p243, %p244
    %p247 = scmp.ne.s32.totalorder %s230, %s246
    %p248 = scmp.eq.s32.totalorder %s20, 0
    %p249 = por %p247, %p248
    %p250 = scmp.le.s32.totalorder 1, %s14
    %p251 = scmp.lt.s32.totalorder %s14, 5
    %p252 = pnand %p250, %p251
    %p253 = pneg %p252
    // Predicated region
    $region9: #{convmixer_subblock.2} parent=5 // pred_check
      _
    $region10: #{convmixer_subblock.2} parent=5 // pred_check_branch
      %255 = sbr.rel (%p252) target = $region12
    $region11: #{convmixer_subblock.2} parent=5 // pred_region
      %s256 = ssub.s32 %s14, 1
      // Predicated region
      $region13: #{convmixer_subblock.2} parent=11 // pred_check
        %p257 = pneg %p105
      $region14: #{convmixer_subblock.2} parent=11 // pred_check_branch
        %259 = sbr.rel (%p257) target = $region16
      $region15: #{convmixer_subblock.2} parent=11 // pred_region
        _
      $region16: #{convmixer_subblock.2} parent=11 // pred_fallthru
        _
      // Predicated region
      $region17: #{convmixer_subblock.2} parent=11 // pred_check
        %p260 = pneg %p126
      $region18: #{convmixer_subblock.2} parent=11 // pred_check_branch
        %262 = sbr.rel (%p260) target = $region20
      $region19: #{convmixer_subblock.2} parent=11 // pred_region
        _
      $region20: #{convmixer_subblock.2} parent=11 // pred_fallthru
        _
    $region12: #{convmixer_subblock.2} parent=5 // pred_fallthru
      _
    %p263 = scmp.lt.s32.totalorder %s14, 4
    // Predicated region
    $region21: #{convmixer_subblock.2} parent=5 // pred_check
      %p264 = pneg %p263
    $region22: #{convmixer_subblock.2} parent=5 // pred_check_branch
      %266 = sbr.rel (%p264) target = $region24
    $region23: #{convmixer_subblock.2} parent=5 // pred_region
      // Predicated region
      $region25: #{convmixer_subblock.2} parent=23 // pred_check
        %p267 = pneg %p48
      $region26: #{convmixer_subblock.2} parent=23 // pred_check_branch
        %269 = sbr.rel (%p267) target = $region28
      $region27: #{convmixer_subblock.2} parent=23 // pred_region
        %s270 = smul.u32 8, %s22
        %p271 = scmp.lt.s32.totalorder %s21, 1
        %s272 = scalar_select %p271, %s21, 1
        %p273 = scmp.lt.s32.totalorder %s270, 23
        %s274 = scalar_select %p273, %s270, 23
        %s275 = smul.addr %s274, 3
        %s276 = smul.addr %s272, 72
        %s277 = sadd.s32 %s275, %s276
        %s278 = smul.addr %s277, 8
        %s279 = scalar_lea.vmem %s0, %s278
        %s280 = smul.u32 8, %s22
      $region28: #{convmixer_subblock.2} parent=23 // pred_fallthru
        _
      // Predicated region
      $region29: #{convmixer_subblock.2} parent=23 // pred_check
        %p281 = pneg %p78
      $region30: #{convmixer_subblock.2} parent=23 // pred_check_branch
        %283 = sbr.rel (%p281) target = $region32
      $region31: #{convmixer_subblock.2} parent=23 // pred_region
        %s284 = sadd.s32 %s22, 1
        %s285 = smul.u32 8, %s284
        %p286 = scmp.lt.s32.totalorder %s21, 1
        %s287 = scalar_select %p286, %s21, 1
        %p288 = scmp.lt.s32.totalorder %s285, 23
        %s289 = scalar_select %p288, %s285, 23
        %s290 = smul.addr %s289, 3
        %s291 = smul.addr %s287, 72
        %s292 = sadd.s32 %s290, %s291
        %s293 = smul.addr %s292, 8
        %s294 = scalar_lea.vmem %s1, %s293
        %s295 = sadd.s32 %s22, 1
        %s296 = smul.u32 8, %s295
      $region32: #{convmixer_subblock.2} parent=23 // pred_fallthru
        _
    $region24: #{convmixer_subblock.2} parent=5 // pred_fallthru
      _
    %p297 = scmp.le.s32.totalorder 1, %s14
    %p298 = scmp.lt.s32.totalorder %s14, 5
    %p299 = pnand %p297, %p298
    %p300 = pneg %p299
    // Predicated region
    $region33: #{convmixer_subblock.2} parent=5 // pred_check
      _
    $region34: #{convmixer_subblock.2} parent=5 // pred_check_branch
      %302 = sbr.rel (%p299) target = $region36
    $region35: #{convmixer_subblock.2} parent=5 // pred_region
      %s303 = ssub.s32 %s14, 1
      %s304 = smul.u32 8, %s24
      %p305 = scmp.lt.s32.totalorder %s23, 1
      %s306 = scalar_select %p305, %s23, 1
      %p307 = scmp.lt.s32.totalorder %s304, 23
      %s308 = scalar_select %p307, %s304, 23
      %s309 = smul.addr %s308, 3
      %s310 = smul.addr %s306, 72
      %s311 = sadd.s32 %s309, %s310
      %s312 = smul.addr %s311, 8
      %s313 = scalar_lea.vmem %s0, %s312
      %p314 = pneg %p54
      %p315 = pneg %p51
      %s316 = sadd.s32 %s24, 1
      %s317 = smul.u32 8, %s316
      %p318 = scmp.lt.s32.totalorder %s23, 1
      %s319 = scalar_select %p318, %s23, 1
      %p320 = scmp.lt.s32.totalorder %s317, 23
      %s321 = scalar_select %p320, %s317, 23
      %s322 = smul.addr %s321, 3
      %s323 = smul.addr %s319, 72
      %s324 = sadd.s32 %s322, %s323
      %s325 = smul.addr %s324, 8
      %s326 = scalar_lea.vmem %s1, %s325
      %p327 = pneg %p84
      %p328 = pneg %p81
      %p329 = pneg %p105
      %p330 = pneg %p102
      %p331 = pneg %p126
      %p332 = pneg %p123
      %p333 = pneg %p154
      %p334 = pneg %p151
      %s335 = smul.u32 8, %s24
      %p336 = scmp.lt.s32.totalorder %s23, 1
      %s337 = scalar_select %p336, %s23, 1
      %p338 = scmp.lt.s32.totalorder %s335, 15
      %s339 = scalar_select %p338, %s335, 15
      %s340 = smul.addr %s339, 2
      %s341 = smul.addr %s337, 32
      %s342 = sadd.s32 %s340, %s341
      %s343 = smul.addr %s342, 8
      %s344 = scalar_lea.vmem %s4, %s343
      %p345 = pneg %p182
      %p346 = pneg %p179
      %s347 = smul.u32 8, %s24
      %p348 = scmp.lt.s32.totalorder %s23, 1
      %s349 = scalar_select %p348, %s23, 1
      %p350 = scmp.lt.s32.totalorder %s347, 15
      %s351 = scalar_select %p350, %s347, 15
      %s352 = smul.addr %s351, 2
      %s353 = smul.addr %s349, 32
      %s354 = sadd.s32 %s352, %s353
      %s355 = smul.addr %s354, 8
      %s356 = scalar_lea.vmem %s5, %s355
      %p357 = pneg %p212
      %p358 = pneg %p209
      %s359 = smul.u32 %s23, 2
      %s360 = sadd.s32 %s359, %s24
      %p361 = scmp.lt.s32.totalorder %s360, 3
      %s362 = scalar_select %p361, %s360, 3
      %s363 = smul.addr %s362, 8
      %s364 = scalar_lea.vmem %s6, %s363
      %p365 = pneg %p242
      %p366 = pneg %p239
      %s367 = smul.u32 %s23, 2
      %s368 = sadd.s32 %s367, %s24
      %p369 = scmp.lt.s32.totalorder %s368, 3
      %s370 = scalar_select %p369, %s368, 3
      %s371 = smul.addr %s370, 8
      %s372 = scalar_lea.vmem %s7, %s371
      %s373 = smul.u32 8, %s24
      %p374 = scmp.lt.s32.totalorder %s23, 1
      %s375 = scalar_select %p374, %s23, 1
      %p376 = scmp.lt.s32.totalorder %s373, 23
      %s377 = scalar_select %p376, %s373, 23
      %s378 = smul.addr %s377, 3
      %s379 = smul.addr %s375, 72
      %s380 = sadd.s32 %s378, %s379
      %s381 = smul.addr %s380, 8
      %s382 = scalar_lea.vmem %s0, %s381
      %s383 = smul.u32 8, %s24
      %s384 = sadd.s32 %s24, 1
      %s385 = smul.u32 8, %s384
      %p386 = scmp.lt.s32.totalorder %s23, 1
      %s387 = scalar_select %p386, %s23, 1
      %p388 = scmp.lt.s32.totalorder %s385, 23
      %s389 = scalar_select %p388, %s385, 23
      %s390 = smul.addr %s389, 3
      %s391 = smul.addr %s387, 72
      %s392 = sadd.s32 %s390, %s391
      %s393 = smul.addr %s392, 8
      %s394 = scalar_lea.vmem %s1, %s393
      %s395 = sadd.s32 %s24, 1
      %s396 = smul.u32 8, %s395
      %s397 = smul.u32 8, %s24
      %p398 = scmp.lt.s32.totalorder %s23, 1
      %s399 = scalar_select %p398, %s23, 1
      %p400 = scmp.lt.s32.totalorder %s397, 15
      %s401 = scalar_select %p400, %s397, 15
      %s402 = smul.addr %s401, 2
      %s403 = smul.addr %s399, 32
      %s404 = sadd.s32 %s402, %s403
      %s405 = smul.addr %s404, 8
      %s406 = scalar_lea.vmem %s4, %s405
      %s407 = smul.u32 8, %s24
      %s408 = smul.u32 8, %s24
      %p409 = scmp.lt.s32.totalorder %s23, 1
      %s410 = scalar_select %p409, %s23, 1
      %p411 = scmp.lt.s32.totalorder %s408, 15
      %s412 = scalar_select %p411, %s408, 15
      %s413 = smul.addr %s412, 2
      %s414 = smul.addr %s410, 32
      %s415 = sadd.s32 %s413, %s414
      %s416 = smul.addr %s415, 8
      %s417 = scalar_lea.vmem %s5, %s416
      %s418 = smul.u32 8, %s24
      %s419 = smul.u32 %s23, 2
      %s420 = sadd.s32 %s419, %s24
      %p421 = scmp.lt.s32.totalorder %s420, 3
      %s422 = scalar_select %p421, %s420, 3
      %s423 = smul.addr %s422, 8
      %s424 = scalar_lea.vmem %s6, %s423
      %s425 = smul.u32 %s23, 2
      %s426 = sadd.s32 %s425, %s24
      %s427 = smul.u32 %s23, 2
      %s428 = sadd.s32 %s427, %s24
      %p429 = scmp.lt.s32.totalorder %s428, 3
      %s430 = scalar_select %p429, %s428, 3
      %s431 = smul.addr %s430, 8
      %s432 = scalar_lea.vmem %s7, %s431
      %s433 = smul.u32 %s23, 2
      %s434 = sadd.s32 %s433, %s24
      %v435 = vld [vmem:[%s382] sm:$0xff]
      %v436 = vld [vmem:[%s382 + $0x8] sm:$0xff]
      %v437 = vld [vmem:[%s382 + $0x10] sm:$0xff]
      %v438 = vld [vmem:[%s382 + $0x18] sm:$0xff]
      %v439 = vld [vmem:[%s382 + $0x20] sm:$0xff]
      %v440 = vld [vmem:[%s382 + $0x28] sm:$0xff]
      %v441 = vld [vmem:[%s382 + $0x30] sm:$0xff]
      %v442 = vld [vmem:[%s382 + $0x38] sm:$0xff]
      %v443 = vld [vmem:[%s382 + $0x40] sm:$0xff]
      %v444 = vld [vmem:[%s382 + $0x48] sm:$0xff]
      %v445 = vld [vmem:[%s382 + $0x50] sm:$0xff]
      %v446 = vld [vmem:[%s382 + $0x58] sm:$0xff]
      %v447 = vld [vmem:[%s382 + $0x60] sm:$0xff]
      %v448 = vld [vmem:[%s382 + $0x68] sm:$0xff]
      %v449 = vld [vmem:[%s382 + $0x70] sm:$0xff]
      %v450 = vld [vmem:[%s382 + $0x78] sm:$0xff]
      %v451 = vld [vmem:[%s382 + $0x80] sm:$0xff]
      %v452 = vld [vmem:[%s382 + $0x88] sm:$0xff]
      %v453 = vld [vmem:[%s382 + $0x90] sm:$0xff]
      %v454 = vld [vmem:[%s382 + $0x98] sm:$0xff]
      %v455 = vld [vmem:[%s382 + $0xa0] sm:$0xff]
      %v456 = vld [vmem:[%s382 + $0xa8] sm:$0xff]
      %v457 = vld [vmem:[%s382 + $0xb0] sm:$0xff]
      %v458 = vld [vmem:[%s382 + $0xb8] sm:$0xff]
      %459 = vst [vmem:[#allocation2] sm:$0xff] %v435
      %460 = vst [vmem:[#allocation2 + $0x8] sm:$0xff] %v436
      %461 = vst [vmem:[#allocation2 + $0x10] sm:$0xff] %v437
      %462 = vst [vmem:[#allocation2 + $0x18] sm:$0xff] %v438
      %463 = vst [vmem:[#allocation2 + $0x20] sm:$0xff] %v439
      %464 = vst [vmem:[#allocation2 + $0x28] sm:$0xff] %v440
      %465 = vst [vmem:[#allocation2 + $0x30] sm:$0xff] %v441
      %466 = vst [vmem:[#allocation2 + $0x38] sm:$0xff] %v442
      %467 = vst [vmem:[#allocation2 + $0x40] sm:$0xff] %v443
      %468 = vst [vmem:[#allocation2 + $0x48] sm:$0xff] %v444
      %469 = vst [vmem:[#allocation2 + $0x50] sm:$0xff] %v445
      %470 = vst [vmem:[#allocation2 + $0x58] sm:$0xff] %v446
      %471 = vst [vmem:[#allocation2 + $0x60] sm:$0xff] %v447
      %472 = vst [vmem:[#allocation2 + $0x68] sm:$0xff] %v448
      %473 = vst [vmem:[#allocation2 + $0x70] sm:$0xff] %v449
      %474 = vst [vmem:[#allocation2 + $0x78] sm:$0xff] %v450
      %475 = vst [vmem:[#allocation2 + $0x80] sm:$0xff] %v451
      %476 = vst [vmem:[#allocation2 + $0x88] sm:$0xff] %v452
      %477 = vst [vmem:[#allocation2 + $0x90] sm:$0xff] %v453
      %478 = vst [vmem:[#allocation2 + $0x98] sm:$0xff] %v454
      %479 = vst [vmem:[#allocation2 + $0xa0] sm:$0xff] %v455
      %480 = vst [vmem:[#allocation2 + $0xa8] sm:$0xff] %v456
      %481 = vst [vmem:[#allocation2 + $0xb0] sm:$0xff] %v457
      %482 = vst [vmem:[#allocation2 + $0xb8] sm:$0xff] %v458
      %v483 = vld [vmem:[%s394] sm:$0xff]
      %v484 = vld [vmem:[%s394 + $0x8] sm:$0xff]
      %v485 = vld [vmem:[%s394 + $0x10] sm:$0xff]
      %v486 = vld [vmem:[%s394 + $0x18] sm:$0xff]
      %v487 = vld [vmem:[%s394 + $0x20] sm:$0xff]
      %v488 = vld [vmem:[%s394 + $0x28] sm:$0xff]
      %v489 = vld [vmem:[%s394 + $0x30] sm:$0xff]
      %v490 = vld [vmem:[%s394 + $0x38] sm:$0xff]
      %v491 = vld [vmem:[%s394 + $0x40] sm:$0xff]
      %v492 = vld [vmem:[%s394 + $0x48] sm:$0xff]
      %v493 = vld [vmem:[%s394 + $0x50] sm:$0xff]
      %v494 = vld [vmem:[%s394 + $0x58] sm:$0xff]
      %v495 = vld [vmem:[%s394 + $0x60] sm:$0xff]
      %v496 = vld [vmem:[%s394 + $0x68] sm:$0xff]
      %v497 = vld [vmem:[%s394 + $0x70] sm:$0xff]
      %v498 = vld [vmem:[%s394 + $0x78] sm:$0xff]
      %v499 = vld [vmem:[%s394 + $0x80] sm:$0xff]
      %v500 = vld [vmem:[%s394 + $0x88] sm:$0xff]
      %v501 = vld [vmem:[%s394 + $0x90] sm:$0xff]
      %v502 = vld [vmem:[%s394 + $0x98] sm:$0xff]
      %v503 = vld [vmem:[%s394 + $0xa0] sm:$0xff]
      %v504 = vld [vmem:[%s394 + $0xa8] sm:$0xff]
      %v505 = vld [vmem:[%s394 + $0xb0] sm:$0xff]
      %v506 = vld [vmem:[%s394 + $0xb8] sm:$0xff]
      %s507 = scalar_lea.vmem [#allocation2], 192
      %508 = vst [vmem:[%s507] sm:$0xff] %v483
      %509 = vst [vmem:[%s507 + $0x8] sm:$0xff] %v484
      %510 = vst [vmem:[%s507 + $0x10] sm:$0xff] %v485
      %511 = vst [vmem:[%s507 + $0x18] sm:$0xff] %v486
      %512 = vst [vmem:[%s507 + $0x20] sm:$0xff] %v487
      %513 = vst [vmem:[%s507 + $0x28] sm:$0xff] %v488
      %514 = vst [vmem:[%s507 + $0x30] sm:$0xff] %v489
      %515 = vst [vmem:[%s507 + $0x38] sm:$0xff] %v490
      %516 = vst [vmem:[%s507 + $0x40] sm:$0xff] %v491
      %517 = vst [vmem:[%s507 + $0x48] sm:$0xff] %v492
      %518 = vst [vmem:[%s507 + $0x50] sm:$0xff] %v493
      %519 = vst [vmem:[%s507 + $0x58] sm:$0xff] %v494
      %520 = vst [vmem:[%s507 + $0x60] sm:$0xff] %v495
      %521 = vst [vmem:[%s507 + $0x68] sm:$0xff] %v496
      %522 = vst [vmem:[%s507 + $0x70] sm:$0xff] %v497
      %523 = vst [vmem:[%s507 + $0x78] sm:$0xff] %v498
      %524 = vst [vmem:[%s507 + $0x80] sm:$0xff] %v499
      %525 = vst [vmem:[%s507 + $0x88] sm:$0xff] %v500
      %526 = vst [vmem:[%s507 + $0x90] sm:$0xff] %v501
      %527 = vst [vmem:[%s507 + $0x98] sm:$0xff] %v502
      %528 = vst [vmem:[%s507 + $0xa0] sm:$0xff] %v503
      %529 = vst [vmem:[%s507 + $0xa8] sm:$0xff] %v504
      %530 = vst [vmem:[%s507 + $0xb0] sm:$0xff] %v505
      %531 = vst [vmem:[%s507 + $0xb8] sm:$0xff] %v506
      %s532 = scalar_lea.vmem [#allocation2], 96
      %v533 = vld [vmem:[%s532 + $0x4] sm:$0xff]
      %v534 = vld [vmem:[%s532 + $0xc] sm:$0xff]
      %v535 = vld [vmem:[%s532 + $0x1c] sm:$0xff]
      %v536 = vld [vmem:[%s532 + $0x24] sm:$0xff]
      %v537 = vld [vmem:[%s532 + $0x34] sm:$0xff]
      %v538 = vld [vmem:[%s532 + $0x3c] sm:$0xff]
      %v539 = vld [vmem:[%s532 + $0x4c] sm:$0xff]
      %v540 = vld [vmem:[%s532 + $0x54] sm:$0xff]
      %v541 = vld [vmem:[%s532 + $0x64] sm:$0xff]
      %v542 = vld [vmem:[%s532 + $0x6c] sm:$0xff]
      %v543 = vld [vmem:[%s532 + $0x7c] sm:$0xff]
      %v544 = vld [vmem:[%s532 + $0x84] sm:$0xff]
      %v545 = vld [vmem:[%s532 + $0x94] sm:$0xff]
      %v546 = vld [vmem:[%s532 + $0x9c] sm:$0xff]
      %v547 = vld [vmem:[%s532 + $0xac] sm:$0xff]
      %v548 = vld [vmem:[%s532 + $0xb4] sm:$0xff]
      %549 = vst [vmem:[%s417] sm:$0xff] %v533
      %550 = vst [vmem:[%s417 + $0x8] sm:$0xff] %v534
      %551 = vst [vmem:[%s417 + $0x10] sm:$0xff] %v535
      %552 = vst [vmem:[%s417 + $0x18] sm:$0xff] %v536
      %553 = vst [vmem:[%s417 + $0x20] sm:$0xff] %v537
      %554 = vst [vmem:[%s417 + $0x28] sm:$0xff] %v538
      %555 = vst [vmem:[%s417 + $0x30] sm:$0xff] %v539
      %556 = vst [vmem:[%s417 + $0x38] sm:$0xff] %v540
      %557 = vst [vmem:[%s417 + $0x40] sm:$0xff] %v541
      %558 = vst [vmem:[%s417 + $0x48] sm:$0xff] %v542
      %559 = vst [vmem:[%s417 + $0x50] sm:$0xff] %v543
      %560 = vst [vmem:[%s417 + $0x58] sm:$0xff] %v544
      %561 = vst [vmem:[%s417 + $0x60] sm:$0xff] %v545
      %562 = vst [vmem:[%s417 + $0x68] sm:$0xff] %v546
      %563 = vst [vmem:[%s417 + $0x70] sm:$0xff] %v547
      %564 = vst [vmem:[%s417 + $0x78] sm:$0xff] %v548
      %v565 = vld [vmem:[%s3] sm:$0x1]
      %v566 = vld [vmem:[%s2] sm:$0x1]
      %v567 = vld [vmem:[#allocation2] sm:$0xff]
      %v568 = vld [vmem:[#allocation2 + $0x8] sm:$0xff]
      %v569 = vld [vmem:[#allocation2 + $0x18] sm:$0xff]
      %v570 = vld [vmem:[#allocation2 + $0x20] sm:$0xff]
      %v571 = vld [vmem:[#allocation2 + $0x30] sm:$0xff]
      %v572 = vld [vmem:[#allocation2 + $0x38] sm:$0xff]
      %v573 = vld [vmem:[#allocation2 + $0x48] sm:$0xff]
      %v574 = vld [vmem:[#allocation2 + $0x50] sm:$0xff]
      %v575 = vld [vmem:[#allocation2 + $0x60] sm:$0xff]
      %v576 = vld [vmem:[#allocation2 + $0x68] sm:$0xff]
      %v577 = vld [vmem:[#allocation2 + $0x78] sm:$0xff]
      %v578 = vld [vmem:[#allocation2 + $0x80] sm:$0xff]
      %v579 = vld [vmem:[#allocation2 + $0x90] sm:$0xff]
      %v580 = vld [vmem:[#allocation2 + $0x98] sm:$0xff]
      %v581 = vld [vmem:[#allocation2 + $0xa8] sm:$0xff]
      %v582 = vld [vmem:[#allocation2 + $0xb0] sm:$0xff]
      %v583 = vlaneseq
      %v584 = vshrl.u32 %v583, 7
      %v585 = vsub.s32 0, %v584
      %v586 = vrot.slane %v566, %v585
      %v587 = vmul.f32 %v567, %v586
      %v588 = vmul.f32 %v568, %v586
      %v589 = vmul.f32 %v569, %v586
      %v590 = vmul.f32 %v570, %v586
      %v591 = vmul.f32 %v571, %v586
      %v592 = vmul.f32 %v572, %v586
      %v593 = vmul.f32 %v573, %v586
      %v594 = vmul.f32 %v574, %v586
      %v595 = vmul.f32 %v575, %v586
      %v596 = vmul.f32 %v576, %v586
      %v597 = vmul.f32 %v577, %v586
      %v598 = vmul.f32 %v578, %v586
      %v599 = vmul.f32 %v579, %v586
      %v600 = vmul.f32 %v580, %v586
      %v601 = vmul.f32 %v581, %v586
      %v602 = vmul.f32 %v582, %v586
      %v603 = vadd.f32 %v587, 0.0
      %v604 = vadd.f32 %v588, 0.0
      %v605 = vadd.f32 %v589, 0.0
      %v606 = vadd.f32 %v590, 0.0
      %v607 = vadd.f32 %v591, 0.0
      %v608 = vadd.f32 %v592, 0.0
      %v609 = vadd.f32 %v593, 0.0
      %v610 = vadd.f32 %v594, 0.0
      %v611 = vadd.f32 %v595, 0.0
      %v612 = vadd.f32 %v596, 0.0
      %v613 = vadd.f32 %v597, 0.0
      %v614 = vadd.f32 %v598, 0.0
      %v615 = vadd.f32 %v599, 0.0
      %v616 = vadd.f32 %v600, 0.0
      %v617 = vadd.f32 %v601, 0.0
      %v618 = vadd.f32 %v602, 0.0
      %v619 = vld [vmem:[%s2 + $0x1] sm:$0x1]
      %v620 = vld [vmem:[#allocation2 + $0x1] sm:$0xff]
      %v621 = vld [vmem:[#allocation2 + $0x9] sm:$0xff]
      %v622 = vld [vmem:[#allocation2 + $0x19] sm:$0xff]
      %v623 = vld [vmem:[#allocation2 + $0x21] sm:$0xff]
      %v624 = vld [vmem:[#allocation2 + $0x31] sm:$0xff]
      %v625 = vld [vmem:[#allocation2 + $0x39] sm:$0xff]
      %v626 = vld [vmem:[#allocation2 + $0x49] sm:$0xff]
      %v627 = vld [vmem:[#allocation2 + $0x51] sm:$0xff]
      %v628 = vld [vmem:[#allocation2 + $0x61] sm:$0xff]
      %v629 = vld [vmem:[#allocation2 + $0x69] sm:$0xff]
      %v630 = vld [vmem:[#allocation2 + $0x79] sm:$0xff]
      %v631 = vld [vmem:[#allocation2 + $0x81] sm:$0xff]
      %v632 = vld [vmem:[#allocation2 + $0x91] sm:$0xff]
      %v633 = vld [vmem:[#allocation2 + $0x99] sm:$0xff]
      %v634 = vld [vmem:[#allocation2 + $0xa9] sm:$0xff]
      %v635 = vld [vmem:[#allocation2 + $0xb1] sm:$0xff]
      %v636 = vlaneseq
      %v637 = vshrl.u32 %v636, 7
      %v638 = vsub.s32 0, %v637
      %v639 = vrot.slane %v619, %v638
      %v640 = vmul.f32 %v620, %v639
      %v641 = vmul.f32 %v621, %v639
      %v642 = vmul.f32 %v622, %v639
      %v643 = vmul.f32 %v623, %v639
      %v644 = vmul.f32 %v624, %v639
      %v645 = vmul.f32 %v625, %v639
      %v646 = vmul.f32 %v626, %v639
      %v647 = vmul.f32 %v627, %v639
      %v648 = vmul.f32 %v628, %v639
      %v649 = vmul.f32 %v629, %v639
      %v650 = vmul.f32 %v630, %v639
      %v651 = vmul.f32 %v631, %v639
      %v652 = vmul.f32 %v632, %v639
      %v653 = vmul.f32 %v633, %v639
      %v654 = vmul.f32 %v634, %v639
      %v655 = vmul.f32 %v635, %v639
      %v656 = vadd.f32 %v603, %v640
      %v657 = vadd.f32 %v604, %v641
      %v658 = vadd.f32 %v605, %v642
      %v659 = vadd.f32 %v606, %v643
      %v660 = vadd.f32 %v607, %v644
      %v661 = vadd.f32 %v608, %v645
      %v662 = vadd.f32 %v609, %v646
      %v663 = vadd.f32 %v610, %v647
      %v664 = vadd.f32 %v611, %v648
      %v665 = vadd.f32 %v612, %v649
      %v666 = vadd.f32 %v613, %v650
      %v667 = vadd.f32 %v614, %v651
      %v668 = vadd.f32 %v615, %v652
      %v669 = vadd.f32 %v616, %v653
      %v670 = vadd.f32 %v617, %v654
      %v671 = vadd.f32 %v618, %v655
      %v672 = vld [vmem:[%s2 + $0x2] sm:$0x1]
      %v673 = vld [vmem:[#allocation2 + $0x2] sm:$0xff]
      %v674 = vld [vmem:[#allocation2 + $0xa] sm:$0xff]
      %v675 = vld [vmem:[#allocation2 + $0x1a] sm:$0xff]
      %v676 = vld [vmem:[#allocation2 + $0x22] sm:$0xff]
      %v677 = vld [vmem:[#allocation2 + $0x32] sm:$0xff]
      %v678 = vld [vmem:[#allocation2 + $0x3a] sm:$0xff]
      %v679 = vld [vmem:[#allocation2 + $0x4a] sm:$0xff]
      %v680 = vld [vmem:[#allocation2 + $0x52] sm:$0xff]
      %v681 = vld [vmem:[#allocation2 + $0x62] sm:$0xff]
      %v682 = vld [vmem:[#allocation2 + $0x6a] sm:$0xff]
      %v683 = vld [vmem:[#allocation2 + $0x7a] sm:$0xff]
      %v684 = vld [vmem:[#allocation2 + $0x82] sm:$0xff]
      %v685 = vld [vmem:[#allocation2 + $0x92] sm:$0xff]
      %v686 = vld [vmem:[#allocation2 + $0x9a] sm:$0xff]
      %v687 = vld [vmem:[#allocation2 + $0xaa] sm:$0xff]
      %v688 = vld [vmem:[#allocation2 + $0xb2] sm:$0xff]
      %v689 = vlaneseq
      %v690 = vshrl.u32 %v689, 7
      %v691 = vsub.s32 0, %v690
      %v692 = vrot.slane %v672, %v691
      %v693 = vmul.f32 %v673, %v692
      %v694 = vmul.f32 %v674, %v692
      %v695 = vmul.f32 %v675, %v692
      %v696 = vmul.f32 %v676, %v692
      %v697 = vmul.f32 %v677, %v692
      %v698 = vmul.f32 %v678, %v692
      %v699 = vmul.f32 %v679, %v692
      %v700 = vmul.f32 %v680, %v692
      %v701 = vmul.f32 %v681, %v692
      %v702 = vmul.f32 %v682, %v692
      %v703 = vmul.f32 %v683, %v692
      %v704 = vmul.f32 %v684, %v692
      %v705 = vmul.f32 %v685, %v692
      %v706 = vmul.f32 %v686, %v692
      %v707 = vmul.f32 %v687, %v692
      %v708 = vmul.f32 %v688, %v692
      %v709 = vadd.f32 %v656, %v693
      %v710 = vadd.f32 %v657, %v694
      %v711 = vadd.f32 %v658, %v695
      %v712 = vadd.f32 %v659, %v696
      %v713 = vadd.f32 %v660, %v697
      %v714 = vadd.f32 %v661, %v698
      %v715 = vadd.f32 %v662, %v699
      %v716 = vadd.f32 %v663, %v700
      %v717 = vadd.f32 %v664, %v701
      %v718 = vadd.f32 %v665, %v702
      %v719 = vadd.f32 %v666, %v703
      %v720 = vadd.f32 %v667, %v704
      %v721 = vadd.f32 %v668, %v705
      %v722 = vadd.f32 %v669, %v706
      %v723 = vadd.f32 %v670, %v707
      %v724 = vadd.f32 %v671, %v708
      %v725 = vld [vmem:[%s2 + $0x3] sm:$0x1]
      %v726 = vld [vmem:[#allocation2 + $0x3] sm:$0xff]
      %v727 = vld [vmem:[#allocation2 + $0xb] sm:$0xff]
      %v728 = vld [vmem:[#allocation2 + $0x1b] sm:$0xff]
      %v729 = vld [vmem:[#allocation2 + $0x23] sm:$0xff]
      %v730 = vld [vmem:[#allocation2 + $0x33] sm:$0xff]
      %v731 = vld [vmem:[#allocation2 + $0x3b] sm:$0xff]
      %v732 = vld [vmem:[#allocation2 + $0x4b] sm:$0xff]
      %v733 = vld [vmem:[#allocation2 + $0x53] sm:$0xff]
      %v734 = vld [vmem:[#allocation2 + $0x63] sm:$0xff]
      %v735 = vld [vmem:[#allocation2 + $0x6b] sm:$0xff]
      %v736 = vld [vmem:[#allocation2 + $0x7b] sm:$0xff]
      %v737 = vld [vmem:[#allocation2 + $0x83] sm:$0xff]
      %v738 = vld [vmem:[#allocation2 + $0x93] sm:$0xff]
      %v739 = vld [vmem:[#allocation2 + $0x9b] sm:$0xff]
      %v740 = vld [vmem:[#allocation2 + $0xab] sm:$0xff]
      %v741 = vld [vmem:[#allocation2 + $0xb3] sm:$0xff]
      %v742 = vlaneseq
      %v743 = vshrl.u32 %v742, 7
      %v744 = vsub.s32 0, %v743
      %v745 = vrot.slane %v725, %v744
      %v746 = vmul.f32 %v726, %v745
      %v747 = vmul.f32 %v727, %v745
      %v748 = vmul.f32 %v728, %v745
      %v749 = vmul.f32 %v729, %v745
      %v750 = vmul.f32 %v730, %v745
      %v751 = vmul.f32 %v731, %v745
      %v752 = vmul.f32 %v732, %v745
      %v753 = vmul.f32 %v733, %v745
      %v754 = vmul.f32 %v734, %v745
      %v755 = vmul.f32 %v735, %v745
      %v756 = vmul.f32 %v736, %v745
      %v757 = vmul.f32 %v737, %v745
      %v758 = vmul.f32 %v738, %v745
      %v759 = vmul.f32 %v739, %v745
      %v760 = vmul.f32 %v740, %v745
      %v761 = vmul.f32 %v741, %v745
      %v762 = vadd.f32 %v709, %v746
      %v763 = vadd.f32 %v710, %v747
      %v764 = vadd.f32 %v711, %v748
      %v765 = vadd.f32 %v712, %v749
      %v766 = vadd.f32 %v713, %v750
      %v767 = vadd.f32 %v714, %v751
      %v768 = vadd.f32 %v715, %v752
      %v769 = vadd.f32 %v716, %v753
      %v770 = vadd.f32 %v717, %v754
      %v771 = vadd.f32 %v718, %v755
      %v772 = vadd.f32 %v719, %v756
      %v773 = vadd.f32 %v720, %v757
      %v774 = vadd.f32 %v721, %v758
      %v775 = vadd.f32 %v722, %v759
      %v776 = vadd.f32 %v723, %v760
      %v777 = vadd.f32 %v724, %v761
      %v778 = vld [vmem:[%s2 + $0x4] sm:$0x1]
      %v779 = vld [vmem:[#allocation2 + $0x4] sm:$0xff]
      %v780 = vld [vmem:[#allocation2 + $0xc] sm:$0xff]
      %v781 = vld [vmem:[#allocation2 + $0x1c] sm:$0xff]
      %v782 = vld [vmem:[#allocation2 + $0x24] sm:$0xff]
      %v783 = vld [vmem:[#allocation2 + $0x34] sm:$0xff]
      %v784 = vld [vmem:[#allocation2 + $0x3c] sm:$0xff]
      %v785 = vld [vmem:[#allocation2 + $0x4c] sm:$0xff]
      %v786 = vld [vmem:[#allocation2 + $0x54] sm:$0xff]
      %v787 = vld [vmem:[#allocation2 + $0x64] sm:$0xff]
      %v788 = vld [vmem:[#allocation2 + $0x6c] sm:$0xff]
      %v789 = vld [vmem:[#allocation2 + $0x7c] sm:$0xff]
      %v790 = vld [vmem:[#allocation2 + $0x84] sm:$0xff]
      %v791 = vld [vmem:[#allocation2 + $0x94] sm:$0xff]
      %v792 = vld [vmem:[#allocation2 + $0x9c] sm:$0xff]
      %v793 = vld [vmem:[#allocation2 + $0xac] sm:$0xff]
      %v794 = vld [vmem:[#allocation2 + $0xb4] sm:$0xff]
      %v795 = vlaneseq
      %v796 = vshrl.u32 %v795, 7
      %v797 = vsub.s32 0, %v796
      %v798 = vrot.slane %v778, %v797
      %v799 = vmul.f32 %v779, %v798
      %v800 = vmul.f32 %v780, %v798
      %v801 = vmul.f32 %v781, %v798
      %v802 = vmul.f32 %v782, %v798
      %v803 = vmul.f32 %v783, %v798
      %v804 = vmul.f32 %v784, %v798
      %v805 = vmul.f32 %v785, %v798
      %v806 = vmul.f32 %v786, %v798
      %v807 = vmul.f32 %v787, %v798
      %v808 = vmul.f32 %v788, %v798
      %v809 = vmul.f32 %v789, %v798
      %v810 = vmul.f32 %v790, %v798
      %v811 = vmul.f32 %v791, %v798
      %v812 = vmul.f32 %v792, %v798
      %v813 = vmul.f32 %v793, %v798
      %v814 = vmul.f32 %v794, %v798
      %v815 = vadd.f32 %v762, %v799
      %v816 = vadd.f32 %v763, %v800
      %v817 = vadd.f32 %v764, %v801
      %v818 = vadd.f32 %v765, %v802
      %v819 = vadd.f32 %v766, %v803
      %v820 = vadd.f32 %v767, %v804
      %v821 = vadd.f32 %v768, %v805
      %v822 = vadd.f32 %v769, %v806
      %v823 = vadd.f32 %v770, %v807
      %v824 = vadd.f32 %v771, %v808
      %v825 = vadd.f32 %v772, %v809
      %v826 = vadd.f32 %v773, %v810
      %v827 = vadd.f32 %v774, %v811
      %v828 = vadd.f32 %v775, %v812
      %v829 = vadd.f32 %v776, %v813
      %v830 = vadd.f32 %v777, %v814
      %v831 = vld [vmem:[%s2 + $0x5] sm:$0x1]
      %v832 = vld [vmem:[#allocation2 + $0x5] sm:$0xff]
      %v833 = vld [vmem:[#allocation2 + $0xd] sm:$0xff]
      %v834 = vld [vmem:[#allocation2 + $0x1d] sm:$0xff]
      %v835 = vld [vmem:[#allocation2 + $0x25] sm:$0xff]
      %v836 = vld [vmem:[#allocation2 + $0x35] sm:$0xff]
      %v837 = vld [vmem:[#allocation2 + $0x3d] sm:$0xff]
      %v838 = vld [vmem:[#allocation2 + $0x4d] sm:$0xff]
      %v839 = vld [vmem:[#allocation2 + $0x55] sm:$0xff]
      %v840 = vld [vmem:[#allocation2 + $0x65] sm:$0xff]
      %v841 = vld [vmem:[#allocation2 + $0x6d] sm:$0xff]
      %v842 = vld [vmem:[#allocation2 + $0x7d] sm:$0xff]
      %v843 = vld [vmem:[#allocation2 + $0x85] sm:$0xff]
      %v844 = vld [vmem:[#allocation2 + $0x95] sm:$0xff]
      %v845 = vld [vmem:[#allocation2 + $0x9d] sm:$0xff]
      %v846 = vld [vmem:[#allocation2 + $0xad] sm:$0xff]
      %v847 = vld [vmem:[#allocation2 + $0xb5] sm:$0xff]
      %v848 = vlaneseq
      %v849 = vshrl.u32 %v848, 7
      %v850 = vsub.s32 0, %v849
      %v851 = vrot.slane %v831, %v850
      %v852 = vmul.f32 %v832, %v851
      %v853 = vmul.f32 %v833, %v851
      %v854 = vmul.f32 %v834, %v851
      %v855 = vmul.f32 %v835, %v851
      %v856 = vmul.f32 %v836, %v851
      %v857 = vmul.f32 %v837, %v851
      %v858 = vmul.f32 %v838, %v851
      %v859 = vmul.f32 %v839, %v851
      %v860 = vmul.f32 %v840, %v851
      %v861 = vmul.f32 %v841, %v851
      %v862 = vmul.f32 %v842, %v851
      %v863 = vmul.f32 %v843, %v851
      %v864 = vmul.f32 %v844, %v851
      %v865 = vmul.f32 %v845, %v851
      %v866 = vmul.f32 %v846, %v851
      %v867 = vmul.f32 %v847, %v851
      %v868 = vadd.f32 %v815, %v852
      %v869 = vadd.f32 %v816, %v853
      %v870 = vadd.f32 %v817, %v854
      %v871 = vadd.f32 %v818, %v855
      %v872 = vadd.f32 %v819, %v856
      %v873 = vadd.f32 %v820, %v857
      %v874 = vadd.f32 %v821, %v858
      %v875 = vadd.f32 %v822, %v859
      %v876 = vadd.f32 %v823, %v860
      %v877 = vadd.f32 %v824, %v861
      %v878 = vadd.f32 %v825, %v862
      %v879 = vadd.f32 %v826, %v863
      %v880 = vadd.f32 %v827, %v864
      %v881 = vadd.f32 %v828, %v865
      %v882 = vadd.f32 %v829, %v866
      %v883 = vadd.f32 %v830, %v867
      %v884 = vld [vmem:[%s2 + $0x6] sm:$0x1]
      %v885 = vld [vmem:[#allocation2 + $0x6] sm:$0xff]
      %v886 = vld [vmem:[#allocation2 + $0xe] sm:$0xff]
      %v887 = vld [vmem:[#allocation2 + $0x1e] sm:$0xff]
      %v888 = vld [vmem:[#allocation2 + $0x26] sm:$0xff]
      %v889 = vld [vmem:[#allocation2 + $0x36] sm:$0xff]
      %v890 = vld [vmem:[#allocation2 + $0x3e] sm:$0xff]
      %v891 = vld [vmem:[#allocation2 + $0x4e] sm:$0xff]
      %v892 = vld [vmem:[#allocation2 + $0x56] sm:$0xff]
      %v893 = vld [vmem:[#allocation2 + $0x66] sm:$0xff]
      %v894 = vld [vmem:[#allocation2 + $0x6e] sm:$0xff]
      %v895 = vld [vmem:[#allocation2 + $0x7e] sm:$0xff]
      %v896 = vld [vmem:[#allocation2 + $0x86] sm:$0xff]
      %v897 = vld [vmem:[#allocation2 + $0x96] sm:$0xff]
      %v898 = vld [vmem:[#allocation2 + $0x9e] sm:$0xff]
      %v899 = vld [vmem:[#allocation2 + $0xae] sm:$0xff]
      %v900 = vld [vmem:[#allocation2 + $0xb6] sm:$0xff]
      %v901 = vlaneseq
      %v902 = vshrl.u32 %v901, 7
      %v903 = vsub.s32 0, %v902
      %v904 = vrot.slane %v884, %v903
      %v905 = vmul.f32 %v885, %v904
      %v906 = vmul.f32 %v886, %v904
      %v907 = vmul.f32 %v887, %v904
      %v908 = vmul.f32 %v888, %v904
      %v909 = vmul.f32 %v889, %v904
      %v910 = vmul.f32 %v890, %v904
      %v911 = vmul.f32 %v891, %v904
      %v912 = vmul.f32 %v892, %v904
      %v913 = vmul.f32 %v893, %v904
      %v914 = vmul.f32 %v894, %v904
      %v915 = vmul.f32 %v895, %v904
      %v916 = vmul.f32 %v896, %v904
      %v917 = vmul.f32 %v897, %v904
      %v918 = vmul.f32 %v898, %v904
      %v919 = vmul.f32 %v899, %v904
      %v920 = vmul.f32 %v900, %v904
      %v921 = vadd.f32 %v868, %v905
      %v922 = vadd.f32 %v869, %v906
      %v923 = vadd.f32 %v870, %v907
      %v924 = vadd.f32 %v871, %v908
      %v925 = vadd.f32 %v872, %v909
      %v926 = vadd.f32 %v873, %v910
      %v927 = vadd.f32 %v874, %v911
      %v928 = vadd.f32 %v875, %v912
      %v929 = vadd.f32 %v876, %v913
      %v930 = vadd.f32 %v877, %v914
      %v931 = vadd.f32 %v878, %v915
      %v932 = vadd.f32 %v879, %v916
      %v933 = vadd.f32 %v880, %v917
      %v934 = vadd.f32 %v881, %v918
      %v935 = vadd.f32 %v882, %v919
      %v936 = vadd.f32 %v883, %v920
      %v937 = vld [vmem:[%s2 + $0x7] sm:$0x1]
      %v938 = vld [vmem:[#allocation2 + $0x7] sm:$0xff]
      %v939 = vld [vmem:[#allocation2 + $0xf] sm:$0xff]
      %v940 = vld [vmem:[#allocation2 + $0x1f] sm:$0xff]
      %v941 = vld [vmem:[#allocation2 + $0x27] sm:$0xff]
      %v942 = vld [vmem:[#allocation2 + $0x37] sm:$0xff]
      %v943 = vld [vmem:[#allocation2 + $0x3f] sm:$0xff]
      %v944 = vld [vmem:[#allocation2 + $0x4f] sm:$0xff]
      %v945 = vld [vmem:[#allocation2 + $0x57] sm:$0xff]
      %v946 = vld [vmem:[#allocation2 + $0x67] sm:$0xff]
      %v947 = vld [vmem:[#allocation2 + $0x6f] sm:$0xff]
      %v948 = vld [vmem:[#allocation2 + $0x7f] sm:$0xff]
      %v949 = vld [vmem:[#allocation2 + $0x87] sm:$0xff]
      %v950 = vld [vmem:[#allocation2 + $0x97] sm:$0xff]
      %v951 = vld [vmem:[#allocation2 + $0x9f] sm:$0xff]
      %v952 = vld [vmem:[#allocation2 + $0xaf] sm:$0xff]
      %v953 = vld [vmem:[#allocation2 + $0xb7] sm:$0xff]
      %v954 = vlaneseq
      %v955 = vshrl.u32 %v954, 7
      %v956 = vsub.s32 0, %v955
      %v957 = vrot.slane %v937, %v956
      %v958 = vmul.f32 %v938, %v957
      %v959 = vmul.f32 %v939, %v957
      %v960 = vmul.f32 %v940, %v957
      %v961 = vmul.f32 %v941, %v957
      %v962 = vmul.f32 %v942, %v957
      %v963 = vmul.f32 %v943, %v957
      %v964 = vmul.f32 %v944, %v957
      %v965 = vmul.f32 %v945, %v957
      %v966 = vmul.f32 %v946, %v957
      %v967 = vmul.f32 %v947, %v957
      %v968 = vmul.f32 %v948, %v957
      %v969 = vmul.f32 %v949, %v957
      %v970 = vmul.f32 %v950, %v957
      %v971 = vmul.f32 %v951, %v957
      %v972 = vmul.f32 %v952, %v957
      %v973 = vmul.f32 %v953, %v957
      %v974 = vadd.f32 %v921, %v958
      %v975 = vadd.f32 %v922, %v959
      %v976 = vadd.f32 %v923, %v960
      %v977 = vadd.f32 %v924, %v961
      %v978 = vadd.f32 %v925, %v962
      %v979 = vadd.f32 %v926, %v963
      %v980 = vadd.f32 %v927, %v964
      %v981 = vadd.f32 %v928, %v965
      %v982 = vadd.f32 %v929, %v966
      %v983 = vadd.f32 %v930, %v967
      %v984 = vadd.f32 %v931, %v968
      %v985 = vadd.f32 %v932, %v969
      %v986 = vadd.f32 %v933, %v970
      %v987 = vadd.f32 %v934, %v971
      %v988 = vadd.f32 %v935, %v972
      %v989 = vadd.f32 %v936, %v973
      %v990 = vld [vmem:[%s2 + $0x8] sm:$0x1]
      %v991 = vld [vmem:[#allocation2 + $0x10] sm:$0xff]
      %v992 = vld [vmem:[#allocation2 + $0x28] sm:$0xff]
      %v993 = vld [vmem:[#allocation2 + $0x40] sm:$0xff]
      %v994 = vld [vmem:[#allocation2 + $0x58] sm:$0xff]
      %v995 = vld [vmem:[#allocation2 + $0x70] sm:$0xff]
      %v996 = vld [vmem:[#allocation2 + $0x88] sm:$0xff]
      %v997 = vld [vmem:[#allocation2 + $0xa0] sm:$0xff]
      %v998 = vld [vmem:[#allocation2 + $0xb8] sm:$0xff]
      %v999 = vlaneseq
      %v1000 = vshrl.u32 %v999, 7
      %v1001 = vsub.s32 0, %v1000
      %v1002 = vrot.slane %v990, %v1001
      %v1003 = vmul.f32 %v568, %v1002
      %v1004 = vmul.f32 %v991, %v1002
      %v1005 = vmul.f32 %v570, %v1002
      %v1006 = vmul.f32 %v992, %v1002
      %v1007 = vmul.f32 %v572, %v1002
      %v1008 = vmul.f32 %v993, %v1002
      %v1009 = vmul.f32 %v574, %v1002
      %v1010 = vmul.f32 %v994, %v1002
      %v1011 = vmul.f32 %v576, %v1002
      %v1012 = vmul.f32 %v995, %v1002
      %v1013 = vmul.f32 %v578, %v1002
      %v1014 = vmul.f32 %v996, %v1002
      %v1015 = vmul.f32 %v580, %v1002
      %v1016 = vmul.f32 %v997, %v1002
      %v1017 = vmul.f32 %v582, %v1002
      %v1018 = vmul.f32 %v998, %v1002
      %v1019 = vadd.f32 %v974, %v1003
      %v1020 = vadd.f32 %v975, %v1004
      %v1021 = vadd.f32 %v976, %v1005
      %v1022 = vadd.f32 %v977, %v1006
      %v1023 = vadd.f32 %v978, %v1007
      %v1024 = vadd.f32 %v979, %v1008
      %v1025 = vadd.f32 %v980, %v1009
      %v1026 = vadd.f32 %v981, %v1010
      %v1027 = vadd.f32 %v982, %v1011
      %v1028 = vadd.f32 %v983, %v1012
      %v1029 = vadd.f32 %v984, %v1013
      %v1030 = vadd.f32 %v985, %v1014
      %v1031 = vadd.f32 %v986, %v1015
      %v1032 = vadd.f32 %v987, %v1016
      %v1033 = vadd.f32 %v988, %v1017
      %v1034 = vadd.f32 %v989, %v1018
      %s1035 = scalar_lea.vmem %s2, 16
      %v1036 = vld [vmem:[%s1035] sm:$0x1]
      %s1037 = scalar_lea.vmem [#allocation2], 24
      %v1038 = vld [vmem:[%s1037] sm:$0xff]
      %v1039 = vld [vmem:[%s1037 + $0x8] sm:$0xff]
      %v1040 = vld [vmem:[%s1037 + $0x18] sm:$0xff]
      %v1041 = vld [vmem:[%s1037 + $0x20] sm:$0xff]
      %v1042 = vld [vmem:[%s1037 + $0x30] sm:$0xff]
      %v1043 = vld [vmem:[%s1037 + $0x38] sm:$0xff]
      %v1044 = vld [vmem:[%s1037 + $0x48] sm:$0xff]
      %v1045 = vld [vmem:[%s1037 + $0x50] sm:$0xff]
      %v1046 = vld [vmem:[%s1037 + $0x60] sm:$0xff]
      %v1047 = vld [vmem:[%s1037 + $0x68] sm:$0xff]
      %v1048 = vld [vmem:[%s1037 + $0x78] sm:$0xff]
      %v1049 = vld [vmem:[%s1037 + $0x80] sm:$0xff]
      %v1050 = vld [vmem:[%s1037 + $0x90] sm:$0xff]
      %v1051 = vld [vmem:[%s1037 + $0x98] sm:$0xff]
      %v1052 = vld [vmem:[%s1037 + $0xa8] sm:$0xff]
      %v1053 = vld [vmem:[%s1037 + $0xb0] sm:$0xff]
      %v1054 = vlaneseq
      %v1055 = vshrl.u32 %v1054, 7
      %v1056 = vsub.s32 0, %v1055
      %v1057 = vrot.slane %v1036, %v1056
      %v1058 = vmul.f32 %v1038, %v1057
      %v1059 = vmul.f32 %v1039, %v1057
      %v1060 = vmul.f32 %v1040, %v1057
      %v1061 = vmul.f32 %v1041, %v1057
      %v1062 = vmul.f32 %v1042, %v1057
      %v1063 = vmul.f32 %v1043, %v1057
      %v1064 = vmul.f32 %v1044, %v1057
      %v1065 = vmul.f32 %v1045, %v1057
      %v1066 = vmul.f32 %v1046, %v1057
      %v1067 = vmul.f32 %v1047, %v1057
      %v1068 = vmul.f32 %v1048, %v1057
      %v1069 = vmul.f32 %v1049, %v1057
      %v1070 = vmul.f32 %v1050, %v1057
      %v1071 = vmul.f32 %v1051, %v1057
      %v1072 = vmul.f32 %v1052, %v1057
      %v1073 = vmul.f32 %v1053, %v1057
      %v1074 = vadd.f32 %v1019, %v1058
      %v1075 = vadd.f32 %v1020, %v1059
      %v1076 = vadd.f32 %v1021, %v1060
      %v1077 = vadd.f32 %v1022, %v1061
      %v1078 = vadd.f32 %v1023, %v1062
      %v1079 = vadd.f32 %v1024, %v1063
      %v1080 = vadd.f32 %v1025, %v1064
      %v1081 = vadd.f32 %v1026, %v1065
      %v1082 = vadd.f32 %v1027, %v1066
      %v1083 = vadd.f32 %v1028, %v1067
      %v1084 = vadd.f32 %v1029, %v1068
      %v1085 = vadd.f32 %v1030, %v1069
      %v1086 = vadd.f32 %v1031, %v1070
      %v1087 = vadd.f32 %v1032, %v1071
      %v1088 = vadd.f32 %v1033, %v1072
      %v1089 = vadd.f32 %v1034, %v1073
      %v1090 = vld [vmem:[%s1035 + $0x1] sm:$0x1]
      %v1091 = vld [vmem:[%s1037 + $0x1] sm:$0xff]
      %v1092 = vld [vmem:[%s1037 + $0x9] sm:$0xff]
      %v1093 = vld [vmem:[%s1037 + $0x19] sm:$0xff]
      %v1094 = vld [vmem:[%s1037 + $0x21] sm:$0xff]
      %v1095 = vld [vmem:[%s1037 + $0x31] sm:$0xff]
      %v1096 = vld [vmem:[%s1037 + $0x39] sm:$0xff]
      %v1097 = vld [vmem:[%s1037 + $0x49] sm:$0xff]
      %v1098 = vld [vmem:[%s1037 + $0x51] sm:$0xff]
      %v1099 = vld [vmem:[%s1037 + $0x61] sm:$0xff]
      %v1100 = vld [vmem:[%s1037 + $0x69] sm:$0xff]
      %v1101 = vld [vmem:[%s1037 + $0x79] sm:$0xff]
      %v1102 = vld [vmem:[%s1037 + $0x81] sm:$0xff]
      %v1103 = vld [vmem:[%s1037 + $0x91] sm:$0xff]
      %v1104 = vld [vmem:[%s1037 + $0x99] sm:$0xff]
      %v1105 = vld [vmem:[%s1037 + $0xa9] sm:$0xff]
      %v1106 = vld [vmem:[%s1037 + $0xb1] sm:$0xff]
      %v1107 = vlaneseq
      %v1108 = vshrl.u32 %v1107, 7
      %v1109 = vsub.s32 0, %v1108
      %v1110 = vrot.slane %v1090, %v1109
      %v1111 = vmul.f32 %v1091, %v1110
      %v1112 = vmul.f32 %v1092, %v1110
      %v1113 = vmul.f32 %v1093, %v1110
      %v1114 = vmul.f32 %v1094, %v1110
      %v1115 = vmul.f32 %v1095, %v1110
      %v1116 = vmul.f32 %v1096, %v1110
      %v1117 = vmul.f32 %v1097, %v1110
      %v1118 = vmul.f32 %v1098, %v1110
      %v1119 = vmul.f32 %v1099, %v1110
      %v1120 = vmul.f32 %v1100, %v1110
      %v1121 = vmul.f32 %v1101, %v1110
      %v1122 = vmul.f32 %v1102, %v1110
      %v1123 = vmul.f32 %v1103, %v1110
      %v1124 = vmul.f32 %v1104, %v1110
      %v1125 = vmul.f32 %v1105, %v1110
      %v1126 = vmul.f32 %v1106, %v1110
      %v1127 = vadd.f32 %v1074, %v1111
      %v1128 = vadd.f32 %v1075, %v1112
      %v1129 = vadd.f32 %v1076, %v1113
      %v1130 = vadd.f32 %v1077, %v1114
      %v1131 = vadd.f32 %v1078, %v1115
      %v1132 = vadd.f32 %v1079, %v1116
      %v1133 = vadd.f32 %v1080, %v1117
      %v1134 = vadd.f32 %v1081, %v1118
      %v1135 = vadd.f32 %v1082, %v1119
      %v1136 = vadd.f32 %v1083, %v1120
      %v1137 = vadd.f32 %v1084, %v1121
      %v1138 = vadd.f32 %v1085, %v1122
      %v1139 = vadd.f32 %v1086, %v1123
      %v1140 = vadd.f32 %v1087, %v1124
      %v1141 = vadd.f32 %v1088, %v1125
      %v1142 = vadd.f32 %v1089, %v1126
      %v1143 = vld [vmem:[%s1035 + $0x2] sm:$0x1]
      %v1144 = vld [vmem:[%s1037 + $0x2] sm:$0xff]
      %v1145 = vld [vmem:[%s1037 + $0xa] sm:$0xff]
      %v1146 = vld [vmem:[%s1037 + $0x1a] sm:$0xff]
      %v1147 = vld [vmem:[%s1037 + $0x22] sm:$0xff]
      %v1148 = vld [vmem:[%s1037 + $0x32] sm:$0xff]
      %v1149 = vld [vmem:[%s1037 + $0x3a] sm:$0xff]
      %v1150 = vld [vmem:[%s1037 + $0x4a] sm:$0xff]
      %v1151 = vld [vmem:[%s1037 + $0x52] sm:$0xff]
      %v1152 = vld [vmem:[%s1037 + $0x62] sm:$0xff]
      %v1153 = vld [vmem:[%s1037 + $0x6a] sm:$0xff]
      %v1154 = vld [vmem:[%s1037 + $0x7a] sm:$0xff]
      %v1155 = vld [vmem:[%s1037 + $0x82] sm:$0xff]
      %v1156 = vld [vmem:[%s1037 + $0x92] sm:$0xff]
      %v1157 = vld [vmem:[%s1037 + $0x9a] sm:$0xff]
      %v1158 = vld [vmem:[%s1037 + $0xaa] sm:$0xff]
      %v1159 = vld [vmem:[%s1037 + $0xb2] sm:$0xff]
      %v1160 = vlaneseq
      %v1161 = vshrl.u32 %v1160, 7
      %v1162 = vsub.s32 0, %v1161
      %v1163 = vrot.slane %v1143, %v1162
      %v1164 = vmul.f32 %v1144, %v1163
      %v1165 = vmul.f32 %v1145, %v1163
      %v1166 = vmul.f32 %v1146, %v1163
      %v1167 = vmul.f32 %v1147, %v1163
      %v1168 = vmul.f32 %v1148, %v1163
      %v1169 = vmul.f32 %v1149, %v1163
      %v1170 = vmul.f32 %v1150, %v1163
      %v1171 = vmul.f32 %v1151, %v1163
      %v1172 = vmul.f32 %v1152, %v1163
      %v1173 = vmul.f32 %v1153, %v1163
      %v1174 = vmul.f32 %v1154, %v1163
      %v1175 = vmul.f32 %v1155, %v1163
      %v1176 = vmul.f32 %v1156, %v1163
      %v1177 = vmul.f32 %v1157, %v1163
      %v1178 = vmul.f32 %v1158, %v1163
      %v1179 = vmul.f32 %v1159, %v1163
      %v1180 = vadd.f32 %v1127, %v1164
      %v1181 = vadd.f32 %v1128, %v1165
      %v1182 = vadd.f32 %v1129, %v1166
      %v1183 = vadd.f32 %v1130, %v1167
      %v1184 = vadd.f32 %v1131, %v1168
      %v1185 = vadd.f32 %v1132, %v1169
      %v1186 = vadd.f32 %v1133, %v1170
      %v1187 = vadd.f32 %v1134, %v1171
      %v1188 = vadd.f32 %v1135, %v1172
      %v1189 = vadd.f32 %v1136, %v1173
      %v1190 = vadd.f32 %v1137, %v1174
      %v1191 = vadd.f32 %v1138, %v1175
      %v1192 = vadd.f32 %v1139, %v1176
      %v1193 = vadd.f32 %v1140, %v1177
      %v1194 = vadd.f32 %v1141, %v1178
      %v1195 = vadd.f32 %v1142, %v1179
      %v1196 = vld [vmem:[%s1035 + $0x3] sm:$0x1]
      %v1197 = vld [vmem:[%s1037 + $0x3] sm:$0xff]
      %v1198 = vld [vmem:[%s1037 + $0xb] sm:$0xff]
      %v1199 = vld [vmem:[%s1037 + $0x1b] sm:$0xff]
      %v1200 = vld [vmem:[%s1037 + $0x23] sm:$0xff]
      %v1201 = vld [vmem:[%s1037 + $0x33] sm:$0xff]
      %v1202 = vld [vmem:[%s1037 + $0x3b] sm:$0xff]
      %v1203 = vld [vmem:[%s1037 + $0x4b] sm:$0xff]
      %v1204 = vld [vmem:[%s1037 + $0x53] sm:$0xff]
      %v1205 = vld [vmem:[%s1037 + $0x63] sm:$0xff]
      %v1206 = vld [vmem:[%s1037 + $0x6b] sm:$0xff]
      %v1207 = vld [vmem:[%s1037 + $0x7b] sm:$0xff]
      %v1208 = vld [vmem:[%s1037 + $0x83] sm:$0xff]
      %v1209 = vld [vmem:[%s1037 + $0x93] sm:$0xff]
      %v1210 = vld [vmem:[%s1037 + $0x9b] sm:$0xff]
      %v1211 = vld [vmem:[%s1037 + $0xab] sm:$0xff]
      %v1212 = vld [vmem:[%s1037 + $0xb3] sm:$0xff]
      %v1213 = vlaneseq
      %v1214 = vshrl.u32 %v1213, 7
      %v1215 = vsub.s32 0, %v1214
      %v1216 = vrot.slane %v1196, %v1215
      %v1217 = vmul.f32 %v1197, %v1216
      %v1218 = vmul.f32 %v1198, %v1216
      %v1219 = vmul.f32 %v1199, %v1216
      %v1220 = vmul.f32 %v1200, %v1216
      %v1221 = vmul.f32 %v1201, %v1216
      %v1222 = vmul.f32 %v1202, %v1216
      %v1223 = vmul.f32 %v1203, %v1216
      %v1224 = vmul.f32 %v1204, %v1216
      %v1225 = vmul.f32 %v1205, %v1216
      %v1226 = vmul.f32 %v1206, %v1216
      %v1227 = vmul.f32 %v1207, %v1216
      %v1228 = vmul.f32 %v1208, %v1216
      %v1229 = vmul.f32 %v1209, %v1216
      %v1230 = vmul.f32 %v1210, %v1216
      %v1231 = vmul.f32 %v1211, %v1216
      %v1232 = vmul.f32 %v1212, %v1216
      %v1233 = vadd.f32 %v1180, %v1217
      %v1234 = vadd.f32 %v1181, %v1218
      %v1235 = vadd.f32 %v1182, %v1219
      %v1236 = vadd.f32 %v1183, %v1220
      %v1237 = vadd.f32 %v1184, %v1221
      %v1238 = vadd.f32 %v1185, %v1222
      %v1239 = vadd.f32 %v1186, %v1223
      %v1240 = vadd.f32 %v1187, %v1224
      %v1241 = vadd.f32 %v1188, %v1225
      %v1242 = vadd.f32 %v1189, %v1226
      %v1243 = vadd.f32 %v1190, %v1227
      %v1244 = vadd.f32 %v1191, %v1228
      %v1245 = vadd.f32 %v1192, %v1229
      %v1246 = vadd.f32 %v1193, %v1230
      %v1247 = vadd.f32 %v1194, %v1231
      %v1248 = vadd.f32 %v1195, %v1232
      %v1249 = vld [vmem:[%s1035 + $0x4] sm:$0x1]
      %v1250 = vld [vmem:[%s1037 + $0x4] sm:$0xff]
      %v1251 = vld [vmem:[%s1037 + $0xc] sm:$0xff]
      %v1252 = vld [vmem:[%s1037 + $0x1c] sm:$0xff]
      %v1253 = vld [vmem:[%s1037 + $0x24] sm:$0xff]
      %v1254 = vld [vmem:[%s1037 + $0x34] sm:$0xff]
      %v1255 = vld [vmem:[%s1037 + $0x3c] sm:$0xff]
      %v1256 = vld [vmem:[%s1037 + $0x4c] sm:$0xff]
      %v1257 = vld [vmem:[%s1037 + $0x54] sm:$0xff]
      %v1258 = vld [vmem:[%s1037 + $0x64] sm:$0xff]
      %v1259 = vld [vmem:[%s1037 + $0x6c] sm:$0xff]
      %v1260 = vld [vmem:[%s1037 + $0x7c] sm:$0xff]
      %v1261 = vld [vmem:[%s1037 + $0x84] sm:$0xff]
      %v1262 = vld [vmem:[%s1037 + $0x94] sm:$0xff]
      %v1263 = vld [vmem:[%s1037 + $0x9c] sm:$0xff]
      %v1264 = vld [vmem:[%s1037 + $0xac] sm:$0xff]
      %v1265 = vld [vmem:[%s1037 + $0xb4] sm:$0xff]
      %v1266 = vlaneseq
      %v1267 = vshrl.u32 %v1266, 7
      %v1268 = vsub.s32 0, %v1267
      %v1269 = vrot.slane %v1249, %v1268
      %v1270 = vmul.f32 %v1250, %v1269
      %v1271 = vmul.f32 %v1251, %v1269
      %v1272 = vmul.f32 %v1252, %v1269
      %v1273 = vmul.f32 %v1253, %v1269
      %v1274 = vmul.f32 %v1254, %v1269
      %v1275 = vmul.f32 %v1255, %v1269
      %v1276 = vmul.f32 %v1256, %v1269
      %v1277 = vmul.f32 %v1257, %v1269
      %v1278 = vmul.f32 %v1258, %v1269
      %v1279 = vmul.f32 %v1259, %v1269
      %v1280 = vmul.f32 %v1260, %v1269
      %v1281 = vmul.f32 %v1261, %v1269
      %v1282 = vmul.f32 %v1262, %v1269
      %v1283 = vmul.f32 %v1263, %v1269
      %v1284 = vmul.f32 %v1264, %v1269
      %v1285 = vmul.f32 %v1265, %v1269
      %v1286 = vadd.f32 %v1233, %v1270
      %v1287 = vadd.f32 %v1234, %v1271
      %v1288 = vadd.f32 %v1235, %v1272
      %v1289 = vadd.f32 %v1236, %v1273
      %v1290 = vadd.f32 %v1237, %v1274
      %v1291 = vadd.f32 %v1238, %v1275
      %v1292 = vadd.f32 %v1239, %v1276
      %v1293 = vadd.f32 %v1240, %v1277
      %v1294 = vadd.f32 %v1241, %v1278
      %v1295 = vadd.f32 %v1242, %v1279
      %v1296 = vadd.f32 %v1243, %v1280
      %v1297 = vadd.f32 %v1244, %v1281
      %v1298 = vadd.f32 %v1245, %v1282
      %v1299 = vadd.f32 %v1246, %v1283
      %v1300 = vadd.f32 %v1247, %v1284
      %v1301 = vadd.f32 %v1248, %v1285
      %v1302 = vld [vmem:[%s1035 + $0x5] sm:$0x1]
      %v1303 = vld [vmem:[%s1037 + $0x5] sm:$0xff]
      %v1304 = vld [vmem:[%s1037 + $0xd] sm:$0xff]
      %v1305 = vld [vmem:[%s1037 + $0x1d] sm:$0xff]
      %v1306 = vld [vmem:[%s1037 + $0x25] sm:$0xff]
      %v1307 = vld [vmem:[%s1037 + $0x35] sm:$0xff]
      %v1308 = vld [vmem:[%s1037 + $0x3d] sm:$0xff]
      %v1309 = vld [vmem:[%s1037 + $0x4d] sm:$0xff]
      %v1310 = vld [vmem:[%s1037 + $0x55] sm:$0xff]
      %v1311 = vld [vmem:[%s1037 + $0x65] sm:$0xff]
      %v1312 = vld [vmem:[%s1037 + $0x6d] sm:$0xff]
      %v1313 = vld [vmem:[%s1037 + $0x7d] sm:$0xff]
      %v1314 = vld [vmem:[%s1037 + $0x85] sm:$0xff]
      %v1315 = vld [vmem:[%s1037 + $0x95] sm:$0xff]
      %v1316 = vld [vmem:[%s1037 + $0x9d] sm:$0xff]
      %v1317 = vld [vmem:[%s1037 + $0xad] sm:$0xff]
      %v1318 = vld [vmem:[%s1037 + $0xb5] sm:$0xff]
      %v1319 = vlaneseq
      %v1320 = vshrl.u32 %v1319, 7
      %v1321 = vsub.s32 0, %v1320
      %v1322 = vrot.slane %v1302, %v1321
      %v1323 = vmul.f32 %v1303, %v1322
      %v1324 = vmul.f32 %v1304, %v1322
      %v1325 = vmul.f32 %v1305, %v1322
      %v1326 = vmul.f32 %v1306, %v1322
      %v1327 = vmul.f32 %v1307, %v1322
      %v1328 = vmul.f32 %v1308, %v1322
      %v1329 = vmul.f32 %v1309, %v1322
      %v1330 = vmul.f32 %v1310, %v1322
      %v1331 = vmul.f32 %v1311, %v1322
      %v1332 = vmul.f32 %v1312, %v1322
      %v1333 = vmul.f32 %v1313, %v1322
      %v1334 = vmul.f32 %v1314, %v1322
      %v1335 = vmul.f32 %v1315, %v1322
      %v1336 = vmul.f32 %v1316, %v1322
      %v1337 = vmul.f32 %v1317, %v1322
      %v1338 = vmul.f32 %v1318, %v1322
      %v1339 = vadd.f32 %v1286, %v1323
      %v1340 = vadd.f32 %v1287, %v1324
      %v1341 = vadd.f32 %v1288, %v1325
      %v1342 = vadd.f32 %v1289, %v1326
      %v1343 = vadd.f32 %v1290, %v1327
      %v1344 = vadd.f32 %v1291, %v1328
      %v1345 = vadd.f32 %v1292, %v1329
      %v1346 = vadd.f32 %v1293, %v1330
      %v1347 = vadd.f32 %v1294, %v1331
      %v1348 = vadd.f32 %v1295, %v1332
      %v1349 = vadd.f32 %v1296, %v1333
      %v1350 = vadd.f32 %v1297, %v1334
      %v1351 = vadd.f32 %v1298, %v1335
      %v1352 = vadd.f32 %v1299, %v1336
      %v1353 = vadd.f32 %v1300, %v1337
      %v1354 = vadd.f32 %v1301, %v1338
      %v1355 = vld [vmem:[%s1035 + $0x6] sm:$0x1]
      %v1356 = vld [vmem:[%s1037 + $0x6] sm:$0xff]
      %v1357 = vld [vmem:[%s1037 + $0xe] sm:$0xff]
      %v1358 = vld [vmem:[%s1037 + $0x1e] sm:$0xff]
      %v1359 = vld [vmem:[%s1037 + $0x26] sm:$0xff]
      %v1360 = vld [vmem:[%s1037 + $0x36] sm:$0xff]
      %v1361 = vld [vmem:[%s1037 + $0x3e] sm:$0xff]
      %v1362 = vld [vmem:[%s1037 + $0x4e] sm:$0xff]
      %v1363 = vld [vmem:[%s1037 + $0x56] sm:$0xff]
      %v1364 = vld [vmem:[%s1037 + $0x66] sm:$0xff]
      %v1365 = vld [vmem:[%s1037 + $0x6e] sm:$0xff]
      %v1366 = vld [vmem:[%s1037 + $0x7e] sm:$0xff]
      %v1367 = vld [vmem:[%s1037 + $0x86] sm:$0xff]
      %v1368 = vld [vmem:[%s1037 + $0x96] sm:$0xff]
      %v1369 = vld [vmem:[%s1037 + $0x9e] sm:$0xff]
      %v1370 = vld [vmem:[%s1037 + $0xae] sm:$0xff]
      %v1371 = vld [vmem:[%s1037 + $0xb6] sm:$0xff]
      %v1372 = vlaneseq
      %v1373 = vshrl.u32 %v1372, 7
      %v1374 = vsub.s32 0, %v1373
      %v1375 = vrot.slane %v1355, %v1374
      %v1376 = vmul.f32 %v1356, %v1375
      %v1377 = vmul.f32 %v1357, %v1375
      %v1378 = vmul.f32 %v1358, %v1375
      %v1379 = vmul.f32 %v1359, %v1375
      %v1380 = vmul.f32 %v1360, %v1375
      %v1381 = vmul.f32 %v1361, %v1375
      %v1382 = vmul.f32 %v1362, %v1375
      %v1383 = vmul.f32 %v1363, %v1375
      %v1384 = vmul.f32 %v1364, %v1375
      %v1385 = vmul.f32 %v1365, %v1375
      %v1386 = vmul.f32 %v1366, %v1375
      %v1387 = vmul.f32 %v1367, %v1375
      %v1388 = vmul.f32 %v1368, %v1375
      %v1389 = vmul.f32 %v1369, %v1375
      %v1390 = vmul.f32 %v1370, %v1375
      %v1391 = vmul.f32 %v1371, %v1375
      %v1392 = vadd.f32 %v1339, %v1376
      %v1393 = vadd.f32 %v1340, %v1377
      %v1394 = vadd.f32 %v1341, %v1378
      %v1395 = vadd.f32 %v1342, %v1379
      %v1396 = vadd.f32 %v1343, %v1380
      %v1397 = vadd.f32 %v1344, %v1381
      %v1398 = vadd.f32 %v1345, %v1382
      %v1399 = vadd.f32 %v1346, %v1383
      %v1400 = vadd.f32 %v1347, %v1384
      %v1401 = vadd.f32 %v1348, %v1385
      %v1402 = vadd.f32 %v1349, %v1386
      %v1403 = vadd.f32 %v1350, %v1387
      %v1404 = vadd.f32 %v1351, %v1388
      %v1405 = vadd.f32 %v1352, %v1389
      %v1406 = vadd.f32 %v1353, %v1390
      %v1407 = vadd.f32 %v1354, %v1391
      %v1408 = vld [vmem:[%s1035 + $0x7] sm:$0x1]
      %v1409 = vld [vmem:[%s1037 + $0x7] sm:$0xff]
      %v1410 = vld [vmem:[%s1037 + $0xf] sm:$0xff]
      %v1411 = vld [vmem:[%s1037 + $0x1f] sm:$0xff]
      %v1412 = vld [vmem:[%s1037 + $0x27] sm:$0xff]
      %v1413 = vld [vmem:[%s1037 + $0x37] sm:$0xff]
      %v1414 = vld [vmem:[%s1037 + $0x3f] sm:$0xff]
      %v1415 = vld [vmem:[%s1037 + $0x4f] sm:$0xff]
      %v1416 = vld [vmem:[%s1037 + $0x57] sm:$0xff]
      %v1417 = vld [vmem:[%s1037 + $0x67] sm:$0xff]
      %v1418 = vld [vmem:[%s1037 + $0x6f] sm:$0xff]
      %v1419 = vld [vmem:[%s1037 + $0x7f] sm:$0xff]
      %v1420 = vld [vmem:[%s1037 + $0x87] sm:$0xff]
      %v1421 = vld [vmem:[%s1037 + $0x97] sm:$0xff]
      %v1422 = vld [vmem:[%s1037 + $0x9f] sm:$0xff]
      %v1423 = vld [vmem:[%s1037 + $0xaf] sm:$0xff]
      %v1424 = vld [vmem:[%s1037 + $0xb7] sm:$0xff]
      %v1425 = vlaneseq
      %v1426 = vshrl.u32 %v1425, 7
      %v1427 = vsub.s32 0, %v1426
      %v1428 = vrot.slane %v1408, %v1427
      %v1429 = vmul.f32 %v1409, %v1428
      %v1430 = vmul.f32 %v1410, %v1428
      %v1431 = vmul.f32 %v1411, %v1428
      %v1432 = vmul.f32 %v1412, %v1428
      %v1433 = vmul.f32 %v1413, %v1428
      %v1434 = vmul.f32 %v1414, %v1428
      %v1435 = vmul.f32 %v1415, %v1428
      %v1436 = vmul.f32 %v1416, %v1428
      %v1437 = vmul.f32 %v1417, %v1428
      %v1438 = vmul.f32 %v1418, %v1428
      %v1439 = vmul.f32 %v1419, %v1428
      %v1440 = vmul.f32 %v1420, %v1428
      %v1441 = vmul.f32 %v1421, %v1428
      %v1442 = vmul.f32 %v1422, %v1428
      %v1443 = vmul.f32 %v1423, %v1428
      %v1444 = vmul.f32 %v1424, %v1428
      %v1445 = vadd.f32 %v1392, %v1429
      %v1446 = vadd.f32 %v1393, %v1430
      %v1447 = vadd.f32 %v1394, %v1431
      %v1448 = vadd.f32 %v1395, %v1432
      %v1449 = vadd.f32 %v1396, %v1433
      %v1450 = vadd.f32 %v1397, %v1434
      %v1451 = vadd.f32 %v1398, %v1435
      %v1452 = vadd.f32 %v1399, %v1436
      %v1453 = vadd.f32 %v1400, %v1437
      %v1454 = vadd.f32 %v1401, %v1438
      %v1455 = vadd.f32 %v1402, %v1439
      %v1456 = vadd.f32 %v1403, %v1440
      %v1457 = vadd.f32 %v1404, %v1441
      %v1458 = vadd.f32 %v1405, %v1442
      %v1459 = vadd.f32 %v1406, %v1443
      %v1460 = vadd.f32 %v1407, %v1444
      %v1461 = vld [vmem:[%s1035 + $0x8] sm:$0x1]
      %v1462 = vld [vmem:[%s1037 + $0x10] sm:$0xff]
      %v1463 = vld [vmem:[%s1037 + $0x28] sm:$0xff]
      %v1464 = vld [vmem:[%s1037 + $0x40] sm:$0xff]
      %v1465 = vld [vmem:[%s1037 + $0x58] sm:$0xff]
      %v1466 = vld [vmem:[%s1037 + $0x70] sm:$0xff]
      %v1467 = vld [vmem:[%s1037 + $0x88] sm:$0xff]
      %v1468 = vld [vmem:[%s1037 + $0xa0] sm:$0xff]
      %v1469 = vld [vmem:[%s1037 + $0xb8] sm:$0xff]
      %v1470 = vlaneseq
      %v1471 = vshrl.u32 %v1470, 7
      %v1472 = vsub.s32 0, %v1471
      %v1473 = vrot.slane %v1461, %v1472
      %v1474 = vmul.f32 %v1039, %v1473
      %v1475 = vmul.f32 %v1462, %v1473
      %v1476 = vmul.f32 %v1041, %v1473
      %v1477 = vmul.f32 %v1463, %v1473
      %v1478 = vmul.f32 %v1043, %v1473
      %v1479 = vmul.f32 %v1464, %v1473
      %v1480 = vmul.f32 %v1045, %v1473
      %v1481 = vmul.f32 %v1465, %v1473
      %v1482 = vmul.f32 %v1047, %v1473
      %v1483 = vmul.f32 %v1466, %v1473
      %v1484 = vmul.f32 %v1049, %v1473
      %v1485 = vmul.f32 %v1467, %v1473
      %v1486 = vmul.f32 %v1051, %v1473
      %v1487 = vmul.f32 %v1468, %v1473
      %v1488 = vmul.f32 %v1053, %v1473
      %v1489 = vmul.f32 %v1469, %v1473
      %v1490 = vadd.f32 %v1445, %v1474
      %v1491 = vadd.f32 %v1446, %v1475
      %v1492 = vadd.f32 %v1447, %v1476
      %v1493 = vadd.f32 %v1448, %v1477
      %v1494 = vadd.f32 %v1449, %v1478
      %v1495 = vadd.f32 %v1450, %v1479
      %v1496 = vadd.f32 %v1451, %v1480
      %v1497 = vadd.f32 %v1452, %v1481
      %v1498 = vadd.f32 %v1453, %v1482
      %v1499 = vadd.f32 %v1454, %v1483
      %v1500 = vadd.f32 %v1455, %v1484
      %v1501 = vadd.f32 %v1456, %v1485
      %v1502 = vadd.f32 %v1457, %v1486
      %v1503 = vadd.f32 %v1458, %v1487
      %v1504 = vadd.f32 %v1459, %v1488
      %v1505 = vadd.f32 %v1460, %v1489
      %s1506 = scalar_lea.vmem %s2, 32
      %v1507 = vld [vmem:[%s1506] sm:$0x1]
      %s1508 = scalar_lea.vmem [#allocation2], 48
      %v1509 = vld [vmem:[%s1508] sm:$0xff]
      %v1510 = vld [vmem:[%s1508 + $0x8] sm:$0xff]
      %v1511 = vld [vmem:[%s1508 + $0x18] sm:$0xff]
      %v1512 = vld [vmem:[%s1508 + $0x20] sm:$0xff]
      %v1513 = vld [vmem:[%s1508 + $0x30] sm:$0xff]
      %v1514 = vld [vmem:[%s1508 + $0x38] sm:$0xff]
      %v1515 = vld [vmem:[%s1508 + $0x48] sm:$0xff]
      %v1516 = vld [vmem:[%s1508 + $0x50] sm:$0xff]
      %v1517 = vld [vmem:[%s1508 + $0x60] sm:$0xff]
      %v1518 = vld [vmem:[%s1508 + $0x68] sm:$0xff]
      %v1519 = vld [vmem:[%s1508 + $0x78] sm:$0xff]
      %v1520 = vld [vmem:[%s1508 + $0x80] sm:$0xff]
      %v1521 = vld [vmem:[%s1508 + $0x90] sm:$0xff]
      %v1522 = vld [vmem:[%s1508 + $0x98] sm:$0xff]
      %v1523 = vld [vmem:[%s1508 + $0xa8] sm:$0xff]
      %v1524 = vld [vmem:[%s1508 + $0xb0] sm:$0xff]
      %v1525 = vlaneseq
      %v1526 = vshrl.u32 %v1525, 7
      %v1527 = vsub.s32 0, %v1526
      %v1528 = vrot.slane %v1507, %v1527
      %v1529 = vmul.f32 %v1509, %v1528
      %v1530 = vmul.f32 %v1510, %v1528
      %v1531 = vmul.f32 %v1511, %v1528
      %v1532 = vmul.f32 %v1512, %v1528
      %v1533 = vmul.f32 %v1513, %v1528
      %v1534 = vmul.f32 %v1514, %v1528
      %v1535 = vmul.f32 %v1515, %v1528
      %v1536 = vmul.f32 %v1516, %v1528
      %v1537 = vmul.f32 %v1517, %v1528
      %v1538 = vmul.f32 %v1518, %v1528
      %v1539 = vmul.f32 %v1519, %v1528
      %v1540 = vmul.f32 %v1520, %v1528
      %v1541 = vmul.f32 %v1521, %v1528
      %v1542 = vmul.f32 %v1522, %v1528
      %v1543 = vmul.f32 %v1523, %v1528
      %v1544 = vmul.f32 %v1524, %v1528
      %v1545 = vadd.f32 %v1490, %v1529
      %v1546 = vadd.f32 %v1491, %v1530
      %v1547 = vadd.f32 %v1492, %v1531
      %v1548 = vadd.f32 %v1493, %v1532
      %v1549 = vadd.f32 %v1494, %v1533
      %v1550 = vadd.f32 %v1495, %v1534
      %v1551 = vadd.f32 %v1496, %v1535
      %v1552 = vadd.f32 %v1497, %v1536
      %v1553 = vadd.f32 %v1498, %v1537
      %v1554 = vadd.f32 %v1499, %v1538
      %v1555 = vadd.f32 %v1500, %v1539
      %v1556 = vadd.f32 %v1501, %v1540
      %v1557 = vadd.f32 %v1502, %v1541
      %v1558 = vadd.f32 %v1503, %v1542
      %v1559 = vadd.f32 %v1504, %v1543
      %v1560 = vadd.f32 %v1505, %v1544
      %v1561 = vld [vmem:[%s1506 + $0x1] sm:$0x1]
      %v1562 = vld [vmem:[%s1508 + $0x1] sm:$0xff]
      %v1563 = vld [vmem:[%s1508 + $0x9] sm:$0xff]
      %v1564 = vld [vmem:[%s1508 + $0x19] sm:$0xff]
      %v1565 = vld [vmem:[%s1508 + $0x21] sm:$0xff]
      %v1566 = vld [vmem:[%s1508 + $0x31] sm:$0xff]
      %v1567 = vld [vmem:[%s1508 + $0x39] sm:$0xff]
      %v1568 = vld [vmem:[%s1508 + $0x49] sm:$0xff]
      %v1569 = vld [vmem:[%s1508 + $0x51] sm:$0xff]
      %v1570 = vld [vmem:[%s1508 + $0x61] sm:$0xff]
      %v1571 = vld [vmem:[%s1508 + $0x69] sm:$0xff]
      %v1572 = vld [vmem:[%s1508 + $0x79] sm:$0xff]
      %v1573 = vld [vmem:[%s1508 + $0x81] sm:$0xff]
      %v1574 = vld [vmem:[%s1508 + $0x91] sm:$0xff]
      %v1575 = vld [vmem:[%s1508 + $0x99] sm:$0xff]
      %v1576 = vld [vmem:[%s1508 + $0xa9] sm:$0xff]
      %v1577 = vld [vmem:[%s1508 + $0xb1] sm:$0xff]
      %v1578 = vlaneseq
      %v1579 = vshrl.u32 %v1578, 7
      %v1580 = vsub.s32 0, %v1579
      %v1581 = vrot.slane %v1561, %v1580
      %v1582 = vmul.f32 %v1562, %v1581
      %v1583 = vmul.f32 %v1563, %v1581
      %v1584 = vmul.f32 %v1564, %v1581
      %v1585 = vmul.f32 %v1565, %v1581
      %v1586 = vmul.f32 %v1566, %v1581
      %v1587 = vmul.f32 %v1567, %v1581
      %v1588 = vmul.f32 %v1568, %v1581
      %v1589 = vmul.f32 %v1569, %v1581
      %v1590 = vmul.f32 %v1570, %v1581
      %v1591 = vmul.f32 %v1571, %v1581
      %v1592 = vmul.f32 %v1572, %v1581
      %v1593 = vmul.f32 %v1573, %v1581
      %v1594 = vmul.f32 %v1574, %v1581
      %v1595 = vmul.f32 %v1575, %v1581
      %v1596 = vmul.f32 %v1576, %v1581
      %v1597 = vmul.f32 %v1577, %v1581
      %v1598 = vadd.f32 %v1545, %v1582
      %v1599 = vadd.f32 %v1546, %v1583
      %v1600 = vadd.f32 %v1547, %v1584
      %v1601 = vadd.f32 %v1548, %v1585
      %v1602 = vadd.f32 %v1549, %v1586
      %v1603 = vadd.f32 %v1550, %v1587
      %v1604 = vadd.f32 %v1551, %v1588
      %v1605 = vadd.f32 %v1552, %v1589
      %v1606 = vadd.f32 %v1553, %v1590
      %v1607 = vadd.f32 %v1554, %v1591
      %v1608 = vadd.f32 %v1555, %v1592
      %v1609 = vadd.f32 %v1556, %v1593
      %v1610 = vadd.f32 %v1557, %v1594
      %v1611 = vadd.f32 %v1558, %v1595
      %v1612 = vadd.f32 %v1559, %v1596
      %v1613 = vadd.f32 %v1560, %v1597
      %v1614 = vld [vmem:[%s1506 + $0x2] sm:$0x1]
      %v1615 = vld [vmem:[%s1508 + $0x2] sm:$0xff]
      %v1616 = vld [vmem:[%s1508 + $0xa] sm:$0xff]
      %v1617 = vld [vmem:[%s1508 + $0x1a] sm:$0xff]
      %v1618 = vld [vmem:[%s1508 + $0x22] sm:$0xff]
      %v1619 = vld [vmem:[%s1508 + $0x32] sm:$0xff]
      %v1620 = vld [vmem:[%s1508 + $0x3a] sm:$0xff]
      %v1621 = vld [vmem:[%s1508 + $0x4a] sm:$0xff]
      %v1622 = vld [vmem:[%s1508 + $0x52] sm:$0xff]
      %v1623 = vld [vmem:[%s1508 + $0x62] sm:$0xff]
      %v1624 = vld [vmem:[%s1508 + $0x6a] sm:$0xff]
      %v1625 = vld [vmem:[%s1508 + $0x7a] sm:$0xff]
      %v1626 = vld [vmem:[%s1508 + $0x82] sm:$0xff]
      %v1627 = vld [vmem:[%s1508 + $0x92] sm:$0xff]
      %v1628 = vld [vmem:[%s1508 + $0x9a] sm:$0xff]
      %v1629 = vld [vmem:[%s1508 + $0xaa] sm:$0xff]
      %v1630 = vld [vmem:[%s1508 + $0xb2] sm:$0xff]
      %v1631 = vlaneseq
      %v1632 = vshrl.u32 %v1631, 7
      %v1633 = vsub.s32 0, %v1632
      %v1634 = vrot.slane %v1614, %v1633
      %v1635 = vmul.f32 %v1615, %v1634
      %v1636 = vmul.f32 %v1616, %v1634
      %v1637 = vmul.f32 %v1617, %v1634
      %v1638 = vmul.f32 %v1618, %v1634
      %v1639 = vmul.f32 %v1619, %v1634
      %v1640 = vmul.f32 %v1620, %v1634
      %v1641 = vmul.f32 %v1621, %v1634
      %v1642 = vmul.f32 %v1622, %v1634
      %v1643 = vmul.f32 %v1623, %v1634
      %v1644 = vmul.f32 %v1624, %v1634
      %v1645 = vmul.f32 %v1625, %v1634
      %v1646 = vmul.f32 %v1626, %v1634
      %v1647 = vmul.f32 %v1627, %v1634
      %v1648 = vmul.f32 %v1628, %v1634
      %v1649 = vmul.f32 %v1629, %v1634
      %v1650 = vmul.f32 %v1630, %v1634
      %v1651 = vadd.f32 %v1598, %v1635
      %v1652 = vadd.f32 %v1599, %v1636
      %v1653 = vadd.f32 %v1600, %v1637
      %v1654 = vadd.f32 %v1601, %v1638
      %v1655 = vadd.f32 %v1602, %v1639
      %v1656 = vadd.f32 %v1603, %v1640
      %v1657 = vadd.f32 %v1604, %v1641
      %v1658 = vadd.f32 %v1605, %v1642
      %v1659 = vadd.f32 %v1606, %v1643
      %v1660 = vadd.f32 %v1607, %v1644
      %v1661 = vadd.f32 %v1608, %v1645
      %v1662 = vadd.f32 %v1609, %v1646
      %v1663 = vadd.f32 %v1610, %v1647
      %v1664 = vadd.f32 %v1611, %v1648
      %v1665 = vadd.f32 %v1612, %v1649
      %v1666 = vadd.f32 %v1613, %v1650
      %v1667 = vld [vmem:[%s1506 + $0x3] sm:$0x1]
      %v1668 = vld [vmem:[%s1508 + $0x3] sm:$0xff]
      %v1669 = vld [vmem:[%s1508 + $0xb] sm:$0xff]
      %v1670 = vld [vmem:[%s1508 + $0x1b] sm:$0xff]
      %v1671 = vld [vmem:[%s1508 + $0x23] sm:$0xff]
      %v1672 = vld [vmem:[%s1508 + $0x33] sm:$0xff]
      %v1673 = vld [vmem:[%s1508 + $0x3b] sm:$0xff]
      %v1674 = vld [vmem:[%s1508 + $0x4b] sm:$0xff]
      %v1675 = vld [vmem:[%s1508 + $0x53] sm:$0xff]
      %v1676 = vld [vmem:[%s1508 + $0x63] sm:$0xff]
      %v1677 = vld [vmem:[%s1508 + $0x6b] sm:$0xff]
      %v1678 = vld [vmem:[%s1508 + $0x7b] sm:$0xff]
      %v1679 = vld [vmem:[%s1508 + $0x83] sm:$0xff]
      %v1680 = vld [vmem:[%s1508 + $0x93] sm:$0xff]
      %v1681 = vld [vmem:[%s1508 + $0x9b] sm:$0xff]
      %v1682 = vld [vmem:[%s1508 + $0xab] sm:$0xff]
      %v1683 = vld [vmem:[%s1508 + $0xb3] sm:$0xff]
      %v1684 = vlaneseq
      %v1685 = vshrl.u32 %v1684, 7
      %v1686 = vsub.s32 0, %v1685
      %v1687 = vrot.slane %v1667, %v1686
      %v1688 = vmul.f32 %v1668, %v1687
      %v1689 = vmul.f32 %v1669, %v1687
      %v1690 = vmul.f32 %v1670, %v1687
      %v1691 = vmul.f32 %v1671, %v1687
      %v1692 = vmul.f32 %v1672, %v1687
      %v1693 = vmul.f32 %v1673, %v1687
      %v1694 = vmul.f32 %v1674, %v1687
      %v1695 = vmul.f32 %v1675, %v1687
      %v1696 = vmul.f32 %v1676, %v1687
      %v1697 = vmul.f32 %v1677, %v1687
      %v1698 = vmul.f32 %v1678, %v1687
      %v1699 = vmul.f32 %v1679, %v1687
      %v1700 = vmul.f32 %v1680, %v1687
      %v1701 = vmul.f32 %v1681, %v1687
      %v1702 = vmul.f32 %v1682, %v1687
      %v1703 = vmul.f32 %v1683, %v1687
      %v1704 = vadd.f32 %v1651, %v1688
      %v1705 = vadd.f32 %v1652, %v1689
      %v1706 = vadd.f32 %v1653, %v1690
      %v1707 = vadd.f32 %v1654, %v1691
      %v1708 = vadd.f32 %v1655, %v1692
      %v1709 = vadd.f32 %v1656, %v1693
      %v1710 = vadd.f32 %v1657, %v1694
      %v1711 = vadd.f32 %v1658, %v1695
      %v1712 = vadd.f32 %v1659, %v1696
      %v1713 = vadd.f32 %v1660, %v1697
      %v1714 = vadd.f32 %v1661, %v1698
      %v1715 = vadd.f32 %v1662, %v1699
      %v1716 = vadd.f32 %v1663, %v1700
      %v1717 = vadd.f32 %v1664, %v1701
      %v1718 = vadd.f32 %v1665, %v1702
      %v1719 = vadd.f32 %v1666, %v1703
      %v1720 = vld [vmem:[%s1506 + $0x4] sm:$0x1]
      %v1721 = vld [vmem:[%s1508 + $0x4] sm:$0xff]
      %v1722 = vld [vmem:[%s1508 + $0xc] sm:$0xff]
      %v1723 = vld [vmem:[%s1508 + $0x1c] sm:$0xff]
      %v1724 = vld [vmem:[%s1508 + $0x24] sm:$0xff]
      %v1725 = vld [vmem:[%s1508 + $0x34] sm:$0xff]
      %v1726 = vld [vmem:[%s1508 + $0x3c] sm:$0xff]
      %v1727 = vld [vmem:[%s1508 + $0x4c] sm:$0xff]
      %v1728 = vld [vmem:[%s1508 + $0x54] sm:$0xff]
      %v1729 = vld [vmem:[%s1508 + $0x64] sm:$0xff]
      %v1730 = vld [vmem:[%s1508 + $0x6c] sm:$0xff]
      %v1731 = vld [vmem:[%s1508 + $0x7c] sm:$0xff]
      %v1732 = vld [vmem:[%s1508 + $0x84] sm:$0xff]
      %v1733 = vld [vmem:[%s1508 + $0x94] sm:$0xff]
      %v1734 = vld [vmem:[%s1508 + $0x9c] sm:$0xff]
      %v1735 = vld [vmem:[%s1508 + $0xac] sm:$0xff]
      %v1736 = vld [vmem:[%s1508 + $0xb4] sm:$0xff]
      %v1737 = vlaneseq
      %v1738 = vshrl.u32 %v1737, 7
      %v1739 = vsub.s32 0, %v1738
      %v1740 = vrot.slane %v1720, %v1739
      %v1741 = vmul.f32 %v1721, %v1740
      %v1742 = vmul.f32 %v1722, %v1740
      %v1743 = vmul.f32 %v1723, %v1740
      %v1744 = vmul.f32 %v1724, %v1740
      %v1745 = vmul.f32 %v1725, %v1740
      %v1746 = vmul.f32 %v1726, %v1740
      %v1747 = vmul.f32 %v1727, %v1740
      %v1748 = vmul.f32 %v1728, %v1740
      %v1749 = vmul.f32 %v1729, %v1740
      %v1750 = vmul.f32 %v1730, %v1740
      %v1751 = vmul.f32 %v1731, %v1740
      %v1752 = vmul.f32 %v1732, %v1740
      %v1753 = vmul.f32 %v1733, %v1740
      %v1754 = vmul.f32 %v1734, %v1740
      %v1755 = vmul.f32 %v1735, %v1740
      %v1756 = vmul.f32 %v1736, %v1740
      %v1757 = vadd.f32 %v1704, %v1741
      %v1758 = vadd.f32 %v1705, %v1742
      %v1759 = vadd.f32 %v1706, %v1743
      %v1760 = vadd.f32 %v1707, %v1744
      %v1761 = vadd.f32 %v1708, %v1745
      %v1762 = vadd.f32 %v1709, %v1746
      %v1763 = vadd.f32 %v1710, %v1747
      %v1764 = vadd.f32 %v1711, %v1748
      %v1765 = vadd.f32 %v1712, %v1749
      %v1766 = vadd.f32 %v1713, %v1750
      %v1767 = vadd.f32 %v1714, %v1751
      %v1768 = vadd.f32 %v1715, %v1752
      %v1769 = vadd.f32 %v1716, %v1753
      %v1770 = vadd.f32 %v1717, %v1754
      %v1771 = vadd.f32 %v1718, %v1755
      %v1772 = vadd.f32 %v1719, %v1756
      %v1773 = vld [vmem:[%s1506 + $0x5] sm:$0x1]
      %v1774 = vld [vmem:[%s1508 + $0x5] sm:$0xff]
      %v1775 = vld [vmem:[%s1508 + $0xd] sm:$0xff]
      %v1776 = vld [vmem:[%s1508 + $0x1d] sm:$0xff]
      %v1777 = vld [vmem:[%s1508 + $0x25] sm:$0xff]
      %v1778 = vld [vmem:[%s1508 + $0x35] sm:$0xff]
      %v1779 = vld [vmem:[%s1508 + $0x3d] sm:$0xff]
      %v1780 = vld [vmem:[%s1508 + $0x4d] sm:$0xff]
      %v1781 = vld [vmem:[%s1508 + $0x55] sm:$0xff]
      %v1782 = vld [vmem:[%s1508 + $0x65] sm:$0xff]
      %v1783 = vld [vmem:[%s1508 + $0x6d] sm:$0xff]
      %v1784 = vld [vmem:[%s1508 + $0x7d] sm:$0xff]
      %v1785 = vld [vmem:[%s1508 + $0x85] sm:$0xff]
      %v1786 = vld [vmem:[%s1508 + $0x95] sm:$0xff]
      %v1787 = vld [vmem:[%s1508 + $0x9d] sm:$0xff]
      %v1788 = vld [vmem:[%s1508 + $0xad] sm:$0xff]
      %v1789 = vld [vmem:[%s1508 + $0xb5] sm:$0xff]
      %v1790 = vlaneseq
      %v1791 = vshrl.u32 %v1790, 7
      %v1792 = vsub.s32 0, %v1791
      %v1793 = vrot.slane %v1773, %v1792
      %v1794 = vmul.f32 %v1774, %v1793
      %v1795 = vmul.f32 %v1775, %v1793
      %v1796 = vmul.f32 %v1776, %v1793
      %v1797 = vmul.f32 %v1777, %v1793
      %v1798 = vmul.f32 %v1778, %v1793
      %v1799 = vmul.f32 %v1779, %v1793
      %v1800 = vmul.f32 %v1780, %v1793
      %v1801 = vmul.f32 %v1781, %v1793
      %v1802 = vmul.f32 %v1782, %v1793
      %v1803 = vmul.f32 %v1783, %v1793
      %v1804 = vmul.f32 %v1784, %v1793
      %v1805 = vmul.f32 %v1785, %v1793
      %v1806 = vmul.f32 %v1786, %v1793
      %v1807 = vmul.f32 %v1787, %v1793
      %v1808 = vmul.f32 %v1788, %v1793
      %v1809 = vmul.f32 %v1789, %v1793
      %v1810 = vadd.f32 %v1757, %v1794
      %v1811 = vadd.f32 %v1758, %v1795
      %v1812 = vadd.f32 %v1759, %v1796
      %v1813 = vadd.f32 %v1760, %v1797
      %v1814 = vadd.f32 %v1761, %v1798
      %v1815 = vadd.f32 %v1762, %v1799
      %v1816 = vadd.f32 %v1763, %v1800
      %v1817 = vadd.f32 %v1764, %v1801
      %v1818 = vadd.f32 %v1765, %v1802
      %v1819 = vadd.f32 %v1766, %v1803
      %v1820 = vadd.f32 %v1767, %v1804
      %v1821 = vadd.f32 %v1768, %v1805
      %v1822 = vadd.f32 %v1769, %v1806
      %v1823 = vadd.f32 %v1770, %v1807
      %v1824 = vadd.f32 %v1771, %v1808
      %v1825 = vadd.f32 %v1772, %v1809
      %v1826 = vld [vmem:[%s1506 + $0x6] sm:$0x1]
      %v1827 = vld [vmem:[%s1508 + $0x6] sm:$0xff]
      %v1828 = vld [vmem:[%s1508 + $0xe] sm:$0xff]
      %v1829 = vld [vmem:[%s1508 + $0x1e] sm:$0xff]
      %v1830 = vld [vmem:[%s1508 + $0x26] sm:$0xff]
      %v1831 = vld [vmem:[%s1508 + $0x36] sm:$0xff]
      %v1832 = vld [vmem:[%s1508 + $0x3e] sm:$0xff]
      %v1833 = vld [vmem:[%s1508 + $0x4e] sm:$0xff]
      %v1834 = vld [vmem:[%s1508 + $0x56] sm:$0xff]
      %v1835 = vld [vmem:[%s1508 + $0x66] sm:$0xff]
      %v1836 = vld [vmem:[%s1508 + $0x6e] sm:$0xff]
      %v1837 = vld [vmem:[%s1508 + $0x7e] sm:$0xff]
      %v1838 = vld [vmem:[%s1508 + $0x86] sm:$0xff]
      %v1839 = vld [vmem:[%s1508 + $0x96] sm:$0xff]
      %v1840 = vld [vmem:[%s1508 + $0x9e] sm:$0xff]
      %v1841 = vld [vmem:[%s1508 + $0xae] sm:$0xff]
      %v1842 = vld [vmem:[%s1508 + $0xb6] sm:$0xff]
      %v1843 = vlaneseq
      %v1844 = vshrl.u32 %v1843, 7
      %v1845 = vsub.s32 0, %v1844
      %v1846 = vrot.slane %v1826, %v1845
      %v1847 = vmul.f32 %v1827, %v1846
      %v1848 = vmul.f32 %v1828, %v1846
      %v1849 = vmul.f32 %v1829, %v1846
      %v1850 = vmul.f32 %v1830, %v1846
      %v1851 = vmul.f32 %v1831, %v1846
      %v1852 = vmul.f32 %v1832, %v1846
      %v1853 = vmul.f32 %v1833, %v1846
      %v1854 = vmul.f32 %v1834, %v1846
      %v1855 = vmul.f32 %v1835, %v1846
      %v1856 = vmul.f32 %v1836, %v1846
      %v1857 = vmul.f32 %v1837, %v1846
      %v1858 = vmul.f32 %v1838, %v1846
      %v1859 = vmul.f32 %v1839, %v1846
      %v1860 = vmul.f32 %v1840, %v1846
      %v1861 = vmul.f32 %v1841, %v1846
      %v1862 = vmul.f32 %v1842, %v1846
      %v1863 = vadd.f32 %v1810, %v1847
      %v1864 = vadd.f32 %v1811, %v1848
      %v1865 = vadd.f32 %v1812, %v1849
      %v1866 = vadd.f32 %v1813, %v1850
      %v1867 = vadd.f32 %v1814, %v1851
      %v1868 = vadd.f32 %v1815, %v1852
      %v1869 = vadd.f32 %v1816, %v1853
      %v1870 = vadd.f32 %v1817, %v1854
      %v1871 = vadd.f32 %v1818, %v1855
      %v1872 = vadd.f32 %v1819, %v1856
      %v1873 = vadd.f32 %v1820, %v1857
      %v1874 = vadd.f32 %v1821, %v1858
      %v1875 = vadd.f32 %v1822, %v1859
      %v1876 = vadd.f32 %v1823, %v1860
      %v1877 = vadd.f32 %v1824, %v1861
      %v1878 = vadd.f32 %v1825, %v1862
      %v1879 = vld [vmem:[%s1506 + $0x7] sm:$0x1]
      %v1880 = vld [vmem:[%s1508 + $0x7] sm:$0xff]
      %v1881 = vld [vmem:[%s1508 + $0xf] sm:$0xff]
      %v1882 = vld [vmem:[%s1508 + $0x1f] sm:$0xff]
      %v1883 = vld [vmem:[%s1508 + $0x27] sm:$0xff]
      %v1884 = vld [vmem:[%s1508 + $0x37] sm:$0xff]
      %v1885 = vld [vmem:[%s1508 + $0x3f] sm:$0xff]
      %v1886 = vld [vmem:[%s1508 + $0x4f] sm:$0xff]
      %v1887 = vld [vmem:[%s1508 + $0x57] sm:$0xff]
      %v1888 = vld [vmem:[%s1508 + $0x67] sm:$0xff]
      %v1889 = vld [vmem:[%s1508 + $0x6f] sm:$0xff]
      %v1890 = vld [vmem:[%s1508 + $0x7f] sm:$0xff]
      %v1891 = vld [vmem:[%s1508 + $0x87] sm:$0xff]
      %v1892 = vld [vmem:[%s1508 + $0x97] sm:$0xff]
      %v1893 = vld [vmem:[%s1508 + $0x9f] sm:$0xff]
      %v1894 = vld [vmem:[%s1508 + $0xaf] sm:$0xff]
      %v1895 = vld [vmem:[%s1508 + $0xb7] sm:$0xff]
      %v1896 = vlaneseq
      %v1897 = vshrl.u32 %v1896, 7
      %v1898 = vsub.s32 0, %v1897
      %v1899 = vrot.slane %v1879, %v1898
      %v1900 = vmul.f32 %v1880, %v1899
      %v1901 = vmul.f32 %v1881, %v1899
      %v1902 = vmul.f32 %v1882, %v1899
      %v1903 = vmul.f32 %v1883, %v1899
      %v1904 = vmul.f32 %v1884, %v1899
      %v1905 = vmul.f32 %v1885, %v1899
      %v1906 = vmul.f32 %v1886, %v1899
      %v1907 = vmul.f32 %v1887, %v1899
      %v1908 = vmul.f32 %v1888, %v1899
      %v1909 = vmul.f32 %v1889, %v1899
      %v1910 = vmul.f32 %v1890, %v1899
      %v1911 = vmul.f32 %v1891, %v1899
      %v1912 = vmul.f32 %v1892, %v1899
      %v1913 = vmul.f32 %v1893, %v1899
      %v1914 = vmul.f32 %v1894, %v1899
      %v1915 = vmul.f32 %v1895, %v1899
      %v1916 = vadd.f32 %v1863, %v1900
      %v1917 = vadd.f32 %v1864, %v1901
      %v1918 = vadd.f32 %v1865, %v1902
      %v1919 = vadd.f32 %v1866, %v1903
      %v1920 = vadd.f32 %v1867, %v1904
      %v1921 = vadd.f32 %v1868, %v1905
      %v1922 = vadd.f32 %v1869, %v1906
      %v1923 = vadd.f32 %v1870, %v1907
      %v1924 = vadd.f32 %v1871, %v1908
      %v1925 = vadd.f32 %v1872, %v1909
      %v1926 = vadd.f32 %v1873, %v1910
      %v1927 = vadd.f32 %v1874, %v1911
      %v1928 = vadd.f32 %v1875, %v1912
      %v1929 = vadd.f32 %v1876, %v1913
      %v1930 = vadd.f32 %v1877, %v1914
      %v1931 = vadd.f32 %v1878, %v1915
      %v1932 = vld [vmem:[%s1506 + $0x8] sm:$0x1]
      %v1933 = vld [vmem:[%s1508 + $0x10] sm:$0xff]
      %v1934 = vld [vmem:[%s1508 + $0x28] sm:$0xff]
      %v1935 = vld [vmem:[%s1508 + $0x40] sm:$0xff]
      %v1936 = vld [vmem:[%s1508 + $0x58] sm:$0xff]
      %v1937 = vld [vmem:[%s1508 + $0x70] sm:$0xff]
      %v1938 = vld [vmem:[%s1508 + $0x88] sm:$0xff]
      %v1939 = vld [vmem:[%s1508 + $0xa0] sm:$0xff]
      %v1940 = vld [vmem:[%s1508 + $0xb8] sm:$0xff]
      %v1941 = vlaneseq
      %v1942 = vshrl.u32 %v1941, 7
      %v1943 = vsub.s32 0, %v1942
      %v1944 = vrot.slane %v1932, %v1943
      %v1945 = vmul.f32 %v1510, %v1944
      %v1946 = vmul.f32 %v1933, %v1944
      %v1947 = vmul.f32 %v1512, %v1944
      %v1948 = vmul.f32 %v1934, %v1944
      %v1949 = vmul.f32 %v1514, %v1944
      %v1950 = vmul.f32 %v1935, %v1944
      %v1951 = vmul.f32 %v1516, %v1944
      %v1952 = vmul.f32 %v1936, %v1944
      %v1953 = vmul.f32 %v1518, %v1944
      %v1954 = vmul.f32 %v1937, %v1944
      %v1955 = vmul.f32 %v1520, %v1944
      %v1956 = vmul.f32 %v1938, %v1944
      %v1957 = vmul.f32 %v1522, %v1944
      %v1958 = vmul.f32 %v1939, %v1944
      %v1959 = vmul.f32 %v1524, %v1944
      %v1960 = vmul.f32 %v1940, %v1944
      %v1961 = vadd.f32 %v1916, %v1945
      %v1962 = vadd.f32 %v1917, %v1946
      %v1963 = vadd.f32 %v1918, %v1947
      %v1964 = vadd.f32 %v1919, %v1948
      %v1965 = vadd.f32 %v1920, %v1949
      %v1966 = vadd.f32 %v1921, %v1950
      %v1967 = vadd.f32 %v1922, %v1951
      %v1968 = vadd.f32 %v1923, %v1952
      %v1969 = vadd.f32 %v1924, %v1953
      %v1970 = vadd.f32 %v1925, %v1954
      %v1971 = vadd.f32 %v1926, %v1955
      %v1972 = vadd.f32 %v1927, %v1956
      %v1973 = vadd.f32 %v1928, %v1957
      %v1974 = vadd.f32 %v1929, %v1958
      %v1975 = vadd.f32 %v1930, %v1959
      %v1976 = vadd.f32 %v1931, %v1960
      %s1977 = scalar_lea.vmem %s2, 48
      %v1978 = vld [vmem:[%s1977] sm:$0x1]
      %s1979 = scalar_lea.vmem [#allocation2], 72
      %v1980 = vld [vmem:[%s1979] sm:$0xff]
      %v1981 = vld [vmem:[%s1979 + $0x8] sm:$0xff]
      %v1982 = vld [vmem:[%s1979 + $0x18] sm:$0xff]
      %v1983 = vld [vmem:[%s1979 + $0x20] sm:$0xff]
      %v1984 = vld [vmem:[%s1979 + $0x30] sm:$0xff]
      %v1985 = vld [vmem:[%s1979 + $0x38] sm:$0xff]
      %v1986 = vld [vmem:[%s1979 + $0x48] sm:$0xff]
      %v1987 = vld [vmem:[%s1979 + $0x50] sm:$0xff]
      %v1988 = vld [vmem:[%s1979 + $0x60] sm:$0xff]
      %v1989 = vld [vmem:[%s1979 + $0x68] sm:$0xff]
      %v1990 = vld [vmem:[%s1979 + $0x78] sm:$0xff]
      %v1991 = vld [vmem:[%s1979 + $0x80] sm:$0xff]
      %v1992 = vld [vmem:[%s1979 + $0x90] sm:$0xff]
      %v1993 = vld [vmem:[%s1979 + $0x98] sm:$0xff]
      %v1994 = vld [vmem:[%s1979 + $0xa8] sm:$0xff]
      %v1995 = vld [vmem:[%s1979 + $0xb0] sm:$0xff]
      %v1996 = vlaneseq
      %v1997 = vshrl.u32 %v1996, 7
      %v1998 = vsub.s32 0, %v1997
      %v1999 = vrot.slane %v1978, %v1998
      %v2000 = vmul.f32 %v1980, %v1999
      %v2001 = vmul.f32 %v1981, %v1999
      %v2002 = vmul.f32 %v1982, %v1999
      %v2003 = vmul.f32 %v1983, %v1999
      %v2004 = vmul.f32 %v1984, %v1999
      %v2005 = vmul.f32 %v1985, %v1999
      %v2006 = vmul.f32 %v1986, %v1999
      %v2007 = vmul.f32 %v1987, %v1999
      %v2008 = vmul.f32 %v1988, %v1999
      %v2009 = vmul.f32 %v1989, %v1999
      %v2010 = vmul.f32 %v1990, %v1999
      %v2011 = vmul.f32 %v1991, %v1999
      %v2012 = vmul.f32 %v1992, %v1999
      %v2013 = vmul.f32 %v1993, %v1999
      %v2014 = vmul.f32 %v1994, %v1999
      %v2015 = vmul.f32 %v1995, %v1999
      %v2016 = vadd.f32 %v1961, %v2000
      %v2017 = vadd.f32 %v1962, %v2001
      %v2018 = vadd.f32 %v1963, %v2002
      %v2019 = vadd.f32 %v1964, %v2003
      %v2020 = vadd.f32 %v1965, %v2004
      %v2021 = vadd.f32 %v1966, %v2005
      %v2022 = vadd.f32 %v1967, %v2006
      %v2023 = vadd.f32 %v1968, %v2007
      %v2024 = vadd.f32 %v1969, %v2008
      %v2025 = vadd.f32 %v1970, %v2009
      %v2026 = vadd.f32 %v1971, %v2010
      %v2027 = vadd.f32 %v1972, %v2011
      %v2028 = vadd.f32 %v1973, %v2012
      %v2029 = vadd.f32 %v1974, %v2013
      %v2030 = vadd.f32 %v1975, %v2014
      %v2031 = vadd.f32 %v1976, %v2015
      %v2032 = vld [vmem:[%s1977 + $0x1] sm:$0x1]
      %v2033 = vld [vmem:[%s1979 + $0x1] sm:$0xff]
      %v2034 = vld [vmem:[%s1979 + $0x9] sm:$0xff]
      %v2035 = vld [vmem:[%s1979 + $0x19] sm:$0xff]
      %v2036 = vld [vmem:[%s1979 + $0x21] sm:$0xff]
      %v2037 = vld [vmem:[%s1979 + $0x31] sm:$0xff]
      %v2038 = vld [vmem:[%s1979 + $0x39] sm:$0xff]
      %v2039 = vld [vmem:[%s1979 + $0x49] sm:$0xff]
      %v2040 = vld [vmem:[%s1979 + $0x51] sm:$0xff]
      %v2041 = vld [vmem:[%s1979 + $0x61] sm:$0xff]
      %v2042 = vld [vmem:[%s1979 + $0x69] sm:$0xff]
      %v2043 = vld [vmem:[%s1979 + $0x79] sm:$0xff]
      %v2044 = vld [vmem:[%s1979 + $0x81] sm:$0xff]
      %v2045 = vld [vmem:[%s1979 + $0x91] sm:$0xff]
      %v2046 = vld [vmem:[%s1979 + $0x99] sm:$0xff]
      %v2047 = vld [vmem:[%s1979 + $0xa9] sm:$0xff]
      %v2048 = vld [vmem:[%s1979 + $0xb1] sm:$0xff]
      %v2049 = vlaneseq
      %v2050 = vshrl.u32 %v2049, 7
      %v2051 = vsub.s32 0, %v2050
      %v2052 = vrot.slane %v2032, %v2051
      %v2053 = vmul.f32 %v2033, %v2052
      %v2054 = vmul.f32 %v2034, %v2052
      %v2055 = vmul.f32 %v2035, %v2052
      %v2056 = vmul.f32 %v2036, %v2052
      %v2057 = vmul.f32 %v2037, %v2052
      %v2058 = vmul.f32 %v2038, %v2052
      %v2059 = vmul.f32 %v2039, %v2052
      %v2060 = vmul.f32 %v2040, %v2052
      %v2061 = vmul.f32 %v2041, %v2052
      %v2062 = vmul.f32 %v2042, %v2052
      %v2063 = vmul.f32 %v2043, %v2052
      %v2064 = vmul.f32 %v2044, %v2052
      %v2065 = vmul.f32 %v2045, %v2052
      %v2066 = vmul.f32 %v2046, %v2052
      %v2067 = vmul.f32 %v2047, %v2052
      %v2068 = vmul.f32 %v2048, %v2052
      %v2069 = vadd.f32 %v2016, %v2053
      %v2070 = vadd.f32 %v2017, %v2054
      %v2071 = vadd.f32 %v2018, %v2055
      %v2072 = vadd.f32 %v2019, %v2056
      %v2073 = vadd.f32 %v2020, %v2057
      %v2074 = vadd.f32 %v2021, %v2058
      %v2075 = vadd.f32 %v2022, %v2059
      %v2076 = vadd.f32 %v2023, %v2060
      %v2077 = vadd.f32 %v2024, %v2061
      %v2078 = vadd.f32 %v2025, %v2062
      %v2079 = vadd.f32 %v2026, %v2063
      %v2080 = vadd.f32 %v2027, %v2064
      %v2081 = vadd.f32 %v2028, %v2065
      %v2082 = vadd.f32 %v2029, %v2066
      %v2083 = vadd.f32 %v2030, %v2067
      %v2084 = vadd.f32 %v2031, %v2068
      %v2085 = vld [vmem:[%s1977 + $0x2] sm:$0x1]
      %v2086 = vld [vmem:[%s1979 + $0x2] sm:$0xff]
      %v2087 = vld [vmem:[%s1979 + $0xa] sm:$0xff]
      %v2088 = vld [vmem:[%s1979 + $0x1a] sm:$0xff]
      %v2089 = vld [vmem:[%s1979 + $0x22] sm:$0xff]
      %v2090 = vld [vmem:[%s1979 + $0x32] sm:$0xff]
      %v2091 = vld [vmem:[%s1979 + $0x3a] sm:$0xff]
      %v2092 = vld [vmem:[%s1979 + $0x4a] sm:$0xff]
      %v2093 = vld [vmem:[%s1979 + $0x52] sm:$0xff]
      %v2094 = vld [vmem:[%s1979 + $0x62] sm:$0xff]
      %v2095 = vld [vmem:[%s1979 + $0x6a] sm:$0xff]
      %v2096 = vld [vmem:[%s1979 + $0x7a] sm:$0xff]
      %v2097 = vld [vmem:[%s1979 + $0x82] sm:$0xff]
      %v2098 = vld [vmem:[%s1979 + $0x92] sm:$0xff]
      %v2099 = vld [vmem:[%s1979 + $0x9a] sm:$0xff]
      %v2100 = vld [vmem:[%s1979 + $0xaa] sm:$0xff]
      %v2101 = vld [vmem:[%s1979 + $0xb2] sm:$0xff]
      %v2102 = vlaneseq
      %v2103 = vshrl.u32 %v2102, 7
      %v2104 = vsub.s32 0, %v2103
      %v2105 = vrot.slane %v2085, %v2104
      %v2106 = vmul.f32 %v2086, %v2105
      %v2107 = vmul.f32 %v2087, %v2105
      %v2108 = vmul.f32 %v2088, %v2105
      %v2109 = vmul.f32 %v2089, %v2105
      %v2110 = vmul.f32 %v2090, %v2105
      %v2111 = vmul.f32 %v2091, %v2105
      %v2112 = vmul.f32 %v2092, %v2105
      %v2113 = vmul.f32 %v2093, %v2105
      %v2114 = vmul.f32 %v2094, %v2105
      %v2115 = vmul.f32 %v2095, %v2105
      %v2116 = vmul.f32 %v2096, %v2105
      %v2117 = vmul.f32 %v2097, %v2105
      %v2118 = vmul.f32 %v2098, %v2105
      %v2119 = vmul.f32 %v2099, %v2105
      %v2120 = vmul.f32 %v2100, %v2105
      %v2121 = vmul.f32 %v2101, %v2105
      %v2122 = vadd.f32 %v2069, %v2106
      %v2123 = vadd.f32 %v2070, %v2107
      %v2124 = vadd.f32 %v2071, %v2108
      %v2125 = vadd.f32 %v2072, %v2109
      %v2126 = vadd.f32 %v2073, %v2110
      %v2127 = vadd.f32 %v2074, %v2111
      %v2128 = vadd.f32 %v2075, %v2112
      %v2129 = vadd.f32 %v2076, %v2113
      %v2130 = vadd.f32 %v2077, %v2114
      %v2131 = vadd.f32 %v2078, %v2115
      %v2132 = vadd.f32 %v2079, %v2116
      %v2133 = vadd.f32 %v2080, %v2117
      %v2134 = vadd.f32 %v2081, %v2118
      %v2135 = vadd.f32 %v2082, %v2119
      %v2136 = vadd.f32 %v2083, %v2120
      %v2137 = vadd.f32 %v2084, %v2121
      %v2138 = vld [vmem:[%s1977 + $0x3] sm:$0x1]
      %v2139 = vld [vmem:[%s1979 + $0x3] sm:$0xff]
      %v2140 = vld [vmem:[%s1979 + $0xb] sm:$0xff]
      %v2141 = vld [vmem:[%s1979 + $0x1b] sm:$0xff]
      %v2142 = vld [vmem:[%s1979 + $0x23] sm:$0xff]
      %v2143 = vld [vmem:[%s1979 + $0x33] sm:$0xff]
      %v2144 = vld [vmem:[%s1979 + $0x3b] sm:$0xff]
      %v2145 = vld [vmem:[%s1979 + $0x4b] sm:$0xff]
      %v2146 = vld [vmem:[%s1979 + $0x53] sm:$0xff]
      %v2147 = vld [vmem:[%s1979 + $0x63] sm:$0xff]
      %v2148 = vld [vmem:[%s1979 + $0x6b] sm:$0xff]
      %v2149 = vld [vmem:[%s1979 + $0x7b] sm:$0xff]
      %v2150 = vld [vmem:[%s1979 + $0x83] sm:$0xff]
      %v2151 = vld [vmem:[%s1979 + $0x93] sm:$0xff]
      %v2152 = vld [vmem:[%s1979 + $0x9b] sm:$0xff]
      %v2153 = vld [vmem:[%s1979 + $0xab] sm:$0xff]
      %v2154 = vld [vmem:[%s1979 + $0xb3] sm:$0xff]
      %v2155 = vlaneseq
      %v2156 = vshrl.u32 %v2155, 7
      %v2157 = vsub.s32 0, %v2156
      %v2158 = vrot.slane %v2138, %v2157
      %v2159 = vmul.f32 %v2139, %v2158
      %v2160 = vmul.f32 %v2140, %v2158
      %v2161 = vmul.f32 %v2141, %v2158
      %v2162 = vmul.f32 %v2142, %v2158
      %v2163 = vmul.f32 %v2143, %v2158
      %v2164 = vmul.f32 %v2144, %v2158
      %v2165 = vmul.f32 %v2145, %v2158
      %v2166 = vmul.f32 %v2146, %v2158
      %v2167 = vmul.f32 %v2147, %v2158
      %v2168 = vmul.f32 %v2148, %v2158
      %v2169 = vmul.f32 %v2149, %v2158
      %v2170 = vmul.f32 %v2150, %v2158
      %v2171 = vmul.f32 %v2151, %v2158
      %v2172 = vmul.f32 %v2152, %v2158
      %v2173 = vmul.f32 %v2153, %v2158
      %v2174 = vmul.f32 %v2154, %v2158
      %v2175 = vadd.f32 %v2122, %v2159
      %v2176 = vadd.f32 %v2123, %v2160
      %v2177 = vadd.f32 %v2124, %v2161
      %v2178 = vadd.f32 %v2125, %v2162
      %v2179 = vadd.f32 %v2126, %v2163
      %v2180 = vadd.f32 %v2127, %v2164
      %v2181 = vadd.f32 %v2128, %v2165
      %v2182 = vadd.f32 %v2129, %v2166
      %v2183 = vadd.f32 %v2130, %v2167
      %v2184 = vadd.f32 %v2131, %v2168
      %v2185 = vadd.f32 %v2132, %v2169
      %v2186 = vadd.f32 %v2133, %v2170
      %v2187 = vadd.f32 %v2134, %v2171
      %v2188 = vadd.f32 %v2135, %v2172
      %v2189 = vadd.f32 %v2136, %v2173
      %v2190 = vadd.f32 %v2137, %v2174
      %v2191 = vld [vmem:[%s1977 + $0x4] sm:$0x1]
      %v2192 = vld [vmem:[%s1979 + $0x4] sm:$0xff]
      %v2193 = vld [vmem:[%s1979 + $0xc] sm:$0xff]
      %v2194 = vld [vmem:[%s1979 + $0x1c] sm:$0xff]
      %v2195 = vld [vmem:[%s1979 + $0x24] sm:$0xff]
      %v2196 = vld [vmem:[%s1979 + $0x34] sm:$0xff]
      %v2197 = vld [vmem:[%s1979 + $0x3c] sm:$0xff]
      %v2198 = vld [vmem:[%s1979 + $0x4c] sm:$0xff]
      %v2199 = vld [vmem:[%s1979 + $0x54] sm:$0xff]
      %v2200 = vld [vmem:[%s1979 + $0x64] sm:$0xff]
      %v2201 = vld [vmem:[%s1979 + $0x6c] sm:$0xff]
      %v2202 = vld [vmem:[%s1979 + $0x7c] sm:$0xff]
      %v2203 = vld [vmem:[%s1979 + $0x84] sm:$0xff]
      %v2204 = vld [vmem:[%s1979 + $0x94] sm:$0xff]
      %v2205 = vld [vmem:[%s1979 + $0x9c] sm:$0xff]
      %v2206 = vld [vmem:[%s1979 + $0xac] sm:$0xff]
      %v2207 = vld [vmem:[%s1979 + $0xb4] sm:$0xff]
      %v2208 = vlaneseq
      %v2209 = vshrl.u32 %v2208, 7
      %v2210 = vsub.s32 0, %v2209
      %v2211 = vrot.slane %v2191, %v2210
      %v2212 = vmul.f32 %v2192, %v2211
      %v2213 = vmul.f32 %v2193, %v2211
      %v2214 = vmul.f32 %v2194, %v2211
      %v2215 = vmul.f32 %v2195, %v2211
      %v2216 = vmul.f32 %v2196, %v2211
      %v2217 = vmul.f32 %v2197, %v2211
      %v2218 = vmul.f32 %v2198, %v2211
      %v2219 = vmul.f32 %v2199, %v2211
      %v2220 = vmul.f32 %v2200, %v2211
      %v2221 = vmul.f32 %v2201, %v2211
      %v2222 = vmul.f32 %v2202, %v2211
      %v2223 = vmul.f32 %v2203, %v2211
      %v2224 = vmul.f32 %v2204, %v2211
      %v2225 = vmul.f32 %v2205, %v2211
      %v2226 = vmul.f32 %v2206, %v2211
      %v2227 = vmul.f32 %v2207, %v2211
      %v2228 = vadd.f32 %v2175, %v2212
      %v2229 = vadd.f32 %v2176, %v2213
      %v2230 = vadd.f32 %v2177, %v2214
      %v2231 = vadd.f32 %v2178, %v2215
      %v2232 = vadd.f32 %v2179, %v2216
      %v2233 = vadd.f32 %v2180, %v2217
      %v2234 = vadd.f32 %v2181, %v2218
      %v2235 = vadd.f32 %v2182, %v2219
      %v2236 = vadd.f32 %v2183, %v2220
      %v2237 = vadd.f32 %v2184, %v2221
      %v2238 = vadd.f32 %v2185, %v2222
      %v2239 = vadd.f32 %v2186, %v2223
      %v2240 = vadd.f32 %v2187, %v2224
      %v2241 = vadd.f32 %v2188, %v2225
      %v2242 = vadd.f32 %v2189, %v2226
      %v2243 = vadd.f32 %v2190, %v2227
      %v2244 = vld [vmem:[%s1977 + $0x5] sm:$0x1]
      %v2245 = vld [vmem:[%s1979 + $0x5] sm:$0xff]
      %v2246 = vld [vmem:[%s1979 + $0xd] sm:$0xff]
      %v2247 = vld [vmem:[%s1979 + $0x1d] sm:$0xff]
      %v2248 = vld [vmem:[%s1979 + $0x25] sm:$0xff]
      %v2249 = vld [vmem:[%s1979 + $0x35] sm:$0xff]
      %v2250 = vld [vmem:[%s1979 + $0x3d] sm:$0xff]
      %v2251 = vld [vmem:[%s1979 + $0x4d] sm:$0xff]
      %v2252 = vld [vmem:[%s1979 + $0x55] sm:$0xff]
      %v2253 = vld [vmem:[%s1979 + $0x65] sm:$0xff]
      %v2254 = vld [vmem:[%s1979 + $0x6d] sm:$0xff]
      %v2255 = vld [vmem:[%s1979 + $0x7d] sm:$0xff]
      %v2256 = vld [vmem:[%s1979 + $0x85] sm:$0xff]
      %v2257 = vld [vmem:[%s1979 + $0x95] sm:$0xff]
      %v2258 = vld [vmem:[%s1979 + $0x9d] sm:$0xff]
      %v2259 = vld [vmem:[%s1979 + $0xad] sm:$0xff]
      %v2260 = vld [vmem:[%s1979 + $0xb5] sm:$0xff]
      %v2261 = vlaneseq
      %v2262 = vshrl.u32 %v2261, 7
      %v2263 = vsub.s32 0, %v2262
      %v2264 = vrot.slane %v2244, %v2263
      %v2265 = vmul.f32 %v2245, %v2264
      %v2266 = vmul.f32 %v2246, %v2264
      %v2267 = vmul.f32 %v2247, %v2264
      %v2268 = vmul.f32 %v2248, %v2264
      %v2269 = vmul.f32 %v2249, %v2264
      %v2270 = vmul.f32 %v2250, %v2264
      %v2271 = vmul.f32 %v2251, %v2264
      %v2272 = vmul.f32 %v2252, %v2264
      %v2273 = vmul.f32 %v2253, %v2264
      %v2274 = vmul.f32 %v2254, %v2264
      %v2275 = vmul.f32 %v2255, %v2264
      %v2276 = vmul.f32 %v2256, %v2264
      %v2277 = vmul.f32 %v2257, %v2264
      %v2278 = vmul.f32 %v2258, %v2264
      %v2279 = vmul.f32 %v2259, %v2264
      %v2280 = vmul.f32 %v2260, %v2264
      %v2281 = vadd.f32 %v2228, %v2265
      %v2282 = vadd.f32 %v2229, %v2266
      %v2283 = vadd.f32 %v2230, %v2267
      %v2284 = vadd.f32 %v2231, %v2268
      %v2285 = vadd.f32 %v2232, %v2269
      %v2286 = vadd.f32 %v2233, %v2270
      %v2287 = vadd.f32 %v2234, %v2271
      %v2288 = vadd.f32 %v2235, %v2272
      %v2289 = vadd.f32 %v2236, %v2273
      %v2290 = vadd.f32 %v2237, %v2274
      %v2291 = vadd.f32 %v2238, %v2275
      %v2292 = vadd.f32 %v2239, %v2276
      %v2293 = vadd.f32 %v2240, %v2277
      %v2294 = vadd.f32 %v2241, %v2278
      %v2295 = vadd.f32 %v2242, %v2279
      %v2296 = vadd.f32 %v2243, %v2280
      %v2297 = vld [vmem:[%s1977 + $0x6] sm:$0x1]
      %v2298 = vld [vmem:[%s1979 + $0x6] sm:$0xff]
      %v2299 = vld [vmem:[%s1979 + $0xe] sm:$0xff]
      %v2300 = vld [vmem:[%s1979 + $0x1e] sm:$0xff]
      %v2301 = vld [vmem:[%s1979 + $0x26] sm:$0xff]
      %v2302 = vld [vmem:[%s1979 + $0x36] sm:$0xff]
      %v2303 = vld [vmem:[%s1979 + $0x3e] sm:$0xff]
      %v2304 = vld [vmem:[%s1979 + $0x4e] sm:$0xff]
      %v2305 = vld [vmem:[%s1979 + $0x56] sm:$0xff]
      %v2306 = vld [vmem:[%s1979 + $0x66] sm:$0xff]
      %v2307 = vld [vmem:[%s1979 + $0x6e] sm:$0xff]
      %v2308 = vld [vmem:[%s1979 + $0x7e] sm:$0xff]
      %v2309 = vld [vmem:[%s1979 + $0x86] sm:$0xff]
      %v2310 = vld [vmem:[%s1979 + $0x96] sm:$0xff]
      %v2311 = vld [vmem:[%s1979 + $0x9e] sm:$0xff]
      %v2312 = vld [vmem:[%s1979 + $0xae] sm:$0xff]
      %v2313 = vld [vmem:[%s1979 + $0xb6] sm:$0xff]
      %v2314 = vlaneseq
      %v2315 = vshrl.u32 %v2314, 7
      %v2316 = vsub.s32 0, %v2315
      %v2317 = vrot.slane %v2297, %v2316
      %v2318 = vmul.f32 %v2298, %v2317
      %v2319 = vmul.f32 %v2299, %v2317
      %v2320 = vmul.f32 %v2300, %v2317
      %v2321 = vmul.f32 %v2301, %v2317
      %v2322 = vmul.f32 %v2302, %v2317
      %v2323 = vmul.f32 %v2303, %v2317
      %v2324 = vmul.f32 %v2304, %v2317
      %v2325 = vmul.f32 %v2305, %v2317
      %v2326 = vmul.f32 %v2306, %v2317
      %v2327 = vmul.f32 %v2307, %v2317
      %v2328 = vmul.f32 %v2308, %v2317
      %v2329 = vmul.f32 %v2309, %v2317
      %v2330 = vmul.f32 %v2310, %v2317
      %v2331 = vmul.f32 %v2311, %v2317
      %v2332 = vmul.f32 %v2312, %v2317
      %v2333 = vmul.f32 %v2313, %v2317
      %v2334 = vadd.f32 %v2281, %v2318
      %v2335 = vadd.f32 %v2282, %v2319
      %v2336 = vadd.f32 %v2283, %v2320
      %v2337 = vadd.f32 %v2284, %v2321
      %v2338 = vadd.f32 %v2285, %v2322
      %v2339 = vadd.f32 %v2286, %v2323
      %v2340 = vadd.f32 %v2287, %v2324
      %v2341 = vadd.f32 %v2288, %v2325
      %v2342 = vadd.f32 %v2289, %v2326
      %v2343 = vadd.f32 %v2290, %v2327
      %v2344 = vadd.f32 %v2291, %v2328
      %v2345 = vadd.f32 %v2292, %v2329
      %v2346 = vadd.f32 %v2293, %v2330
      %v2347 = vadd.f32 %v2294, %v2331
      %v2348 = vadd.f32 %v2295, %v2332
      %v2349 = vadd.f32 %v2296, %v2333
      %v2350 = vld [vmem:[%s1977 + $0x7] sm:$0x1]
      %v2351 = vld [vmem:[%s1979 + $0x7] sm:$0xff]
      %v2352 = vld [vmem:[%s1979 + $0xf] sm:$0xff]
      %v2353 = vld [vmem:[%s1979 + $0x1f] sm:$0xff]
      %v2354 = vld [vmem:[%s1979 + $0x27] sm:$0xff]
      %v2355 = vld [vmem:[%s1979 + $0x37] sm:$0xff]
      %v2356 = vld [vmem:[%s1979 + $0x3f] sm:$0xff]
      %v2357 = vld [vmem:[%s1979 + $0x4f] sm:$0xff]
      %v2358 = vld [vmem:[%s1979 + $0x57] sm:$0xff]
      %v2359 = vld [vmem:[%s1979 + $0x67] sm:$0xff]
      %v2360 = vld [vmem:[%s1979 + $0x6f] sm:$0xff]
      %v2361 = vld [vmem:[%s1979 + $0x7f] sm:$0xff]
      %v2362 = vld [vmem:[%s1979 + $0x87] sm:$0xff]
      %v2363 = vld [vmem:[%s1979 + $0x97] sm:$0xff]
      %v2364 = vld [vmem:[%s1979 + $0x9f] sm:$0xff]
      %v2365 = vld [vmem:[%s1979 + $0xaf] sm:$0xff]
      %v2366 = vld [vmem:[%s1979 + $0xb7] sm:$0xff]
      %v2367 = vlaneseq
      %v2368 = vshrl.u32 %v2367, 7
      %v2369 = vsub.s32 0, %v2368
      %v2370 = vrot.slane %v2350, %v2369
      %v2371 = vmul.f32 %v2351, %v2370
      %v2372 = vmul.f32 %v2352, %v2370
      %v2373 = vmul.f32 %v2353, %v2370
      %v2374 = vmul.f32 %v2354, %v2370
      %v2375 = vmul.f32 %v2355, %v2370
      %v2376 = vmul.f32 %v2356, %v2370
      %v2377 = vmul.f32 %v2357, %v2370
      %v2378 = vmul.f32 %v2358, %v2370
      %v2379 = vmul.f32 %v2359, %v2370
      %v2380 = vmul.f32 %v2360, %v2370
      %v2381 = vmul.f32 %v2361, %v2370
      %v2382 = vmul.f32 %v2362, %v2370
      %v2383 = vmul.f32 %v2363, %v2370
      %v2384 = vmul.f32 %v2364, %v2370
      %v2385 = vmul.f32 %v2365, %v2370
      %v2386 = vmul.f32 %v2366, %v2370
      %v2387 = vadd.f32 %v2334, %v2371
      %v2388 = vadd.f32 %v2335, %v2372
      %v2389 = vadd.f32 %v2336, %v2373
      %v2390 = vadd.f32 %v2337, %v2374
      %v2391 = vadd.f32 %v2338, %v2375
      %v2392 = vadd.f32 %v2339, %v2376
      %v2393 = vadd.f32 %v2340, %v2377
      %v2394 = vadd.f32 %v2341, %v2378
      %v2395 = vadd.f32 %v2342, %v2379
      %v2396 = vadd.f32 %v2343, %v2380
      %v2397 = vadd.f32 %v2344, %v2381
      %v2398 = vadd.f32 %v2345, %v2382
      %v2399 = vadd.f32 %v2346, %v2383
      %v2400 = vadd.f32 %v2347, %v2384
      %v2401 = vadd.f32 %v2348, %v2385
      %v2402 = vadd.f32 %v2349, %v2386
      %v2403 = vld [vmem:[%s1977 + $0x8] sm:$0x1]
      %v2404 = vld [vmem:[%s1979 + $0x10] sm:$0xff]
      %v2405 = vld [vmem:[%s1979 + $0x28] sm:$0xff]
      %v2406 = vld [vmem:[%s1979 + $0x40] sm:$0xff]
      %v2407 = vld [vmem:[%s1979 + $0x58] sm:$0xff]
      %v2408 = vld [vmem:[%s1979 + $0x70] sm:$0xff]
      %v2409 = vld [vmem:[%s1979 + $0x88] sm:$0xff]
      %v2410 = vld [vmem:[%s1979 + $0xa0] sm:$0xff]
      %v2411 = vld [vmem:[%s1979 + $0xb8] sm:$0xff]
      %v2412 = vlaneseq
      %v2413 = vshrl.u32 %v2412, 7
      %v2414 = vsub.s32 0, %v2413
      %v2415 = vrot.slane %v2403, %v2414
      %v2416 = vmul.f32 %v1981, %v2415
      %v2417 = vmul.f32 %v2404, %v2415
      %v2418 = vmul.f32 %v1983, %v2415
      %v2419 = vmul.f32 %v2405, %v2415
      %v2420 = vmul.f32 %v1985, %v2415
      %v2421 = vmul.f32 %v2406, %v2415
      %v2422 = vmul.f32 %v1987, %v2415
      %v2423 = vmul.f32 %v2407, %v2415
      %v2424 = vmul.f32 %v1989, %v2415
      %v2425 = vmul.f32 %v2408, %v2415
      %v2426 = vmul.f32 %v1991, %v2415
      %v2427 = vmul.f32 %v2409, %v2415
      %v2428 = vmul.f32 %v1993, %v2415
      %v2429 = vmul.f32 %v2410, %v2415
      %v2430 = vmul.f32 %v1995, %v2415
      %v2431 = vmul.f32 %v2411, %v2415
      %v2432 = vadd.f32 %v2387, %v2416
      %v2433 = vadd.f32 %v2388, %v2417
      %v2434 = vadd.f32 %v2389, %v2418
      %v2435 = vadd.f32 %v2390, %v2419
      %v2436 = vadd.f32 %v2391, %v2420
      %v2437 = vadd.f32 %v2392, %v2421
      %v2438 = vadd.f32 %v2393, %v2422
      %v2439 = vadd.f32 %v2394, %v2423
      %v2440 = vadd.f32 %v2395, %v2424
      %v2441 = vadd.f32 %v2396, %v2425
      %v2442 = vadd.f32 %v2397, %v2426
      %v2443 = vadd.f32 %v2398, %v2427
      %v2444 = vadd.f32 %v2399, %v2428
      %v2445 = vadd.f32 %v2400, %v2429
      %v2446 = vadd.f32 %v2401, %v2430
      %v2447 = vadd.f32 %v2402, %v2431
      %s2448 = scalar_lea.vmem %s2, 64
      %v2449 = vld [vmem:[%s2448] sm:$0x1]
      %v2450 = vld [vmem:[%s532] sm:$0xff]
      %v2451 = vld [vmem:[%s532 + $0x8] sm:$0xff]
      %v2452 = vld [vmem:[%s532 + $0x18] sm:$0xff]
      %v2453 = vld [vmem:[%s532 + $0x20] sm:$0xff]
      %v2454 = vld [vmem:[%s532 + $0x30] sm:$0xff]
      %v2455 = vld [vmem:[%s532 + $0x38] sm:$0xff]
      %v2456 = vld [vmem:[%s532 + $0x48] sm:$0xff]
      %v2457 = vld [vmem:[%s532 + $0x50] sm:$0xff]
      %v2458 = vld [vmem:[%s532 + $0x60] sm:$0xff]
      %v2459 = vld [vmem:[%s532 + $0x68] sm:$0xff]
      %v2460 = vld [vmem:[%s532 + $0x78] sm:$0xff]
      %v2461 = vld [vmem:[%s532 + $0x80] sm:$0xff]
      %v2462 = vld [vmem:[%s532 + $0x90] sm:$0xff]
      %v2463 = vld [vmem:[%s532 + $0x98] sm:$0xff]
      %v2464 = vld [vmem:[%s532 + $0xa8] sm:$0xff]
      %v2465 = vld [vmem:[%s532 + $0xb0] sm:$0xff]
      %v2466 = vlaneseq
      %v2467 = vshrl.u32 %v2466, 7
      %v2468 = vsub.s32 0, %v2467
      %v2469 = vrot.slane %v2449, %v2468
      %v2470 = vmul.f32 %v2450, %v2469
      %v2471 = vmul.f32 %v2451, %v2469
      %v2472 = vmul.f32 %v2452, %v2469
      %v2473 = vmul.f32 %v2453, %v2469
      %v2474 = vmul.f32 %v2454, %v2469
      %v2475 = vmul.f32 %v2455, %v2469
      %v2476 = vmul.f32 %v2456, %v2469
      %v2477 = vmul.f32 %v2457, %v2469
      %v2478 = vmul.f32 %v2458, %v2469
      %v2479 = vmul.f32 %v2459, %v2469
      %v2480 = vmul.f32 %v2460, %v2469
      %v2481 = vmul.f32 %v2461, %v2469
      %v2482 = vmul.f32 %v2462, %v2469
      %v2483 = vmul.f32 %v2463, %v2469
      %v2484 = vmul.f32 %v2464, %v2469
      %v2485 = vmul.f32 %v2465, %v2469
      %v2486 = vadd.f32 %v2432, %v2470
      %v2487 = vadd.f32 %v2433, %v2471
      %v2488 = vadd.f32 %v2434, %v2472
      %v2489 = vadd.f32 %v2435, %v2473
      %v2490 = vadd.f32 %v2436, %v2474
      %v2491 = vadd.f32 %v2437, %v2475
      %v2492 = vadd.f32 %v2438, %v2476
      %v2493 = vadd.f32 %v2439, %v2477
      %v2494 = vadd.f32 %v2440, %v2478
      %v2495 = vadd.f32 %v2441, %v2479
      %v2496 = vadd.f32 %v2442, %v2480
      %v2497 = vadd.f32 %v2443, %v2481
      %v2498 = vadd.f32 %v2444, %v2482
      %v2499 = vadd.f32 %v2445, %v2483
      %v2500 = vadd.f32 %v2446, %v2484
      %v2501 = vadd.f32 %v2447, %v2485
      %v2502 = vld [vmem:[%s2448 + $0x1] sm:$0x1]
      %v2503 = vld [vmem:[%s532 + $0x1] sm:$0xff]
      %v2504 = vld [vmem:[%s532 + $0x9] sm:$0xff]
      %v2505 = vld [vmem:[%s532 + $0x19] sm:$0xff]
      %v2506 = vld [vmem:[%s532 + $0x21] sm:$0xff]
      %v2507 = vld [vmem:[%s532 + $0x31] sm:$0xff]
      %v2508 = vld [vmem:[%s532 + $0x39] sm:$0xff]
      %v2509 = vld [vmem:[%s532 + $0x49] sm:$0xff]
      %v2510 = vld [vmem:[%s532 + $0x51] sm:$0xff]
      %v2511 = vld [vmem:[%s532 + $0x61] sm:$0xff]
      %v2512 = vld [vmem:[%s532 + $0x69] sm:$0xff]
      %v2513 = vld [vmem:[%s532 + $0x79] sm:$0xff]
      %v2514 = vld [vmem:[%s532 + $0x81] sm:$0xff]
      %v2515 = vld [vmem:[%s532 + $0x91] sm:$0xff]
      %v2516 = vld [vmem:[%s532 + $0x99] sm:$0xff]
      %v2517 = vld [vmem:[%s532 + $0xa9] sm:$0xff]
      %v2518 = vld [vmem:[%s532 + $0xb1] sm:$0xff]
      %v2519 = vlaneseq
      %v2520 = vshrl.u32 %v2519, 7
      %v2521 = vsub.s32 0, %v2520
      %v2522 = vrot.slane %v2502, %v2521
      %v2523 = vmul.f32 %v2503, %v2522
      %v2524 = vmul.f32 %v2504, %v2522
      %v2525 = vmul.f32 %v2505, %v2522
      %v2526 = vmul.f32 %v2506, %v2522
      %v2527 = vmul.f32 %v2507, %v2522
      %v2528 = vmul.f32 %v2508, %v2522
      %v2529 = vmul.f32 %v2509, %v2522
      %v2530 = vmul.f32 %v2510, %v2522
      %v2531 = vmul.f32 %v2511, %v2522
      %v2532 = vmul.f32 %v2512, %v2522
      %v2533 = vmul.f32 %v2513, %v2522
      %v2534 = vmul.f32 %v2514, %v2522
      %v2535 = vmul.f32 %v2515, %v2522
      %v2536 = vmul.f32 %v2516, %v2522
      %v2537 = vmul.f32 %v2517, %v2522
      %v2538 = vmul.f32 %v2518, %v2522
      %v2539 = vadd.f32 %v2486, %v2523
      %v2540 = vadd.f32 %v2487, %v2524
      %v2541 = vadd.f32 %v2488, %v2525
      %v2542 = vadd.f32 %v2489, %v2526
      %v2543 = vadd.f32 %v2490, %v2527
      %v2544 = vadd.f32 %v2491, %v2528
      %v2545 = vadd.f32 %v2492, %v2529
      %v2546 = vadd.f32 %v2493, %v2530
      %v2547 = vadd.f32 %v2494, %v2531
      %v2548 = vadd.f32 %v2495, %v2532
      %v2549 = vadd.f32 %v2496, %v2533
      %v2550 = vadd.f32 %v2497, %v2534
      %v2551 = vadd.f32 %v2498, %v2535
      %v2552 = vadd.f32 %v2499, %v2536
      %v2553 = vadd.f32 %v2500, %v2537
      %v2554 = vadd.f32 %v2501, %v2538
      %v2555 = vld [vmem:[%s2448 + $0x2] sm:$0x1]
      %v2556 = vld [vmem:[%s532 + $0x2] sm:$0xff]
      %v2557 = vld [vmem:[%s532 + $0xa] sm:$0xff]
      %v2558 = vld [vmem:[%s532 + $0x1a] sm:$0xff]
      %v2559 = vld [vmem:[%s532 + $0x22] sm:$0xff]
      %v2560 = vld [vmem:[%s532 + $0x32] sm:$0xff]
      %v2561 = vld [vmem:[%s532 + $0x3a] sm:$0xff]
      %v2562 = vld [vmem:[%s532 + $0x4a] sm:$0xff]
      %v2563 = vld [vmem:[%s532 + $0x52] sm:$0xff]
      %v2564 = vld [vmem:[%s532 + $0x62] sm:$0xff]
      %v2565 = vld [vmem:[%s532 + $0x6a] sm:$0xff]
      %v2566 = vld [vmem:[%s532 + $0x7a] sm:$0xff]
      %v2567 = vld [vmem:[%s532 + $0x82] sm:$0xff]
      %v2568 = vld [vmem:[%s532 + $0x92] sm:$0xff]
      %v2569 = vld [vmem:[%s532 + $0x9a] sm:$0xff]
      %v2570 = vld [vmem:[%s532 + $0xaa] sm:$0xff]
      %v2571 = vld [vmem:[%s532 + $0xb2] sm:$0xff]
      %v2572 = vlaneseq
      %v2573 = vshrl.u32 %v2572, 7
      %v2574 = vsub.s32 0, %v2573
      %v2575 = vrot.slane %v2555, %v2574
      %v2576 = vmul.f32 %v2556, %v2575
      %v2577 = vmul.f32 %v2557, %v2575
      %v2578 = vmul.f32 %v2558, %v2575
      %v2579 = vmul.f32 %v2559, %v2575
      %v2580 = vmul.f32 %v2560, %v2575
      %v2581 = vmul.f32 %v2561, %v2575
      %v2582 = vmul.f32 %v2562, %v2575
      %v2583 = vmul.f32 %v2563, %v2575
      %v2584 = vmul.f32 %v2564, %v2575
      %v2585 = vmul.f32 %v2565, %v2575
      %v2586 = vmul.f32 %v2566, %v2575
      %v2587 = vmul.f32 %v2567, %v2575
      %v2588 = vmul.f32 %v2568, %v2575
      %v2589 = vmul.f32 %v2569, %v2575
      %v2590 = vmul.f32 %v2570, %v2575
      %v2591 = vmul.f32 %v2571, %v2575
      %v2592 = vadd.f32 %v2539, %v2576
      %v2593 = vadd.f32 %v2540, %v2577
      %v2594 = vadd.f32 %v2541, %v2578
      %v2595 = vadd.f32 %v2542, %v2579
      %v2596 = vadd.f32 %v2543, %v2580
      %v2597 = vadd.f32 %v2544, %v2581
      %v2598 = vadd.f32 %v2545, %v2582
      %v2599 = vadd.f32 %v2546, %v2583
      %v2600 = vadd.f32 %v2547, %v2584
      %v2601 = vadd.f32 %v2548, %v2585
      %v2602 = vadd.f32 %v2549, %v2586
      %v2603 = vadd.f32 %v2550, %v2587
      %v2604 = vadd.f32 %v2551, %v2588
      %v2605 = vadd.f32 %v2552, %v2589
      %v2606 = vadd.f32 %v2553, %v2590
      %v2607 = vadd.f32 %v2554, %v2591
      %v2608 = vld [vmem:[%s2448 + $0x3] sm:$0x1]
      %v2609 = vld [vmem:[%s532 + $0x3] sm:$0xff]
      %v2610 = vld [vmem:[%s532 + $0xb] sm:$0xff]
      %v2611 = vld [vmem:[%s532 + $0x1b] sm:$0xff]
      %v2612 = vld [vmem:[%s532 + $0x23] sm:$0xff]
      %v2613 = vld [vmem:[%s532 + $0x33] sm:$0xff]
      %v2614 = vld [vmem:[%s532 + $0x3b] sm:$0xff]
      %v2615 = vld [vmem:[%s532 + $0x4b] sm:$0xff]
      %v2616 = vld [vmem:[%s532 + $0x53] sm:$0xff]
      %v2617 = vld [vmem:[%s532 + $0x63] sm:$0xff]
      %v2618 = vld [vmem:[%s532 + $0x6b] sm:$0xff]
      %v2619 = vld [vmem:[%s532 + $0x7b] sm:$0xff]
      %v2620 = vld [vmem:[%s532 + $0x83] sm:$0xff]
      %v2621 = vld [vmem:[%s532 + $0x93] sm:$0xff]
      %v2622 = vld [vmem:[%s532 + $0x9b] sm:$0xff]
      %v2623 = vld [vmem:[%s532 + $0xab] sm:$0xff]
      %v2624 = vld [vmem:[%s532 + $0xb3] sm:$0xff]
      %v2625 = vlaneseq
      %v2626 = vshrl.u32 %v2625, 7
      %v2627 = vsub.s32 0, %v2626
      %v2628 = vrot.slane %v2608, %v2627
      %v2629 = vmul.f32 %v2609, %v2628
      %v2630 = vmul.f32 %v2610, %v2628
      %v2631 = vmul.f32 %v2611, %v2628
      %v2632 = vmul.f32 %v2612, %v2628
      %v2633 = vmul.f32 %v2613, %v2628
      %v2634 = vmul.f32 %v2614, %v2628
      %v2635 = vmul.f32 %v2615, %v2628
      %v2636 = vmul.f32 %v2616, %v2628
      %v2637 = vmul.f32 %v2617, %v2628
      %v2638 = vmul.f32 %v2618, %v2628
      %v2639 = vmul.f32 %v2619, %v2628
      %v2640 = vmul.f32 %v2620, %v2628
      %v2641 = vmul.f32 %v2621, %v2628
      %v2642 = vmul.f32 %v2622, %v2628
      %v2643 = vmul.f32 %v2623, %v2628
      %v2644 = vmul.f32 %v2624, %v2628
      %v2645 = vadd.f32 %v2592, %v2629
      %v2646 = vadd.f32 %v2593, %v2630
      %v2647 = vadd.f32 %v2594, %v2631
      %v2648 = vadd.f32 %v2595, %v2632
      %v2649 = vadd.f32 %v2596, %v2633
      %v2650 = vadd.f32 %v2597, %v2634
      %v2651 = vadd.f32 %v2598, %v2635
      %v2652 = vadd.f32 %v2599, %v2636
      %v2653 = vadd.f32 %v2600, %v2637
      %v2654 = vadd.f32 %v2601, %v2638
      %v2655 = vadd.f32 %v2602, %v2639
      %v2656 = vadd.f32 %v2603, %v2640
      %v2657 = vadd.f32 %v2604, %v2641
      %v2658 = vadd.f32 %v2605, %v2642
      %v2659 = vadd.f32 %v2606, %v2643
      %v2660 = vadd.f32 %v2607, %v2644
      %v2661 = vld [vmem:[%s2448 + $0x4] sm:$0x1]
      %v2662 = vld [vmem:[%s532 + $0x4] sm:$0xff]
      %v2663 = vld [vmem:[%s532 + $0xc] sm:$0xff]
      %v2664 = vld [vmem:[%s532 + $0x1c] sm:$0xff]
      %v2665 = vld [vmem:[%s532 + $0x24] sm:$0xff]
      %v2666 = vld [vmem:[%s532 + $0x34] sm:$0xff]
      %v2667 = vld [vmem:[%s532 + $0x3c] sm:$0xff]
      %v2668 = vld [vmem:[%s532 + $0x4c] sm:$0xff]
      %v2669 = vld [vmem:[%s532 + $0x54] sm:$0xff]
      %v2670 = vld [vmem:[%s532 + $0x64] sm:$0xff]
      %v2671 = vld [vmem:[%s532 + $0x6c] sm:$0xff]
      %v2672 = vld [vmem:[%s532 + $0x7c] sm:$0xff]
      %v2673 = vld [vmem:[%s532 + $0x84] sm:$0xff]
      %v2674 = vld [vmem:[%s532 + $0x94] sm:$0xff]
      %v2675 = vld [vmem:[%s532 + $0x9c] sm:$0xff]
      %v2676 = vld [vmem:[%s532 + $0xac] sm:$0xff]
      %v2677 = vld [vmem:[%s532 + $0xb4] sm:$0xff]
      %v2678 = vlaneseq
      %v2679 = vshrl.u32 %v2678, 7
      %v2680 = vsub.s32 0, %v2679
      %v2681 = vrot.slane %v2661, %v2680
      %v2682 = vmul.f32 %v2662, %v2681
      %v2683 = vmul.f32 %v2663, %v2681
      %v2684 = vmul.f32 %v2664, %v2681
      %v2685 = vmul.f32 %v2665, %v2681
      %v2686 = vmul.f32 %v2666, %v2681
      %v2687 = vmul.f32 %v2667, %v2681
      %v2688 = vmul.f32 %v2668, %v2681
      %v2689 = vmul.f32 %v2669, %v2681
      %v2690 = vmul.f32 %v2670, %v2681
      %v2691 = vmul.f32 %v2671, %v2681
      %v2692 = vmul.f32 %v2672, %v2681
      %v2693 = vmul.f32 %v2673, %v2681
      %v2694 = vmul.f32 %v2674, %v2681
      %v2695 = vmul.f32 %v2675, %v2681
      %v2696 = vmul.f32 %v2676, %v2681
      %v2697 = vmul.f32 %v2677, %v2681
      %v2698 = vadd.f32 %v2645, %v2682
      %v2699 = vadd.f32 %v2646, %v2683
      %v2700 = vadd.f32 %v2647, %v2684
      %v2701 = vadd.f32 %v2648, %v2685
      %v2702 = vadd.f32 %v2649, %v2686
      %v2703 = vadd.f32 %v2650, %v2687
      %v2704 = vadd.f32 %v2651, %v2688
      %v2705 = vadd.f32 %v2652, %v2689
      %v2706 = vadd.f32 %v2653, %v2690
      %v2707 = vadd.f32 %v2654, %v2691
      %v2708 = vadd.f32 %v2655, %v2692
      %v2709 = vadd.f32 %v2656, %v2693
      %v2710 = vadd.f32 %v2657, %v2694
      %v2711 = vadd.f32 %v2658, %v2695
      %v2712 = vadd.f32 %v2659, %v2696
      %v2713 = vadd.f32 %v2660, %v2697
      %v2714 = vld [vmem:[%s2448 + $0x5] sm:$0x1]
      %v2715 = vld [vmem:[%s532 + $0x5] sm:$0xff]
      %v2716 = vld [vmem:[%s532 + $0xd] sm:$0xff]
      %v2717 = vld [vmem:[%s532 + $0x1d] sm:$0xff]
      %v2718 = vld [vmem:[%s532 + $0x25] sm:$0xff]
      %v2719 = vld [vmem:[%s532 + $0x35] sm:$0xff]
      %v2720 = vld [vmem:[%s532 + $0x3d] sm:$0xff]
      %v2721 = vld [vmem:[%s532 + $0x4d] sm:$0xff]
      %v2722 = vld [vmem:[%s532 + $0x55] sm:$0xff]
      %v2723 = vld [vmem:[%s532 + $0x65] sm:$0xff]
      %v2724 = vld [vmem:[%s532 + $0x6d] sm:$0xff]
      %v2725 = vld [vmem:[%s532 + $0x7d] sm:$0xff]
      %v2726 = vld [vmem:[%s532 + $0x85] sm:$0xff]
      %v2727 = vld [vmem:[%s532 + $0x95] sm:$0xff]
      %v2728 = vld [vmem:[%s532 + $0x9d] sm:$0xff]
      %v2729 = vld [vmem:[%s532 + $0xad] sm:$0xff]
      %v2730 = vld [vmem:[%s532 + $0xb5] sm:$0xff]
      %v2731 = vlaneseq
      %v2732 = vshrl.u32 %v2731, 7
      %v2733 = vsub.s32 0, %v2732
      %v2734 = vrot.slane %v2714, %v2733
      %v2735 = vmul.f32 %v2715, %v2734
      %v2736 = vmul.f32 %v2716, %v2734
      %v2737 = vmul.f32 %v2717, %v2734
      %v2738 = vmul.f32 %v2718, %v2734
      %v2739 = vmul.f32 %v2719, %v2734
      %v2740 = vmul.f32 %v2720, %v2734
      %v2741 = vmul.f32 %v2721, %v2734
      %v2742 = vmul.f32 %v2722, %v2734
      %v2743 = vmul.f32 %v2723, %v2734
      %v2744 = vmul.f32 %v2724, %v2734
      %v2745 = vmul.f32 %v2725, %v2734
      %v2746 = vmul.f32 %v2726, %v2734
      %v2747 = vmul.f32 %v2727, %v2734
      %v2748 = vmul.f32 %v2728, %v2734
      %v2749 = vmul.f32 %v2729, %v2734
      %v2750 = vmul.f32 %v2730, %v2734
      %v2751 = vadd.f32 %v2698, %v2735
      %v2752 = vadd.f32 %v2699, %v2736
      %v2753 = vadd.f32 %v2700, %v2737
      %v2754 = vadd.f32 %v2701, %v2738
      %v2755 = vadd.f32 %v2702, %v2739
      %v2756 = vadd.f32 %v2703, %v2740
      %v2757 = vadd.f32 %v2704, %v2741
      %v2758 = vadd.f32 %v2705, %v2742
      %v2759 = vadd.f32 %v2706, %v2743
      %v2760 = vadd.f32 %v2707, %v2744
      %v2761 = vadd.f32 %v2708, %v2745
      %v2762 = vadd.f32 %v2709, %v2746
      %v2763 = vadd.f32 %v2710, %v2747
      %v2764 = vadd.f32 %v2711, %v2748
      %v2765 = vadd.f32 %v2712, %v2749
      %v2766 = vadd.f32 %v2713, %v2750
      %v2767 = vld [vmem:[%s2448 + $0x6] sm:$0x1]
      %v2768 = vld [vmem:[%s532 + $0x6] sm:$0xff]
      %v2769 = vld [vmem:[%s532 + $0xe] sm:$0xff]
      %v2770 = vld [vmem:[%s532 + $0x1e] sm:$0xff]
      %v2771 = vld [vmem:[%s532 + $0x26] sm:$0xff]
      %v2772 = vld [vmem:[%s532 + $0x36] sm:$0xff]
      %v2773 = vld [vmem:[%s532 + $0x3e] sm:$0xff]
      %v2774 = vld [vmem:[%s532 + $0x4e] sm:$0xff]
      %v2775 = vld [vmem:[%s532 + $0x56] sm:$0xff]
      %v2776 = vld [vmem:[%s532 + $0x66] sm:$0xff]
      %v2777 = vld [vmem:[%s532 + $0x6e] sm:$0xff]
      %v2778 = vld [vmem:[%s532 + $0x7e] sm:$0xff]
      %v2779 = vld [vmem:[%s532 + $0x86] sm:$0xff]
      %v2780 = vld [vmem:[%s532 + $0x96] sm:$0xff]
      %v2781 = vld [vmem:[%s532 + $0x9e] sm:$0xff]
      %v2782 = vld [vmem:[%s532 + $0xae] sm:$0xff]
      %v2783 = vld [vmem:[%s532 + $0xb6] sm:$0xff]
      %v2784 = vlaneseq
      %v2785 = vshrl.u32 %v2784, 7
      %v2786 = vsub.s32 0, %v2785
      %v2787 = vrot.slane %v2767, %v2786
      %v2788 = vmul.f32 %v2768, %v2787
      %v2789 = vmul.f32 %v2769, %v2787
      %v2790 = vmul.f32 %v2770, %v2787
      %v2791 = vmul.f32 %v2771, %v2787
      %v2792 = vmul.f32 %v2772, %v2787
      %v2793 = vmul.f32 %v2773, %v2787
      %v2794 = vmul.f32 %v2774, %v2787
      %v2795 = vmul.f32 %v2775, %v2787
      %v2796 = vmul.f32 %v2776, %v2787
      %v2797 = vmul.f32 %v2777, %v2787
      %v2798 = vmul.f32 %v2778, %v2787
      %v2799 = vmul.f32 %v2779, %v2787
      %v2800 = vmul.f32 %v2780, %v2787
      %v2801 = vmul.f32 %v2781, %v2787
      %v2802 = vmul.f32 %v2782, %v2787
      %v2803 = vmul.f32 %v2783, %v2787
      %v2804 = vadd.f32 %v2751, %v2788
      %v2805 = vadd.f32 %v2752, %v2789
      %v2806 = vadd.f32 %v2753, %v2790
      %v2807 = vadd.f32 %v2754, %v2791
      %v2808 = vadd.f32 %v2755, %v2792
      %v2809 = vadd.f32 %v2756, %v2793
      %v2810 = vadd.f32 %v2757, %v2794
      %v2811 = vadd.f32 %v2758, %v2795
      %v2812 = vadd.f32 %v2759, %v2796
      %v2813 = vadd.f32 %v2760, %v2797
      %v2814 = vadd.f32 %v2761, %v2798
      %v2815 = vadd.f32 %v2762, %v2799
      %v2816 = vadd.f32 %v2763, %v2800
      %v2817 = vadd.f32 %v2764, %v2801
      %v2818 = vadd.f32 %v2765, %v2802
      %v2819 = vadd.f32 %v2766, %v2803
      %v2820 = vld [vmem:[%s2448 + $0x7] sm:$0x1]
      %v2821 = vld [vmem:[%s532 + $0x7] sm:$0xff]
      %v2822 = vld [vmem:[%s532 + $0xf] sm:$0xff]
      %v2823 = vld [vmem:[%s532 + $0x1f] sm:$0xff]
      %v2824 = vld [vmem:[%s532 + $0x27] sm:$0xff]
      %v2825 = vld [vmem:[%s532 + $0x37] sm:$0xff]
      %v2826 = vld [vmem:[%s532 + $0x3f] sm:$0xff]
      %v2827 = vld [vmem:[%s532 + $0x4f] sm:$0xff]
      %v2828 = vld [vmem:[%s532 + $0x57] sm:$0xff]
      %v2829 = vld [vmem:[%s532 + $0x67] sm:$0xff]
      %v2830 = vld [vmem:[%s532 + $0x6f] sm:$0xff]
      %v2831 = vld [vmem:[%s532 + $0x7f] sm:$0xff]
      %v2832 = vld [vmem:[%s532 + $0x87] sm:$0xff]
      %v2833 = vld [vmem:[%s532 + $0x97] sm:$0xff]
      %v2834 = vld [vmem:[%s532 + $0x9f] sm:$0xff]
      %v2835 = vld [vmem:[%s532 + $0xaf] sm:$0xff]
      %v2836 = vld [vmem:[%s532 + $0xb7] sm:$0xff]
      %v2837 = vlaneseq
      %v2838 = vshrl.u32 %v2837, 7
      %v2839 = vsub.s32 0, %v2838
      %v2840 = vrot.slane %v2820, %v2839
      %v2841 = vmul.f32 %v2821, %v2840
      %v2842 = vmul.f32 %v2822, %v2840
      %v2843 = vmul.f32 %v2823, %v2840
      %v2844 = vmul.f32 %v2824, %v2840
      %v2845 = vmul.f32 %v2825, %v2840
      %v2846 = vmul.f32 %v2826, %v2840
      %v2847 = vmul.f32 %v2827, %v2840
      %v2848 = vmul.f32 %v2828, %v2840
      %v2849 = vmul.f32 %v2829, %v2840
      %v2850 = vmul.f32 %v2830, %v2840
      %v2851 = vmul.f32 %v2831, %v2840
      %v2852 = vmul.f32 %v2832, %v2840
      %v2853 = vmul.f32 %v2833, %v2840
      %v2854 = vmul.f32 %v2834, %v2840
      %v2855 = vmul.f32 %v2835, %v2840
      %v2856 = vmul.f32 %v2836, %v2840
      %v2857 = vadd.f32 %v2804, %v2841
      %v2858 = vadd.f32 %v2805, %v2842
      %v2859 = vadd.f32 %v2806, %v2843
      %v2860 = vadd.f32 %v2807, %v2844
      %v2861 = vadd.f32 %v2808, %v2845
      %v2862 = vadd.f32 %v2809, %v2846
      %v2863 = vadd.f32 %v2810, %v2847
      %v2864 = vadd.f32 %v2811, %v2848
      %v2865 = vadd.f32 %v2812, %v2849
      %v2866 = vadd.f32 %v2813, %v2850
      %v2867 = vadd.f32 %v2814, %v2851
      %v2868 = vadd.f32 %v2815, %v2852
      %v2869 = vadd.f32 %v2816, %v2853
      %v2870 = vadd.f32 %v2817, %v2854
      %v2871 = vadd.f32 %v2818, %v2855
      %v2872 = vadd.f32 %v2819, %v2856
      %v2873 = vld [vmem:[%s2448 + $0x8] sm:$0x1]
      %v2874 = vld [vmem:[%s532 + $0x10] sm:$0xff]
      %v2875 = vld [vmem:[%s532 + $0x28] sm:$0xff]
      %v2876 = vld [vmem:[%s532 + $0x40] sm:$0xff]
      %v2877 = vld [vmem:[%s532 + $0x58] sm:$0xff]
      %v2878 = vld [vmem:[%s532 + $0x70] sm:$0xff]
      %v2879 = vld [vmem:[%s532 + $0x88] sm:$0xff]
      %v2880 = vld [vmem:[%s532 + $0xa0] sm:$0xff]
      %v2881 = vld [vmem:[%s532 + $0xb8] sm:$0xff]
      %v2882 = vlaneseq
      %v2883 = vshrl.u32 %v2882, 7
      %v2884 = vsub.s32 0, %v2883
      %v2885 = vrot.slane %v2873, %v2884
      %v2886 = vmul.f32 %v2451, %v2885
      %v2887 = vmul.f32 %v2874, %v2885
      %v2888 = vmul.f32 %v2453, %v2885
      %v2889 = vmul.f32 %v2875, %v2885
      %v2890 = vmul.f32 %v2455, %v2885
      %v2891 = vmul.f32 %v2876, %v2885
      %v2892 = vmul.f32 %v2457, %v2885
      %v2893 = vmul.f32 %v2877, %v2885
      %v2894 = vmul.f32 %v2459, %v2885
      %v2895 = vmul.f32 %v2878, %v2885
      %v2896 = vmul.f32 %v2461, %v2885
      %v2897 = vmul.f32 %v2879, %v2885
      %v2898 = vmul.f32 %v2463, %v2885
      %v2899 = vmul.f32 %v2880, %v2885
      %v2900 = vmul.f32 %v2465, %v2885
      %v2901 = vmul.f32 %v2881, %v2885
      %v2902 = vadd.f32 %v2857, %v2886
      %v2903 = vadd.f32 %v2858, %v2887
      %v2904 = vadd.f32 %v2859, %v2888
      %v2905 = vadd.f32 %v2860, %v2889
      %v2906 = vadd.f32 %v2861, %v2890
      %v2907 = vadd.f32 %v2862, %v2891
      %v2908 = vadd.f32 %v2863, %v2892
      %v2909 = vadd.f32 %v2864, %v2893
      %v2910 = vadd.f32 %v2865, %v2894
      %v2911 = vadd.f32 %v2866, %v2895
      %v2912 = vadd.f32 %v2867, %v2896
      %v2913 = vadd.f32 %v2868, %v2897
      %v2914 = vadd.f32 %v2869, %v2898
      %v2915 = vadd.f32 %v2870, %v2899
      %v2916 = vadd.f32 %v2871, %v2900
      %v2917 = vadd.f32 %v2872, %v2901
      %s2918 = scalar_lea.vmem %s2, 80
      %v2919 = vld [vmem:[%s2918] sm:$0x1]
      %s2920 = scalar_lea.vmem [#allocation2], 120
      %v2921 = vld [vmem:[%s2920] sm:$0xff]
      %v2922 = vld [vmem:[%s2920 + $0x8] sm:$0xff]
      %v2923 = vld [vmem:[%s2920 + $0x18] sm:$0xff]
      %v2924 = vld [vmem:[%s2920 + $0x20] sm:$0xff]
      %v2925 = vld [vmem:[%s2920 + $0x30] sm:$0xff]
      %v2926 = vld [vmem:[%s2920 + $0x38] sm:$0xff]
      %v2927 = vld [vmem:[%s2920 + $0x48] sm:$0xff]
      %v2928 = vld [vmem:[%s2920 + $0x50] sm:$0xff]
      %v2929 = vld [vmem:[%s2920 + $0x60] sm:$0xff]
      %v2930 = vld [vmem:[%s2920 + $0x68] sm:$0xff]
      %v2931 = vld [vmem:[%s2920 + $0x78] sm:$0xff]
      %v2932 = vld [vmem:[%s2920 + $0x80] sm:$0xff]
      %v2933 = vld [vmem:[%s2920 + $0x90] sm:$0xff]
      %v2934 = vld [vmem:[%s2920 + $0x98] sm:$0xff]
      %v2935 = vld [vmem:[%s2920 + $0xa8] sm:$0xff]
      %v2936 = vld [vmem:[%s2920 + $0xb0] sm:$0xff]
      %v2937 = vlaneseq
      %v2938 = vshrl.u32 %v2937, 7
      %v2939 = vsub.s32 0, %v2938
      %v2940 = vrot.slane %v2919, %v2939
      %v2941 = vmul.f32 %v2921, %v2940
      %v2942 = vmul.f32 %v2922, %v2940
      %v2943 = vmul.f32 %v2923, %v2940
      %v2944 = vmul.f32 %v2924, %v2940
      %v2945 = vmul.f32 %v2925, %v2940
      %v2946 = vmul.f32 %v2926, %v2940
      %v2947 = vmul.f32 %v2927, %v2940
      %v2948 = vmul.f32 %v2928, %v2940
      %v2949 = vmul.f32 %v2929, %v2940
      %v2950 = vmul.f32 %v2930, %v2940
      %v2951 = vmul.f32 %v2931, %v2940
      %v2952 = vmul.f32 %v2932, %v2940
      %v2953 = vmul.f32 %v2933, %v2940
      %v2954 = vmul.f32 %v2934, %v2940
      %v2955 = vmul.f32 %v2935, %v2940
      %v2956 = vmul.f32 %v2936, %v2940
      %v2957 = vadd.f32 %v2902, %v2941
      %v2958 = vadd.f32 %v2903, %v2942
      %v2959 = vadd.f32 %v2904, %v2943
      %v2960 = vadd.f32 %v2905, %v2944
      %v2961 = vadd.f32 %v2906, %v2945
      %v2962 = vadd.f32 %v2907, %v2946
      %v2963 = vadd.f32 %v2908, %v2947
      %v2964 = vadd.f32 %v2909, %v2948
      %v2965 = vadd.f32 %v2910, %v2949
      %v2966 = vadd.f32 %v2911, %v2950
      %v2967 = vadd.f32 %v2912, %v2951
      %v2968 = vadd.f32 %v2913, %v2952
      %v2969 = vadd.f32 %v2914, %v2953
      %v2970 = vadd.f32 %v2915, %v2954
      %v2971 = vadd.f32 %v2916, %v2955
      %v2972 = vadd.f32 %v2917, %v2956
      %v2973 = vld [vmem:[%s2918 + $0x1] sm:$0x1]
      %v2974 = vld [vmem:[%s2920 + $0x1] sm:$0xff]
      %v2975 = vld [vmem:[%s2920 + $0x9] sm:$0xff]
      %v2976 = vld [vmem:[%s2920 + $0x19] sm:$0xff]
      %v2977 = vld [vmem:[%s2920 + $0x21] sm:$0xff]
      %v2978 = vld [vmem:[%s2920 + $0x31] sm:$0xff]
      %v2979 = vld [vmem:[%s2920 + $0x39] sm:$0xff]
      %v2980 = vld [vmem:[%s2920 + $0x49] sm:$0xff]
      %v2981 = vld [vmem:[%s2920 + $0x51] sm:$0xff]
      %v2982 = vld [vmem:[%s2920 + $0x61] sm:$0xff]
      %v2983 = vld [vmem:[%s2920 + $0x69] sm:$0xff]
      %v2984 = vld [vmem:[%s2920 + $0x79] sm:$0xff]
      %v2985 = vld [vmem:[%s2920 + $0x81] sm:$0xff]
      %v2986 = vld [vmem:[%s2920 + $0x91] sm:$0xff]
      %v2987 = vld [vmem:[%s2920 + $0x99] sm:$0xff]
      %v2988 = vld [vmem:[%s2920 + $0xa9] sm:$0xff]
      %v2989 = vld [vmem:[%s2920 + $0xb1] sm:$0xff]
      %v2990 = vlaneseq
      %v2991 = vshrl.u32 %v2990, 7
      %v2992 = vsub.s32 0, %v2991
      %v2993 = vrot.slane %v2973, %v2992
      %v2994 = vmul.f32 %v2974, %v2993
      %v2995 = vmul.f32 %v2975, %v2993
      %v2996 = vmul.f32 %v2976, %v2993
      %v2997 = vmul.f32 %v2977, %v2993
      %v2998 = vmul.f32 %v2978, %v2993
      %v2999 = vmul.f32 %v2979, %v2993
      %v3000 = vmul.f32 %v2980, %v2993
      %v3001 = vmul.f32 %v2981, %v2993
      %v3002 = vmul.f32 %v2982, %v2993
      %v3003 = vmul.f32 %v2983, %v2993
      %v3004 = vmul.f32 %v2984, %v2993
      %v3005 = vmul.f32 %v2985, %v2993
      %v3006 = vmul.f32 %v2986, %v2993
      %v3007 = vmul.f32 %v2987, %v2993
      %v3008 = vmul.f32 %v2988, %v2993
      %v3009 = vmul.f32 %v2989, %v2993
      %v3010 = vadd.f32 %v2957, %v2994
      %v3011 = vadd.f32 %v2958, %v2995
      %v3012 = vadd.f32 %v2959, %v2996
      %v3013 = vadd.f32 %v2960, %v2997
      %v3014 = vadd.f32 %v2961, %v2998
      %v3015 = vadd.f32 %v2962, %v2999
      %v3016 = vadd.f32 %v2963, %v3000
      %v3017 = vadd.f32 %v2964, %v3001
      %v3018 = vadd.f32 %v2965, %v3002
      %v3019 = vadd.f32 %v2966, %v3003
      %v3020 = vadd.f32 %v2967, %v3004
      %v3021 = vadd.f32 %v2968, %v3005
      %v3022 = vadd.f32 %v2969, %v3006
      %v3023 = vadd.f32 %v2970, %v3007
      %v3024 = vadd.f32 %v2971, %v3008
      %v3025 = vadd.f32 %v2972, %v3009
      %v3026 = vld [vmem:[%s2918 + $0x2] sm:$0x1]
      %v3027 = vld [vmem:[%s2920 + $0x2] sm:$0xff]
      %v3028 = vld [vmem:[%s2920 + $0xa] sm:$0xff]
      %v3029 = vld [vmem:[%s2920 + $0x1a] sm:$0xff]
      %v3030 = vld [vmem:[%s2920 + $0x22] sm:$0xff]
      %v3031 = vld [vmem:[%s2920 + $0x32] sm:$0xff]
      %v3032 = vld [vmem:[%s2920 + $0x3a] sm:$0xff]
      %v3033 = vld [vmem:[%s2920 + $0x4a] sm:$0xff]
      %v3034 = vld [vmem:[%s2920 + $0x52] sm:$0xff]
      %v3035 = vld [vmem:[%s2920 + $0x62] sm:$0xff]
      %v3036 = vld [vmem:[%s2920 + $0x6a] sm:$0xff]
      %v3037 = vld [vmem:[%s2920 + $0x7a] sm:$0xff]
      %v3038 = vld [vmem:[%s2920 + $0x82] sm:$0xff]
      %v3039 = vld [vmem:[%s2920 + $0x92] sm:$0xff]
      %v3040 = vld [vmem:[%s2920 + $0x9a] sm:$0xff]
      %v3041 = vld [vmem:[%s2920 + $0xaa] sm:$0xff]
      %v3042 = vld [vmem:[%s2920 + $0xb2] sm:$0xff]
      %v3043 = vlaneseq
      %v3044 = vshrl.u32 %v3043, 7
      %v3045 = vsub.s32 0, %v3044
      %v3046 = vrot.slane %v3026, %v3045
      %v3047 = vmul.f32 %v3027, %v3046
      %v3048 = vmul.f32 %v3028, %v3046
      %v3049 = vmul.f32 %v3029, %v3046
      %v3050 = vmul.f32 %v3030, %v3046
      %v3051 = vmul.f32 %v3031, %v3046
      %v3052 = vmul.f32 %v3032, %v3046
      %v3053 = vmul.f32 %v3033, %v3046
      %v3054 = vmul.f32 %v3034, %v3046
      %v3055 = vmul.f32 %v3035, %v3046
      %v3056 = vmul.f32 %v3036, %v3046
      %v3057 = vmul.f32 %v3037, %v3046
      %v3058 = vmul.f32 %v3038, %v3046
      %v3059 = vmul.f32 %v3039, %v3046
      %v3060 = vmul.f32 %v3040, %v3046
      %v3061 = vmul.f32 %v3041, %v3046
      %v3062 = vmul.f32 %v3042, %v3046
      %v3063 = vadd.f32 %v3010, %v3047
      %v3064 = vadd.f32 %v3011, %v3048
      %v3065 = vadd.f32 %v3012, %v3049
      %v3066 = vadd.f32 %v3013, %v3050
      %v3067 = vadd.f32 %v3014, %v3051
      %v3068 = vadd.f32 %v3015, %v3052
      %v3069 = vadd.f32 %v3016, %v3053
      %v3070 = vadd.f32 %v3017, %v3054
      %v3071 = vadd.f32 %v3018, %v3055
      %v3072 = vadd.f32 %v3019, %v3056
      %v3073 = vadd.f32 %v3020, %v3057
      %v3074 = vadd.f32 %v3021, %v3058
      %v3075 = vadd.f32 %v3022, %v3059
      %v3076 = vadd.f32 %v3023, %v3060
      %v3077 = vadd.f32 %v3024, %v3061
      %v3078 = vadd.f32 %v3025, %v3062
      %v3079 = vld [vmem:[%s2918 + $0x3] sm:$0x1]
      %v3080 = vld [vmem:[%s2920 + $0x3] sm:$0xff]
      %v3081 = vld [vmem:[%s2920 + $0xb] sm:$0xff]
      %v3082 = vld [vmem:[%s2920 + $0x1b] sm:$0xff]
      %v3083 = vld [vmem:[%s2920 + $0x23] sm:$0xff]
      %v3084 = vld [vmem:[%s2920 + $0x33] sm:$0xff]
      %v3085 = vld [vmem:[%s2920 + $0x3b] sm:$0xff]
      %v3086 = vld [vmem:[%s2920 + $0x4b] sm:$0xff]
      %v3087 = vld [vmem:[%s2920 + $0x53] sm:$0xff]
      %v3088 = vld [vmem:[%s2920 + $0x63] sm:$0xff]
      %v3089 = vld [vmem:[%s2920 + $0x6b] sm:$0xff]
      %v3090 = vld [vmem:[%s2920 + $0x7b] sm:$0xff]
      %v3091 = vld [vmem:[%s2920 + $0x83] sm:$0xff]
      %v3092 = vld [vmem:[%s2920 + $0x93] sm:$0xff]
      %v3093 = vld [vmem:[%s2920 + $0x9b] sm:$0xff]
      %v3094 = vld [vmem:[%s2920 + $0xab] sm:$0xff]
      %v3095 = vld [vmem:[%s2920 + $0xb3] sm:$0xff]
      %v3096 = vlaneseq
      %v3097 = vshrl.u32 %v3096, 7
      %v3098 = vsub.s32 0, %v3097
      %v3099 = vrot.slane %v3079, %v3098
      %v3100 = vmul.f32 %v3080, %v3099
      %v3101 = vmul.f32 %v3081, %v3099
      %v3102 = vmul.f32 %v3082, %v3099
      %v3103 = vmul.f32 %v3083, %v3099
      %v3104 = vmul.f32 %v3084, %v3099
      %v3105 = vmul.f32 %v3085, %v3099
      %v3106 = vmul.f32 %v3086, %v3099
      %v3107 = vmul.f32 %v3087, %v3099
      %v3108 = vmul.f32 %v3088, %v3099
      %v3109 = vmul.f32 %v3089, %v3099
      %v3110 = vmul.f32 %v3090, %v3099
      %v3111 = vmul.f32 %v3091, %v3099
      %v3112 = vmul.f32 %v3092, %v3099
      %v3113 = vmul.f32 %v3093, %v3099
      %v3114 = vmul.f32 %v3094, %v3099
      %v3115 = vmul.f32 %v3095, %v3099
      %v3116 = vadd.f32 %v3063, %v3100
      %v3117 = vadd.f32 %v3064, %v3101
      %v3118 = vadd.f32 %v3065, %v3102
      %v3119 = vadd.f32 %v3066, %v3103
      %v3120 = vadd.f32 %v3067, %v3104
      %v3121 = vadd.f32 %v3068, %v3105
      %v3122 = vadd.f32 %v3069, %v3106
      %v3123 = vadd.f32 %v3070, %v3107
      %v3124 = vadd.f32 %v3071, %v3108
      %v3125 = vadd.f32 %v3072, %v3109
      %v3126 = vadd.f32 %v3073, %v3110
      %v3127 = vadd.f32 %v3074, %v3111
      %v3128 = vadd.f32 %v3075, %v3112
      %v3129 = vadd.f32 %v3076, %v3113
      %v3130 = vadd.f32 %v3077, %v3114
      %v3131 = vadd.f32 %v3078, %v3115
      %v3132 = vld [vmem:[%s2918 + $0x4] sm:$0x1]
      %v3133 = vld [vmem:[%s2920 + $0x4] sm:$0xff]
      %v3134 = vld [vmem:[%s2920 + $0xc] sm:$0xff]
      %v3135 = vld [vmem:[%s2920 + $0x1c] sm:$0xff]
      %v3136 = vld [vmem:[%s2920 + $0x24] sm:$0xff]
      %v3137 = vld [vmem:[%s2920 + $0x34] sm:$0xff]
      %v3138 = vld [vmem:[%s2920 + $0x3c] sm:$0xff]
      %v3139 = vld [vmem:[%s2920 + $0x4c] sm:$0xff]
      %v3140 = vld [vmem:[%s2920 + $0x54] sm:$0xff]
      %v3141 = vld [vmem:[%s2920 + $0x64] sm:$0xff]
      %v3142 = vld [vmem:[%s2920 + $0x6c] sm:$0xff]
      %v3143 = vld [vmem:[%s2920 + $0x7c] sm:$0xff]
      %v3144 = vld [vmem:[%s2920 + $0x84] sm:$0xff]
      %v3145 = vld [vmem:[%s2920 + $0x94] sm:$0xff]
      %v3146 = vld [vmem:[%s2920 + $0x9c] sm:$0xff]
      %v3147 = vld [vmem:[%s2920 + $0xac] sm:$0xff]
      %v3148 = vld [vmem:[%s2920 + $0xb4] sm:$0xff]
      %v3149 = vlaneseq
      %v3150 = vshrl.u32 %v3149, 7
      %v3151 = vsub.s32 0, %v3150
      %v3152 = vrot.slane %v3132, %v3151
      %v3153 = vmul.f32 %v3133, %v3152
      %v3154 = vmul.f32 %v3134, %v3152
      %v3155 = vmul.f32 %v3135, %v3152
      %v3156 = vmul.f32 %v3136, %v3152
      %v3157 = vmul.f32 %v3137, %v3152
      %v3158 = vmul.f32 %v3138, %v3152
      %v3159 = vmul.f32 %v3139, %v3152
      %v3160 = vmul.f32 %v3140, %v3152
      %v3161 = vmul.f32 %v3141, %v3152
      %v3162 = vmul.f32 %v3142, %v3152
      %v3163 = vmul.f32 %v3143, %v3152
      %v3164 = vmul.f32 %v3144, %v3152
      %v3165 = vmul.f32 %v3145, %v3152
      %v3166 = vmul.f32 %v3146, %v3152
      %v3167 = vmul.f32 %v3147, %v3152
      %v3168 = vmul.f32 %v3148, %v3152
      %v3169 = vadd.f32 %v3116, %v3153
      %v3170 = vadd.f32 %v3117, %v3154
      %v3171 = vadd.f32 %v3118, %v3155
      %v3172 = vadd.f32 %v3119, %v3156
      %v3173 = vadd.f32 %v3120, %v3157
      %v3174 = vadd.f32 %v3121, %v3158
      %v3175 = vadd.f32 %v3122, %v3159
      %v3176 = vadd.f32 %v3123, %v3160
      %v3177 = vadd.f32 %v3124, %v3161
      %v3178 = vadd.f32 %v3125, %v3162
      %v3179 = vadd.f32 %v3126, %v3163
      %v3180 = vadd.f32 %v3127, %v3164
      %v3181 = vadd.f32 %v3128, %v3165
      %v3182 = vadd.f32 %v3129, %v3166
      %v3183 = vadd.f32 %v3130, %v3167
      %v3184 = vadd.f32 %v3131, %v3168
      %v3185 = vld [vmem:[%s2918 + $0x5] sm:$0x1]
      %v3186 = vld [vmem:[%s2920 + $0x5] sm:$0xff]
      %v3187 = vld [vmem:[%s2920 + $0xd] sm:$0xff]
      %v3188 = vld [vmem:[%s2920 + $0x1d] sm:$0xff]
      %v3189 = vld [vmem:[%s2920 + $0x25] sm:$0xff]
      %v3190 = vld [vmem:[%s2920 + $0x35] sm:$0xff]
      %v3191 = vld [vmem:[%s2920 + $0x3d] sm:$0xff]
      %v3192 = vld [vmem:[%s2920 + $0x4d] sm:$0xff]
      %v3193 = vld [vmem:[%s2920 + $0x55] sm:$0xff]
      %v3194 = vld [vmem:[%s2920 + $0x65] sm:$0xff]
      %v3195 = vld [vmem:[%s2920 + $0x6d] sm:$0xff]
      %v3196 = vld [vmem:[%s2920 + $0x7d] sm:$0xff]
      %v3197 = vld [vmem:[%s2920 + $0x85] sm:$0xff]
      %v3198 = vld [vmem:[%s2920 + $0x95] sm:$0xff]
      %v3199 = vld [vmem:[%s2920 + $0x9d] sm:$0xff]
      %v3200 = vld [vmem:[%s2920 + $0xad] sm:$0xff]
      %v3201 = vld [vmem:[%s2920 + $0xb5] sm:$0xff]
      %v3202 = vlaneseq
      %v3203 = vshrl.u32 %v3202, 7
      %v3204 = vsub.s32 0, %v3203
      %v3205 = vrot.slane %v3185, %v3204
      %v3206 = vmul.f32 %v3186, %v3205
      %v3207 = vmul.f32 %v3187, %v3205
      %v3208 = vmul.f32 %v3188, %v3205
      %v3209 = vmul.f32 %v3189, %v3205
      %v3210 = vmul.f32 %v3190, %v3205
      %v3211 = vmul.f32 %v3191, %v3205
      %v3212 = vmul.f32 %v3192, %v3205
      %v3213 = vmul.f32 %v3193, %v3205
      %v3214 = vmul.f32 %v3194, %v3205
      %v3215 = vmul.f32 %v3195, %v3205
      %v3216 = vmul.f32 %v3196, %v3205
      %v3217 = vmul.f32 %v3197, %v3205
      %v3218 = vmul.f32 %v3198, %v3205
      %v3219 = vmul.f32 %v3199, %v3205
      %v3220 = vmul.f32 %v3200, %v3205
      %v3221 = vmul.f32 %v3201, %v3205
      %v3222 = vadd.f32 %v3169, %v3206
      %v3223 = vadd.f32 %v3170, %v3207
      %v3224 = vadd.f32 %v3171, %v3208
      %v3225 = vadd.f32 %v3172, %v3209
      %v3226 = vadd.f32 %v3173, %v3210
      %v3227 = vadd.f32 %v3174, %v3211
      %v3228 = vadd.f32 %v3175, %v3212
      %v3229 = vadd.f32 %v3176, %v3213
      %v3230 = vadd.f32 %v3177, %v3214
      %v3231 = vadd.f32 %v3178, %v3215
      %v3232 = vadd.f32 %v3179, %v3216
      %v3233 = vadd.f32 %v3180, %v3217
      %v3234 = vadd.f32 %v3181, %v3218
      %v3235 = vadd.f32 %v3182, %v3219
      %v3236 = vadd.f32 %v3183, %v3220
      %v3237 = vadd.f32 %v3184, %v3221
      %v3238 = vld [vmem:[%s2918 + $0x6] sm:$0x1]
      %v3239 = vld [vmem:[%s2920 + $0x6] sm:$0xff]
      %v3240 = vld [vmem:[%s2920 + $0xe] sm:$0xff]
      %v3241 = vld [vmem:[%s2920 + $0x1e] sm:$0xff]
      %v3242 = vld [vmem:[%s2920 + $0x26] sm:$0xff]
      %v3243 = vld [vmem:[%s2920 + $0x36] sm:$0xff]
      %v3244 = vld [vmem:[%s2920 + $0x3e] sm:$0xff]
      %v3245 = vld [vmem:[%s2920 + $0x4e] sm:$0xff]
      %v3246 = vld [vmem:[%s2920 + $0x56] sm:$0xff]
      %v3247 = vld [vmem:[%s2920 + $0x66] sm:$0xff]
      %v3248 = vld [vmem:[%s2920 + $0x6e] sm:$0xff]
      %v3249 = vld [vmem:[%s2920 + $0x7e] sm:$0xff]
      %v3250 = vld [vmem:[%s2920 + $0x86] sm:$0xff]
      %v3251 = vld [vmem:[%s2920 + $0x96] sm:$0xff]
      %v3252 = vld [vmem:[%s2920 + $0x9e] sm:$0xff]
      %v3253 = vld [vmem:[%s2920 + $0xae] sm:$0xff]
      %v3254 = vld [vmem:[%s2920 + $0xb6] sm:$0xff]
      %v3255 = vlaneseq
      %v3256 = vshrl.u32 %v3255, 7
      %v3257 = vsub.s32 0, %v3256
      %v3258 = vrot.slane %v3238, %v3257
      %v3259 = vmul.f32 %v3239, %v3258
      %v3260 = vmul.f32 %v3240, %v3258
      %v3261 = vmul.f32 %v3241, %v3258
      %v3262 = vmul.f32 %v3242, %v3258
      %v3263 = vmul.f32 %v3243, %v3258
      %v3264 = vmul.f32 %v3244, %v3258
      %v3265 = vmul.f32 %v3245, %v3258
      %v3266 = vmul.f32 %v3246, %v3258
      %v3267 = vmul.f32 %v3247, %v3258
      %v3268 = vmul.f32 %v3248, %v3258
      %v3269 = vmul.f32 %v3249, %v3258
      %v3270 = vmul.f32 %v3250, %v3258
      %v3271 = vmul.f32 %v3251, %v3258
      %v3272 = vmul.f32 %v3252, %v3258
      %v3273 = vmul.f32 %v3253, %v3258
      %v3274 = vmul.f32 %v3254, %v3258
      %v3275 = vadd.f32 %v3222, %v3259
      %v3276 = vadd.f32 %v3223, %v3260
      %v3277 = vadd.f32 %v3224, %v3261
      %v3278 = vadd.f32 %v3225, %v3262
      %v3279 = vadd.f32 %v3226, %v3263
      %v3280 = vadd.f32 %v3227, %v3264
      %v3281 = vadd.f32 %v3228, %v3265
      %v3282 = vadd.f32 %v3229, %v3266
      %v3283 = vadd.f32 %v3230, %v3267
      %v3284 = vadd.f32 %v3231, %v3268
      %v3285 = vadd.f32 %v3232, %v3269
      %v3286 = vadd.f32 %v3233, %v3270
      %v3287 = vadd.f32 %v3234, %v3271
      %v3288 = vadd.f32 %v3235, %v3272
      %v3289 = vadd.f32 %v3236, %v3273
      %v3290 = vadd.f32 %v3237, %v3274
      %v3291 = vld [vmem:[%s2918 + $0x7] sm:$0x1]
      %v3292 = vld [vmem:[%s2920 + $0x7] sm:$0xff]
      %v3293 = vld [vmem:[%s2920 + $0xf] sm:$0xff]
      %v3294 = vld [vmem:[%s2920 + $0x1f] sm:$0xff]
      %v3295 = vld [vmem:[%s2920 + $0x27] sm:$0xff]
      %v3296 = vld [vmem:[%s2920 + $0x37] sm:$0xff]
      %v3297 = vld [vmem:[%s2920 + $0x3f] sm:$0xff]
      %v3298 = vld [vmem:[%s2920 + $0x4f] sm:$0xff]
      %v3299 = vld [vmem:[%s2920 + $0x57] sm:$0xff]
      %v3300 = vld [vmem:[%s2920 + $0x67] sm:$0xff]
      %v3301 = vld [vmem:[%s2920 + $0x6f] sm:$0xff]
      %v3302 = vld [vmem:[%s2920 + $0x7f] sm:$0xff]
      %v3303 = vld [vmem:[%s2920 + $0x87] sm:$0xff]
      %v3304 = vld [vmem:[%s2920 + $0x97] sm:$0xff]
      %v3305 = vld [vmem:[%s2920 + $0x9f] sm:$0xff]
      %v3306 = vld [vmem:[%s2920 + $0xaf] sm:$0xff]
      %v3307 = vld [vmem:[%s2920 + $0xb7] sm:$0xff]
      %v3308 = vlaneseq
      %v3309 = vshrl.u32 %v3308, 7
      %v3310 = vsub.s32 0, %v3309
      %v3311 = vrot.slane %v3291, %v3310
      %v3312 = vmul.f32 %v3292, %v3311
      %v3313 = vmul.f32 %v3293, %v3311
      %v3314 = vmul.f32 %v3294, %v3311
      %v3315 = vmul.f32 %v3295, %v3311
      %v3316 = vmul.f32 %v3296, %v3311
      %v3317 = vmul.f32 %v3297, %v3311
      %v3318 = vmul.f32 %v3298, %v3311
      %v3319 = vmul.f32 %v3299, %v3311
      %v3320 = vmul.f32 %v3300, %v3311
      %v3321 = vmul.f32 %v3301, %v3311
      %v3322 = vmul.f32 %v3302, %v3311
      %v3323 = vmul.f32 %v3303, %v3311
      %v3324 = vmul.f32 %v3304, %v3311
      %v3325 = vmul.f32 %v3305, %v3311
      %v3326 = vmul.f32 %v3306, %v3311
      %v3327 = vmul.f32 %v3307, %v3311
      %v3328 = vadd.f32 %v3275, %v3312
      %v3329 = vadd.f32 %v3276, %v3313
      %v3330 = vadd.f32 %v3277, %v3314
      %v3331 = vadd.f32 %v3278, %v3315
      %v3332 = vadd.f32 %v3279, %v3316
      %v3333 = vadd.f32 %v3280, %v3317
      %v3334 = vadd.f32 %v3281, %v3318
      %v3335 = vadd.f32 %v3282, %v3319
      %v3336 = vadd.f32 %v3283, %v3320
      %v3337 = vadd.f32 %v3284, %v3321
      %v3338 = vadd.f32 %v3285, %v3322
      %v3339 = vadd.f32 %v3286, %v3323
      %v3340 = vadd.f32 %v3287, %v3324
      %v3341 = vadd.f32 %v3288, %v3325
      %v3342 = vadd.f32 %v3289, %v3326
      %v3343 = vadd.f32 %v3290, %v3327
      %v3344 = vld [vmem:[%s2918 + $0x8] sm:$0x1]
      %v3345 = vld [vmem:[%s2920 + $0x10] sm:$0xff]
      %v3346 = vld [vmem:[%s2920 + $0x28] sm:$0xff]
      %v3347 = vld [vmem:[%s2920 + $0x40] sm:$0xff]
      %v3348 = vld [vmem:[%s2920 + $0x58] sm:$0xff]
      %v3349 = vld [vmem:[%s2920 + $0x70] sm:$0xff]
      %v3350 = vld [vmem:[%s2920 + $0x88] sm:$0xff]
      %v3351 = vld [vmem:[%s2920 + $0xa0] sm:$0xff]
      %v3352 = vld [vmem:[%s2920 + $0xb8] sm:$0xff]
      %v3353 = vlaneseq
      %v3354 = vshrl.u32 %v3353, 7
      %v3355 = vsub.s32 0, %v3354
      %v3356 = vrot.slane %v3344, %v3355
      %v3357 = vmul.f32 %v2922, %v3356
      %v3358 = vmul.f32 %v3345, %v3356
      %v3359 = vmul.f32 %v2924, %v3356
      %v3360 = vmul.f32 %v3346, %v3356
      %v3361 = vmul.f32 %v2926, %v3356
      %v3362 = vmul.f32 %v3347, %v3356
      %v3363 = vmul.f32 %v2928, %v3356
      %v3364 = vmul.f32 %v3348, %v3356
      %v3365 = vmul.f32 %v2930, %v3356
      %v3366 = vmul.f32 %v3349, %v3356
      %v3367 = vmul.f32 %v2932, %v3356
      %v3368 = vmul.f32 %v3350, %v3356
      %v3369 = vmul.f32 %v2934, %v3356
      %v3370 = vmul.f32 %v3351, %v3356
      %v3371 = vmul.f32 %v2936, %v3356
      %v3372 = vmul.f32 %v3352, %v3356
      %v3373 = vadd.f32 %v3328, %v3357
      %v3374 = vadd.f32 %v3329, %v3358
      %v3375 = vadd.f32 %v3330, %v3359
      %v3376 = vadd.f32 %v3331, %v3360
      %v3377 = vadd.f32 %v3332, %v3361
      %v3378 = vadd.f32 %v3333, %v3362
      %v3379 = vadd.f32 %v3334, %v3363
      %v3380 = vadd.f32 %v3335, %v3364
      %v3381 = vadd.f32 %v3336, %v3365
      %v3382 = vadd.f32 %v3337, %v3366
      %v3383 = vadd.f32 %v3338, %v3367
      %v3384 = vadd.f32 %v3339, %v3368
      %v3385 = vadd.f32 %v3340, %v3369
      %v3386 = vadd.f32 %v3341, %v3370
      %v3387 = vadd.f32 %v3342, %v3371
      %v3388 = vadd.f32 %v3343, %v3372
      %s3389 = scalar_lea.vmem %s2, 96
      %v3390 = vld [vmem:[%s3389] sm:$0x1]
      %s3391 = scalar_lea.vmem [#allocation2], 144
      %v3392 = vld [vmem:[%s3391] sm:$0xff]
      %v3393 = vld [vmem:[%s3391 + $0x8] sm:$0xff]
      %v3394 = vld [vmem:[%s3391 + $0x18] sm:$0xff]
      %v3395 = vld [vmem:[%s3391 + $0x20] sm:$0xff]
      %v3396 = vld [vmem:[%s3391 + $0x30] sm:$0xff]
      %v3397 = vld [vmem:[%s3391 + $0x38] sm:$0xff]
      %v3398 = vld [vmem:[%s3391 + $0x48] sm:$0xff]
      %v3399 = vld [vmem:[%s3391 + $0x50] sm:$0xff]
      %v3400 = vld [vmem:[%s3391 + $0x60] sm:$0xff]
      %v3401 = vld [vmem:[%s3391 + $0x68] sm:$0xff]
      %v3402 = vld [vmem:[%s3391 + $0x78] sm:$0xff]
      %v3403 = vld [vmem:[%s3391 + $0x80] sm:$0xff]
      %v3404 = vld [vmem:[%s3391 + $0x90] sm:$0xff]
      %v3405 = vld [vmem:[%s3391 + $0x98] sm:$0xff]
      %v3406 = vld [vmem:[%s3391 + $0xa8] sm:$0xff]
      %v3407 = vld [vmem:[%s3391 + $0xb0] sm:$0xff]
      %v3408 = vlaneseq
      %v3409 = vshrl.u32 %v3408, 7
      %v3410 = vsub.s32 0, %v3409
      %v3411 = vrot.slane %v3390, %v3410
      %v3412 = vmul.f32 %v3392, %v3411
      %v3413 = vmul.f32 %v3393, %v3411
      %v3414 = vmul.f32 %v3394, %v3411
      %v3415 = vmul.f32 %v3395, %v3411
      %v3416 = vmul.f32 %v3396, %v3411
      %v3417 = vmul.f32 %v3397, %v3411
      %v3418 = vmul.f32 %v3398, %v3411
      %v3419 = vmul.f32 %v3399, %v3411
      %v3420 = vmul.f32 %v3400, %v3411
      %v3421 = vmul.f32 %v3401, %v3411
      %v3422 = vmul.f32 %v3402, %v3411
      %v3423 = vmul.f32 %v3403, %v3411
      %v3424 = vmul.f32 %v3404, %v3411
      %v3425 = vmul.f32 %v3405, %v3411
      %v3426 = vmul.f32 %v3406, %v3411
      %v3427 = vmul.f32 %v3407, %v3411
      %v3428 = vadd.f32 %v3373, %v3412
      %v3429 = vadd.f32 %v3374, %v3413
      %v3430 = vadd.f32 %v3375, %v3414
      %v3431 = vadd.f32 %v3376, %v3415
      %v3432 = vadd.f32 %v3377, %v3416
      %v3433 = vadd.f32 %v3378, %v3417
      %v3434 = vadd.f32 %v3379, %v3418
      %v3435 = vadd.f32 %v3380, %v3419
      %v3436 = vadd.f32 %v3381, %v3420
      %v3437 = vadd.f32 %v3382, %v3421
      %v3438 = vadd.f32 %v3383, %v3422
      %v3439 = vadd.f32 %v3384, %v3423
      %v3440 = vadd.f32 %v3385, %v3424
      %v3441 = vadd.f32 %v3386, %v3425
      %v3442 = vadd.f32 %v3387, %v3426
      %v3443 = vadd.f32 %v3388, %v3427
      %v3444 = vld [vmem:[%s3389 + $0x1] sm:$0x1]
      %v3445 = vld [vmem:[%s3391 + $0x1] sm:$0xff]
      %v3446 = vld [vmem:[%s3391 + $0x9] sm:$0xff]
      %v3447 = vld [vmem:[%s3391 + $0x19] sm:$0xff]
      %v3448 = vld [vmem:[%s3391 + $0x21] sm:$0xff]
      %v3449 = vld [vmem:[%s3391 + $0x31] sm:$0xff]
      %v3450 = vld [vmem:[%s3391 + $0x39] sm:$0xff]
      %v3451 = vld [vmem:[%s3391 + $0x49] sm:$0xff]
      %v3452 = vld [vmem:[%s3391 + $0x51] sm:$0xff]
      %v3453 = vld [vmem:[%s3391 + $0x61] sm:$0xff]
      %v3454 = vld [vmem:[%s3391 + $0x69] sm:$0xff]
      %v3455 = vld [vmem:[%s3391 + $0x79] sm:$0xff]
      %v3456 = vld [vmem:[%s3391 + $0x81] sm:$0xff]
      %v3457 = vld [vmem:[%s3391 + $0x91] sm:$0xff]
      %v3458 = vld [vmem:[%s3391 + $0x99] sm:$0xff]
      %v3459 = vld [vmem:[%s3391 + $0xa9] sm:$0xff]
      %v3460 = vld [vmem:[%s3391 + $0xb1] sm:$0xff]
      %v3461 = vlaneseq
      %v3462 = vshrl.u32 %v3461, 7
      %v3463 = vsub.s32 0, %v3462
      %v3464 = vrot.slane %v3444, %v3463
      %v3465 = vmul.f32 %v3445, %v3464
      %v3466 = vmul.f32 %v3446, %v3464
      %v3467 = vmul.f32 %v3447, %v3464
      %v3468 = vmul.f32 %v3448, %v3464
      %v3469 = vmul.f32 %v3449, %v3464
      %v3470 = vmul.f32 %v3450, %v3464
      %v3471 = vmul.f32 %v3451, %v3464
      %v3472 = vmul.f32 %v3452, %v3464
      %v3473 = vmul.f32 %v3453, %v3464
      %v3474 = vmul.f32 %v3454, %v3464
      %v3475 = vmul.f32 %v3455, %v3464
      %v3476 = vmul.f32 %v3456, %v3464
      %v3477 = vmul.f32 %v3457, %v3464
      %v3478 = vmul.f32 %v3458, %v3464
      %v3479 = vmul.f32 %v3459, %v3464
      %v3480 = vmul.f32 %v3460, %v3464
      %v3481 = vadd.f32 %v3428, %v3465
      %v3482 = vadd.f32 %v3429, %v3466
      %v3483 = vadd.f32 %v3430, %v3467
      %v3484 = vadd.f32 %v3431, %v3468
      %v3485 = vadd.f32 %v3432, %v3469
      %v3486 = vadd.f32 %v3433, %v3470
      %v3487 = vadd.f32 %v3434, %v3471
      %v3488 = vadd.f32 %v3435, %v3472
      %v3489 = vadd.f32 %v3436, %v3473
      %v3490 = vadd.f32 %v3437, %v3474
      %v3491 = vadd.f32 %v3438, %v3475
      %v3492 = vadd.f32 %v3439, %v3476
      %v3493 = vadd.f32 %v3440, %v3477
      %v3494 = vadd.f32 %v3441, %v3478
      %v3495 = vadd.f32 %v3442, %v3479
      %v3496 = vadd.f32 %v3443, %v3480
      %v3497 = vld [vmem:[%s3389 + $0x2] sm:$0x1]
      %v3498 = vld [vmem:[%s3391 + $0x2] sm:$0xff]
      %v3499 = vld [vmem:[%s3391 + $0xa] sm:$0xff]
      %v3500 = vld [vmem:[%s3391 + $0x1a] sm:$0xff]
      %v3501 = vld [vmem:[%s3391 + $0x22] sm:$0xff]
      %v3502 = vld [vmem:[%s3391 + $0x32] sm:$0xff]
      %v3503 = vld [vmem:[%s3391 + $0x3a] sm:$0xff]
      %v3504 = vld [vmem:[%s3391 + $0x4a] sm:$0xff]
      %v3505 = vld [vmem:[%s3391 + $0x52] sm:$0xff]
      %v3506 = vld [vmem:[%s3391 + $0x62] sm:$0xff]
      %v3507 = vld [vmem:[%s3391 + $0x6a] sm:$0xff]
      %v3508 = vld [vmem:[%s3391 + $0x7a] sm:$0xff]
      %v3509 = vld [vmem:[%s3391 + $0x82] sm:$0xff]
      %v3510 = vld [vmem:[%s3391 + $0x92] sm:$0xff]
      %v3511 = vld [vmem:[%s3391 + $0x9a] sm:$0xff]
      %v3512 = vld [vmem:[%s3391 + $0xaa] sm:$0xff]
      %v3513 = vld [vmem:[%s3391 + $0xb2] sm:$0xff]
      %v3514 = vlaneseq
      %v3515 = vshrl.u32 %v3514, 7
      %v3516 = vsub.s32 0, %v3515
      %v3517 = vrot.slane %v3497, %v3516
      %v3518 = vmul.f32 %v3498, %v3517
      %v3519 = vmul.f32 %v3499, %v3517
      %v3520 = vmul.f32 %v3500, %v3517
      %v3521 = vmul.f32 %v3501, %v3517
      %v3522 = vmul.f32 %v3502, %v3517
      %v3523 = vmul.f32 %v3503, %v3517
      %v3524 = vmul.f32 %v3504, %v3517
      %v3525 = vmul.f32 %v3505, %v3517
      %v3526 = vmul.f32 %v3506, %v3517
      %v3527 = vmul.f32 %v3507, %v3517
      %v3528 = vmul.f32 %v3508, %v3517
      %v3529 = vmul.f32 %v3509, %v3517
      %v3530 = vmul.f32 %v3510, %v3517
      %v3531 = vmul.f32 %v3511, %v3517
      %v3532 = vmul.f32 %v3512, %v3517
      %v3533 = vmul.f32 %v3513, %v3517
      %v3534 = vadd.f32 %v3481, %v3518
      %v3535 = vadd.f32 %v3482, %v3519
      %v3536 = vadd.f32 %v3483, %v3520
      %v3537 = vadd.f32 %v3484, %v3521
      %v3538 = vadd.f32 %v3485, %v3522
      %v3539 = vadd.f32 %v3486, %v3523
      %v3540 = vadd.f32 %v3487, %v3524
      %v3541 = vadd.f32 %v3488, %v3525
      %v3542 = vadd.f32 %v3489, %v3526
      %v3543 = vadd.f32 %v3490, %v3527
      %v3544 = vadd.f32 %v3491, %v3528
      %v3545 = vadd.f32 %v3492, %v3529
      %v3546 = vadd.f32 %v3493, %v3530
      %v3547 = vadd.f32 %v3494, %v3531
      %v3548 = vadd.f32 %v3495, %v3532
      %v3549 = vadd.f32 %v3496, %v3533
      %v3550 = vld [vmem:[%s3389 + $0x3] sm:$0x1]
      %v3551 = vld [vmem:[%s3391 + $0x3] sm:$0xff]
      %v3552 = vld [vmem:[%s3391 + $0xb] sm:$0xff]
      %v3553 = vld [vmem:[%s3391 + $0x1b] sm:$0xff]
      %v3554 = vld [vmem:[%s3391 + $0x23] sm:$0xff]
      %v3555 = vld [vmem:[%s3391 + $0x33] sm:$0xff]
      %v3556 = vld [vmem:[%s3391 + $0x3b] sm:$0xff]
      %v3557 = vld [vmem:[%s3391 + $0x4b] sm:$0xff]
      %v3558 = vld [vmem:[%s3391 + $0x53] sm:$0xff]
      %v3559 = vld [vmem:[%s3391 + $0x63] sm:$0xff]
      %v3560 = vld [vmem:[%s3391 + $0x6b] sm:$0xff]
      %v3561 = vld [vmem:[%s3391 + $0x7b] sm:$0xff]
      %v3562 = vld [vmem:[%s3391 + $0x83] sm:$0xff]
      %v3563 = vld [vmem:[%s3391 + $0x93] sm:$0xff]
      %v3564 = vld [vmem:[%s3391 + $0x9b] sm:$0xff]
      %v3565 = vld [vmem:[%s3391 + $0xab] sm:$0xff]
      %v3566 = vld [vmem:[%s3391 + $0xb3] sm:$0xff]
      %v3567 = vlaneseq
      %v3568 = vshrl.u32 %v3567, 7
      %v3569 = vsub.s32 0, %v3568
      %v3570 = vrot.slane %v3550, %v3569
      %v3571 = vmul.f32 %v3551, %v3570
      %v3572 = vmul.f32 %v3552, %v3570
      %v3573 = vmul.f32 %v3553, %v3570
      %v3574 = vmul.f32 %v3554, %v3570
      %v3575 = vmul.f32 %v3555, %v3570
      %v3576 = vmul.f32 %v3556, %v3570
      %v3577 = vmul.f32 %v3557, %v3570
      %v3578 = vmul.f32 %v3558, %v3570
      %v3579 = vmul.f32 %v3559, %v3570
      %v3580 = vmul.f32 %v3560, %v3570
      %v3581 = vmul.f32 %v3561, %v3570
      %v3582 = vmul.f32 %v3562, %v3570
      %v3583 = vmul.f32 %v3563, %v3570
      %v3584 = vmul.f32 %v3564, %v3570
      %v3585 = vmul.f32 %v3565, %v3570
      %v3586 = vmul.f32 %v3566, %v3570
      %v3587 = vadd.f32 %v3534, %v3571
      %v3588 = vadd.f32 %v3535, %v3572
      %v3589 = vadd.f32 %v3536, %v3573
      %v3590 = vadd.f32 %v3537, %v3574
      %v3591 = vadd.f32 %v3538, %v3575
      %v3592 = vadd.f32 %v3539, %v3576
      %v3593 = vadd.f32 %v3540, %v3577
      %v3594 = vadd.f32 %v3541, %v3578
      %v3595 = vadd.f32 %v3542, %v3579
      %v3596 = vadd.f32 %v3543, %v3580
      %v3597 = vadd.f32 %v3544, %v3581
      %v3598 = vadd.f32 %v3545, %v3582
      %v3599 = vadd.f32 %v3546, %v3583
      %v3600 = vadd.f32 %v3547, %v3584
      %v3601 = vadd.f32 %v3548, %v3585
      %v3602 = vadd.f32 %v3549, %v3586
      %v3603 = vld [vmem:[%s3389 + $0x4] sm:$0x1]
      %v3604 = vld [vmem:[%s3391 + $0x4] sm:$0xff]
      %v3605 = vld [vmem:[%s3391 + $0xc] sm:$0xff]
      %v3606 = vld [vmem:[%s3391 + $0x1c] sm:$0xff]
      %v3607 = vld [vmem:[%s3391 + $0x24] sm:$0xff]
      %v3608 = vld [vmem:[%s3391 + $0x34] sm:$0xff]
      %v3609 = vld [vmem:[%s3391 + $0x3c] sm:$0xff]
      %v3610 = vld [vmem:[%s3391 + $0x4c] sm:$0xff]
      %v3611 = vld [vmem:[%s3391 + $0x54] sm:$0xff]
      %v3612 = vld [vmem:[%s3391 + $0x64] sm:$0xff]
      %v3613 = vld [vmem:[%s3391 + $0x6c] sm:$0xff]
      %v3614 = vld [vmem:[%s3391 + $0x7c] sm:$0xff]
      %v3615 = vld [vmem:[%s3391 + $0x84] sm:$0xff]
      %v3616 = vld [vmem:[%s3391 + $0x94] sm:$0xff]
      %v3617 = vld [vmem:[%s3391 + $0x9c] sm:$0xff]
      %v3618 = vld [vmem:[%s3391 + $0xac] sm:$0xff]
      %v3619 = vld [vmem:[%s3391 + $0xb4] sm:$0xff]
      %v3620 = vlaneseq
      %v3621 = vshrl.u32 %v3620, 7
      %v3622 = vsub.s32 0, %v3621
      %v3623 = vrot.slane %v3603, %v3622
      %v3624 = vmul.f32 %v3604, %v3623
      %v3625 = vmul.f32 %v3605, %v3623
      %v3626 = vmul.f32 %v3606, %v3623
      %v3627 = vmul.f32 %v3607, %v3623
      %v3628 = vmul.f32 %v3608, %v3623
      %v3629 = vmul.f32 %v3609, %v3623
      %v3630 = vmul.f32 %v3610, %v3623
      %v3631 = vmul.f32 %v3611, %v3623
      %v3632 = vmul.f32 %v3612, %v3623
      %v3633 = vmul.f32 %v3613, %v3623
      %v3634 = vmul.f32 %v3614, %v3623
      %v3635 = vmul.f32 %v3615, %v3623
      %v3636 = vmul.f32 %v3616, %v3623
      %v3637 = vmul.f32 %v3617, %v3623
      %v3638 = vmul.f32 %v3618, %v3623
      %v3639 = vmul.f32 %v3619, %v3623
      %v3640 = vadd.f32 %v3587, %v3624
      %v3641 = vadd.f32 %v3588, %v3625
      %v3642 = vadd.f32 %v3589, %v3626
      %v3643 = vadd.f32 %v3590, %v3627
      %v3644 = vadd.f32 %v3591, %v3628
      %v3645 = vadd.f32 %v3592, %v3629
      %v3646 = vadd.f32 %v3593, %v3630
      %v3647 = vadd.f32 %v3594, %v3631
      %v3648 = vadd.f32 %v3595, %v3632
      %v3649 = vadd.f32 %v3596, %v3633
      %v3650 = vadd.f32 %v3597, %v3634
      %v3651 = vadd.f32 %v3598, %v3635
      %v3652 = vadd.f32 %v3599, %v3636
      %v3653 = vadd.f32 %v3600, %v3637
      %v3654 = vadd.f32 %v3601, %v3638
      %v3655 = vadd.f32 %v3602, %v3639
      %v3656 = vld [vmem:[%s3389 + $0x5] sm:$0x1]
      %v3657 = vld [vmem:[%s3391 + $0x5] sm:$0xff]
      %v3658 = vld [vmem:[%s3391 + $0xd] sm:$0xff]
      %v3659 = vld [vmem:[%s3391 + $0x1d] sm:$0xff]
      %v3660 = vld [vmem:[%s3391 + $0x25] sm:$0xff]
      %v3661 = vld [vmem:[%s3391 + $0x35] sm:$0xff]
      %v3662 = vld [vmem:[%s3391 + $0x3d] sm:$0xff]
      %v3663 = vld [vmem:[%s3391 + $0x4d] sm:$0xff]
      %v3664 = vld [vmem:[%s3391 + $0x55] sm:$0xff]
      %v3665 = vld [vmem:[%s3391 + $0x65] sm:$0xff]
      %v3666 = vld [vmem:[%s3391 + $0x6d] sm:$0xff]
      %v3667 = vld [vmem:[%s3391 + $0x7d] sm:$0xff]
      %v3668 = vld [vmem:[%s3391 + $0x85] sm:$0xff]
      %v3669 = vld [vmem:[%s3391 + $0x95] sm:$0xff]
      %v3670 = vld [vmem:[%s3391 + $0x9d] sm:$0xff]
      %v3671 = vld [vmem:[%s3391 + $0xad] sm:$0xff]
      %v3672 = vld [vmem:[%s3391 + $0xb5] sm:$0xff]
      %v3673 = vlaneseq
      %v3674 = vshrl.u32 %v3673, 7
      %v3675 = vsub.s32 0, %v3674
      %v3676 = vrot.slane %v3656, %v3675
      %v3677 = vmul.f32 %v3657, %v3676
      %v3678 = vmul.f32 %v3658, %v3676
      %v3679 = vmul.f32 %v3659, %v3676
      %v3680 = vmul.f32 %v3660, %v3676
      %v3681 = vmul.f32 %v3661, %v3676
      %v3682 = vmul.f32 %v3662, %v3676
      %v3683 = vmul.f32 %v3663, %v3676
      %v3684 = vmul.f32 %v3664, %v3676
      %v3685 = vmul.f32 %v3665, %v3676
      %v3686 = vmul.f32 %v3666, %v3676
      %v3687 = vmul.f32 %v3667, %v3676
      %v3688 = vmul.f32 %v3668, %v3676
      %v3689 = vmul.f32 %v3669, %v3676
      %v3690 = vmul.f32 %v3670, %v3676
      %v3691 = vmul.f32 %v3671, %v3676
      %v3692 = vmul.f32 %v3672, %v3676
      %v3693 = vadd.f32 %v3640, %v3677
      %v3694 = vadd.f32 %v3641, %v3678
      %v3695 = vadd.f32 %v3642, %v3679
      %v3696 = vadd.f32 %v3643, %v3680
      %v3697 = vadd.f32 %v3644, %v3681
      %v3698 = vadd.f32 %v3645, %v3682
      %v3699 = vadd.f32 %v3646, %v3683
      %v3700 = vadd.f32 %v3647, %v3684
      %v3701 = vadd.f32 %v3648, %v3685
      %v3702 = vadd.f32 %v3649, %v3686
      %v3703 = vadd.f32 %v3650, %v3687
      %v3704 = vadd.f32 %v3651, %v3688
      %v3705 = vadd.f32 %v3652, %v3689
      %v3706 = vadd.f32 %v3653, %v3690
      %v3707 = vadd.f32 %v3654, %v3691
      %v3708 = vadd.f32 %v3655, %v3692
      %v3709 = vld [vmem:[%s3389 + $0x6] sm:$0x1]
      %v3710 = vld [vmem:[%s3391 + $0x6] sm:$0xff]
      %v3711 = vld [vmem:[%s3391 + $0xe] sm:$0xff]
      %v3712 = vld [vmem:[%s3391 + $0x1e] sm:$0xff]
      %v3713 = vld [vmem:[%s3391 + $0x26] sm:$0xff]
      %v3714 = vld [vmem:[%s3391 + $0x36] sm:$0xff]
      %v3715 = vld [vmem:[%s3391 + $0x3e] sm:$0xff]
      %v3716 = vld [vmem:[%s3391 + $0x4e] sm:$0xff]
      %v3717 = vld [vmem:[%s3391 + $0x56] sm:$0xff]
      %v3718 = vld [vmem:[%s3391 + $0x66] sm:$0xff]
      %v3719 = vld [vmem:[%s3391 + $0x6e] sm:$0xff]
      %v3720 = vld [vmem:[%s3391 + $0x7e] sm:$0xff]
      %v3721 = vld [vmem:[%s3391 + $0x86] sm:$0xff]
      %v3722 = vld [vmem:[%s3391 + $0x96] sm:$0xff]
      %v3723 = vld [vmem:[%s3391 + $0x9e] sm:$0xff]
      %v3724 = vld [vmem:[%s3391 + $0xae] sm:$0xff]
      %v3725 = vld [vmem:[%s3391 + $0xb6] sm:$0xff]
      %v3726 = vlaneseq
      %v3727 = vshrl.u32 %v3726, 7
      %v3728 = vsub.s32 0, %v3727
      %v3729 = vrot.slane %v3709, %v3728
      %v3730 = vmul.f32 %v3710, %v3729
      %v3731 = vmul.f32 %v3711, %v3729
      %v3732 = vmul.f32 %v3712, %v3729
      %v3733 = vmul.f32 %v3713, %v3729
      %v3734 = vmul.f32 %v3714, %v3729
      %v3735 = vmul.f32 %v3715, %v3729
      %v3736 = vmul.f32 %v3716, %v3729
      %v3737 = vmul.f32 %v3717, %v3729
      %v3738 = vmul.f32 %v3718, %v3729
      %v3739 = vmul.f32 %v3719, %v3729
      %v3740 = vmul.f32 %v3720, %v3729
      %v3741 = vmul.f32 %v3721, %v3729
      %v3742 = vmul.f32 %v3722, %v3729
      %v3743 = vmul.f32 %v3723, %v3729
      %v3744 = vmul.f32 %v3724, %v3729
      %v3745 = vmul.f32 %v3725, %v3729
      %v3746 = vadd.f32 %v3693, %v3730
      %v3747 = vadd.f32 %v3694, %v3731
      %v3748 = vadd.f32 %v3695, %v3732
      %v3749 = vadd.f32 %v3696, %v3733
      %v3750 = vadd.f32 %v3697, %v3734
      %v3751 = vadd.f32 %v3698, %v3735
      %v3752 = vadd.f32 %v3699, %v3736
      %v3753 = vadd.f32 %v3700, %v3737
      %v3754 = vadd.f32 %v3701, %v3738
      %v3755 = vadd.f32 %v3702, %v3739
      %v3756 = vadd.f32 %v3703, %v3740
      %v3757 = vadd.f32 %v3704, %v3741
      %v3758 = vadd.f32 %v3705, %v3742
      %v3759 = vadd.f32 %v3706, %v3743
      %v3760 = vadd.f32 %v3707, %v3744
      %v3761 = vadd.f32 %v3708, %v3745
      %v3762 = vld [vmem:[%s3389 + $0x7] sm:$0x1]
      %v3763 = vld [vmem:[%s3391 + $0x7] sm:$0xff]
      %v3764 = vld [vmem:[%s3391 + $0xf] sm:$0xff]
      %v3765 = vld [vmem:[%s3391 + $0x1f] sm:$0xff]
      %v3766 = vld [vmem:[%s3391 + $0x27] sm:$0xff]
      %v3767 = vld [vmem:[%s3391 + $0x37] sm:$0xff]
      %v3768 = vld [vmem:[%s3391 + $0x3f] sm:$0xff]
      %v3769 = vld [vmem:[%s3391 + $0x4f] sm:$0xff]
      %v3770 = vld [vmem:[%s3391 + $0x57] sm:$0xff]
      %v3771 = vld [vmem:[%s3391 + $0x67] sm:$0xff]
      %v3772 = vld [vmem:[%s3391 + $0x6f] sm:$0xff]
      %v3773 = vld [vmem:[%s3391 + $0x7f] sm:$0xff]
      %v3774 = vld [vmem:[%s3391 + $0x87] sm:$0xff]
      %v3775 = vld [vmem:[%s3391 + $0x97] sm:$0xff]
      %v3776 = vld [vmem:[%s3391 + $0x9f] sm:$0xff]
      %v3777 = vld [vmem:[%s3391 + $0xaf] sm:$0xff]
      %v3778 = vld [vmem:[%s3391 + $0xb7] sm:$0xff]
      %v3779 = vlaneseq
      %v3780 = vshrl.u32 %v3779, 7
      %v3781 = vsub.s32 0, %v3780
      %v3782 = vrot.slane %v3762, %v3781
      %v3783 = vmul.f32 %v3763, %v3782
      %v3784 = vmul.f32 %v3764, %v3782
      %v3785 = vmul.f32 %v3765, %v3782
      %v3786 = vmul.f32 %v3766, %v3782
      %v3787 = vmul.f32 %v3767, %v3782
      %v3788 = vmul.f32 %v3768, %v3782
      %v3789 = vmul.f32 %v3769, %v3782
      %v3790 = vmul.f32 %v3770, %v3782
      %v3791 = vmul.f32 %v3771, %v3782
      %v3792 = vmul.f32 %v3772, %v3782
      %v3793 = vmul.f32 %v3773, %v3782
      %v3794 = vmul.f32 %v3774, %v3782
      %v3795 = vmul.f32 %v3775, %v3782
      %v3796 = vmul.f32 %v3776, %v3782
      %v3797 = vmul.f32 %v3777, %v3782
      %v3798 = vmul.f32 %v3778, %v3782
      %v3799 = vadd.f32 %v3746, %v3783
      %v3800 = vadd.f32 %v3747, %v3784
      %v3801 = vadd.f32 %v3748, %v3785
      %v3802 = vadd.f32 %v3749, %v3786
      %v3803 = vadd.f32 %v3750, %v3787
      %v3804 = vadd.f32 %v3751, %v3788
      %v3805 = vadd.f32 %v3752, %v3789
      %v3806 = vadd.f32 %v3753, %v3790
      %v3807 = vadd.f32 %v3754, %v3791
      %v3808 = vadd.f32 %v3755, %v3792
      %v3809 = vadd.f32 %v3756, %v3793
      %v3810 = vadd.f32 %v3757, %v3794
      %v3811 = vadd.f32 %v3758, %v3795
      %v3812 = vadd.f32 %v3759, %v3796
      %v3813 = vadd.f32 %v3760, %v3797
      %v3814 = vadd.f32 %v3761, %v3798
      %v3815 = vld [vmem:[%s3389 + $0x8] sm:$0x1]
      %v3816 = vld [vmem:[%s3391 + $0x10] sm:$0xff]
      %v3817 = vld [vmem:[%s3391 + $0x28] sm:$0xff]
      %v3818 = vld [vmem:[%s3391 + $0x40] sm:$0xff]
      %v3819 = vld [vmem:[%s3391 + $0x58] sm:$0xff]
      %v3820 = vld [vmem:[%s3391 + $0x70] sm:$0xff]
      %v3821 = vld [vmem:[%s3391 + $0x88] sm:$0xff]
      %v3822 = vld [vmem:[%s3391 + $0xa0] sm:$0xff]
      %v3823 = vld [vmem:[%s3391 + $0xb8] sm:$0xff]
      %v3824 = vlaneseq
      %v3825 = vshrl.u32 %v3824, 7
      %v3826 = vsub.s32 0, %v3825
      %v3827 = vrot.slane %v3815, %v3826
      %v3828 = vmul.f32 %v3393, %v3827
      %v3829 = vmul.f32 %v3816, %v3827
      %v3830 = vmul.f32 %v3395, %v3827
      %v3831 = vmul.f32 %v3817, %v3827
      %v3832 = vmul.f32 %v3397, %v3827
      %v3833 = vmul.f32 %v3818, %v3827
      %v3834 = vmul.f32 %v3399, %v3827
      %v3835 = vmul.f32 %v3819, %v3827
      %v3836 = vmul.f32 %v3401, %v3827
      %v3837 = vmul.f32 %v3820, %v3827
      %v3838 = vmul.f32 %v3403, %v3827
      %v3839 = vmul.f32 %v3821, %v3827
      %v3840 = vmul.f32 %v3405, %v3827
      %v3841 = vmul.f32 %v3822, %v3827
      %v3842 = vmul.f32 %v3407, %v3827
      %v3843 = vmul.f32 %v3823, %v3827
      %v3844 = vadd.f32 %v3799, %v3828
      %v3845 = vadd.f32 %v3800, %v3829
      %v3846 = vadd.f32 %v3801, %v3830
      %v3847 = vadd.f32 %v3802, %v3831
      %v3848 = vadd.f32 %v3803, %v3832
      %v3849 = vadd.f32 %v3804, %v3833
      %v3850 = vadd.f32 %v3805, %v3834
      %v3851 = vadd.f32 %v3806, %v3835
      %v3852 = vadd.f32 %v3807, %v3836
      %v3853 = vadd.f32 %v3808, %v3837
      %v3854 = vadd.f32 %v3809, %v3838
      %v3855 = vadd.f32 %v3810, %v3839
      %v3856 = vadd.f32 %v3811, %v3840
      %v3857 = vadd.f32 %v3812, %v3841
      %v3858 = vadd.f32 %v3813, %v3842
      %v3859 = vadd.f32 %v3814, %v3843
      %s3860 = scalar_lea.vmem %s2, 112
      %v3861 = vld [vmem:[%s3860] sm:$0x1]
      %s3862 = scalar_lea.vmem [#allocation2], 168
      %v3863 = vld [vmem:[%s3862] sm:$0xff]
      %v3864 = vld [vmem:[%s3862 + $0x8] sm:$0xff]
      %v3865 = vld [vmem:[%s3862 + $0x18] sm:$0xff]
      %v3866 = vld [vmem:[%s3862 + $0x20] sm:$0xff]
      %v3867 = vld [vmem:[%s3862 + $0x30] sm:$0xff]
      %v3868 = vld [vmem:[%s3862 + $0x38] sm:$0xff]
      %v3869 = vld [vmem:[%s3862 + $0x48] sm:$0xff]
      %v3870 = vld [vmem:[%s3862 + $0x50] sm:$0xff]
      %v3871 = vld [vmem:[%s3862 + $0x60] sm:$0xff]
      %v3872 = vld [vmem:[%s3862 + $0x68] sm:$0xff]
      %v3873 = vld [vmem:[%s3862 + $0x78] sm:$0xff]
      %v3874 = vld [vmem:[%s3862 + $0x80] sm:$0xff]
      %v3875 = vld [vmem:[%s3862 + $0x90] sm:$0xff]
      %v3876 = vld [vmem:[%s3862 + $0x98] sm:$0xff]
      %v3877 = vld [vmem:[%s3862 + $0xa8] sm:$0xff]
      %v3878 = vld [vmem:[%s3862 + $0xb0] sm:$0xff]
      %v3879 = vlaneseq
      %v3880 = vshrl.u32 %v3879, 7
      %v3881 = vsub.s32 0, %v3880
      %v3882 = vrot.slane %v3861, %v3881
      %v3883 = vmul.f32 %v3863, %v3882
      %v3884 = vmul.f32 %v3864, %v3882
      %v3885 = vmul.f32 %v3865, %v3882
      %v3886 = vmul.f32 %v3866, %v3882
      %v3887 = vmul.f32 %v3867, %v3882
      %v3888 = vmul.f32 %v3868, %v3882
      %v3889 = vmul.f32 %v3869, %v3882
      %v3890 = vmul.f32 %v3870, %v3882
      %v3891 = vmul.f32 %v3871, %v3882
      %v3892 = vmul.f32 %v3872, %v3882
      %v3893 = vmul.f32 %v3873, %v3882
      %v3894 = vmul.f32 %v3874, %v3882
      %v3895 = vmul.f32 %v3875, %v3882
      %v3896 = vmul.f32 %v3876, %v3882
      %v3897 = vmul.f32 %v3877, %v3882
      %v3898 = vmul.f32 %v3878, %v3882
      %v3899 = vadd.f32 %v3844, %v3883
      %v3900 = vadd.f32 %v3845, %v3884
      %v3901 = vadd.f32 %v3846, %v3885
      %v3902 = vadd.f32 %v3847, %v3886
      %v3903 = vadd.f32 %v3848, %v3887
      %v3904 = vadd.f32 %v3849, %v3888
      %v3905 = vadd.f32 %v3850, %v3889
      %v3906 = vadd.f32 %v3851, %v3890
      %v3907 = vadd.f32 %v3852, %v3891
      %v3908 = vadd.f32 %v3853, %v3892
      %v3909 = vadd.f32 %v3854, %v3893
      %v3910 = vadd.f32 %v3855, %v3894
      %v3911 = vadd.f32 %v3856, %v3895
      %v3912 = vadd.f32 %v3857, %v3896
      %v3913 = vadd.f32 %v3858, %v3897
      %v3914 = vadd.f32 %v3859, %v3898
      %v3915 = vld [vmem:[%s3860 + $0x1] sm:$0x1]
      %v3916 = vld [vmem:[%s3862 + $0x1] sm:$0xff]
      %v3917 = vld [vmem:[%s3862 + $0x9] sm:$0xff]
      %v3918 = vld [vmem:[%s3862 + $0x19] sm:$0xff]
      %v3919 = vld [vmem:[%s3862 + $0x21] sm:$0xff]
      %v3920 = vld [vmem:[%s3862 + $0x31] sm:$0xff]
      %v3921 = vld [vmem:[%s3862 + $0x39] sm:$0xff]
      %v3922 = vld [vmem:[%s3862 + $0x49] sm:$0xff]
      %v3923 = vld [vmem:[%s3862 + $0x51] sm:$0xff]
      %v3924 = vld [vmem:[%s3862 + $0x61] sm:$0xff]
      %v3925 = vld [vmem:[%s3862 + $0x69] sm:$0xff]
      %v3926 = vld [vmem:[%s3862 + $0x79] sm:$0xff]
      %v3927 = vld [vmem:[%s3862 + $0x81] sm:$0xff]
      %v3928 = vld [vmem:[%s3862 + $0x91] sm:$0xff]
      %v3929 = vld [vmem:[%s3862 + $0x99] sm:$0xff]
      %v3930 = vld [vmem:[%s3862 + $0xa9] sm:$0xff]
      %v3931 = vld [vmem:[%s3862 + $0xb1] sm:$0xff]
      %v3932 = vlaneseq
      %v3933 = vshrl.u32 %v3932, 7
      %v3934 = vsub.s32 0, %v3933
      %v3935 = vrot.slane %v3915, %v3934
      %v3936 = vmul.f32 %v3916, %v3935
      %v3937 = vmul.f32 %v3917, %v3935
      %v3938 = vmul.f32 %v3918, %v3935
      %v3939 = vmul.f32 %v3919, %v3935
      %v3940 = vmul.f32 %v3920, %v3935
      %v3941 = vmul.f32 %v3921, %v3935
      %v3942 = vmul.f32 %v3922, %v3935
      %v3943 = vmul.f32 %v3923, %v3935
      %v3944 = vmul.f32 %v3924, %v3935
      %v3945 = vmul.f32 %v3925, %v3935
      %v3946 = vmul.f32 %v3926, %v3935
      %v3947 = vmul.f32 %v3927, %v3935
      %v3948 = vmul.f32 %v3928, %v3935
      %v3949 = vmul.f32 %v3929, %v3935
      %v3950 = vmul.f32 %v3930, %v3935
      %v3951 = vmul.f32 %v3931, %v3935
      %v3952 = vadd.f32 %v3899, %v3936
      %v3953 = vadd.f32 %v3900, %v3937
      %v3954 = vadd.f32 %v3901, %v3938
      %v3955 = vadd.f32 %v3902, %v3939
      %v3956 = vadd.f32 %v3903, %v3940
      %v3957 = vadd.f32 %v3904, %v3941
      %v3958 = vadd.f32 %v3905, %v3942
      %v3959 = vadd.f32 %v3906, %v3943
      %v3960 = vadd.f32 %v3907, %v3944
      %v3961 = vadd.f32 %v3908, %v3945
      %v3962 = vadd.f32 %v3909, %v3946
      %v3963 = vadd.f32 %v3910, %v3947
      %v3964 = vadd.f32 %v3911, %v3948
      %v3965 = vadd.f32 %v3912, %v3949
      %v3966 = vadd.f32 %v3913, %v3950
      %v3967 = vadd.f32 %v3914, %v3951
      %v3968 = vld [vmem:[%s3860 + $0x2] sm:$0x1]
      %v3969 = vld [vmem:[%s3862 + $0x2] sm:$0xff]
      %v3970 = vld [vmem:[%s3862 + $0xa] sm:$0xff]
      %v3971 = vld [vmem:[%s3862 + $0x1a] sm:$0xff]
      %v3972 = vld [vmem:[%s3862 + $0x22] sm:$0xff]
      %v3973 = vld [vmem:[%s3862 + $0x32] sm:$0xff]
      %v3974 = vld [vmem:[%s3862 + $0x3a] sm:$0xff]
      %v3975 = vld [vmem:[%s3862 + $0x4a] sm:$0xff]
      %v3976 = vld [vmem:[%s3862 + $0x52] sm:$0xff]
      %v3977 = vld [vmem:[%s3862 + $0x62] sm:$0xff]
      %v3978 = vld [vmem:[%s3862 + $0x6a] sm:$0xff]
      %v3979 = vld [vmem:[%s3862 + $0x7a] sm:$0xff]
      %v3980 = vld [vmem:[%s3862 + $0x82] sm:$0xff]
      %v3981 = vld [vmem:[%s3862 + $0x92] sm:$0xff]
      %v3982 = vld [vmem:[%s3862 + $0x9a] sm:$0xff]
      %v3983 = vld [vmem:[%s3862 + $0xaa] sm:$0xff]
      %v3984 = vld [vmem:[%s3862 + $0xb2] sm:$0xff]
      %v3985 = vlaneseq
      %v3986 = vshrl.u32 %v3985, 7
      %v3987 = vsub.s32 0, %v3986
      %v3988 = vrot.slane %v3968, %v3987
      %v3989 = vmul.f32 %v3969, %v3988
      %v3990 = vmul.f32 %v3970, %v3988
      %v3991 = vmul.f32 %v3971, %v3988
      %v3992 = vmul.f32 %v3972, %v3988
      %v3993 = vmul.f32 %v3973, %v3988
      %v3994 = vmul.f32 %v3974, %v3988
      %v3995 = vmul.f32 %v3975, %v3988
      %v3996 = vmul.f32 %v3976, %v3988
      %v3997 = vmul.f32 %v3977, %v3988
      %v3998 = vmul.f32 %v3978, %v3988
      %v3999 = vmul.f32 %v3979, %v3988
      %v4000 = vmul.f32 %v3980, %v3988
      %v4001 = vmul.f32 %v3981, %v3988
      %v4002 = vmul.f32 %v3982, %v3988
      %v4003 = vmul.f32 %v3983, %v3988
      %v4004 = vmul.f32 %v3984, %v3988
      %v4005 = vadd.f32 %v3952, %v3989
      %v4006 = vadd.f32 %v3953, %v3990
      %v4007 = vadd.f32 %v3954, %v3991
      %v4008 = vadd.f32 %v3955, %v3992
      %v4009 = vadd.f32 %v3956, %v3993
      %v4010 = vadd.f32 %v3957, %v3994
      %v4011 = vadd.f32 %v3958, %v3995
      %v4012 = vadd.f32 %v3959, %v3996
      %v4013 = vadd.f32 %v3960, %v3997
      %v4014 = vadd.f32 %v3961, %v3998
      %v4015 = vadd.f32 %v3962, %v3999
      %v4016 = vadd.f32 %v3963, %v4000
      %v4017 = vadd.f32 %v3964, %v4001
      %v4018 = vadd.f32 %v3965, %v4002
      %v4019 = vadd.f32 %v3966, %v4003
      %v4020 = vadd.f32 %v3967, %v4004
      %v4021 = vld [vmem:[%s3860 + $0x3] sm:$0x1]
      %v4022 = vld [vmem:[%s3862 + $0x3] sm:$0xff]
      %v4023 = vld [vmem:[%s3862 + $0xb] sm:$0xff]
      %v4024 = vld [vmem:[%s3862 + $0x1b] sm:$0xff]
      %v4025 = vld [vmem:[%s3862 + $0x23] sm:$0xff]
      %v4026 = vld [vmem:[%s3862 + $0x33] sm:$0xff]
      %v4027 = vld [vmem:[%s3862 + $0x3b] sm:$0xff]
      %v4028 = vld [vmem:[%s3862 + $0x4b] sm:$0xff]
      %v4029 = vld [vmem:[%s3862 + $0x53] sm:$0xff]
      %v4030 = vld [vmem:[%s3862 + $0x63] sm:$0xff]
      %v4031 = vld [vmem:[%s3862 + $0x6b] sm:$0xff]
      %v4032 = vld [vmem:[%s3862 + $0x7b] sm:$0xff]
      %v4033 = vld [vmem:[%s3862 + $0x83] sm:$0xff]
      %v4034 = vld [vmem:[%s3862 + $0x93] sm:$0xff]
      %v4035 = vld [vmem:[%s3862 + $0x9b] sm:$0xff]
      %v4036 = vld [vmem:[%s3862 + $0xab] sm:$0xff]
      %v4037 = vld [vmem:[%s3862 + $0xb3] sm:$0xff]
      %v4038 = vlaneseq
      %v4039 = vshrl.u32 %v4038, 7
      %v4040 = vsub.s32 0, %v4039
      %v4041 = vrot.slane %v4021, %v4040
      %v4042 = vmul.f32 %v4022, %v4041
      %v4043 = vmul.f32 %v4023, %v4041
      %v4044 = vmul.f32 %v4024, %v4041
      %v4045 = vmul.f32 %v4025, %v4041
      %v4046 = vmul.f32 %v4026, %v4041
      %v4047 = vmul.f32 %v4027, %v4041
      %v4048 = vmul.f32 %v4028, %v4041
      %v4049 = vmul.f32 %v4029, %v4041
      %v4050 = vmul.f32 %v4030, %v4041
      %v4051 = vmul.f32 %v4031, %v4041
      %v4052 = vmul.f32 %v4032, %v4041
      %v4053 = vmul.f32 %v4033, %v4041
      %v4054 = vmul.f32 %v4034, %v4041
      %v4055 = vmul.f32 %v4035, %v4041
      %v4056 = vmul.f32 %v4036, %v4041
      %v4057 = vmul.f32 %v4037, %v4041
      %v4058 = vadd.f32 %v4005, %v4042
      %v4059 = vadd.f32 %v4006, %v4043
      %v4060 = vadd.f32 %v4007, %v4044
      %v4061 = vadd.f32 %v4008, %v4045
      %v4062 = vadd.f32 %v4009, %v4046
      %v4063 = vadd.f32 %v4010, %v4047
      %v4064 = vadd.f32 %v4011, %v4048
      %v4065 = vadd.f32 %v4012, %v4049
      %v4066 = vadd.f32 %v4013, %v4050
      %v4067 = vadd.f32 %v4014, %v4051
      %v4068 = vadd.f32 %v4015, %v4052
      %v4069 = vadd.f32 %v4016, %v4053
      %v4070 = vadd.f32 %v4017, %v4054
      %v4071 = vadd.f32 %v4018, %v4055
      %v4072 = vadd.f32 %v4019, %v4056
      %v4073 = vadd.f32 %v4020, %v4057
      %v4074 = vld [vmem:[%s3860 + $0x4] sm:$0x1]
      %v4075 = vld [vmem:[%s3862 + $0x4] sm:$0xff]
      %v4076 = vld [vmem:[%s3862 + $0xc] sm:$0xff]
      %v4077 = vld [vmem:[%s3862 + $0x1c] sm:$0xff]
      %v4078 = vld [vmem:[%s3862 + $0x24] sm:$0xff]
      %v4079 = vld [vmem:[%s3862 + $0x34] sm:$0xff]
      %v4080 = vld [vmem:[%s3862 + $0x3c] sm:$0xff]
      %v4081 = vld [vmem:[%s3862 + $0x4c] sm:$0xff]
      %v4082 = vld [vmem:[%s3862 + $0x54] sm:$0xff]
      %v4083 = vld [vmem:[%s3862 + $0x64] sm:$0xff]
      %v4084 = vld [vmem:[%s3862 + $0x6c] sm:$0xff]
      %v4085 = vld [vmem:[%s3862 + $0x7c] sm:$0xff]
      %v4086 = vld [vmem:[%s3862 + $0x84] sm:$0xff]
      %v4087 = vld [vmem:[%s3862 + $0x94] sm:$0xff]
      %v4088 = vld [vmem:[%s3862 + $0x9c] sm:$0xff]
      %v4089 = vld [vmem:[%s3862 + $0xac] sm:$0xff]
      %v4090 = vld [vmem:[%s3862 + $0xb4] sm:$0xff]
      %v4091 = vlaneseq
      %v4092 = vshrl.u32 %v4091, 7
      %v4093 = vsub.s32 0, %v4092
      %v4094 = vrot.slane %v4074, %v4093
      %v4095 = vmul.f32 %v4075, %v4094
      %v4096 = vmul.f32 %v4076, %v4094
      %v4097 = vmul.f32 %v4077, %v4094
      %v4098 = vmul.f32 %v4078, %v4094
      %v4099 = vmul.f32 %v4079, %v4094
      %v4100 = vmul.f32 %v4080, %v4094
      %v4101 = vmul.f32 %v4081, %v4094
      %v4102 = vmul.f32 %v4082, %v4094
      %v4103 = vmul.f32 %v4083, %v4094
      %v4104 = vmul.f32 %v4084, %v4094
      %v4105 = vmul.f32 %v4085, %v4094
      %v4106 = vmul.f32 %v4086, %v4094
      %v4107 = vmul.f32 %v4087, %v4094
      %v4108 = vmul.f32 %v4088, %v4094
      %v4109 = vmul.f32 %v4089, %v4094
      %v4110 = vmul.f32 %v4090, %v4094
      %v4111 = vadd.f32 %v4058, %v4095
      %v4112 = vadd.f32 %v4059, %v4096
      %v4113 = vadd.f32 %v4060, %v4097
      %v4114 = vadd.f32 %v4061, %v4098
      %v4115 = vadd.f32 %v4062, %v4099
      %v4116 = vadd.f32 %v4063, %v4100
      %v4117 = vadd.f32 %v4064, %v4101
      %v4118 = vadd.f32 %v4065, %v4102
      %v4119 = vadd.f32 %v4066, %v4103
      %v4120 = vadd.f32 %v4067, %v4104
      %v4121 = vadd.f32 %v4068, %v4105
      %v4122 = vadd.f32 %v4069, %v4106
      %v4123 = vadd.f32 %v4070, %v4107
      %v4124 = vadd.f32 %v4071, %v4108
      %v4125 = vadd.f32 %v4072, %v4109
      %v4126 = vadd.f32 %v4073, %v4110
      %v4127 = vld [vmem:[%s3860 + $0x5] sm:$0x1]
      %v4128 = vld [vmem:[%s3862 + $0x5] sm:$0xff]
      %v4129 = vld [vmem:[%s3862 + $0xd] sm:$0xff]
      %v4130 = vld [vmem:[%s3862 + $0x1d] sm:$0xff]
      %v4131 = vld [vmem:[%s3862 + $0x25] sm:$0xff]
      %v4132 = vld [vmem:[%s3862 + $0x35] sm:$0xff]
      %v4133 = vld [vmem:[%s3862 + $0x3d] sm:$0xff]
      %v4134 = vld [vmem:[%s3862 + $0x4d] sm:$0xff]
      %v4135 = vld [vmem:[%s3862 + $0x55] sm:$0xff]
      %v4136 = vld [vmem:[%s3862 + $0x65] sm:$0xff]
      %v4137 = vld [vmem:[%s3862 + $0x6d] sm:$0xff]
      %v4138 = vld [vmem:[%s3862 + $0x7d] sm:$0xff]
      %v4139 = vld [vmem:[%s3862 + $0x85] sm:$0xff]
      %v4140 = vld [vmem:[%s3862 + $0x95] sm:$0xff]
      %v4141 = vld [vmem:[%s3862 + $0x9d] sm:$0xff]
      %v4142 = vld [vmem:[%s3862 + $0xad] sm:$0xff]
      %v4143 = vld [vmem:[%s3862 + $0xb5] sm:$0xff]
      %v4144 = vlaneseq
      %v4145 = vshrl.u32 %v4144, 7
      %v4146 = vsub.s32 0, %v4145
      %v4147 = vrot.slane %v4127, %v4146
      %v4148 = vmul.f32 %v4128, %v4147
      %v4149 = vmul.f32 %v4129, %v4147
      %v4150 = vmul.f32 %v4130, %v4147
      %v4151 = vmul.f32 %v4131, %v4147
      %v4152 = vmul.f32 %v4132, %v4147
      %v4153 = vmul.f32 %v4133, %v4147
      %v4154 = vmul.f32 %v4134, %v4147
      %v4155 = vmul.f32 %v4135, %v4147
      %v4156 = vmul.f32 %v4136, %v4147
      %v4157 = vmul.f32 %v4137, %v4147
      %v4158 = vmul.f32 %v4138, %v4147
      %v4159 = vmul.f32 %v4139, %v4147
      %v4160 = vmul.f32 %v4140, %v4147
      %v4161 = vmul.f32 %v4141, %v4147
      %v4162 = vmul.f32 %v4142, %v4147
      %v4163 = vmul.f32 %v4143, %v4147
      %v4164 = vadd.f32 %v4111, %v4148
      %v4165 = vadd.f32 %v4112, %v4149
      %v4166 = vadd.f32 %v4113, %v4150
      %v4167 = vadd.f32 %v4114, %v4151
      %v4168 = vadd.f32 %v4115, %v4152
      %v4169 = vadd.f32 %v4116, %v4153
      %v4170 = vadd.f32 %v4117, %v4154
      %v4171 = vadd.f32 %v4118, %v4155
      %v4172 = vadd.f32 %v4119, %v4156
      %v4173 = vadd.f32 %v4120, %v4157
      %v4174 = vadd.f32 %v4121, %v4158
      %v4175 = vadd.f32 %v4122, %v4159
      %v4176 = vadd.f32 %v4123, %v4160
      %v4177 = vadd.f32 %v4124, %v4161
      %v4178 = vadd.f32 %v4125, %v4162
      %v4179 = vadd.f32 %v4126, %v4163
      %v4180 = vld [vmem:[%s3860 + $0x6] sm:$0x1]
      %v4181 = vld [vmem:[%s3862 + $0x6] sm:$0xff]
      %v4182 = vld [vmem:[%s3862 + $0xe] sm:$0xff]
      %v4183 = vld [vmem:[%s3862 + $0x1e] sm:$0xff]
      %v4184 = vld [vmem:[%s3862 + $0x26] sm:$0xff]
      %v4185 = vld [vmem:[%s3862 + $0x36] sm:$0xff]
      %v4186 = vld [vmem:[%s3862 + $0x3e] sm:$0xff]
      %v4187 = vld [vmem:[%s3862 + $0x4e] sm:$0xff]
      %v4188 = vld [vmem:[%s3862 + $0x56] sm:$0xff]
      %v4189 = vld [vmem:[%s3862 + $0x66] sm:$0xff]
      %v4190 = vld [vmem:[%s3862 + $0x6e] sm:$0xff]
      %v4191 = vld [vmem:[%s3862 + $0x7e] sm:$0xff]
      %v4192 = vld [vmem:[%s3862 + $0x86] sm:$0xff]
      %v4193 = vld [vmem:[%s3862 + $0x96] sm:$0xff]
      %v4194 = vld [vmem:[%s3862 + $0x9e] sm:$0xff]
      %v4195 = vld [vmem:[%s3862 + $0xae] sm:$0xff]
      %v4196 = vld [vmem:[%s3862 + $0xb6] sm:$0xff]
      %v4197 = vlaneseq
      %v4198 = vshrl.u32 %v4197, 7
      %v4199 = vsub.s32 0, %v4198
      %v4200 = vrot.slane %v4180, %v4199
      %v4201 = vmul.f32 %v4181, %v4200
      %v4202 = vmul.f32 %v4182, %v4200
      %v4203 = vmul.f32 %v4183, %v4200
      %v4204 = vmul.f32 %v4184, %v4200
      %v4205 = vmul.f32 %v4185, %v4200
      %v4206 = vmul.f32 %v4186, %v4200
      %v4207 = vmul.f32 %v4187, %v4200
      %v4208 = vmul.f32 %v4188, %v4200
      %v4209 = vmul.f32 %v4189, %v4200
      %v4210 = vmul.f32 %v4190, %v4200
      %v4211 = vmul.f32 %v4191, %v4200
      %v4212 = vmul.f32 %v4192, %v4200
      %v4213 = vmul.f32 %v4193, %v4200
      %v4214 = vmul.f32 %v4194, %v4200
      %v4215 = vmul.f32 %v4195, %v4200
      %v4216 = vmul.f32 %v4196, %v4200
      %v4217 = vadd.f32 %v4164, %v4201
      %v4218 = vadd.f32 %v4165, %v4202
      %v4219 = vadd.f32 %v4166, %v4203
      %v4220 = vadd.f32 %v4167, %v4204
      %v4221 = vadd.f32 %v4168, %v4205
      %v4222 = vadd.f32 %v4169, %v4206
      %v4223 = vadd.f32 %v4170, %v4207
      %v4224 = vadd.f32 %v4171, %v4208
      %v4225 = vadd.f32 %v4172, %v4209
      %v4226 = vadd.f32 %v4173, %v4210
      %v4227 = vadd.f32 %v4174, %v4211
      %v4228 = vadd.f32 %v4175, %v4212
      %v4229 = vadd.f32 %v4176, %v4213
      %v4230 = vadd.f32 %v4177, %v4214
      %v4231 = vadd.f32 %v4178, %v4215
      %v4232 = vadd.f32 %v4179, %v4216
      %v4233 = vld [vmem:[%s3860 + $0x7] sm:$0x1]
      %v4234 = vld [vmem:[%s3862 + $0x7] sm:$0xff]
      %v4235 = vld [vmem:[%s3862 + $0xf] sm:$0xff]
      %v4236 = vld [vmem:[%s3862 + $0x1f] sm:$0xff]
      %v4237 = vld [vmem:[%s3862 + $0x27] sm:$0xff]
      %v4238 = vld [vmem:[%s3862 + $0x37] sm:$0xff]
      %v4239 = vld [vmem:[%s3862 + $0x3f] sm:$0xff]
      %v4240 = vld [vmem:[%s3862 + $0x4f] sm:$0xff]
      %v4241 = vld [vmem:[%s3862 + $0x57] sm:$0xff]
      %v4242 = vld [vmem:[%s3862 + $0x67] sm:$0xff]
      %v4243 = vld [vmem:[%s3862 + $0x6f] sm:$0xff]
      %v4244 = vld [vmem:[%s3862 + $0x7f] sm:$0xff]
      %v4245 = vld [vmem:[%s3862 + $0x87] sm:$0xff]
      %v4246 = vld [vmem:[%s3862 + $0x97] sm:$0xff]
      %v4247 = vld [vmem:[%s3862 + $0x9f] sm:$0xff]
      %v4248 = vld [vmem:[%s3862 + $0xaf] sm:$0xff]
      %v4249 = vld [vmem:[%s3862 + $0xb7] sm:$0xff]
      %v4250 = vlaneseq
      %v4251 = vshrl.u32 %v4250, 7
      %v4252 = vsub.s32 0, %v4251
      %v4253 = vrot.slane %v4233, %v4252
      %v4254 = vmul.f32 %v4234, %v4253
      %v4255 = vmul.f32 %v4235, %v4253
      %v4256 = vmul.f32 %v4236, %v4253
      %v4257 = vmul.f32 %v4237, %v4253
      %v4258 = vmul.f32 %v4238, %v4253
      %v4259 = vmul.f32 %v4239, %v4253
      %v4260 = vmul.f32 %v4240, %v4253
      %v4261 = vmul.f32 %v4241, %v4253
      %v4262 = vmul.f32 %v4242, %v4253
      %v4263 = vmul.f32 %v4243, %v4253
      %v4264 = vmul.f32 %v4244, %v4253
      %v4265 = vmul.f32 %v4245, %v4253
      %v4266 = vmul.f32 %v4246, %v4253
      %v4267 = vmul.f32 %v4247, %v4253
      %v4268 = vmul.f32 %v4248, %v4253
      %v4269 = vmul.f32 %v4249, %v4253
      %v4270 = vadd.f32 %v4217, %v4254
      %v4271 = vadd.f32 %v4218, %v4255
      %v4272 = vadd.f32 %v4219, %v4256
      %v4273 = vadd.f32 %v4220, %v4257
      %v4274 = vadd.f32 %v4221, %v4258
      %v4275 = vadd.f32 %v4222, %v4259
      %v4276 = vadd.f32 %v4223, %v4260
      %v4277 = vadd.f32 %v4224, %v4261
      %v4278 = vadd.f32 %v4225, %v4262
      %v4279 = vadd.f32 %v4226, %v4263
      %v4280 = vadd.f32 %v4227, %v4264
      %v4281 = vadd.f32 %v4228, %v4265
      %v4282 = vadd.f32 %v4229, %v4266
      %v4283 = vadd.f32 %v4230, %v4267
      %v4284 = vadd.f32 %v4231, %v4268
      %v4285 = vadd.f32 %v4232, %v4269
      %v4286 = vld [vmem:[%s3860 + $0x8] sm:$0x1]
      %v4287 = vld [vmem:[%s3862 + $0x10] sm:$0xff]
      %v4288 = vld [vmem:[%s3862 + $0x28] sm:$0xff]
      %v4289 = vld [vmem:[%s3862 + $0x40] sm:$0xff]
      %v4290 = vld [vmem:[%s3862 + $0x58] sm:$0xff]
      %v4291 = vld [vmem:[%s3862 + $0x70] sm:$0xff]
      %v4292 = vld [vmem:[%s3862 + $0x88] sm:$0xff]
      %v4293 = vld [vmem:[%s3862 + $0xa0] sm:$0xff]
      %v4294 = vld [vmem:[%s3862 + $0xb8] sm:$0xff]
      %v4295 = vlaneseq
      %v4296 = vshrl.u32 %v4295, 7
      %v4297 = vsub.s32 0, %v4296
      %v4298 = vrot.slane %v4286, %v4297
      %v4299 = vmul.f32 %v3864, %v4298
      %v4300 = vmul.f32 %v4287, %v4298
      %v4301 = vmul.f32 %v3866, %v4298
      %v4302 = vmul.f32 %v4288, %v4298
      %v4303 = vmul.f32 %v3868, %v4298
      %v4304 = vmul.f32 %v4289, %v4298
      %v4305 = vmul.f32 %v3870, %v4298
      %v4306 = vmul.f32 %v4290, %v4298
      %v4307 = vmul.f32 %v3872, %v4298
      %v4308 = vmul.f32 %v4291, %v4298
      %v4309 = vmul.f32 %v3874, %v4298
      %v4310 = vmul.f32 %v4292, %v4298
      %v4311 = vmul.f32 %v3876, %v4298
      %v4312 = vmul.f32 %v4293, %v4298
      %v4313 = vmul.f32 %v3878, %v4298
      %v4314 = vmul.f32 %v4294, %v4298
      %v4315 = vadd.f32 %v4270, %v4299
      %v4316 = vadd.f32 %v4271, %v4300
      %v4317 = vadd.f32 %v4272, %v4301
      %v4318 = vadd.f32 %v4273, %v4302
      %v4319 = vadd.f32 %v4274, %v4303
      %v4320 = vadd.f32 %v4275, %v4304
      %v4321 = vadd.f32 %v4276, %v4305
      %v4322 = vadd.f32 %v4277, %v4306
      %v4323 = vadd.f32 %v4278, %v4307
      %v4324 = vadd.f32 %v4279, %v4308
      %v4325 = vadd.f32 %v4280, %v4309
      %v4326 = vadd.f32 %v4281, %v4310
      %v4327 = vadd.f32 %v4282, %v4311
      %v4328 = vadd.f32 %v4283, %v4312
      %v4329 = vadd.f32 %v4284, %v4313
      %v4330 = vadd.f32 %v4285, %v4314
      %s4331 = scalar_lea.vmem %s2, 128
      %v4332 = vld [vmem:[%s4331] sm:$0x1]
      %v4333 = vld [vmem:[%s507] sm:$0xff]
      %v4334 = vld [vmem:[%s507 + $0x8] sm:$0xff]
      %v4335 = vld [vmem:[%s507 + $0x18] sm:$0xff]
      %v4336 = vld [vmem:[%s507 + $0x20] sm:$0xff]
      %v4337 = vld [vmem:[%s507 + $0x30] sm:$0xff]
      %v4338 = vld [vmem:[%s507 + $0x38] sm:$0xff]
      %v4339 = vld [vmem:[%s507 + $0x48] sm:$0xff]
      %v4340 = vld [vmem:[%s507 + $0x50] sm:$0xff]
      %v4341 = vld [vmem:[%s507 + $0x60] sm:$0xff]
      %v4342 = vld [vmem:[%s507 + $0x68] sm:$0xff]
      %v4343 = vld [vmem:[%s507 + $0x78] sm:$0xff]
      %v4344 = vld [vmem:[%s507 + $0x80] sm:$0xff]
      %v4345 = vld [vmem:[%s507 + $0x90] sm:$0xff]
      %v4346 = vld [vmem:[%s507 + $0x98] sm:$0xff]
      %v4347 = vld [vmem:[%s507 + $0xa8] sm:$0xff]
      %v4348 = vld [vmem:[%s507 + $0xb0] sm:$0xff]
      %v4349 = vlaneseq
      %v4350 = vshrl.u32 %v4349, 7
      %v4351 = vsub.s32 0, %v4350
      %v4352 = vrot.slane %v4332, %v4351
      %v4353 = vmul.f32 %v4333, %v4352
      %v4354 = vmul.f32 %v4334, %v4352
      %v4355 = vmul.f32 %v4335, %v4352
      %v4356 = vmul.f32 %v4336, %v4352
      %v4357 = vmul.f32 %v4337, %v4352
      %v4358 = vmul.f32 %v4338, %v4352
      %v4359 = vmul.f32 %v4339, %v4352
      %v4360 = vmul.f32 %v4340, %v4352
      %v4361 = vmul.f32 %v4341, %v4352
      %v4362 = vmul.f32 %v4342, %v4352
      %v4363 = vmul.f32 %v4343, %v4352
      %v4364 = vmul.f32 %v4344, %v4352
      %v4365 = vmul.f32 %v4345, %v4352
      %v4366 = vmul.f32 %v4346, %v4352
      %v4367 = vmul.f32 %v4347, %v4352
      %v4368 = vmul.f32 %v4348, %v4352
      %v4369 = vadd.f32 %v4315, %v4353
      %v4370 = vadd.f32 %v4316, %v4354
      %v4371 = vadd.f32 %v4317, %v4355
      %v4372 = vadd.f32 %v4318, %v4356
      %v4373 = vadd.f32 %v4319, %v4357
      %v4374 = vadd.f32 %v4320, %v4358
      %v4375 = vadd.f32 %v4321, %v4359
      %v4376 = vadd.f32 %v4322, %v4360
      %v4377 = vadd.f32 %v4323, %v4361
      %v4378 = vadd.f32 %v4324, %v4362
      %v4379 = vadd.f32 %v4325, %v4363
      %v4380 = vadd.f32 %v4326, %v4364
      %v4381 = vadd.f32 %v4327, %v4365
      %v4382 = vadd.f32 %v4328, %v4366
      %v4383 = vadd.f32 %v4329, %v4367
      %v4384 = vadd.f32 %v4330, %v4368
      %v4385 = vld [vmem:[%s4331 + $0x1] sm:$0x1]
      %v4386 = vld [vmem:[%s507 + $0x1] sm:$0xff]
      %v4387 = vld [vmem:[%s507 + $0x9] sm:$0xff]
      %v4388 = vld [vmem:[%s507 + $0x19] sm:$0xff]
      %v4389 = vld [vmem:[%s507 + $0x21] sm:$0xff]
      %v4390 = vld [vmem:[%s507 + $0x31] sm:$0xff]
      %v4391 = vld [vmem:[%s507 + $0x39] sm:$0xff]
      %v4392 = vld [vmem:[%s507 + $0x49] sm:$0xff]
      %v4393 = vld [vmem:[%s507 + $0x51] sm:$0xff]
      %v4394 = vld [vmem:[%s507 + $0x61] sm:$0xff]
      %v4395 = vld [vmem:[%s507 + $0x69] sm:$0xff]
      %v4396 = vld [vmem:[%s507 + $0x79] sm:$0xff]
      %v4397 = vld [vmem:[%s507 + $0x81] sm:$0xff]
      %v4398 = vld [vmem:[%s507 + $0x91] sm:$0xff]
      %v4399 = vld [vmem:[%s507 + $0x99] sm:$0xff]
      %v4400 = vld [vmem:[%s507 + $0xa9] sm:$0xff]
      %v4401 = vld [vmem:[%s507 + $0xb1] sm:$0xff]
      %v4402 = vlaneseq
      %v4403 = vshrl.u32 %v4402, 7
      %v4404 = vsub.s32 0, %v4403
      %v4405 = vrot.slane %v4385, %v4404
      %v4406 = vmul.f32 %v4386, %v4405
      %v4407 = vmul.f32 %v4387, %v4405
      %v4408 = vmul.f32 %v4388, %v4405
      %v4409 = vmul.f32 %v4389, %v4405
      %v4410 = vmul.f32 %v4390, %v4405
      %v4411 = vmul.f32 %v4391, %v4405
      %v4412 = vmul.f32 %v4392, %v4405
      %v4413 = vmul.f32 %v4393, %v4405
      %v4414 = vmul.f32 %v4394, %v4405
      %v4415 = vmul.f32 %v4395, %v4405
      %v4416 = vmul.f32 %v4396, %v4405
      %v4417 = vmul.f32 %v4397, %v4405
      %v4418 = vmul.f32 %v4398, %v4405
      %v4419 = vmul.f32 %v4399, %v4405
      %v4420 = vmul.f32 %v4400, %v4405
      %v4421 = vmul.f32 %v4401, %v4405
      %v4422 = vadd.f32 %v4369, %v4406
      %v4423 = vadd.f32 %v4370, %v4407
      %v4424 = vadd.f32 %v4371, %v4408
      %v4425 = vadd.f32 %v4372, %v4409
      %v4426 = vadd.f32 %v4373, %v4410
      %v4427 = vadd.f32 %v4374, %v4411
      %v4428 = vadd.f32 %v4375, %v4412
      %v4429 = vadd.f32 %v4376, %v4413
      %v4430 = vadd.f32 %v4377, %v4414
      %v4431 = vadd.f32 %v4378, %v4415
      %v4432 = vadd.f32 %v4379, %v4416
      %v4433 = vadd.f32 %v4380, %v4417
      %v4434 = vadd.f32 %v4381, %v4418
      %v4435 = vadd.f32 %v4382, %v4419
      %v4436 = vadd.f32 %v4383, %v4420
      %v4437 = vadd.f32 %v4384, %v4421
      %v4438 = vld [vmem:[%s4331 + $0x2] sm:$0x1]
      %v4439 = vld [vmem:[%s507 + $0x2] sm:$0xff]
      %v4440 = vld [vmem:[%s507 + $0xa] sm:$0xff]
      %v4441 = vld [vmem:[%s507 + $0x1a] sm:$0xff]
      %v4442 = vld [vmem:[%s507 + $0x22] sm:$0xff]
      %v4443 = vld [vmem:[%s507 + $0x32] sm:$0xff]
      %v4444 = vld [vmem:[%s507 + $0x3a] sm:$0xff]
      %v4445 = vld [vmem:[%s507 + $0x4a] sm:$0xff]
      %v4446 = vld [vmem:[%s507 + $0x52] sm:$0xff]
      %v4447 = vld [vmem:[%s507 + $0x62] sm:$0xff]
      %v4448 = vld [vmem:[%s507 + $0x6a] sm:$0xff]
      %v4449 = vld [vmem:[%s507 + $0x7a] sm:$0xff]
      %v4450 = vld [vmem:[%s507 + $0x82] sm:$0xff]
      %v4451 = vld [vmem:[%s507 + $0x92] sm:$0xff]
      %v4452 = vld [vmem:[%s507 + $0x9a] sm:$0xff]
      %v4453 = vld [vmem:[%s507 + $0xaa] sm:$0xff]
      %v4454 = vld [vmem:[%s507 + $0xb2] sm:$0xff]
      %v4455 = vlaneseq
      %v4456 = vshrl.u32 %v4455, 7
      %v4457 = vsub.s32 0, %v4456
      %v4458 = vrot.slane %v4438, %v4457
      %v4459 = vmul.f32 %v4439, %v4458
      %v4460 = vmul.f32 %v4440, %v4458
      %v4461 = vmul.f32 %v4441, %v4458
      %v4462 = vmul.f32 %v4442, %v4458
      %v4463 = vmul.f32 %v4443, %v4458
      %v4464 = vmul.f32 %v4444, %v4458
      %v4465 = vmul.f32 %v4445, %v4458
      %v4466 = vmul.f32 %v4446, %v4458
      %v4467 = vmul.f32 %v4447, %v4458
      %v4468 = vmul.f32 %v4448, %v4458
      %v4469 = vmul.f32 %v4449, %v4458
      %v4470 = vmul.f32 %v4450, %v4458
      %v4471 = vmul.f32 %v4451, %v4458
      %v4472 = vmul.f32 %v4452, %v4458
      %v4473 = vmul.f32 %v4453, %v4458
      %v4474 = vmul.f32 %v4454, %v4458
      %v4475 = vadd.f32 %v4422, %v4459
      %v4476 = vadd.f32 %v4423, %v4460
      %v4477 = vadd.f32 %v4424, %v4461
      %v4478 = vadd.f32 %v4425, %v4462
      %v4479 = vadd.f32 %v4426, %v4463
      %v4480 = vadd.f32 %v4427, %v4464
      %v4481 = vadd.f32 %v4428, %v4465
      %v4482 = vadd.f32 %v4429, %v4466
      %v4483 = vadd.f32 %v4430, %v4467
      %v4484 = vadd.f32 %v4431, %v4468
      %v4485 = vadd.f32 %v4432, %v4469
      %v4486 = vadd.f32 %v4433, %v4470
      %v4487 = vadd.f32 %v4434, %v4471
      %v4488 = vadd.f32 %v4435, %v4472
      %v4489 = vadd.f32 %v4436, %v4473
      %v4490 = vadd.f32 %v4437, %v4474
      %v4491 = vld [vmem:[%s4331 + $0x3] sm:$0x1]
      %v4492 = vld [vmem:[%s507 + $0x3] sm:$0xff]
      %v4493 = vld [vmem:[%s507 + $0xb] sm:$0xff]
      %v4494 = vld [vmem:[%s507 + $0x1b] sm:$0xff]
      %v4495 = vld [vmem:[%s507 + $0x23] sm:$0xff]
      %v4496 = vld [vmem:[%s507 + $0x33] sm:$0xff]
      %v4497 = vld [vmem:[%s507 + $0x3b] sm:$0xff]
      %v4498 = vld [vmem:[%s507 + $0x4b] sm:$0xff]
      %v4499 = vld [vmem:[%s507 + $0x53] sm:$0xff]
      %v4500 = vld [vmem:[%s507 + $0x63] sm:$0xff]
      %v4501 = vld [vmem:[%s507 + $0x6b] sm:$0xff]
      %v4502 = vld [vmem:[%s507 + $0x7b] sm:$0xff]
      %v4503 = vld [vmem:[%s507 + $0x83] sm:$0xff]
      %v4504 = vld [vmem:[%s507 + $0x93] sm:$0xff]
      %v4505 = vld [vmem:[%s507 + $0x9b] sm:$0xff]
      %v4506 = vld [vmem:[%s507 + $0xab] sm:$0xff]
      %v4507 = vld [vmem:[%s507 + $0xb3] sm:$0xff]
      %v4508 = vlaneseq
      %v4509 = vshrl.u32 %v4508, 7
      %v4510 = vsub.s32 0, %v4509
      %v4511 = vrot.slane %v4491, %v4510
      %v4512 = vmul.f32 %v4492, %v4511
      %v4513 = vmul.f32 %v4493, %v4511
      %v4514 = vmul.f32 %v4494, %v4511
      %v4515 = vmul.f32 %v4495, %v4511
      %v4516 = vmul.f32 %v4496, %v4511
      %v4517 = vmul.f32 %v4497, %v4511
      %v4518 = vmul.f32 %v4498, %v4511
      %v4519 = vmul.f32 %v4499, %v4511
      %v4520 = vmul.f32 %v4500, %v4511
      %v4521 = vmul.f32 %v4501, %v4511
      %v4522 = vmul.f32 %v4502, %v4511
      %v4523 = vmul.f32 %v4503, %v4511
      %v4524 = vmul.f32 %v4504, %v4511
      %v4525 = vmul.f32 %v4505, %v4511
      %v4526 = vmul.f32 %v4506, %v4511
      %v4527 = vmul.f32 %v4507, %v4511
      %v4528 = vadd.f32 %v4475, %v4512
      %v4529 = vadd.f32 %v4476, %v4513
      %v4530 = vadd.f32 %v4477, %v4514
      %v4531 = vadd.f32 %v4478, %v4515
      %v4532 = vadd.f32 %v4479, %v4516
      %v4533 = vadd.f32 %v4480, %v4517
      %v4534 = vadd.f32 %v4481, %v4518
      %v4535 = vadd.f32 %v4482, %v4519
      %v4536 = vadd.f32 %v4483, %v4520
      %v4537 = vadd.f32 %v4484, %v4521
      %v4538 = vadd.f32 %v4485, %v4522
      %v4539 = vadd.f32 %v4486, %v4523
      %v4540 = vadd.f32 %v4487, %v4524
      %v4541 = vadd.f32 %v4488, %v4525
      %v4542 = vadd.f32 %v4489, %v4526
      %v4543 = vadd.f32 %v4490, %v4527
      %v4544 = vld [vmem:[%s4331 + $0x4] sm:$0x1]
      %v4545 = vld [vmem:[%s507 + $0x4] sm:$0xff]
      %v4546 = vld [vmem:[%s507 + $0xc] sm:$0xff]
      %v4547 = vld [vmem:[%s507 + $0x1c] sm:$0xff]
      %v4548 = vld [vmem:[%s507 + $0x24] sm:$0xff]
      %v4549 = vld [vmem:[%s507 + $0x34] sm:$0xff]
      %v4550 = vld [vmem:[%s507 + $0x3c] sm:$0xff]
      %v4551 = vld [vmem:[%s507 + $0x4c] sm:$0xff]
      %v4552 = vld [vmem:[%s507 + $0x54] sm:$0xff]
      %v4553 = vld [vmem:[%s507 + $0x64] sm:$0xff]
      %v4554 = vld [vmem:[%s507 + $0x6c] sm:$0xff]
      %v4555 = vld [vmem:[%s507 + $0x7c] sm:$0xff]
      %v4556 = vld [vmem:[%s507 + $0x84] sm:$0xff]
      %v4557 = vld [vmem:[%s507 + $0x94] sm:$0xff]
      %v4558 = vld [vmem:[%s507 + $0x9c] sm:$0xff]
      %v4559 = vld [vmem:[%s507 + $0xac] sm:$0xff]
      %v4560 = vld [vmem:[%s507 + $0xb4] sm:$0xff]
      %v4561 = vlaneseq
      %v4562 = vshrl.u32 %v4561, 7
      %v4563 = vsub.s32 0, %v4562
      %v4564 = vrot.slane %v4544, %v4563
      %v4565 = vmul.f32 %v4545, %v4564
      %v4566 = vmul.f32 %v4546, %v4564
      %v4567 = vmul.f32 %v4547, %v4564
      %v4568 = vmul.f32 %v4548, %v4564
      %v4569 = vmul.f32 %v4549, %v4564
      %v4570 = vmul.f32 %v4550, %v4564
      %v4571 = vmul.f32 %v4551, %v4564
      %v4572 = vmul.f32 %v4552, %v4564
      %v4573 = vmul.f32 %v4553, %v4564
      %v4574 = vmul.f32 %v4554, %v4564
      %v4575 = vmul.f32 %v4555, %v4564
      %v4576 = vmul.f32 %v4556, %v4564
      %v4577 = vmul.f32 %v4557, %v4564
      %v4578 = vmul.f32 %v4558, %v4564
      %v4579 = vmul.f32 %v4559, %v4564
      %v4580 = vmul.f32 %v4560, %v4564
      %v4581 = vadd.f32 %v4528, %v4565
      %v4582 = vadd.f32 %v4529, %v4566
      %v4583 = vadd.f32 %v4530, %v4567
      %v4584 = vadd.f32 %v4531, %v4568
      %v4585 = vadd.f32 %v4532, %v4569
      %v4586 = vadd.f32 %v4533, %v4570
      %v4587 = vadd.f32 %v4534, %v4571
      %v4588 = vadd.f32 %v4535, %v4572
      %v4589 = vadd.f32 %v4536, %v4573
      %v4590 = vadd.f32 %v4537, %v4574
      %v4591 = vadd.f32 %v4538, %v4575
      %v4592 = vadd.f32 %v4539, %v4576
      %v4593 = vadd.f32 %v4540, %v4577
      %v4594 = vadd.f32 %v4541, %v4578
      %v4595 = vadd.f32 %v4542, %v4579
      %v4596 = vadd.f32 %v4543, %v4580
      %v4597 = vld [vmem:[%s4331 + $0x5] sm:$0x1]
      %v4598 = vld [vmem:[%s507 + $0x5] sm:$0xff]
      %v4599 = vld [vmem:[%s507 + $0xd] sm:$0xff]
      %v4600 = vld [vmem:[%s507 + $0x1d] sm:$0xff]
      %v4601 = vld [vmem:[%s507 + $0x25] sm:$0xff]
      %v4602 = vld [vmem:[%s507 + $0x35] sm:$0xff]
      %v4603 = vld [vmem:[%s507 + $0x3d] sm:$0xff]
      %v4604 = vld [vmem:[%s507 + $0x4d] sm:$0xff]
      %v4605 = vld [vmem:[%s507 + $0x55] sm:$0xff]
      %v4606 = vld [vmem:[%s507 + $0x65] sm:$0xff]
      %v4607 = vld [vmem:[%s507 + $0x6d] sm:$0xff]
      %v4608 = vld [vmem:[%s507 + $0x7d] sm:$0xff]
      %v4609 = vld [vmem:[%s507 + $0x85] sm:$0xff]
      %v4610 = vld [vmem:[%s507 + $0x95] sm:$0xff]
      %v4611 = vld [vmem:[%s507 + $0x9d] sm:$0xff]
      %v4612 = vld [vmem:[%s507 + $0xad] sm:$0xff]
      %v4613 = vld [vmem:[%s507 + $0xb5] sm:$0xff]
      %v4614 = vlaneseq
      %v4615 = vshrl.u32 %v4614, 7
      %v4616 = vsub.s32 0, %v4615
      %v4617 = vrot.slane %v4597, %v4616
      %v4618 = vmul.f32 %v4598, %v4617
      %v4619 = vmul.f32 %v4599, %v4617
      %v4620 = vmul.f32 %v4600, %v4617
      %v4621 = vmul.f32 %v4601, %v4617
      %v4622 = vmul.f32 %v4602, %v4617
      %v4623 = vmul.f32 %v4603, %v4617
      %v4624 = vmul.f32 %v4604, %v4617
      %v4625 = vmul.f32 %v4605, %v4617
      %v4626 = vmul.f32 %v4606, %v4617
      %v4627 = vmul.f32 %v4607, %v4617
      %v4628 = vmul.f32 %v4608, %v4617
      %v4629 = vmul.f32 %v4609, %v4617
      %v4630 = vmul.f32 %v4610, %v4617
      %v4631 = vmul.f32 %v4611, %v4617
      %v4632 = vmul.f32 %v4612, %v4617
      %v4633 = vmul.f32 %v4613, %v4617
      %v4634 = vadd.f32 %v4581, %v4618
      %v4635 = vadd.f32 %v4582, %v4619
      %v4636 = vadd.f32 %v4583, %v4620
      %v4637 = vadd.f32 %v4584, %v4621
      %v4638 = vadd.f32 %v4585, %v4622
      %v4639 = vadd.f32 %v4586, %v4623
      %v4640 = vadd.f32 %v4587, %v4624
      %v4641 = vadd.f32 %v4588, %v4625
      %v4642 = vadd.f32 %v4589, %v4626
      %v4643 = vadd.f32 %v4590, %v4627
      %v4644 = vadd.f32 %v4591, %v4628
      %v4645 = vadd.f32 %v4592, %v4629
      %v4646 = vadd.f32 %v4593, %v4630
      %v4647 = vadd.f32 %v4594, %v4631
      %v4648 = vadd.f32 %v4595, %v4632
      %v4649 = vadd.f32 %v4596, %v4633
      %v4650 = vld [vmem:[%s4331 + $0x6] sm:$0x1]
      %v4651 = vld [vmem:[%s507 + $0x6] sm:$0xff]
      %v4652 = vld [vmem:[%s507 + $0xe] sm:$0xff]
      %v4653 = vld [vmem:[%s507 + $0x1e] sm:$0xff]
      %v4654 = vld [vmem:[%s507 + $0x26] sm:$0xff]
      %v4655 = vld [vmem:[%s507 + $0x36] sm:$0xff]
      %v4656 = vld [vmem:[%s507 + $0x3e] sm:$0xff]
      %v4657 = vld [vmem:[%s507 + $0x4e] sm:$0xff]
      %v4658 = vld [vmem:[%s507 + $0x56] sm:$0xff]
      %v4659 = vld [vmem:[%s507 + $0x66] sm:$0xff]
      %v4660 = vld [vmem:[%s507 + $0x6e] sm:$0xff]
      %v4661 = vld [vmem:[%s507 + $0x7e] sm:$0xff]
      %v4662 = vld [vmem:[%s507 + $0x86] sm:$0xff]
      %v4663 = vld [vmem:[%s507 + $0x96] sm:$0xff]
      %v4664 = vld [vmem:[%s507 + $0x9e] sm:$0xff]
      %v4665 = vld [vmem:[%s507 + $0xae] sm:$0xff]
      %v4666 = vld [vmem:[%s507 + $0xb6] sm:$0xff]
      %v4667 = vlaneseq
      %v4668 = vshrl.u32 %v4667, 7
      %v4669 = vsub.s32 0, %v4668
      %v4670 = vrot.slane %v4650, %v4669
      %v4671 = vmul.f32 %v4651, %v4670
      %v4672 = vmul.f32 %v4652, %v4670
      %v4673 = vmul.f32 %v4653, %v4670
      %v4674 = vmul.f32 %v4654, %v4670
      %v4675 = vmul.f32 %v4655, %v4670
      %v4676 = vmul.f32 %v4656, %v4670
      %v4677 = vmul.f32 %v4657, %v4670
      %v4678 = vmul.f32 %v4658, %v4670
      %v4679 = vmul.f32 %v4659, %v4670
      %v4680 = vmul.f32 %v4660, %v4670
      %v4681 = vmul.f32 %v4661, %v4670
      %v4682 = vmul.f32 %v4662, %v4670
      %v4683 = vmul.f32 %v4663, %v4670
      %v4684 = vmul.f32 %v4664, %v4670
      %v4685 = vmul.f32 %v4665, %v4670
      %v4686 = vmul.f32 %v4666, %v4670
      %v4687 = vadd.f32 %v4634, %v4671
      %v4688 = vadd.f32 %v4635, %v4672
      %v4689 = vadd.f32 %v4636, %v4673
      %v4690 = vadd.f32 %v4637, %v4674
      %v4691 = vadd.f32 %v4638, %v4675
      %v4692 = vadd.f32 %v4639, %v4676
      %v4693 = vadd.f32 %v4640, %v4677
      %v4694 = vadd.f32 %v4641, %v4678
      %v4695 = vadd.f32 %v4642, %v4679
      %v4696 = vadd.f32 %v4643, %v4680
      %v4697 = vadd.f32 %v4644, %v4681
      %v4698 = vadd.f32 %v4645, %v4682
      %v4699 = vadd.f32 %v4646, %v4683
      %v4700 = vadd.f32 %v4647, %v4684
      %v4701 = vadd.f32 %v4648, %v4685
      %v4702 = vadd.f32 %v4649, %v4686
      %v4703 = vld [vmem:[%s4331 + $0x7] sm:$0x1]
      %v4704 = vld [vmem:[%s507 + $0x7] sm:$0xff]
      %v4705 = vld [vmem:[%s507 + $0xf] sm:$0xff]
      %v4706 = vld [vmem:[%s507 + $0x1f] sm:$0xff]
      %v4707 = vld [vmem:[%s507 + $0x27] sm:$0xff]
      %v4708 = vld [vmem:[%s507 + $0x37] sm:$0xff]
      %v4709 = vld [vmem:[%s507 + $0x3f] sm:$0xff]
      %v4710 = vld [vmem:[%s507 + $0x4f] sm:$0xff]
      %v4711 = vld [vmem:[%s507 + $0x57] sm:$0xff]
      %v4712 = vld [vmem:[%s507 + $0x67] sm:$0xff]
      %v4713 = vld [vmem:[%s507 + $0x6f] sm:$0xff]
      %v4714 = vld [vmem:[%s507 + $0x7f] sm:$0xff]
      %v4715 = vld [vmem:[%s507 + $0x87] sm:$0xff]
      %v4716 = vld [vmem:[%s507 + $0x97] sm:$0xff]
      %v4717 = vld [vmem:[%s507 + $0x9f] sm:$0xff]
      %v4718 = vld [vmem:[%s507 + $0xaf] sm:$0xff]
      %v4719 = vld [vmem:[%s507 + $0xb7] sm:$0xff]
      %v4720 = vlaneseq
      %v4721 = vshrl.u32 %v4720, 7
      %v4722 = vsub.s32 0, %v4721
      %v4723 = vrot.slane %v4703, %v4722
      %v4724 = vmul.f32 %v4704, %v4723
      %v4725 = vmul.f32 %v4705, %v4723
      %v4726 = vmul.f32 %v4706, %v4723
      %v4727 = vmul.f32 %v4707, %v4723
      %v4728 = vmul.f32 %v4708, %v4723
      %v4729 = vmul.f32 %v4709, %v4723
      %v4730 = vmul.f32 %v4710, %v4723
      %v4731 = vmul.f32 %v4711, %v4723
      %v4732 = vmul.f32 %v4712, %v4723
      %v4733 = vmul.f32 %v4713, %v4723
      %v4734 = vmul.f32 %v4714, %v4723
      %v4735 = vmul.f32 %v4715, %v4723
      %v4736 = vmul.f32 %v4716, %v4723
      %v4737 = vmul.f32 %v4717, %v4723
      %v4738 = vmul.f32 %v4718, %v4723
      %v4739 = vmul.f32 %v4719, %v4723
      %v4740 = vadd.f32 %v4687, %v4724
      %v4741 = vadd.f32 %v4688, %v4725
      %v4742 = vadd.f32 %v4689, %v4726
      %v4743 = vadd.f32 %v4690, %v4727
      %v4744 = vadd.f32 %v4691, %v4728
      %v4745 = vadd.f32 %v4692, %v4729
      %v4746 = vadd.f32 %v4693, %v4730
      %v4747 = vadd.f32 %v4694, %v4731
      %v4748 = vadd.f32 %v4695, %v4732
      %v4749 = vadd.f32 %v4696, %v4733
      %v4750 = vadd.f32 %v4697, %v4734
      %v4751 = vadd.f32 %v4698, %v4735
      %v4752 = vadd.f32 %v4699, %v4736
      %v4753 = vadd.f32 %v4700, %v4737
      %v4754 = vadd.f32 %v4701, %v4738
      %v4755 = vadd.f32 %v4702, %v4739
      %v4756 = vld [vmem:[%s4331 + $0x8] sm:$0x1]
      %v4757 = vld [vmem:[%s507 + $0x10] sm:$0xff]
      %v4758 = vld [vmem:[%s507 + $0x28] sm:$0xff]
      %v4759 = vld [vmem:[%s507 + $0x40] sm:$0xff]
      %v4760 = vld [vmem:[%s507 + $0x58] sm:$0xff]
      %v4761 = vld [vmem:[%s507 + $0x70] sm:$0xff]
      %v4762 = vld [vmem:[%s507 + $0x88] sm:$0xff]
      %v4763 = vld [vmem:[%s507 + $0xa0] sm:$0xff]
      %v4764 = vld [vmem:[%s507 + $0xb8] sm:$0xff]
      %v4765 = vlaneseq
      %v4766 = vshrl.u32 %v4765, 7
      %v4767 = vsub.s32 0, %v4766
      %v4768 = vrot.slane %v4756, %v4767
      %v4769 = vmul.f32 %v4334, %v4768
      %v4770 = vmul.f32 %v4757, %v4768
      %v4771 = vmul.f32 %v4336, %v4768
      %v4772 = vmul.f32 %v4758, %v4768
      %v4773 = vmul.f32 %v4338, %v4768
      %v4774 = vmul.f32 %v4759, %v4768
      %v4775 = vmul.f32 %v4340, %v4768
      %v4776 = vmul.f32 %v4760, %v4768
      %v4777 = vmul.f32 %v4342, %v4768
      %v4778 = vmul.f32 %v4761, %v4768
      %v4779 = vmul.f32 %v4344, %v4768
      %v4780 = vmul.f32 %v4762, %v4768
      %v4781 = vmul.f32 %v4346, %v4768
      %v4782 = vmul.f32 %v4763, %v4768
      %v4783 = vmul.f32 %v4348, %v4768
      %v4784 = vmul.f32 %v4764, %v4768
      %v4785 = vadd.f32 %v4740, %v4769
      %v4786 = vadd.f32 %v4741, %v4770
      %v4787 = vadd.f32 %v4742, %v4771
      %v4788 = vadd.f32 %v4743, %v4772
      %v4789 = vadd.f32 %v4744, %v4773
      %v4790 = vadd.f32 %v4745, %v4774
      %v4791 = vadd.f32 %v4746, %v4775
      %v4792 = vadd.f32 %v4747, %v4776
      %v4793 = vadd.f32 %v4748, %v4777
      %v4794 = vadd.f32 %v4749, %v4778
      %v4795 = vadd.f32 %v4750, %v4779
      %v4796 = vadd.f32 %v4751, %v4780
      %v4797 = vadd.f32 %v4752, %v4781
      %v4798 = vadd.f32 %v4753, %v4782
      %v4799 = vadd.f32 %v4754, %v4783
      %v4800 = vadd.f32 %v4755, %v4784
      %v4802 = vlaneseq
      %v4803 = vshrl.u32 %v4802, 7
      %v4804 = vsub.s32 0, %v4803
      %v4805 = vrot.slane %v565, %v4804
      %v4807 = vadd.f32 %v4785, %v4805
      %v4808 = vadd.f32 %v4786, %v4805
      %v4809 = vadd.f32 %v4787, %v4805
      %v4810 = vadd.f32 %v4788, %v4805
      %v4811 = vadd.f32 %v4789, %v4805
      %v4812 = vadd.f32 %v4790, %v4805
      %v4813 = vadd.f32 %v4791, %v4805
      %v4814 = vadd.f32 %v4792, %v4805
      %v4815 = vadd.f32 %v4793, %v4805
      %v4816 = vadd.f32 %v4794, %v4805
      %v4817 = vadd.f32 %v4795, %v4805
      %v4818 = vadd.f32 %v4796, %v4805
      %v4819 = vadd.f32 %v4797, %v4805
      %v4820 = vadd.f32 %v4798, %v4805
      %v4821 = vadd.f32 %v4799, %v4805
      %v4822 = vadd.f32 %v4800, %v4805
      %v4823 = vmul.f32 %v4807, 0.5
      %v4824 = vmul.f32 %v4808, 0.5
      %v4825 = vmul.f32 %v4809, 0.5
      %v4826 = vmul.f32 %v4810, 0.5
      %v4827 = vmul.f32 %v4811, 0.5
      %v4828 = vmul.f32 %v4812, 0.5
      %v4829 = vmul.f32 %v4813, 0.5
      %v4830 = vmul.f32 %v4814, 0.5
      %v4831 = vmul.f32 %v4815, 0.5
      %v4832 = vmul.f32 %v4816, 0.5
      %v4833 = vmul.f32 %v4817, 0.5
      %v4834 = vmul.f32 %v4818, 0.5
      %v4835 = vmul.f32 %v4819, 0.5
      %v4836 = vmul.f32 %v4820, 0.5
      %v4837 = vmul.f32 %v4821, 0.5
      %v4838 = vmul.f32 %v4822, 0.5
      %v4839 = vmul.f32 %v4807, 0.70710677
      %v4840 = vmul.f32 %v4808, 0.70710677
      %v4841 = vmul.f32 %v4809, 0.70710677
      %v4842 = vmul.f32 %v4810, 0.70710677
      %v4843 = vmul.f32 %v4811, 0.70710677
      %v4844 = vmul.f32 %v4812, 0.70710677
      %v4845 = vmul.f32 %v4813, 0.70710677
      %v4846 = vmul.f32 %v4814, 0.70710677
      %v4847 = vmul.f32 %v4815, 0.70710677
      %v4848 = vmul.f32 %v4816, 0.70710677
      %v4849 = vmul.f32 %v4817, 0.70710677
      %v4850 = vmul.f32 %v4818, 0.70710677
      %v4851 = vmul.f32 %v4819, 0.70710677
      %v4852 = vmul.f32 %v4820, 0.70710677
      %v4853 = vmul.f32 %v4821, 0.70710677
      %v4854 = vmul.f32 %v4822, 0.70710677
      %vm4855 = vcmp.ge.f32.partialorder %v4839, 0.0
      %vm4856 = vcmp.ge.f32.partialorder %v4840, 0.0
      %vm4857 = vcmp.ge.f32.partialorder %v4841, 0.0
      %vm4858 = vcmp.ge.f32.partialorder %v4842, 0.0
      %vm4859 = vcmp.ge.f32.partialorder %v4843, 0.0
      %vm4860 = vcmp.ge.f32.partialorder %v4844, 0.0
      %vm4861 = vcmp.ge.f32.partialorder %v4845, 0.0
      %vm4862 = vcmp.ge.f32.partialorder %v4846, 0.0
      %vm4863 = vcmp.ge.f32.partialorder %v4847, 0.0
      %vm4864 = vcmp.ge.f32.partialorder %v4848, 0.0
      %vm4865 = vcmp.ge.f32.partialorder %v4849, 0.0
      %vm4866 = vcmp.ge.f32.partialorder %v4850, 0.0
      %vm4867 = vcmp.ge.f32.partialorder %v4851, 0.0
      %vm4868 = vcmp.ge.f32.partialorder %v4852, 0.0
      %vm4869 = vcmp.ge.f32.partialorder %v4853, 0.0
      %vm4870 = vcmp.ge.f32.partialorder %v4854, 0.0
      %v4871 = vsel %vm4855, 1.0, -1.0
      %v4872 = vsel %vm4856, 1.0, -1.0
      %v4873 = vsel %vm4857, 1.0, -1.0
      %v4874 = vsel %vm4858, 1.0, -1.0
      %v4875 = vsel %vm4859, 1.0, -1.0
      %v4876 = vsel %vm4860, 1.0, -1.0
      %v4877 = vsel %vm4861, 1.0, -1.0
      %v4878 = vsel %vm4862, 1.0, -1.0
      %v4879 = vsel %vm4863, 1.0, -1.0
      %v4880 = vsel %vm4864, 1.0, -1.0
      %v4881 = vsel %vm4865, 1.0, -1.0
      %v4882 = vsel %vm4866, 1.0, -1.0
      %v4883 = vsel %vm4867, 1.0, -1.0
      %v4884 = vsel %vm4868, 1.0, -1.0
      %v4885 = vsel %vm4869, 1.0, -1.0
      %v4886 = vsel %vm4870, 1.0, -1.0
      %v4887 = vand.u32 2147483647, %v4839
      %v4888 = vand.u32 2147483647, %v4840
      %v4889 = vand.u32 2147483647, %v4841
      %v4890 = vand.u32 2147483647, %v4842
      %v4891 = vand.u32 2147483647, %v4843
      %v4892 = vand.u32 2147483647, %v4844
      %v4893 = vand.u32 2147483647, %v4845
      %v4894 = vand.u32 2147483647, %v4846
      %v4895 = vand.u32 2147483647, %v4847
      %v4896 = vand.u32 2147483647, %v4848
      %v4897 = vand.u32 2147483647, %v4849
      %v4898 = vand.u32 2147483647, %v4850
      %v4899 = vand.u32 2147483647, %v4851
      %v4900 = vand.u32 2147483647, %v4852
      %v4901 = vand.u32 2147483647, %v4853
      %v4902 = vand.u32 2147483647, %v4854
      %v4903 = vmul.f32 %v4887, 0.3275911
      %v4904 = vmul.f32 %v4888, 0.3275911
      %v4905 = vmul.f32 %v4889, 0.3275911
      %v4906 = vmul.f32 %v4890, 0.3275911
      %v4907 = vmul.f32 %v4891, 0.3275911
      %v4908 = vmul.f32 %v4892, 0.3275911
      %v4909 = vmul.f32 %v4893, 0.3275911
      %v4910 = vmul.f32 %v4894, 0.3275911
      %v4911 = vmul.f32 %v4895, 0.3275911
      %v4912 = vmul.f32 %v4896, 0.3275911
      %v4913 = vmul.f32 %v4897, 0.3275911
      %v4914 = vmul.f32 %v4898, 0.3275911
      %v4915 = vmul.f32 %v4899, 0.3275911
      %v4916 = vmul.f32 %v4900, 0.3275911
      %v4917 = vmul.f32 %v4901, 0.3275911
      %v4918 = vmul.f32 %v4902, 0.3275911
      %v4919 = vadd.f32 %v4903, 1.0
      %v4920 = vadd.f32 %v4904, 1.0
      %v4921 = vadd.f32 %v4905, 1.0
      %v4922 = vadd.f32 %v4906, 1.0
      %v4923 = vadd.f32 %v4907, 1.0
      %v4924 = vadd.f32 %v4908, 1.0
      %v4925 = vadd.f32 %v4909, 1.0
      %v4926 = vadd.f32 %v4910, 1.0
      %v4927 = vadd.f32 %v4911, 1.0
      %v4928 = vadd.f32 %v4912, 1.0
      %v4929 = vadd.f32 %v4913, 1.0
      %v4930 = vadd.f32 %v4914, 1.0
      %v4931 = vadd.f32 %v4915, 1.0
      %v4932 = vadd.f32 %v4916, 1.0
      %v4933 = vadd.f32 %v4917, 1.0
      %v4934 = vadd.f32 %v4918, 1.0
      %v4935 = vrcp.pop %v4919
      %v4936 = vmul.f32 1.0, %v4935
      %v4937 = vrcp.pop %v4920
      %v4938 = vmul.f32 1.0, %v4937
      %v4939 = vrcp.pop %v4921
      %v4940 = vmul.f32 1.0, %v4939
      %v4941 = vrcp.pop %v4922
      %v4942 = vmul.f32 1.0, %v4941
      %v4943 = vrcp.pop %v4923
      %v4944 = vmul.f32 1.0, %v4943
      %v4945 = vrcp.pop %v4924
      %v4946 = vmul.f32 1.0, %v4945
      %v4947 = vrcp.pop %v4925
      %v4948 = vmul.f32 1.0, %v4947
      %v4949 = vrcp.pop %v4926
      %v4950 = vmul.f32 1.0, %v4949
      %v4951 = vrcp.pop %v4927
      %v4952 = vmul.f32 1.0, %v4951
      %v4953 = vrcp.pop %v4928
      %v4954 = vmul.f32 1.0, %v4953
      %v4955 = vrcp.pop %v4929
      %v4956 = vmul.f32 1.0, %v4955
      %v4957 = vrcp.pop %v4930
      %v4958 = vmul.f32 1.0, %v4957
      %v4959 = vrcp.pop %v4931
      %v4960 = vmul.f32 1.0, %v4959
      %v4961 = vrcp.pop %v4932
      %v4962 = vmul.f32 1.0, %v4961
      %v4963 = vrcp.pop %v4933
      %v4964 = vmul.f32 1.0, %v4963
      %v4965 = vrcp.pop %v4934
      %v4966 = vmul.f32 1.0, %v4965
      %v4967 = vmul.f32 %v4936, 1.0614054
      %v4968 = vmul.f32 %v4938, 1.0614054
      %v4969 = vmul.f32 %v4940, 1.0614054
      %v4970 = vmul.f32 %v4942, 1.0614054
      %v4971 = vmul.f32 %v4944, 1.0614054
      %v4972 = vmul.f32 %v4946, 1.0614054
      %v4973 = vmul.f32 %v4948, 1.0614054
      %v4974 = vmul.f32 %v4950, 1.0614054
      %v4975 = vmul.f32 %v4952, 1.0614054
      %v4976 = vmul.f32 %v4954, 1.0614054
      %v4977 = vmul.f32 %v4956, 1.0614054
      %v4978 = vmul.f32 %v4958, 1.0614054
      %v4979 = vmul.f32 %v4960, 1.0614054
      %v4980 = vmul.f32 %v4962, 1.0614054
      %v4981 = vmul.f32 %v4964, 1.0614054
      %v4982 = vmul.f32 %v4966, 1.0614054
      %v4983 = vadd.f32 %v4967, -1.4531521
      %v4984 = vadd.f32 %v4968, -1.4531521
      %v4985 = vadd.f32 %v4969, -1.4531521
      %v4986 = vadd.f32 %v4970, -1.4531521
      %v4987 = vadd.f32 %v4971, -1.4531521
      %v4988 = vadd.f32 %v4972, -1.4531521
      %v4989 = vadd.f32 %v4973, -1.4531521
      %v4990 = vadd.f32 %v4974, -1.4531521
      %v4991 = vadd.f32 %v4975, -1.4531521
      %v4992 = vadd.f32 %v4976, -1.4531521
      %v4993 = vadd.f32 %v4977, -1.4531521
      %v4994 = vadd.f32 %v4978, -1.4531521
      %v4995 = vadd.f32 %v4979, -1.4531521
      %v4996 = vadd.f32 %v4980, -1.4531521
      %v4997 = vadd.f32 %v4981, -1.4531521
      %v4998 = vadd.f32 %v4982, -1.4531521
      %v4999 = vmul.f32 %v4983, %v4936
      %v5000 = vmul.f32 %v4984, %v4938
      %v5001 = vmul.f32 %v4985, %v4940
      %v5002 = vmul.f32 %v4986, %v4942
      %v5003 = vmul.f32 %v4987, %v4944
      %v5004 = vmul.f32 %v4988, %v4946
      %v5005 = vmul.f32 %v4989, %v4948
      %v5006 = vmul.f32 %v4990, %v4950
      %v5007 = vmul.f32 %v4991, %v4952
      %v5008 = vmul.f32 %v4992, %v4954
      %v5009 = vmul.f32 %v4993, %v4956
      %v5010 = vmul.f32 %v4994, %v4958
      %v5011 = vmul.f32 %v4995, %v4960
      %v5012 = vmul.f32 %v4996, %v4962
      %v5013 = vmul.f32 %v4997, %v4964
      %v5014 = vmul.f32 %v4998, %v4966
      %v5015 = vadd.f32 %v4999, 1.4214138
      %v5016 = vadd.f32 %v5000, 1.4214138
      %v5017 = vadd.f32 %v5001, 1.4214138
      %v5018 = vadd.f32 %v5002, 1.4214138
      %v5019 = vadd.f32 %v5003, 1.4214138
      %v5020 = vadd.f32 %v5004, 1.4214138
      %v5021 = vadd.f32 %v5005, 1.4214138
      %v5022 = vadd.f32 %v5006, 1.4214138
      %v5023 = vadd.f32 %v5007, 1.4214138
      %v5024 = vadd.f32 %v5008, 1.4214138
      %v5025 = vadd.f32 %v5009, 1.4214138
      %v5026 = vadd.f32 %v5010, 1.4214138
      %v5027 = vadd.f32 %v5011, 1.4214138
      %v5028 = vadd.f32 %v5012, 1.4214138
      %v5029 = vadd.f32 %v5013, 1.4214138
      %v5030 = vadd.f32 %v5014, 1.4214138
      %v5031 = vmul.f32 %v5015, %v4936
      %v5032 = vmul.f32 %v5016, %v4938
      %v5033 = vmul.f32 %v5017, %v4940
      %v5034 = vmul.f32 %v5018, %v4942
      %v5035 = vmul.f32 %v5019, %v4944
      %v5036 = vmul.f32 %v5020, %v4946
      %v5037 = vmul.f32 %v5021, %v4948
      %v5038 = vmul.f32 %v5022, %v4950
      %v5039 = vmul.f32 %v5023, %v4952
      %v5040 = vmul.f32 %v5024, %v4954
      %v5041 = vmul.f32 %v5025, %v4956
      %v5042 = vmul.f32 %v5026, %v4958
      %v5043 = vmul.f32 %v5027, %v4960
      %v5044 = vmul.f32 %v5028, %v4962
      %v5045 = vmul.f32 %v5029, %v4964
      %v5046 = vmul.f32 %v5030, %v4966
      %v5047 = vadd.f32 %v5031, -0.28449672
      %v5048 = vadd.f32 %v5032, -0.28449672
      %v5049 = vadd.f32 %v5033, -0.28449672
      %v5050 = vadd.f32 %v5034, -0.28449672
      %v5051 = vadd.f32 %v5035, -0.28449672
      %v5052 = vadd.f32 %v5036, -0.28449672
      %v5053 = vadd.f32 %v5037, -0.28449672
      %v5054 = vadd.f32 %v5038, -0.28449672
      %v5055 = vadd.f32 %v5039, -0.28449672
      %v5056 = vadd.f32 %v5040, -0.28449672
      %v5057 = vadd.f32 %v5041, -0.28449672
      %v5058 = vadd.f32 %v5042, -0.28449672
      %v5059 = vadd.f32 %v5043, -0.28449672
      %v5060 = vadd.f32 %v5044, -0.28449672
      %v5061 = vadd.f32 %v5045, -0.28449672
      %v5062 = vadd.f32 %v5046, -0.28449672
      %v5063 = vmul.f32 %v5047, %v4936
      %v5064 = vmul.f32 %v5048, %v4938
      %v5065 = vmul.f32 %v5049, %v4940
      %v5066 = vmul.f32 %v5050, %v4942
      %v5067 = vmul.f32 %v5051, %v4944
      %v5068 = vmul.f32 %v5052, %v4946
      %v5069 = vmul.f32 %v5053, %v4948
      %v5070 = vmul.f32 %v5054, %v4950
      %v5071 = vmul.f32 %v5055, %v4952
      %v5072 = vmul.f32 %v5056, %v4954
      %v5073 = vmul.f32 %v5057, %v4956
      %v5074 = vmul.f32 %v5058, %v4958
      %v5075 = vmul.f32 %v5059, %v4960
      %v5076 = vmul.f32 %v5060, %v4962
      %v5077 = vmul.f32 %v5061, %v4964
      %v5078 = vmul.f32 %v5062, %v4966
      %v5079 = vadd.f32 %v5063, 0.2548296
      %v5080 = vadd.f32 %v5064, 0.2548296
      %v5081 = vadd.f32 %v5065, 0.2548296
      %v5082 = vadd.f32 %v5066, 0.2548296
      %v5083 = vadd.f32 %v5067, 0.2548296
      %v5084 = vadd.f32 %v5068, 0.2548296
      %v5085 = vadd.f32 %v5069, 0.2548296
      %v5086 = vadd.f32 %v5070, 0.2548296
      %v5087 = vadd.f32 %v5071, 0.2548296
      %v5088 = vadd.f32 %v5072, 0.2548296
      %v5089 = vadd.f32 %v5073, 0.2548296
      %v5090 = vadd.f32 %v5074, 0.2548296
      %v5091 = vadd.f32 %v5075, 0.2548296
      %v5092 = vadd.f32 %v5076, 0.2548296
      %v5093 = vadd.f32 %v5077, 0.2548296
      %v5094 = vadd.f32 %v5078, 0.2548296
      %v5095 = vmul.f32 %v5079, %v4936
      %v5096 = vmul.f32 %v5080, %v4938
      %v5097 = vmul.f32 %v5081, %v4940
      %v5098 = vmul.f32 %v5082, %v4942
      %v5099 = vmul.f32 %v5083, %v4944
      %v5100 = vmul.f32 %v5084, %v4946
      %v5101 = vmul.f32 %v5085, %v4948
      %v5102 = vmul.f32 %v5086, %v4950
      %v5103 = vmul.f32 %v5087, %v4952
      %v5104 = vmul.f32 %v5088, %v4954
      %v5105 = vmul.f32 %v5089, %v4956
      %v5106 = vmul.f32 %v5090, %v4958
      %v5107 = vmul.f32 %v5091, %v4960
      %v5108 = vmul.f32 %v5092, %v4962
      %v5109 = vmul.f32 %v5093, %v4964
      %v5110 = vmul.f32 %v5094, %v4966
      %v5111 = vsub.f32 0.0, %v4887
      %v5112 = vsub.f32 0.0, %v4888
      %v5113 = vsub.f32 0.0, %v4889
      %v5114 = vsub.f32 0.0, %v4890
      %v5115 = vsub.f32 0.0, %v4891
      %v5116 = vsub.f32 0.0, %v4892
      %v5117 = vsub.f32 0.0, %v4893
      %v5118 = vsub.f32 0.0, %v4894
      %v5119 = vsub.f32 0.0, %v4895
      %v5120 = vsub.f32 0.0, %v4896
      %v5121 = vsub.f32 0.0, %v4897
      %v5122 = vsub.f32 0.0, %v4898
      %v5123 = vsub.f32 0.0, %v4899
      %v5124 = vsub.f32 0.0, %v4900
      %v5125 = vsub.f32 0.0, %v4901
      %v5126 = vsub.f32 0.0, %v4902
      %v5127 = vmul.f32 %v5111, %v4887
      %v5128 = vmul.f32 %v5112, %v4888
      %v5129 = vmul.f32 %v5113, %v4889
      %v5130 = vmul.f32 %v5114, %v4890
      %v5131 = vmul.f32 %v5115, %v4891
      %v5132 = vmul.f32 %v5116, %v4892
      %v5133 = vmul.f32 %v5117, %v4893
      %v5134 = vmul.f32 %v5118, %v4894
      %v5135 = vmul.f32 %v5119, %v4895
      %v5136 = vmul.f32 %v5120, %v4896
      %v5137 = vmul.f32 %v5121, %v4897
      %v5138 = vmul.f32 %v5122, %v4898
      %v5139 = vmul.f32 %v5123, %v4899
      %v5140 = vmul.f32 %v5124, %v4900
      %v5141 = vmul.f32 %v5125, %v4901
      %v5142 = vmul.f32 %v5126, %v4902
      %v5143 = vmul.f32 %v5127, 1.442695
      %v5144 = vpow.pop %v5143
      %v5145 = vmul.f32 %v5128, 1.442695
      %v5146 = vpow.pop %v5145
      %v5147 = vmul.f32 %v5129, 1.442695
      %v5148 = vpow.pop %v5147
      %v5149 = vmul.f32 %v5130, 1.442695
      %v5150 = vpow.pop %v5149
      %v5151 = vmul.f32 %v5131, 1.442695
      %v5152 = vpow.pop %v5151
      %v5153 = vmul.f32 %v5132, 1.442695
      %v5154 = vpow.pop %v5153
      %v5155 = vmul.f32 %v5133, 1.442695
      %v5156 = vpow.pop %v5155
      %v5157 = vmul.f32 %v5134, 1.442695
      %v5158 = vpow.pop %v5157
      %v5159 = vmul.f32 %v5135, 1.442695
      %v5160 = vpow.pop %v5159
      %v5161 = vmul.f32 %v5136, 1.442695
      %v5162 = vpow.pop %v5161
      %v5163 = vmul.f32 %v5137, 1.442695
      %v5164 = vpow.pop %v5163
      %v5165 = vmul.f32 %v5138, 1.442695
      %v5166 = vpow.pop %v5165
      %v5167 = vmul.f32 %v5139, 1.442695
      %v5168 = vpow.pop %v5167
      %v5169 = vmul.f32 %v5140, 1.442695
      %v5170 = vpow.pop %v5169
      %v5171 = vmul.f32 %v5141, 1.442695
      %v5172 = vpow.pop %v5171
      %v5173 = vmul.f32 %v5142, 1.442695
      %v5174 = vpow.pop %v5173
      %v5175 = vmul.f32 %v5095, %v5144
      %v5176 = vmul.f32 %v5096, %v5146
      %v5177 = vmul.f32 %v5097, %v5148
      %v5178 = vmul.f32 %v5098, %v5150
      %v5179 = vmul.f32 %v5099, %v5152
      %v5180 = vmul.f32 %v5100, %v5154
      %v5181 = vmul.f32 %v5101, %v5156
      %v5182 = vmul.f32 %v5102, %v5158
      %v5183 = vmul.f32 %v5103, %v5160
      %v5184 = vmul.f32 %v5104, %v5162
      %v5185 = vmul.f32 %v5105, %v5164
      %v5186 = vmul.f32 %v5106, %v5166
      %v5187 = vmul.f32 %v5107, %v5168
      %v5188 = vmul.f32 %v5108, %v5170
      %v5189 = vmul.f32 %v5109, %v5172
      %v5190 = vmul.f32 %v5110, %v5174
      %v5191 = vsub.f32 1.0, %v5175
      %v5192 = vsub.f32 1.0, %v5176
      %v5193 = vsub.f32 1.0, %v5177
      %v5194 = vsub.f32 1.0, %v5178
      %v5195 = vsub.f32 1.0, %v5179
      %v5196 = vsub.f32 1.0, %v5180
      %v5197 = vsub.f32 1.0, %v5181
      %v5198 = vsub.f32 1.0, %v5182
      %v5199 = vsub.f32 1.0, %v5183
      %v5200 = vsub.f32 1.0, %v5184
      %v5201 = vsub.f32 1.0, %v5185
      %v5202 = vsub.f32 1.0, %v5186
      %v5203 = vsub.f32 1.0, %v5187
      %v5204 = vsub.f32 1.0, %v5188
      %v5205 = vsub.f32 1.0, %v5189
      %v5206 = vsub.f32 1.0, %v5190
      %v5207 = vmul.f32 %v4871, %v5191
      %v5208 = vmul.f32 %v4872, %v5192
      %v5209 = vmul.f32 %v4873, %v5193
      %v5210 = vmul.f32 %v4874, %v5194
      %v5211 = vmul.f32 %v4875, %v5195
      %v5212 = vmul.f32 %v4876, %v5196
      %v5213 = vmul.f32 %v4877, %v5197
      %v5214 = vmul.f32 %v4878, %v5198
      %v5215 = vmul.f32 %v4879, %v5199
      %v5216 = vmul.f32 %v4880, %v5200
      %v5217 = vmul.f32 %v4881, %v5201
      %v5218 = vmul.f32 %v4882, %v5202
      %v5219 = vmul.f32 %v4883, %v5203
      %v5220 = vmul.f32 %v4884, %v5204
      %v5221 = vmul.f32 %v4885, %v5205
      %v5222 = vmul.f32 %v4886, %v5206
      %v5223 = vadd.f32 %v5207, 1.0
      %v5224 = vadd.f32 %v5208, 1.0
      %v5225 = vadd.f32 %v5209, 1.0
      %v5226 = vadd.f32 %v5210, 1.0
      %v5227 = vadd.f32 %v5211, 1.0
      %v5228 = vadd.f32 %v5212, 1.0
      %v5229 = vadd.f32 %v5213, 1.0
      %v5230 = vadd.f32 %v5214, 1.0
      %v5231 = vadd.f32 %v5215, 1.0
      %v5232 = vadd.f32 %v5216, 1.0
      %v5233 = vadd.f32 %v5217, 1.0
      %v5234 = vadd.f32 %v5218, 1.0
      %v5235 = vadd.f32 %v5219, 1.0
      %v5236 = vadd.f32 %v5220, 1.0
      %v5237 = vadd.f32 %v5221, 1.0
      %v5238 = vadd.f32 %v5222, 1.0
      %v5239 = vmul.f32 %v4823, %v5223
      %v5240 = vmul.f32 %v4824, %v5224
      %v5241 = vmul.f32 %v4825, %v5225
      %v5242 = vmul.f32 %v4826, %v5226
      %v5243 = vmul.f32 %v4827, %v5227
      %v5244 = vmul.f32 %v4828, %v5228
      %v5245 = vmul.f32 %v4829, %v5229
      %v5246 = vmul.f32 %v4830, %v5230
      %v5247 = vmul.f32 %v4831, %v5231
      %v5248 = vmul.f32 %v4832, %v5232
      %v5249 = vmul.f32 %v4833, %v5233
      %v5250 = vmul.f32 %v4834, %v5234
      %v5251 = vmul.f32 %v4835, %v5235
      %v5252 = vmul.f32 %v4836, %v5236
      %v5253 = vmul.f32 %v4837, %v5237
      %v5254 = vmul.f32 %v4838, %v5238
      %5255 = vst [vmem:[%s406] sm:$0xff] %v5239
      %5256 = vst [vmem:[%s406 + $0x8] sm:$0xff] %v5240
      %5257 = vst [vmem:[%s406 + $0x10] sm:$0xff] %v5241
      %5258 = vst [vmem:[%s406 + $0x18] sm:$0xff] %v5242
      %5259 = vst [vmem:[%s406 + $0x20] sm:$0xff] %v5243
      %5260 = vst [vmem:[%s406 + $0x28] sm:$0xff] %v5244
      %5261 = vst [vmem:[%s406 + $0x30] sm:$0xff] %v5245
      %5262 = vst [vmem:[%s406 + $0x38] sm:$0xff] %v5246
      %5263 = vst [vmem:[%s406 + $0x40] sm:$0xff] %v5247
      %5264 = vst [vmem:[%s406 + $0x48] sm:$0xff] %v5248
      %5265 = vst [vmem:[%s406 + $0x50] sm:$0xff] %v5249
      %5266 = vst [vmem:[%s406 + $0x58] sm:$0xff] %v5250
      %5267 = vst [vmem:[%s406 + $0x60] sm:$0xff] %v5251
      %5268 = vst [vmem:[%s406 + $0x68] sm:$0xff] %v5252
      %5269 = vst [vmem:[%s406 + $0x70] sm:$0xff] %v5253
      %5270 = vst [vmem:[%s406 + $0x78] sm:$0xff] %v5254
      %v5271 = vadd.f32 %v5239, %v5240
      %v5272 = vrot.slane %v5271, 4
      %v5273 = vadd.f32 %v5271, %v5272
      %v5274 = vrot.slane %v5273, 2
      %v5275 = vadd.f32 %v5273, %v5274
      %v5276 = vrot.slane %v5275, 1
      %v5277 = vadd.f32 %v5275, %v5276
      %v5278 = vadd.f32 %v5241, %v5242
      %v5279 = vrot.slane %v5278, 4
      %v5280 = vadd.f32 %v5278, %v5279
      %v5281 = vrot.slane %v5280, 2
      %v5282 = vadd.f32 %v5280, %v5281
      %v5283 = vrot.slane %v5282, 1
      %v5284 = vadd.f32 %v5282, %v5283
      %v5285 = vadd.f32 %v5243, %v5244
      %v5286 = vrot.slane %v5285, 4
      %v5287 = vadd.f32 %v5285, %v5286
      %v5288 = vrot.slane %v5287, 2
      %v5289 = vadd.f32 %v5287, %v5288
      %v5290 = vrot.slane %v5289, 1
      %v5291 = vadd.f32 %v5289, %v5290
      %v5292 = vadd.f32 %v5245, %v5246
      %v5293 = vrot.slane %v5292, 4
      %v5294 = vadd.f32 %v5292, %v5293
      %v5295 = vrot.slane %v5294, 2
      %v5296 = vadd.f32 %v5294, %v5295
      %v5297 = vrot.slane %v5296, 1
      %v5298 = vadd.f32 %v5296, %v5297
      %v5299 = vadd.f32 %v5247, %v5248
      %v5300 = vrot.slane %v5299, 4
      %v5301 = vadd.f32 %v5299, %v5300
      %v5302 = vrot.slane %v5301, 2
      %v5303 = vadd.f32 %v5301, %v5302
      %v5304 = vrot.slane %v5303, 1
      %v5305 = vadd.f32 %v5303, %v5304
      %v5306 = vadd.f32 %v5249, %v5250
      %v5307 = vrot.slane %v5306, 4
      %v5308 = vadd.f32 %v5306, %v5307
      %v5309 = vrot.slane %v5308, 2
      %v5310 = vadd.f32 %v5308, %v5309
      %v5311 = vrot.slane %v5310, 1
      %v5312 = vadd.f32 %v5310, %v5311
      %v5313 = vadd.f32 %v5251, %v5252
      %v5314 = vrot.slane %v5313, 4
      %v5315 = vadd.f32 %v5313, %v5314
      %v5316 = vrot.slane %v5315, 2
      %v5317 = vadd.f32 %v5315, %v5316
      %v5318 = vrot.slane %v5317, 1
      %v5319 = vadd.f32 %v5317, %v5318
      %v5320 = vadd.f32 %v5253, %v5254
      %v5321 = vrot.slane %v5320, 4
      %v5322 = vadd.f32 %v5320, %v5321
      %v5323 = vrot.slane %v5322, 2
      %v5324 = vadd.f32 %v5322, %v5323
      %v5325 = vrot.slane %v5324, 1
      %v5326 = vadd.f32 %v5324, %v5325
      %v5327 = vadd.f32 %v5277, 0.0
      %v5328 = vadd.f32 %v5284, 0.0
      %v5329 = vadd.f32 %v5291, 0.0
      %v5330 = vadd.f32 %v5298, 0.0
      %v5331 = vadd.f32 %v5305, 0.0
      %v5332 = vadd.f32 %v5312, 0.0
      %v5333 = vadd.f32 %v5319, 0.0
      %v5334 = vadd.f32 %v5326, 0.0
      %v5335 = vmul.f32 %v5239, %v5239
      %v5336 = vmul.f32 %v5240, %v5240
      %v5337 = vmul.f32 %v5241, %v5241
      %v5338 = vmul.f32 %v5242, %v5242
      %v5339 = vmul.f32 %v5243, %v5243
      %v5340 = vmul.f32 %v5244, %v5244
      %v5341 = vmul.f32 %v5245, %v5245
      %v5342 = vmul.f32 %v5246, %v5246
      %v5343 = vmul.f32 %v5247, %v5247
      %v5344 = vmul.f32 %v5248, %v5248
      %v5345 = vmul.f32 %v5249, %v5249
      %v5346 = vmul.f32 %v5250, %v5250
      %v5347 = vmul.f32 %v5251, %v5251
      %v5348 = vmul.f32 %v5252, %v5252
      %v5349 = vmul.f32 %v5253, %v5253
      %v5350 = vmul.f32 %v5254, %v5254
      %v5351 = vadd.f32 %v5335, %v5336
      %v5352 = vrot.slane %v5351, 4
      %v5353 = vadd.f32 %v5351, %v5352
      %v5354 = vrot.slane %v5353, 2
      %v5355 = vadd.f32 %v5353, %v5354
      %v5356 = vrot.slane %v5355, 1
      %v5357 = vadd.f32 %v5355, %v5356
      %v5358 = vadd.f32 %v5337, %v5338
      %v5359 = vrot.slane %v5358, 4
      %v5360 = vadd.f32 %v5358, %v5359
      %v5361 = vrot.slane %v5360, 2
      %v5362 = vadd.f32 %v5360, %v5361
      %v5363 = vrot.slane %v5362, 1
      %v5364 = vadd.f32 %v5362, %v5363
      %v5365 = vadd.f32 %v5339, %v5340
      %v5366 = vrot.slane %v5365, 4
      %v5367 = vadd.f32 %v5365, %v5366
      %v5368 = vrot.slane %v5367, 2
      %v5369 = vadd.f32 %v5367, %v5368
      %v5370 = vrot.slane %v5369, 1
      %v5371 = vadd.f32 %v5369, %v5370
      %v5372 = vadd.f32 %v5341, %v5342
      %v5373 = vrot.slane %v5372, 4
      %v5374 = vadd.f32 %v5372, %v5373
      %v5375 = vrot.slane %v5374, 2
      %v5376 = vadd.f32 %v5374, %v5375
      %v5377 = vrot.slane %v5376, 1
      %v5378 = vadd.f32 %v5376, %v5377
      %v5379 = vadd.f32 %v5343, %v5344
      %v5380 = vrot.slane %v5379, 4
      %v5381 = vadd.f32 %v5379, %v5380
      %v5382 = vrot.slane %v5381, 2
      %v5383 = vadd.f32 %v5381, %v5382
      %v5384 = vrot.slane %v5383, 1
      %v5385 = vadd.f32 %v5383, %v5384
      %v5386 = vadd.f32 %v5345, %v5346
      %v5387 = vrot.slane %v5386, 4
      %v5388 = vadd.f32 %v5386, %v5387
      %v5389 = vrot.slane %v5388, 2
      %v5390 = vadd.f32 %v5388, %v5389
      %v5391 = vrot.slane %v5390, 1
      %v5392 = vadd.f32 %v5390, %v5391
      %v5393 = vadd.f32 %v5347, %v5348
      %v5394 = vrot.slane %v5393, 4
      %v5395 = vadd.f32 %v5393, %v5394
      %v5396 = vrot.slane %v5395, 2
      %v5397 = vadd.f32 %v5395, %v5396
      %v5398 = vrot.slane %v5397, 1
      %v5399 = vadd.f32 %v5397, %v5398
      %v5400 = vadd.f32 %v5349, %v5350
      %v5401 = vrot.slane %v5400, 4
      %v5402 = vadd.f32 %v5400, %v5401
      %v5403 = vrot.slane %v5402, 2
      %v5404 = vadd.f32 %v5402, %v5403
      %v5405 = vrot.slane %v5404, 1
      %v5406 = vadd.f32 %v5404, %v5405
      %v5407 = vadd.f32 %v5357, 0.0
      %v5408 = vadd.f32 %v5364, 0.0
      %v5409 = vadd.f32 %v5371, 0.0
      %v5410 = vadd.f32 %v5378, 0.0
      %v5411 = vadd.f32 %v5385, 0.0
      %v5412 = vadd.f32 %v5392, 0.0
      %v5413 = vadd.f32 %v5399, 0.0
      %v5414 = vadd.f32 %v5406, 0.0
      %vm5423 = vcmask 1041409
      %v5424 = vsel %vm5423, %v5328, %v5327
      %vm5425 = vcmask 1042434
      %v5426 = vsel %vm5425, %v5329, %v5424
      %vm5427 = vcmask 1043459
      %v5428 = vsel %vm5427, %v5330, %v5426
      %vm5429 = vcmask 1044484
      %v5430 = vsel %vm5429, %v5331, %v5428
      %vm5431 = vcmask 1045509
      %v5432 = vsel %vm5431, %v5332, %v5430
      %vm5433 = vcmask 1046534
      %v5434 = vsel %vm5433, %v5333, %v5432
      %vm5435 = vcmask 1047559
      %v5436 = vsel %vm5435, %v5334, %v5434
      %5438 = vst [vmem:[%s424] sm:$0xff] %v5436
      %v5447 = vsel %vm5423, %v5408, %v5407
      %v5448 = vsel %vm5425, %v5409, %v5447
      %v5449 = vsel %vm5427, %v5410, %v5448
      %v5450 = vsel %vm5429, %v5411, %v5449
      %v5451 = vsel %vm5431, %v5412, %v5450
      %v5452 = vsel %vm5433, %v5413, %v5451
      %v5453 = vsel %vm5435, %v5414, %v5452
      %5455 = vst [vmem:[%s432] sm:$0xff] %v5453
      %s5456 = smul.u32 8, %s24
      %p5457 = scmp.lt.s32.totalorder %s23, 1
      %s5458 = scalar_select %p5457, %s23, 1
      %p5459 = scmp.lt.s32.totalorder %s5456, 15
      %s5460 = scalar_select %p5459, %s5456, 15
      %s5461 = smul.addr %s5460, 2
      %s5462 = smul.addr %s5458, 32
      %s5463 = sadd.s32 %s5461, %s5462
      %s5464 = smul.addr %s5463, 8
      %s5465 = scalar_lea.vmem %s4, %s5464
      %s5466 = smul.u32 8, %s24
      %p5467 = scmp.lt.s32.totalorder %s23, 1
      %s5468 = scalar_select %p5467, %s23, 1
      %p5469 = scmp.lt.s32.totalorder %s5466, 15
      %s5470 = scalar_select %p5469, %s5466, 15
      %s5471 = smul.addr %s5470, 2
      %s5472 = smul.addr %s5468, 32
      %s5473 = sadd.s32 %s5471, %s5472
      %s5474 = smul.addr %s5473, 8
      %s5475 = scalar_lea.vmem %s5, %s5474
      %s5476 = smul.u32 %s23, 2
      %s5477 = sadd.s32 %s5476, %s24
      %p5478 = scmp.lt.s32.totalorder %s5477, 3
      %s5479 = scalar_select %p5478, %s5477, 3
      %s5480 = smul.addr %s5479, 8
      %s5481 = scalar_lea.vmem %s6, %s5480
      %s5482 = smul.u32 %s23, 2
      %s5483 = sadd.s32 %s5482, %s24
      %p5484 = scmp.lt.s32.totalorder %s5483, 3
      %s5485 = scalar_select %p5484, %s5483, 3
      %s5486 = smul.addr %s5485, 8
      %s5487 = scalar_lea.vmem %s7, %s5486
      // Predicated region
      $region37: #{convmixer_subblock.2} parent=35 // pred_check
        %p5488 = pneg %p151
      $region38: #{convmixer_subblock.2} parent=35 // pred_check_branch
        %5490 = sbr.rel (%p5488) target = $region40
      $region39: #{convmixer_subblock.2} parent=35 // pred_region
        %s5491 = smul.u32 8, %s24
      $region40: #{convmixer_subblock.2} parent=35 // pred_fallthru
        _
      // Predicated region
      $region41: #{convmixer_subblock.2} parent=35 // pred_check
        %p5492 = pneg %p179
      $region42: #{convmixer_subblock.2} parent=35 // pred_check_branch
        %5494 = sbr.rel (%p5492) target = $region44
      $region43: #{convmixer_subblock.2} parent=35 // pred_region
        %s5495 = smul.u32 8, %s24
      $region44: #{convmixer_subblock.2} parent=35 // pred_fallthru
        _
      // Predicated region
      $region45: #{convmixer_subblock.2} parent=35 // pred_check
        %p5496 = pneg %p209
      $region46: #{convmixer_subblock.2} parent=35 // pred_check_branch
        %5498 = sbr.rel (%p5496) target = $region48
      $region47: #{convmixer_subblock.2} parent=35 // pred_region
        %s5499 = smul.u32 %s23, 2
        %s5500 = sadd.s32 %s5499, %s24
      $region48: #{convmixer_subblock.2} parent=35 // pred_fallthru
        _
      // Predicated region
      $region49: #{convmixer_subblock.2} parent=35 // pred_check
        %p5501 = pneg %p239
      $region50: #{convmixer_subblock.2} parent=35 // pred_check_branch
        %5503 = sbr.rel (%p5501) target = $region52
      $region51: #{convmixer_subblock.2} parent=35 // pred_region
        %s5504 = smul.u32 %s23, 2
        %s5505 = sadd.s32 %s5504, %s24
      $region52: #{convmixer_subblock.2} parent=35 // pred_fallthru
        _
    $region36: #{convmixer_subblock.2} parent=5 // pred_fallthru
      _
    %p5506 = scmp.le.s32.totalorder 2, %s14
    // Predicated region
    $region53: #{convmixer_subblock.2} parent=5 // pred_check
      %p5507 = pneg %p5506
    $region54: #{convmixer_subblock.2} parent=5 // pred_check_branch
      %5509 = sbr.rel (%p5507) target = $region56
    $region55: #{convmixer_subblock.2} parent=5 // pred_region
      %s5510 = ssub.s32 %s14, 2
      // Predicated region
      $region57: #{convmixer_subblock.2} parent=55 // pred_check
        %p5511 = pneg %p157
      $region58: #{convmixer_subblock.2} parent=55 // pred_check_branch
        %5513 = sbr.rel (%p5511) target = $region60
      $region59: #{convmixer_subblock.2} parent=55 // pred_region
        %s5514 = smul.u32 8, %s26
        %p5515 = scmp.lt.s32.totalorder %s25, 1
        %s5516 = scalar_select %p5515, %s25, 1
        %p5517 = scmp.lt.s32.totalorder %s5514, 15
        %s5518 = scalar_select %p5517, %s5514, 15
        %s5519 = smul.addr %s5518, 2
        %s5520 = smul.addr %s5516, 32
        %s5521 = sadd.s32 %s5519, %s5520
        %s5522 = smul.addr %s5521, 8
        %s5523 = scalar_lea.vmem %s4, %s5522
      $region60: #{convmixer_subblock.2} parent=55 // pred_fallthru
        _
      // Predicated region
      $region61: #{convmixer_subblock.2} parent=55 // pred_check
        %p5524 = pneg %p185
      $region62: #{convmixer_subblock.2} parent=55 // pred_check_branch
        %5526 = sbr.rel (%p5524) target = $region64
      $region63: #{convmixer_subblock.2} parent=55 // pred_region
        %s5527 = smul.u32 8, %s26
        %p5528 = scmp.lt.s32.totalorder %s25, 1
        %s5529 = scalar_select %p5528, %s25, 1
        %p5530 = scmp.lt.s32.totalorder %s5527, 15
        %s5531 = scalar_select %p5530, %s5527, 15
        %s5532 = smul.addr %s5531, 2
        %s5533 = smul.addr %s5529, 32
        %s5534 = sadd.s32 %s5532, %s5533
        %s5535 = smul.addr %s5534, 8
        %s5536 = scalar_lea.vmem %s5, %s5535
      $region64: #{convmixer_subblock.2} parent=55 // pred_fallthru
        _
      // Predicated region
      $region65: #{convmixer_subblock.2} parent=55 // pred_check
        %p5537 = pneg %p215
      $region66: #{convmixer_subblock.2} parent=55 // pred_check_branch
        %5539 = sbr.rel (%p5537) target = $region68
      $region67: #{convmixer_subblock.2} parent=55 // pred_region
        %s5540 = smul.u32 %s25, 2
        %s5541 = sadd.s32 %s5540, %s26
        %p5542 = scmp.lt.s32.totalorder %s5541, 3
        %s5543 = scalar_select %p5542, %s5541, 3
        %s5544 = smul.addr %s5543, 8
        %s5545 = scalar_lea.vmem %s6, %s5544
      $region68: #{convmixer_subblock.2} parent=55 // pred_fallthru
        _
      // Predicated region
      $region69: #{convmixer_subblock.2} parent=55 // pred_check
        %p5546 = pneg %p245
      $region70: #{convmixer_subblock.2} parent=55 // pred_check_branch
        %5548 = sbr.rel (%p5546) target = $region72
      $region71: #{convmixer_subblock.2} parent=55 // pred_region
        %s5549 = smul.u32 %s25, 2
        %s5550 = sadd.s32 %s5549, %s26
        %p5551 = scmp.lt.s32.totalorder %s5550, 3
        %s5552 = scalar_select %p5551, %s5550, 3
        %s5553 = smul.addr %s5552, 8
        %s5554 = scalar_lea.vmem %s7, %s5553
      $region72: #{convmixer_subblock.2} parent=55 // pred_fallthru
        _
    $region56: #{convmixer_subblock.2} parent=5 // pred_fallthru
      _
  $region6: #{convmixer_subblock.2} parent=0 // loop_footer
    %s18 = sadd.s32 1, %s14
  $region7: #{convmixer_subblock.2} parent=0 // loop_footer_branch
    %13 = sbr.rel target = $region3
  $region8: #{convmixer_subblock.2} parent=0 // loop_exit
    _

</llo_original>
